<compile_context>
chip_gen: v7x
topology: tpu7x:2x2x1
jax: 0.10.0
libtpu: 0.0.40
codegen_flags: <defaults>
</compile_context>

<pallas_src>
import functools

import jax
import jax.numpy as jnp
from jax.experimental import pallas as pl
from jax.experimental.pallas import tpu as pltpu

M = 19            # number of branches
M_PAD = 20        # padded to an even branch count (2 branches per grid step)
DIM = 768         # feature dim (forced in the torch module)
R = 2
D = DIM // R      # 384
BN_EPS = 1e-5     # PyTorch BatchNorm1d default eps


# ----------------------------- kernels ----------------------------------------------------------

def _branch_kernel(x_ref, fc1w_ref, fc1b_ref, bns_ref, bnsh_ref, fc2w_ref, fc2b_ref,
                   g_ref, wf_ref, wg_ref, bf_ref, logit_ref):
    # fea_z = fc(sum_i x_i), recomputed every step (cheap ~9 MFLOP, hidden under the weight DMA).
    # Recomputing keeps every grid step independent, so the branch axis stays "parallel".
    fea_u = jnp.sum(x_ref[...], axis=0)                                           # [B, DIM] f32
    h = jnp.dot(fea_u.astype(jnp.bfloat16), fc1w_ref[...],
                preferred_element_type=jnp.float32) + fc1b_ref[...]
    h = jnp.maximum(h, 0.0) * bns_ref[...] + bnsh_ref[...]                        # eval-mode BN
    fea_z = jnp.dot(h.astype(jnp.bfloat16), fc2w_ref[...],
                    preferred_element_type=jnp.float32) + fc2b_ref[...]           # [B, D]
    zb = fea_z.astype(jnp.bfloat16)

    # Two branches per grid step; fcs[i] is pre-folded into wf so each branch is two matmuls:
    #   logit_i = fea_z @ (fcs_w_i @ gfcs_w_i[:D]) + g_i @ gfcs_w_i[D:] + b_fold_i
    # (split matmuls avoid an in-kernel lane concat of [fea_z, g_i]; HBM traffic is identical)
    for j in range(2):
        gj = g_ref[j].astype(jnp.bfloat16)                                        # [B, DIM]
        logit_ref[j] = (
            jnp.dot(zb, wf_ref[j], preferred_element_type=jnp.float32)
            + jnp.dot(gj, wg_ref[j], preferred_element_type=jnp.float32)
            + bf_ref[j])                                                          # [B, DIM]


def _combine_kernel(x_ref, lg_ref, l1w_ref, l1b_ref, b1s_ref, b1sh_ref,
                    l2w_ref, l2b_ref, b2s_ref, b2sh_ref, l3w_ref, l3b_ref, out_ref):
    a = lg_ref[...]                                                               # [M, B, DIM]
    mx = jnp.max(a, axis=0, keepdims=True)
    e = jnp.exp(a - mx)
    attn = e * pl.reciprocal(jnp.sum(e, axis=0, keepdims=True), approx=False)     # softmax over M
    fea_v = jnp.sum(x_ref[...] * attn, axis=0)                                    # [B, DIM]
    h = jnp.maximum(
        jnp.dot(fea_v, l1w_ref[...], preferred_element_type=jnp.float32) + l1b_ref[...], 0.0)
    h = h * b1s_ref[...] + b1sh_ref[...]
    h = jnp.maximum(
        jnp.dot(h, l2w_ref[...], preferred_element_type=jnp.float32) + l2b_ref[...], 0.0)
    h = h * b2s_ref[...] + b2sh_ref[...]
    out_ref[...] = jnp.dot(h, l3w_ref[...], preferred_element_type=jnp.float32) + l3b_ref[...]


# ----------------------------- wrapper -----------------------------------------------------------

def forward(x, g, kp, *, num_class):
    """x, g : [bs, 19*768] float32  ->  [bs, num_class] float32 (kp = prepare_params output)."""
    bs = x.shape[0]
    B = max(8, ((bs + 7) // 8) * 8)                   # pad batch to sublane multiple (per-row ops,
    x3 = x.reshape(bs, M, DIM)                        # so zero-padded rows are harmless / sliced off)
    g3 = g.reshape(bs, M, DIM)
    if B != bs:
        pad = ((0, B - bs), (0, 0), (0, 0))
        x3 = jnp.pad(x3, pad)
        g3 = jnp.pad(g3, pad)
    xt = jnp.transpose(x3, (1, 0, 2))                                 # [M, B, DIM]
    gt = jnp.pad(jnp.transpose(g3, (1, 0, 2)),
                 ((0, M_PAD - M), (0, 0), (0, 0)))                    # [M_PAD, B, DIM]

    h1 = kp["l1_w"].shape[1]
    h2 = kp["l2_w"].shape[1]
    nc_pad = kp["l3_w"].shape[1]

    const2 = lambda s: (0, 0)
    const3 = lambda s: (0, 0, 0)

    # --- per-branch attention logits (dominant kernel: streams the folded bf16 branch weights) ---
    logits = pl.pallas_call(
        _branch_kernel,
        out_shape=jax.ShapeDtypeStruct((M_PAD, B, DIM), jnp.float32),
        grid=(M_PAD // 2,),
        in_specs=[
            pl.BlockSpec((M, B, DIM), const3),                 # x (resident, all branches)
            pl.BlockSpec((DIM, D), const2),                    # fc1_w (bf16, resident)
            pl.BlockSpec((1, D), const2),                      # fc1_b
            pl.BlockSpec((1, D), const2),                      # fc BN scale
            pl.BlockSpec((1, D), const2),                      # fc BN shift
            pl.BlockSpec((D, D), const2),                      # fc2_w (bf16, resident)
            pl.BlockSpec((1, D), const2),                      # fc2_b
            pl.BlockSpec((2, B, DIM), lambda s: (s, 0, 0)),    # g pair
            pl.BlockSpec((2, D, DIM), lambda s: (s, 0, 0)),    # folded fcs@gfcs weight pair (bf16)
            pl.BlockSpec((2, DIM, DIM), lambda s: (s, 0, 0)),  # gfcs g-part weight pair (bf16)
            pl.BlockSpec((2, 1, DIM), lambda s: (s, 0, 0)),    # folded bias pair
        ],
        out_specs=pl.BlockSpec((2, B, DIM), lambda s: (s, 0, 0)),
        compiler_params=pltpu.CompilerParams(
            dimension_semantics=("parallel",),                 # disjoint outputs -> v7x 2-TC shard
            vmem_limit_bytes=32 * 1024 * 1024),
    )(xt, kp["fc1_w"], kp["fc1_b"], kp["fc_bn_s"], kp["fc_bn_sh"], kp["fc2_w"], kp["fc2_b"],
      gt, kp["wfold"], kp["wg"], kp["bfold"])

    # --- softmax over branches, weighted sum, classifier MLP (lane-padded output) ----------------
    out = pl.pallas_call(
        _combine_kernel,
        out_shape=jax.ShapeDtypeStruct((B, nc_pad), jnp.float32),
        grid=(1,),
        in_specs=[
            pl.BlockSpec((M, B, DIM), const3),                 # x
            pl.BlockSpec((M, B, DIM), const3),                 # logits (pad branch never fetched)
            pl.BlockSpec((DIM, h1), const2),
            pl.BlockSpec((1, h1), const2),
            pl.BlockSpec((1, h1), const2),
            pl.BlockSpec((1, h1), const2),
            pl.BlockSpec((h1, h2), const2),
            pl.BlockSpec((1, h2), const2),
            pl.BlockSpec((1, h2), const2),
            pl.BlockSpec((1, h2), const2),
            pl.BlockSpec((h2, nc_pad), const2),
            pl.BlockSpec((1, nc_pad), const2),
        ],
        out_specs=pl.BlockSpec((B, nc_pad), const2),
        compiler_params=pltpu.CompilerParams(dimension_semantics=("arbitrary",)),
    )(xt, logits,
      kp["l1_w"], kp["l1_b"], kp["bn1_s"], kp["bn1_sh"],
      kp["l2_w"], kp["l2_b"], kp["bn2_s"], kp["bn2_sh"],
      kp["l3_w"], kp["l3_b"])

    return out[:bs, :num_class]


# ----------------------------- parameters --------------------------------------------------------

def init_params(key, num_class, gain=0.02):
    """Deterministic synthetic init (normal(0, gain) weights, zero bias, identity-stats BN)."""
    ks = jax.random.split(key, 8)

    def lin(k, fin, fout):
        return gain * jax.random.normal(k, (fin, fout), jnp.float32)

    bn_scale = 1.0 / jnp.sqrt(jnp.float32(1.0 + BN_EPS))   # gamma=1, running_var=1, mean=0, beta=0
    h1, h2 = (128, 32) if num_class < 30 else (256, 128)

    return {
        "fc1_w": lin(ks[0], DIM, D), "fc1_b": jnp.zeros((1, D), jnp.float32),
        "fc_bn_s": jnp.full((1, D), bn_scale, jnp.float32),
        "fc_bn_sh": jnp.zeros((1, D), jnp.float32),
        "fc2_w": lin(ks[1], D, D), "fc2_b": jnp.zeros((1, D), jnp.float32),
        "fcs_w": gain * jax.random.normal(ks[2], (M, D, D), jnp.float32),
        "fcs_b": jnp.zeros((M, 1, D), jnp.float32),
        "gfcs_w": gain * jax.random.normal(ks[3], (M, DIM + D, DIM), jnp.float32),
        "gfcs_b": jnp.zeros((M, 1, DIM), jnp.float32),
        "l1_w": lin(ks[4], DIM, h1), "l1_b": jnp.zeros((1, h1), jnp.float32),
        "bn1_s": jnp.full((1, h1), bn_scale, jnp.float32),
        "bn1_sh": jnp.zeros((1, h1), jnp.float32),
        "l2_w": lin(ks[5], h1, h2), "l2_b": jnp.zeros((1, h2), jnp.float32),
        "bn2_s": jnp.full((1, h2), bn_scale, jnp.float32),
        "bn2_sh": jnp.zeros((1, h2), jnp.float32),
        "l3_w": lin(ks[6], h2, num_class), "l3_b": jnp.zeros((1, num_class), jnp.float32),
    }


def prepare_params(p):
    """One-time (outside jit) conversion of raw params into the kernel streaming layout:
    fold fcs into g_fcs, cast the streamed weights to bf16, pad branch axis to M_PAD and
    lane-pad the classifier output."""
    wg_lo = p["gfcs_w"][:, :D, :]                                           # acts on fcs output
    wg_hi = p["gfcs_w"][:, D:, :]                                           # acts on g
    wfold = jnp.einsum("mij,mjk->mik", p["fcs_w"], wg_lo)                   # [M, D, DIM]
    bfold = jnp.einsum("mij,mjk->mik", p["fcs_b"], wg_lo) + p["gfcs_b"]     # [M, 1, DIM]

    def pad_m(a):
        return jnp.pad(a, ((0, M_PAD - M),) + ((0, 0),) * (a.ndim - 1))

    num_class = p["l3_w"].shape[1]
    nc_pad = max(128, ((num_class + 127) // 128) * 128)

    return {
        "fc1_w": p["fc1_w"].astype(jnp.bfloat16), "fc1_b": p["fc1_b"],
        "fc_bn_s": p["fc_bn_s"], "fc_bn_sh": p["fc_bn_sh"],
        "fc2_w": p["fc2_w"].astype(jnp.bfloat16), "fc2_b": p["fc2_b"],
        "wfold": pad_m(wfold).astype(jnp.bfloat16),
        "wg": pad_m(wg_hi).astype(jnp.bfloat16),
        "bfold": pad_m(bfold).astype(jnp.float32),
        "l1_w": p["l1_w"], "l1_b": p["l1_b"], "bn1_s": p["bn1_s"], "bn1_sh": p["bn1_sh"],
        "l2_w": p["l2_w"], "l2_b": p["l2_b"], "bn2_s": p["bn2_s"], "bn2_sh": p["bn2_sh"],
        "l3_w": jnp.pad(p["l3_w"], ((0, 0), (0, nc_pad - num_class))),
        "l3_b": jnp.pad(p["l3_b"], ((0, 0), (0, nc_pad - num_class))),
    }


# ----------------------------- pure-JAX reference (for verification) -----------------------------

def reference(x, g, p):
    bs = x.shape[0]
    x3 = x.reshape(bs, M, DIM)
    g3 = g.reshape(bs, M, DIM)
    fea_u = x3.sum(axis=1)
    h = jnp.maximum(fea_u @ p["fc1_w"] + p["fc1_b"], 0.0) * p["fc_bn_s"] + p["fc_bn_sh"]
    fea_z = h @ p["fc2_w"] + p["fc2_b"]
    logits = []
    for i in range(M):
        v = fea_z @ p["fcs_w"][i] + p["fcs_b"][i, 0]
        cat = jnp.concatenate([v, g3[:, i, :]], axis=1)
        logits.append(cat @ p["gfcs_w"][i] + p["gfcs_b"][i, 0])
    logits = jnp.stack(logits, axis=1)
    attn = jax.nn.softmax(logits, axis=1)
    fea_v = (x3 * attn).sum(axis=1)
    h = jnp.maximum(fea_v @ p["l1_w"] + p["l1_b"], 0.0) * p["bn1_s"] + p["bn1_sh"]
    h = jnp.maximum(h @ p["l2_w"] + p["l2_b"], 0.0) * p["bn2_s"] + p["bn2_sh"]
    return h @ p["l3_w"] + p["l3_b"]


# ----------------------------- main ---------------------------------------------------------------

if __name__ == "__main__":
    key = jax.random.PRNGKey(0)
    kx, kg, kparam = jax.random.split(key, 3)

    num_class = 10          # < 30 -> the (768 -> 128 -> 32 -> num_class) classifier branch
    bs = 8
    x = jax.random.normal(kx, (bs, M * DIM), jnp.float32)   # [8, 14592]
    g = jax.random.normal(kg, (bs, M * DIM), jnp.float32)   # [8, 14592]

    raw_params = init_params(kparam, num_class)
    kernel_params = prepare_params(raw_params)              # one-time fold / bf16 / pad

    run = jax.jit(functools.partial(forward, num_class=num_class))
    out = jax.block_until_ready(run(x, g, kernel_params))
    assert out.shape == (bs, num_class), out.shape

    ref = reference(x, g, raw_params)
    max_err = float(jnp.max(jnp.abs(out - ref)))
    if not jnp.allclose(out, ref, atol=5e-3, rtol=5e-3):
        raise AssertionError(f"kernel/reference mismatch, max abs err = {max_err}")

    print("KERNEL_OK")
</pallas_src>

<mosaic_0001>
module attributes {stable_mosaic.version = 11 : i64} {
  func.func @_branch_kernel(%arg0: i32, %arg1: memref<19x8x768xf32, #tpu.memory_space<vmem>>, %arg2: memref<768x384xbf16, #tpu.memory_space<vmem>>, %arg3: memref<1x384xf32, #tpu.memory_space<vmem>>, %arg4: memref<1x384xf32, #tpu.memory_space<vmem>>, %arg5: memref<1x384xf32, #tpu.memory_space<vmem>>, %arg6: memref<384x384xbf16, #tpu.memory_space<vmem>>, %arg7: memref<1x384xf32, #tpu.memory_space<vmem>>, %arg8: memref<2x8x768xf32, #tpu.memory_space<vmem>>, %arg9: memref<2x384x768xbf16, #tpu.memory_space<vmem>>, %arg10: memref<2x768x768xbf16, #tpu.memory_space<vmem>>, %arg11: memref<2x1x768xf32, #tpu.memory_space<vmem>>, %arg12: memref<2x8x768xf32, #tpu.memory_space<vmem>>) attributes {dimension_semantics = [#tpu.dimension_semantics<parallel>], iteration_bounds = array<i64: 10>, scalar_prefetch = 0 : i64, scratch_operands = 0 : i64, tpu.core_type = #tpu.core_type<tc>, window_params = [{pipeline_mode = #tpu.pipeline_mode<synchronous>, transform_indices = @transform_0, window_bounds = array<i64: 19, 8, 768>}, {pipeline_mode = #tpu.pipeline_mode<synchronous>, transform_indices = @transform_1, window_bounds = array<i64: 768, 384>}, {pipeline_mode = #tpu.pipeline_mode<synchronous>, transform_indices = @transform_2, window_bounds = array<i64: 1, 384>}, {pipeline_mode = #tpu.pipeline_mode<synchronous>, transform_indices = @transform_3, window_bounds = array<i64: 1, 384>}, {pipeline_mode = #tpu.pipeline_mode<synchronous>, transform_indices = @transform_4, window_bounds = array<i64: 1, 384>}, {pipeline_mode = #tpu.pipeline_mode<synchronous>, transform_indices = @transform_5, window_bounds = array<i64: 384, 384>}, {pipeline_mode = #tpu.pipeline_mode<synchronous>, transform_indices = @transform_6, window_bounds = array<i64: 1, 384>}, {transform_indices = @transform_7, window_bounds = array<i64: 2, 8, 768>}, {transform_indices = @transform_8, window_bounds = array<i64: 2, 384, 768>}, {transform_indices = @transform_9, window_bounds = array<i64: 2, 768, 768>}, {transform_indices = @transform_10, window_bounds = array<i64: 2, 1, 768>}, {transform_indices = @transform_11, window_bounds = array<i64: 2, 8, 768>}]} {
    %c0 = arith.constant 0 : index
    %c0_0 = arith.constant 0 : index
    %c0_1 = arith.constant 0 : index
    %0 = vector.load %arg1[%c0, %c0_0, %c0_1] : memref<19x8x768xf32, #tpu.memory_space<vmem>>, vector<19x8x768xf32>
    %cst = arith.constant dense<0.000000e+00> : vector<8x768xf32>
    %1 = vector.multi_reduction <add>, %0, %cst [0] : vector<19x8x768xf32> to vector<8x768xf32>
    %2 = arith.truncf %1 : vector<8x768xf32> to vector<8x768xbf16>
    %c0_2 = arith.constant 0 : index
    %c0_3 = arith.constant 0 : index
    %3 = vector.load %arg2[%c0_2, %c0_3] : memref<768x384xbf16, #tpu.memory_space<vmem>>, vector<768x384xbf16>
    %cst_4 = arith.constant dense<0.000000e+00> : vector<8x384xf32>
    %4 = tpu.matmul %2, %3, %cst_4 {dimension_numbers = #tpu.dot_dimension_numbers<[1], [0], [0], [1], [0, 0, 1, 1], [], []>} : vector<8x768xbf16>, vector<768x384xbf16>, vector<8x384xf32> -> vector<8x384xf32>
    %c0_5 = arith.constant 0 : index
    %c0_6 = arith.constant 0 : index
    %5 = vector.load %arg3[%c0_5, %c0_6] : memref<1x384xf32, #tpu.memory_space<vmem>>, vector<1x384xf32>
    %6 = vector.broadcast %5 : vector<1x384xf32> to vector<8x384xf32>
    %7 = arith.addf %4, %6 : vector<8x384xf32>
    %cst_7 = arith.constant 0.000000e+00 : f32
    %8 = vector.broadcast %cst_7 : f32 to vector<8x384xf32>
    %9 = arith.maximumf %7, %8 : vector<8x384xf32>
    %c0_8 = arith.constant 0 : index
    %c0_9 = arith.constant 0 : index
    %10 = vector.load %arg4[%c0_8, %c0_9] : memref<1x384xf32, #tpu.memory_space<vmem>>, vector<1x384xf32>
    %11 = vector.broadcast %10 : vector<1x384xf32> to vector<8x384xf32>
    %12 = arith.mulf %9, %11 : vector<8x384xf32>
    %c0_10 = arith.constant 0 : index
    %c0_11 = arith.constant 0 : index
    %13 = vector.load %arg5[%c0_10, %c0_11] : memref<1x384xf32, #tpu.memory_space<vmem>>, vector<1x384xf32>
    %14 = vector.broadcast %13 : vector<1x384xf32> to vector<8x384xf32>
    %15 = arith.addf %12, %14 : vector<8x384xf32>
    %16 = arith.truncf %15 : vector<8x384xf32> to vector<8x384xbf16>
    %c0_12 = arith.constant 0 : index
    %c0_13 = arith.constant 0 : index
    %17 = vector.load %arg6[%c0_12, %c0_13] : memref<384x384xbf16, #tpu.memory_space<vmem>>, vector<384x384xbf16>
    %cst_14 = arith.constant dense<0.000000e+00> : vector<8x384xf32>
    %18 = tpu.matmul %16, %17, %cst_14 {dimension_numbers = #tpu.dot_dimension_numbers<[1], [0], [0], [1], [0, 0, 1, 1], [], []>} : vector<8x384xbf16>, vector<384x384xbf16>, vector<8x384xf32> -> vector<8x384xf32>
    %c0_15 = arith.constant 0 : index
    %c0_16 = arith.constant 0 : index
    %19 = vector.load %arg7[%c0_15, %c0_16] : memref<1x384xf32, #tpu.memory_space<vmem>>, vector<1x384xf32>
    %20 = vector.broadcast %19 : vector<1x384xf32> to vector<8x384xf32>
    %21 = arith.addf %18, %20 : vector<8x384xf32>
    %22 = arith.truncf %21 : vector<8x384xf32> to vector<8x384xbf16>
    %c0_17 = arith.constant 0 : index
    %c0_18 = arith.constant 0 : index
    %c0_19 = arith.constant 0 : index
    %23 = vector.load %arg8[%c0_17, %c0_18, %c0_19] : memref<2x8x768xf32, #tpu.memory_space<vmem>>, vector<1x8x768xf32>
    %24 = vector.shape_cast %23 : vector<1x8x768xf32> to vector<8x768xf32>
    %25 = arith.truncf %24 : vector<8x768xf32> to vector<8x768xbf16>
    %c0_20 = arith.constant 0 : index
    %c0_21 = arith.constant 0 : index
    %c0_22 = arith.constant 0 : index
    %26 = vector.load %arg9[%c0_20, %c0_21, %c0_22] : memref<2x384x768xbf16, #tpu.memory_space<vmem>>, vector<1x384x768xbf16>
    %27 = vector.shape_cast %26 : vector<1x384x768xbf16> to vector<384x768xbf16>
    %cst_23 = arith.constant dense<0.000000e+00> : vector<8x768xf32>
    %28 = tpu.matmul %22, %27, %cst_23 {dimension_numbers = #tpu.dot_dimension_numbers<[1], [0], [0], [1], [0, 0, 1, 1], [], []>} : vector<8x384xbf16>, vector<384x768xbf16>, vector<8x768xf32> -> vector<8x768xf32>
    %c0_24 = arith.constant 0 : index
    %c0_25 = arith.constant 0 : index
    %c0_26 = arith.constant 0 : index
    %29 = vector.load %arg10[%c0_24, %c0_25, %c0_26] : memref<2x768x768xbf16, #tpu.memory_space<vmem>>, vector<1x768x768xbf16>
    %30 = vector.shape_cast %29 : vector<1x768x768xbf16> to vector<768x768xbf16>
    %cst_27 = arith.constant dense<0.000000e+00> : vector<8x768xf32>
    %31 = tpu.matmul %25, %30, %cst_27 {dimension_numbers = #tpu.dot_dimension_numbers<[1], [0], [0], [1], [0, 0, 1, 1], [], []>} : vector<8x768xbf16>, vector<768x768xbf16>, vector<8x768xf32> -> vector<8x768xf32>
    %32 = arith.addf %28, %31 : vector<8x768xf32>
    %c0_28 = arith.constant 0 : index
    %c0_29 = arith.constant 0 : index
    %c0_30 = arith.constant 0 : index
    %33 = vector.load %arg11[%c0_28, %c0_29, %c0_30] : memref<2x1x768xf32, #tpu.memory_space<vmem>>, vector<1x1x768xf32>
    %34 = vector.shape_cast %33 : vector<1x1x768xf32> to vector<1x768xf32>
    %35 = vector.broadcast %34 : vector<1x768xf32> to vector<8x768xf32>
    %36 = arith.addf %32, %35 : vector<8x768xf32>
    %c0_31 = arith.constant 0 : index
    %c0_32 = arith.constant 0 : index
    %c0_33 = arith.constant 0 : index
    %37 = vector.load %arg12[%c0_31, %c0_32, %c0_33] : memref<2x8x768xf32, #tpu.memory_space<vmem>>, vector<1x8x768xf32>
    %38 = vector.shape_cast %37 : vector<1x8x768xf32> to vector<8x768xf32>
    %39 = vector.shape_cast %36 : vector<8x768xf32> to vector<1x8x768xf32>
    tpu.vector_store %arg12[%c0_31, %c0_32, %c0_33], %39 {strides = array<i32>} : memref<2x8x768xf32, #tpu.memory_space<vmem>>, vector<1x8x768xf32>,
    %c1 = arith.constant 1 : index
    %c0_34 = arith.constant 0 : index
    %c0_35 = arith.constant 0 : index
    %40 = vector.load %arg8[%c1, %c0_34, %c0_35] : memref<2x8x768xf32, #tpu.memory_space<vmem>>, vector<1x8x768xf32>
    %41 = vector.shape_cast %40 : vector<1x8x768xf32> to vector<8x768xf32>
    %42 = arith.truncf %41 : vector<8x768xf32> to vector<8x768xbf16>
    %c1_36 = arith.constant 1 : index
    %c0_37 = arith.constant 0 : index
    %c0_38 = arith.constant 0 : index
    %43 = vector.load %arg9[%c1_36, %c0_37, %c0_38] : memref<2x384x768xbf16, #tpu.memory_space<vmem>>, vector<1x384x768xbf16>
    %44 = vector.shape_cast %43 : vector<1x384x768xbf16> to vector<384x768xbf16>
    %cst_39 = arith.constant dense<0.000000e+00> : vector<8x768xf32>
    %45 = tpu.matmul %22, %44, %cst_39 {dimension_numbers = #tpu.dot_dimension_numbers<[1], [0], [0], [1], [0, 0, 1, 1], [], []>} : vector<8x384xbf16>, vector<384x768xbf16>, vector<8x768xf32> -> vector<8x768xf32>
    %c1_40 = arith.constant 1 : index
    %c0_41 = arith.constant 0 : index
    %c0_42 = arith.constant 0 : index
    %46 = vector.load %arg10[%c1_40, %c0_41, %c0_42] : memref<2x768x768xbf16, #tpu.memory_space<vmem>>, vector<1x768x768xbf16>
    %47 = vector.shape_cast %46 : vector<1x768x768xbf16> to vector<768x768xbf16>
    %cst_43 = arith.constant dense<0.000000e+00> : vector<8x768xf32>
    %48 = tpu.matmul %42, %47, %cst_43 {dimension_numbers = #tpu.dot_dimension_numbers<[1], [0], [0], [1], [0, 0, 1, 1], [], []>} : vector<8x768xbf16>, vector<768x768xbf16>, vector<8x768xf32> -> vector<8x768xf32>
    %49 = arith.addf %45, %48 : vector<8x768xf32>
    %c1_44 = arith.constant 1 : index
    %c0_45 = arith.constant 0 : index
    %c0_46 = arith.constant 0 : index
    %50 = vector.load %arg11[%c1_44, %c0_45, %c0_46] : memref<2x1x768xf32, #tpu.memory_space<vmem>>, vector<1x1x768xf32>
    %51 = vector.shape_cast %50 : vector<1x1x768xf32> to vector<1x768xf32>
    %52 = vector.broadcast %51 : vector<1x768xf32> to vector<8x768xf32>
    %53 = arith.addf %49, %52 : vector<8x768xf32>
    %c1_47 = arith.constant 1 : index
    %c0_48 = arith.constant 0 : index
    %c0_49 = arith.constant 0 : index
    %54 = vector.load %arg12[%c1_47, %c0_48, %c0_49] : memref<2x8x768xf32, #tpu.memory_space<vmem>>, vector<1x8x768xf32>
    %55 = vector.shape_cast %54 : vector<1x8x768xf32> to vector<8x768xf32>
    %56 = vector.shape_cast %53 : vector<8x768xf32> to vector<1x8x768xf32>
    tpu.vector_store %arg12[%c1_47, %c0_48, %c0_49], %56 {strides = array<i32>} : memref<2x8x768xf32, #tpu.memory_space<vmem>>, vector<1x8x768xf32>,
    return
  }
  func.func @transform_0(%arg0: i32) -> (i32, i32, i32) {
    %c0_i32 = arith.constant 0 : i32
    %c0_i32_0 = arith.constant 0 : i32
    %c0_i32_1 = arith.constant 0 : i32
    %c0_i32_2 = arith.constant 0 : i32
    return %c0_i32, %c0_i32_0, %c0_i32_1 : i32, i32, i32
  }
  func.func @transform_1(%arg0: i32) -> (i32, i32) {
    %c0_i32 = arith.constant 0 : i32
    %c0_i32_0 = arith.constant 0 : i32
    %c0_i32_1 = arith.constant 0 : i32
    return %c0_i32, %c0_i32_0 : i32, i32
  }
  func.func @transform_2(%arg0: i32) -> (i32, i32) {
    %c0_i32 = arith.constant 0 : i32
    %c0_i32_0 = arith.constant 0 : i32
    %c0_i32_1 = arith.constant 0 : i32
    return %c0_i32, %c0_i32_0 : i32, i32
  }
  func.func @transform_3(%arg0: i32) -> (i32, i32) {
    %c0_i32 = arith.constant 0 : i32
    %c0_i32_0 = arith.constant 0 : i32
    %c0_i32_1 = arith.constant 0 : i32
    return %c0_i32, %c0_i32_0 : i32, i32
  }
  func.func @transform_4(%arg0: i32) -> (i32, i32) {
    %c0_i32 = arith.constant 0 : i32
    %c0_i32_0 = arith.constant 0 : i32
    %c0_i32_1 = arith.constant 0 : i32
    return %c0_i32, %c0_i32_0 : i32, i32
  }
  func.func @transform_5(%arg0: i32) -> (i32, i32) {
    %c0_i32 = arith.constant 0 : i32
    %c0_i32_0 = arith.constant 0 : i32
    %c0_i32_1 = arith.constant 0 : i32
    return %c0_i32, %c0_i32_0 : i32, i32
  }
  func.func @transform_6(%arg0: i32) -> (i32, i32) {
    %c0_i32 = arith.constant 0 : i32
    %c0_i32_0 = arith.constant 0 : i32
    %c0_i32_1 = arith.constant 0 : i32
    return %c0_i32, %c0_i32_0 : i32, i32
  }
  func.func @transform_7(%arg0: i32) -> (i32, i32, i32) {
    %c0_i32 = arith.constant 0 : i32
    %c0_i32_0 = arith.constant 0 : i32
    %c0_i32_1 = arith.constant 0 : i32
    return %arg0, %c0_i32, %c0_i32_0 : i32, i32, i32
  }
  func.func @transform_8(%arg0: i32) -> (i32, i32, i32) {
    %c0_i32 = arith.constant 0 : i32
    %c0_i32_0 = arith.constant 0 : i32
    %c0_i32_1 = arith.constant 0 : i32
    return %arg0, %c0_i32, %c0_i32_0 : i32, i32, i32
  }
  func.func @transform_9(%arg0: i32) -> (i32, i32, i32) {
    %c0_i32 = arith.constant 0 : i32
    %c0_i32_0 = arith.constant 0 : i32
    %c0_i32_1 = arith.constant 0 : i32
    return %arg0, %c0_i32, %c0_i32_0 : i32, i32, i32
  }
  func.func @transform_10(%arg0: i32) -> (i32, i32, i32) {
    %c0_i32 = arith.constant 0 : i32
    %c0_i32_0 = arith.constant 0 : i32
    %c0_i32_1 = arith.constant 0 : i32
    return %arg0, %c0_i32, %c0_i32_0 : i32, i32, i32
  }
  func.func @transform_11(%arg0: i32) -> (i32, i32, i32) {
    %c0_i32 = arith.constant 0 : i32
    %c0_i32_0 = arith.constant 0 : i32
    %c0_i32_1 = arith.constant 0 : i32
    return %arg0, %c0_i32, %c0_i32_0 : i32, i32, i32
  }
}

module attributes {stable_mosaic.version = 11 : i64} {
  func.func @_combine_kernel(%arg0: i32, %arg1: memref<19x8x768xf32, #tpu.memory_space<vmem>>, %arg2: memref<19x8x768xf32, #tpu.memory_space<vmem>>, %arg3: memref<768x128xf32, #tpu.memory_space<vmem>>, %arg4: memref<1x128xf32, #tpu.memory_space<vmem>>, %arg5: memref<1x128xf32, #tpu.memory_space<vmem>>, %arg6: memref<1x128xf32, #tpu.memory_space<vmem>>, %arg7: memref<128x32xf32, #tpu.memory_space<vmem>>, %arg8: memref<1x32xf32, #tpu.memory_space<vmem>>, %arg9: memref<1x32xf32, #tpu.memory_space<vmem>>, %arg10: memref<1x32xf32, #tpu.memory_space<vmem>>, %arg11: memref<32x128xf32, #tpu.memory_space<vmem>>, %arg12: memref<1x128xf32, #tpu.memory_space<vmem>>, %arg13: memref<8x128xf32, #tpu.memory_space<vmem>>) attributes {dimension_semantics = [#tpu.dimension_semantics<arbitrary>], iteration_bounds = array<i64: 1>, scalar_prefetch = 0 : i64, scratch_operands = 0 : i64, tpu.core_type = #tpu.core_type<tc>, window_params = [{pipeline_mode = #tpu.pipeline_mode<synchronous>, transform_indices = @transform_0, window_bounds = array<i64: 19, 8, 768>}, {transform_indices = @transform_1, window_bounds = array<i64: 19, 8, 768>}, {pipeline_mode = #tpu.pipeline_mode<synchronous>, transform_indices = @transform_2, window_bounds = array<i64: 768, 128>}, {pipeline_mode = #tpu.pipeline_mode<synchronous>, transform_indices = @transform_3, window_bounds = array<i64: 1, 128>}, {pipeline_mode = #tpu.pipeline_mode<synchronous>, transform_indices = @transform_4, window_bounds = array<i64: 1, 128>}, {pipeline_mode = #tpu.pipeline_mode<synchronous>, transform_indices = @transform_5, window_bounds = array<i64: 1, 128>}, {pipeline_mode = #tpu.pipeline_mode<synchronous>, transform_indices = @transform_6, window_bounds = array<i64: 128, 32>}, {pipeline_mode = #tpu.pipeline_mode<synchronous>, transform_indices = @transform_7, window_bounds = array<i64: 1, 32>}, {pipeline_mode = #tpu.pipeline_mode<synchronous>, transform_indices = @transform_8, window_bounds = array<i64: 1, 32>}, {pipeline_mode = #tpu.pipeline_mode<synchronous>, transform_indices = @transform_9, window_bounds = array<i64: 1, 32>}, {pipeline_mode = #tpu.pipeline_mode<synchronous>, transform_indices = @transform_10, window_bounds = array<i64: 32, 128>}, {pipeline_mode = #tpu.pipeline_mode<synchronous>, transform_indices = @transform_11, window_bounds = array<i64: 1, 128>}, {pipeline_mode = #tpu.pipeline_mode<synchronous>, transform_indices = @transform_12, window_bounds = array<i64: 8, 128>}]} {
    %c0 = arith.constant 0 : index
    %c0_0 = arith.constant 0 : index
    %c0_1 = arith.constant 0 : index
    %0 = vector.load %arg2[%c0, %c0_0, %c0_1] : memref<19x8x768xf32, #tpu.memory_space<vmem>>, vector<19x8x768xf32>
    %cst = arith.constant dense<0xFF800000> : vector<8x768xf32>
    %1 = vector.multi_reduction <maximumf>, %0, %cst [0] : vector<19x8x768xf32> to vector<8x768xf32>
    %2 = vector.shape_cast %1 : vector<8x768xf32> to vector<1x8x768xf32>
    %3 = vector.broadcast %2 : vector<1x8x768xf32> to vector<19x8x768xf32>
    %4 = arith.subf %0, %3 : vector<19x8x768xf32>
    %5 = math.exp %4 : vector<19x8x768xf32>
    %cst_2 = arith.constant dense<0.000000e+00> : vector<8x768xf32>
    %6 = vector.multi_reduction <add>, %5, %cst_2 [0] : vector<19x8x768xf32> to vector<8x768xf32>
    %7 = vector.shape_cast %6 : vector<8x768xf32> to vector<1x8x768xf32>
    %8 = tpu.reciprocal %7 : vector<1x8x768xf32> -> vector<1x8x768xf32>
    %9 = vector.broadcast %8 : vector<1x8x768xf32> to vector<19x8x768xf32>
    %10 = arith.mulf %5, %9 : vector<19x8x768xf32>
    %c0_3 = arith.constant 0 : index
    %c0_4 = arith.constant 0 : index
    %c0_5 = arith.constant 0 : index
    %11 = vector.load %arg1[%c0_3, %c0_4, %c0_5] : memref<19x8x768xf32, #tpu.memory_space<vmem>>, vector<19x8x768xf32>
    %12 = arith.mulf %11, %10 : vector<19x8x768xf32>
    %cst_6 = arith.constant dense<0.000000e+00> : vector<8x768xf32>
    %13 = vector.multi_reduction <add>, %12, %cst_6 [0] : vector<19x8x768xf32> to vector<8x768xf32>
    %c0_7 = arith.constant 0 : index
    %c0_8 = arith.constant 0 : index
    %14 = vector.load %arg3[%c0_7, %c0_8] : memref<768x128xf32, #tpu.memory_space<vmem>>, vector<768x128xf32>
    %cst_9 = arith.constant dense<0.000000e+00> : vector<8x128xf32>
    %15 = tpu.matmul %13, %14, %cst_9 {dimension_numbers = #tpu.dot_dimension_numbers<[1], [0], [0], [1], [0, 0, 1, 1], [], []>} : vector<8x768xf32>, vector<768x128xf32>, vector<8x128xf32> -> vector<8x128xf32>
    %c0_10 = arith.constant 0 : index
    %c0_11 = arith.constant 0 : index
    %16 = vector.load %arg4[%c0_10, %c0_11] : memref<1x128xf32, #tpu.memory_space<vmem>>, vector<1x128xf32>
    %17 = vector.broadcast %16 : vector<1x128xf32> to vector<8x128xf32>
    %18 = arith.addf %15, %17 : vector<8x128xf32>
    %cst_12 = arith.constant 0.000000e+00 : f32
    %19 = vector.broadcast %cst_12 : f32 to vector<8x128xf32>
    %20 = arith.maximumf %18, %19 : vector<8x128xf32>
    %c0_13 = arith.constant 0 : index
    %c0_14 = arith.constant 0 : index
    %21 = vector.load %arg5[%c0_13, %c0_14] : memref<1x128xf32, #tpu.memory_space<vmem>>, vector<1x128xf32>
    %22 = vector.broadcast %21 : vector<1x128xf32> to vector<8x128xf32>
    %23 = arith.mulf %20, %22 : vector<8x128xf32>
    %c0_15 = arith.constant 0 : index
    %c0_16 = arith.constant 0 : index
    %24 = vector.load %arg6[%c0_15, %c0_16] : memref<1x128xf32, #tpu.memory_space<vmem>>, vector<1x128xf32>
    %25 = vector.broadcast %24 : vector<1x128xf32> to vector<8x128xf32>
    %26 = arith.addf %23, %25 : vector<8x128xf32>
    %c0_17 = arith.constant 0 : index
    %c0_18 = arith.constant 0 : index
    %27 = vector.load %arg7[%c0_17, %c0_18] : memref<128x32xf32, #tpu.memory_space<vmem>>, vector<128x32xf32>
    %cst_19 = arith.constant dense<0.000000e+00> : vector<8x32xf32>
    %28 = tpu.matmul %26, %27, %cst_19 {dimension_numbers = #tpu.dot_dimension_numbers<[1], [0], [0], [1], [0, 0, 1, 1], [], []>} : vector<8x128xf32>, vector<128x32xf32>, vector<8x32xf32> -> vector<8x32xf32>
    %c0_20 = arith.constant 0 : index
    %c0_21 = arith.constant 0 : index
    %29 = vector.load %arg8[%c0_20, %c0_21] : memref<1x32xf32, #tpu.memory_space<vmem>>, vector<1x32xf32>
    %30 = vector.broadcast %29 : vector<1x32xf32> to vector<8x32xf32>
    %31 = arith.addf %28, %30 : vector<8x32xf32>
    %cst_22 = arith.constant 0.000000e+00 : f32
    %32 = vector.broadcast %cst_22 : f32 to vector<8x32xf32>
    %33 = arith.maximumf %31, %32 : vector<8x32xf32>
    %c0_23 = arith.constant 0 : index
    %c0_24 = arith.constant 0 : index
    %34 = vector.load %arg9[%c0_23, %c0_24] : memref<1x32xf32, #tpu.memory_space<vmem>>, vector<1x32xf32>
    %35 = vector.broadcast %34 : vector<1x32xf32> to vector<8x32xf32>
    %36 = arith.mulf %33, %35 : vector<8x32xf32>
    %c0_25 = arith.constant 0 : index
    %c0_26 = arith.constant 0 : index
    %37 = vector.load %arg10[%c0_25, %c0_26] : memref<1x32xf32, #tpu.memory_space<vmem>>, vector<1x32xf32>
    %38 = vector.broadcast %37 : vector<1x32xf32> to vector<8x32xf32>
    %39 = arith.addf %36, %38 : vector<8x32xf32>
    %c0_27 = arith.constant 0 : index
    %c0_28 = arith.constant 0 : index
    %40 = vector.load %arg11[%c0_27, %c0_28] : memref<32x128xf32, #tpu.memory_space<vmem>>, vector<32x128xf32>
    %cst_29 = arith.constant dense<0.000000e+00> : vector<8x128xf32>
    %41 = tpu.matmul %39, %40, %cst_29 {dimension_numbers = #tpu.dot_dimension_numbers<[1], [0], [0], [1], [0, 0, 1, 1], [], []>} : vector<8x32xf32>, vector<32x128xf32>, vector<8x128xf32> -> vector<8x128xf32>
    %c0_30 = arith.constant 0 : index
    %c0_31 = arith.constant 0 : index
    %42 = vector.load %arg12[%c0_30, %c0_31] : memref<1x128xf32, #tpu.memory_space<vmem>>, vector<1x128xf32>
    %43 = vector.broadcast %42 : vector<1x128xf32> to vector<8x128xf32>
    %44 = arith.addf %41, %43 : vector<8x128xf32>
    %c0_32 = arith.constant 0 : index
    %c0_33 = arith.constant 0 : index
    %45 = vector.load %arg13[%c0_32, %c0_33] : memref<8x128xf32, #tpu.memory_space<vmem>>, vector<8x128xf32>
    tpu.vector_store %arg13[%c0_32, %c0_33], %44 {strides = array<i32>} : memref<8x128xf32, #tpu.memory_space<vmem>>, vector<8x128xf32>,
    return
  }
  func.func @transform_0(%arg0: i32) -> (i32, i32, i32) {
    %c0_i32 = arith.constant 0 : i32
    %c0_i32_0 = arith.constant 0 : i32
    %c0_i32_1 = arith.constant 0 : i32
    %c0_i32_2 = arith.constant 0 : i32
    return %c0_i32, %c0_i32_0, %c0_i32_1 : i32, i32, i32
  }
  func.func @transform_1(%arg0: i32) -> (i32, i32, i32) {
    %c0_i32 = arith.constant 0 : i32
    %c0_i32_0 = arith.constant 0 : i32
    %c0_i32_1 = arith.constant 0 : i32
    %c0_i32_2 = arith.constant 0 : i32
    return %c0_i32, %c0_i32_0, %c0_i32_1 : i32, i32, i32
  }
  func.func @transform_2(%arg0: i32) -> (i32, i32) {
    %c0_i32 = arith.constant 0 : i32
    %c0_i32_0 = arith.constant 0 : i32
    %c0_i32_1 = arith.constant 0 : i32
    return %c0_i32, %c0_i32_0 : i32, i32
  }
  func.func @transform_3(%arg0: i32) -> (i32, i32) {
    %c0_i32 = arith.constant 0 : i32
    %c0_i32_0 = arith.constant 0 : i32
    %c0_i32_1 = arith.constant 0 : i32
    return %c0_i32, %c0_i32_0 : i32, i32
  }
  func.func @transform_4(%arg0: i32) -> (i32, i32) {
    %c0_i32 = arith.constant 0 : i32
    %c0_i32_0 = arith.constant 0 : i32
    %c0_i32_1 = arith.constant 0 : i32
    return %c0_i32, %c0_i32_0 : i32, i32
  }
  func.func @transform_5(%arg0: i32) -> (i32, i32) {
    %c0_i32 = arith.constant 0 : i32
    %c0_i32_0 = arith.constant 0 : i32
    %c0_i32_1 = arith.constant 0 : i32
    return %c0_i32, %c0_i32_0 : i32, i32
  }
  func.func @transform_6(%arg0: i32) -> (i32, i32) {
    %c0_i32 = arith.constant 0 : i32
    %c0_i32_0 = arith.constant 0 : i32
    %c0_i32_1 = arith.constant 0 : i32
    return %c0_i32, %c0_i32_0 : i32, i32
  }
  func.func @transform_7(%arg0: i32) -> (i32, i32) {
    %c0_i32 = arith.constant 0 : i32
    %c0_i32_0 = arith.constant 0 : i32
    %c0_i32_1 = arith.constant 0 : i32
    return %c0_i32, %c0_i32_0 : i32, i32
  }
  func.func @transform_8(%arg0: i32) -> (i32, i32) {
    %c0_i32 = arith.constant 0 : i32
    %c0_i32_0 = arith.constant 0 : i32
    %c0_i32_1 = arith.constant 0 : i32
    return %c0_i32, %c0_i32_0 : i32, i32
  }
  func.func @transform_9(%arg0: i32) -> (i32, i32) {
    %c0_i32 = arith.constant 0 : i32
    %c0_i32_0 = arith.constant 0 : i32
    %c0_i32_1 = arith.constant 0 : i32
    return %c0_i32, %c0_i32_0 : i32, i32
  }
  func.func @transform_10(%arg0: i32) -> (i32, i32) {
    %c0_i32 = arith.constant 0 : i32
    %c0_i32_0 = arith.constant 0 : i32
    %c0_i32_1 = arith.constant 0 : i32
    return %c0_i32, %c0_i32_0 : i32, i32
  }
  func.func @transform_11(%arg0: i32) -> (i32, i32) {
    %c0_i32 = arith.constant 0 : i32
    %c0_i32_0 = arith.constant 0 : i32
    %c0_i32_1 = arith.constant 0 : i32
    return %c0_i32, %c0_i32_0 : i32, i32
  }
  func.func @transform_12(%arg0: i32) -> (i32, i32) {
    %c0_i32 = arith.constant 0 : i32
    %c0_i32_0 = arith.constant 0 : i32
    %c0_i32_1 = arith.constant 0 : i32
    return %c0_i32, %c0_i32_0 : i32, i32
  }
}

</mosaic_0001>

<llo_original>
// kernel: forward.3
$region0: #{forward.3}
  #allocation0 [shape = 'u32[]', space=smem, size = 0x4, offset = 0x4, fixed_abs, tag = 'smem constant byte address 0x4 - core index']
  #allocation1 [shape = 'u32[144,128]{1,0:T(1,128)}', space=vmem, size = 0x12000, scoped, tag = 'internal scratch']
  %s0 = inlined_call_operand.vmem [shape: f32[19,8,768], index: 0, kind: input, shape index: {}]
  %s1 = inlined_call_operand.vmem [shape: f32[20,8,768], index: 1, kind: input, shape index: {}]
  %s2 = inlined_call_operand.vmem [shape: f32[768,128], index: 2, kind: input, shape index: {}]
  %s3 = inlined_call_operand.vmem [shape: f32[1,128], index: 3, kind: input, shape index: {}]
  %s4 = inlined_call_operand.vmem [shape: f32[1,128], index: 4, kind: input, shape index: {}]
  %s5 = inlined_call_operand.vmem [shape: f32[1,128], index: 5, kind: input, shape index: {}]
  %s6 = inlined_call_operand.vmem [shape: f32[128,32], index: 6, kind: input, shape index: {}]
  %s7 = inlined_call_operand.vmem [shape: f32[1,32], index: 7, kind: input, shape index: {}]
  %s8 = inlined_call_operand.vmem [shape: f32[1,32], index: 8, kind: input, shape index: {}]
  %s9 = inlined_call_operand.vmem [shape: f32[1,32], index: 9, kind: input, shape index: {}]
  %s10 = inlined_call_operand.vmem [shape: f32[32,128], index: 10, kind: input, shape index: {}]
  %s11 = inlined_call_operand.vmem [shape: f32[1,128], index: 11, kind: input, shape index: {}]
  %s12 = inlined_call_operand.hbm [shape: f32[8,128], index: 12, kind: output, shape index: {}]
  %s13 = sld [smem:[#allocation0]]
  $region58: #{forward.3} parent=0
    _
  %s15 = ssub.s32 1, %s13
  %s16 = scalar_select 0, %s15, %s13
  $region1: #{forward.3} parent=0
    #allocation2 [shape = 'u8[4096]{0}', space=vmem, size = 0x1000, scoped, tag = 'output window, operand 0, single buffered']
    #allocation3 [shape = 's32[1]{0}', space=sflag, size = 0x4, scoped, tag = 'scoped memory for forward.3']
    %17 = vsyncpa [#allocation3], 0
    // Predicated region
    $region2: #{forward.3} parent=1 // pred_check
      _
    $region3: #{forward.3} parent=1 // pred_check_branch
      %19 = sbr.rel (0) target = $region5
    $region4: #{forward.3} parent=1 // pred_region
      _
    $region5: #{forward.3} parent=1 // pred_fallthru
      _
    // Predicated region
    $region6: #{forward.3} parent=1 // pred_check
      _
    $region7: #{forward.3} parent=1 // pred_check_branch
      %21 = sbr.rel (0) target = $region9
    $region8: #{forward.3} parent=1 // pred_region
      _
    $region9: #{forward.3} parent=1 // pred_fallthru
      _
    // Predicated region
    $region10: #{forward.3} parent=1 // pred_check
      _
    $region11: #{forward.3} parent=1 // pred_check_branch
      %23 = sbr.rel (0) target = $region13
    $region12: #{forward.3} parent=1 // pred_region
      _
    $region13: #{forward.3} parent=1 // pred_fallthru
      _
    // Predicated region
    $region14: #{forward.3} parent=1 // pred_check
      _
    $region15: #{forward.3} parent=1 // pred_check_branch
      %25 = sbr.rel (0) target = $region17
    $region16: #{forward.3} parent=1 // pred_region
      _
    $region17: #{forward.3} parent=1 // pred_fallthru
      _
    // Predicated region
    $region18: #{forward.3} parent=1 // pred_check
      _
    $region19: #{forward.3} parent=1 // pred_check_branch
      %27 = sbr.rel (0) target = $region21
    $region20: #{forward.3} parent=1 // pred_region
      _
    $region21: #{forward.3} parent=1 // pred_fallthru
      _
    // Predicated region
    $region22: #{forward.3} parent=1 // pred_check
      _
    $region23: #{forward.3} parent=1 // pred_check_branch
      %29 = sbr.rel (0) target = $region25
    $region24: #{forward.3} parent=1 // pred_region
      _
    $region25: #{forward.3} parent=1 // pred_fallthru
      _
    // Predicated region
    $region26: #{forward.3} parent=1 // pred_check
      _
    $region27: #{forward.3} parent=1 // pred_check_branch
      %31 = sbr.rel (0) target = $region29
    $region28: #{forward.3} parent=1 // pred_region
      _
    $region29: #{forward.3} parent=1 // pred_fallthru
      _
    // Predicated region
    $region30: #{forward.3} parent=1 // pred_check
      _
    $region31: #{forward.3} parent=1 // pred_check_branch
      %33 = sbr.rel (0) target = $region33
    $region32: #{forward.3} parent=1 // pred_region
      _
    $region33: #{forward.3} parent=1 // pred_fallthru
      _
    // Predicated region
    $region34: #{forward.3} parent=1 // pred_check
      _
    $region35: #{forward.3} parent=1 // pred_check_branch
      %35 = sbr.rel (0) target = $region37
    $region36: #{forward.3} parent=1 // pred_region
      _
    $region37: #{forward.3} parent=1 // pred_fallthru
      _
    // Predicated region
    $region38: #{forward.3} parent=1 // pred_check
      _
    $region39: #{forward.3} parent=1 // pred_check_branch
      %37 = sbr.rel (0) target = $region41
    $region40: #{forward.3} parent=1 // pred_region
      _
    $region41: #{forward.3} parent=1 // pred_fallthru
      _
    // Predicated region
    $region42: #{forward.3} parent=1 // pred_check
      _
    $region43: #{forward.3} parent=1 // pred_check_branch
      %39 = sbr.rel (0) target = $region45
    $region44: #{forward.3} parent=1 // pred_region
      _
    $region45: #{forward.3} parent=1 // pred_fallthru
      _
    // Predicated region
    $region46: #{forward.3} parent=1 // pred_check
      _
    $region47: #{forward.3} parent=1 // pred_check_branch
      %41 = sbr.rel (0) target = $region49
    $region48: #{forward.3} parent=1 // pred_region
      _
    $region49: #{forward.3} parent=1 // pred_fallthru
      _
    %v42 = vld [vmem:[%s1] sm:$0xff]
    %v43 = vld [vmem:[%s1 + $0x8] sm:$0xff]
    %v44 = vld [vmem:[%s1 + $0x10] sm:$0xff]
    %v45 = vld [vmem:[%s1 + $0x18] sm:$0xff]
    %v46 = vld [vmem:[%s1 + $0x20] sm:$0xff]
    %v47 = vld [vmem:[%s1 + $0x28] sm:$0xff]
    %v48 = vld [vmem:[%s1 + $0x30] sm:$0xff]
    %v49 = vld [vmem:[%s1 + $0x38] sm:$0xff]
    %v50 = vld [vmem:[%s1 + $0x40] sm:$0xff]
    %v51 = vld [vmem:[%s1 + $0x48] sm:$0xff]
    %v52 = vld [vmem:[%s1 + $0x50] sm:$0xff]
    %v53 = vld [vmem:[%s1 + $0x58] sm:$0xff]
    %v54 = vld [vmem:[%s1 + $0x60] sm:$0xff]
    %v55 = vld [vmem:[%s1 + $0x68] sm:$0xff]
    %v56 = vld [vmem:[%s1 + $0x70] sm:$0xff]
    %v57 = vld [vmem:[%s1 + $0x78] sm:$0xff]
    %v58 = vld [vmem:[%s1 + $0x80] sm:$0xff]
    %v59 = vld [vmem:[%s1 + $0x88] sm:$0xff]
    %v60 = vld [vmem:[%s1 + $0x90] sm:$0xff]
    %v61 = vld [vmem:[%s1 + $0x98] sm:$0xff]
    %v62 = vld [vmem:[%s1 + $0xa0] sm:$0xff]
    %v63 = vld [vmem:[%s1 + $0xa8] sm:$0xff]
    %v64 = vld [vmem:[%s1 + $0xb0] sm:$0xff]
    %v65 = vld [vmem:[%s1 + $0xb8] sm:$0xff]
    %v66 = vld [vmem:[%s1 + $0xc0] sm:$0xff]
    %v67 = vld [vmem:[%s1 + $0xc8] sm:$0xff]
    %v68 = vld [vmem:[%s1 + $0xd0] sm:$0xff]
    %v69 = vld [vmem:[%s1 + $0xd8] sm:$0xff]
    %v70 = vld [vmem:[%s1 + $0xe0] sm:$0xff]
    %v71 = vld [vmem:[%s1 + $0xe8] sm:$0xff]
    %v72 = vld [vmem:[%s1 + $0xf0] sm:$0xff]
    %v73 = vld [vmem:[%s1 + $0xf8] sm:$0xff]
    %v74 = vld [vmem:[%s1 + $0x100] sm:$0xff]
    %v75 = vld [vmem:[%s1 + $0x108] sm:$0xff]
    %v76 = vld [vmem:[%s1 + $0x110] sm:$0xff]
    %v77 = vld [vmem:[%s1 + $0x118] sm:$0xff]
    %v78 = vld [vmem:[%s1 + $0x120] sm:$0xff]
    %v79 = vld [vmem:[%s1 + $0x128] sm:$0xff]
    %v80 = vld [vmem:[%s1 + $0x130] sm:$0xff]
    %v81 = vld [vmem:[%s1 + $0x138] sm:$0xff]
    %v82 = vld [vmem:[%s1 + $0x140] sm:$0xff]
    %v83 = vld [vmem:[%s1 + $0x148] sm:$0xff]
    %v84 = vld [vmem:[%s1 + $0x150] sm:$0xff]
    %v85 = vld [vmem:[%s1 + $0x158] sm:$0xff]
    %v86 = vld [vmem:[%s1 + $0x160] sm:$0xff]
    %v87 = vld [vmem:[%s1 + $0x168] sm:$0xff]
    %v88 = vld [vmem:[%s1 + $0x170] sm:$0xff]
    %v89 = vld [vmem:[%s1 + $0x178] sm:$0xff]
    %v90 = vld [vmem:[%s1 + $0x180] sm:$0xff]
    %v91 = vld [vmem:[%s1 + $0x188] sm:$0xff]
    %v92 = vld [vmem:[%s1 + $0x190] sm:$0xff]
    %v93 = vld [vmem:[%s1 + $0x198] sm:$0xff]
    %v94 = vld [vmem:[%s1 + $0x1a0] sm:$0xff]
    %v95 = vld [vmem:[%s1 + $0x1a8] sm:$0xff]
    %v96 = vld [vmem:[%s1 + $0x1b0] sm:$0xff]
    %v97 = vld [vmem:[%s1 + $0x1b8] sm:$0xff]
    %v98 = vld [vmem:[%s1 + $0x1c0] sm:$0xff]
    %v99 = vld [vmem:[%s1 + $0x1c8] sm:$0xff]
    %v100 = vld [vmem:[%s1 + $0x1d0] sm:$0xff]
    %v101 = vld [vmem:[%s1 + $0x1d8] sm:$0xff]
    %v102 = vld [vmem:[%s1 + $0x1e0] sm:$0xff]
    %v103 = vld [vmem:[%s1 + $0x1e8] sm:$0xff]
    %v104 = vld [vmem:[%s1 + $0x1f0] sm:$0xff]
    %v105 = vld [vmem:[%s1 + $0x1f8] sm:$0xff]
    %v106 = vld [vmem:[%s1 + $0x200] sm:$0xff]
    %v107 = vld [vmem:[%s1 + $0x208] sm:$0xff]
    %v108 = vld [vmem:[%s1 + $0x210] sm:$0xff]
    %v109 = vld [vmem:[%s1 + $0x218] sm:$0xff]
    %v110 = vld [vmem:[%s1 + $0x220] sm:$0xff]
    %v111 = vld [vmem:[%s1 + $0x228] sm:$0xff]
    %v112 = vld [vmem:[%s1 + $0x230] sm:$0xff]
    %v113 = vld [vmem:[%s1 + $0x238] sm:$0xff]
    %v114 = vld [vmem:[%s1 + $0x240] sm:$0xff]
    %v115 = vld [vmem:[%s1 + $0x248] sm:$0xff]
    %v116 = vld [vmem:[%s1 + $0x250] sm:$0xff]
    %v117 = vld [vmem:[%s1 + $0x258] sm:$0xff]
    %v118 = vld [vmem:[%s1 + $0x260] sm:$0xff]
    %v119 = vld [vmem:[%s1 + $0x268] sm:$0xff]
    %v120 = vld [vmem:[%s1 + $0x270] sm:$0xff]
    %v121 = vld [vmem:[%s1 + $0x278] sm:$0xff]
    %v122 = vld [vmem:[%s1 + $0x280] sm:$0xff]
    %v123 = vld [vmem:[%s1 + $0x288] sm:$0xff]
    %v124 = vld [vmem:[%s1 + $0x290] sm:$0xff]
    %v125 = vld [vmem:[%s1 + $0x298] sm:$0xff]
    %v126 = vld [vmem:[%s1 + $0x2a0] sm:$0xff]
    %v127 = vld [vmem:[%s1 + $0x2a8] sm:$0xff]
    %v128 = vld [vmem:[%s1 + $0x2b0] sm:$0xff]
    %v129 = vld [vmem:[%s1 + $0x2b8] sm:$0xff]
    %v130 = vld [vmem:[%s1 + $0x2c0] sm:$0xff]
    %v131 = vld [vmem:[%s1 + $0x2c8] sm:$0xff]
    %v132 = vld [vmem:[%s1 + $0x2d0] sm:$0xff]
    %v133 = vld [vmem:[%s1 + $0x2d8] sm:$0xff]
    %v134 = vld [vmem:[%s1 + $0x2e0] sm:$0xff]
    %v135 = vld [vmem:[%s1 + $0x2e8] sm:$0xff]
    %v136 = vld [vmem:[%s1 + $0x2f0] sm:$0xff]
    %v137 = vld [vmem:[%s1 + $0x2f8] sm:$0xff]
    %v138 = vld [vmem:[%s1 + $0x300] sm:$0xff]
    %v139 = vld [vmem:[%s1 + $0x308] sm:$0xff]
    %v140 = vld [vmem:[%s1 + $0x310] sm:$0xff]
    %v141 = vld [vmem:[%s1 + $0x318] sm:$0xff]
    %v142 = vld [vmem:[%s1 + $0x320] sm:$0xff]
    %v143 = vld [vmem:[%s1 + $0x328] sm:$0xff]
    %v144 = vld [vmem:[%s1 + $0x330] sm:$0xff]
    %v145 = vld [vmem:[%s1 + $0x338] sm:$0xff]
    %v146 = vld [vmem:[%s1 + $0x340] sm:$0xff]
    %v147 = vld [vmem:[%s1 + $0x348] sm:$0xff]
    %v148 = vld [vmem:[%s1 + $0x350] sm:$0xff]
    %v149 = vld [vmem:[%s1 + $0x358] sm:$0xff]
    %v150 = vld [vmem:[%s1 + $0x360] sm:$0xff]
    %v151 = vld [vmem:[%s1 + $0x368] sm:$0xff]
    %v152 = vld [vmem:[%s1 + $0x370] sm:$0xff]
    %v153 = vld [vmem:[%s1 + $0x378] sm:$0xff]
    %v154 = vld [vmem:[%s1 + $0x380] sm:$0xff]
    %v155 = vld [vmem:[%s1 + $0x388] sm:$0xff]
    %v156 = vmax.f32 %v42, %v48
    %v157 = vmax.f32 %v156, %v54
    %v158 = vmax.f32 %v157, %v60
    %v159 = vmax.f32 %v158, %v66
    %v160 = vmax.f32 %v159, %v72
    %v161 = vmax.f32 %v160, %v78
    %v162 = vmax.f32 %v161, %v84
    %v163 = vmax.f32 %v162, %v90
    %v164 = vmax.f32 %v163, %v96
    %v165 = vmax.f32 %v164, %v102
    %v166 = vmax.f32 %v165, %v108
    %v167 = vmax.f32 %v166, %v114
    %v168 = vmax.f32 %v167, %v120
    %v169 = vmax.f32 %v168, %v126
    %v170 = vmax.f32 %v169, %v132
    %v171 = vmax.f32 %v170, %v138
    %v172 = vmax.f32 %v171, %v144
    %v173 = vmax.f32 %v172, %v150
    %v174 = vmax.f32 %v43, %v49
    %v175 = vmax.f32 %v174, %v55
    %v176 = vmax.f32 %v175, %v61
    %v177 = vmax.f32 %v176, %v67
    %v178 = vmax.f32 %v177, %v73
    %v179 = vmax.f32 %v178, %v79
    %v180 = vmax.f32 %v179, %v85
    %v181 = vmax.f32 %v180, %v91
    %v182 = vmax.f32 %v181, %v97
    %v183 = vmax.f32 %v182, %v103
    %v184 = vmax.f32 %v183, %v109
    %v185 = vmax.f32 %v184, %v115
    %v186 = vmax.f32 %v185, %v121
    %v187 = vmax.f32 %v186, %v127
    %v188 = vmax.f32 %v187, %v133
    %v189 = vmax.f32 %v188, %v139
    %v190 = vmax.f32 %v189, %v145
    %v191 = vmax.f32 %v190, %v151
    %v192 = vmax.f32 %v44, %v50
    %v193 = vmax.f32 %v192, %v56
    %v194 = vmax.f32 %v193, %v62
    %v195 = vmax.f32 %v194, %v68
    %v196 = vmax.f32 %v195, %v74
    %v197 = vmax.f32 %v196, %v80
    %v198 = vmax.f32 %v197, %v86
    %v199 = vmax.f32 %v198, %v92
    %v200 = vmax.f32 %v199, %v98
    %v201 = vmax.f32 %v200, %v104
    %v202 = vmax.f32 %v201, %v110
    %v203 = vmax.f32 %v202, %v116
    %v204 = vmax.f32 %v203, %v122
    %v205 = vmax.f32 %v204, %v128
    %v206 = vmax.f32 %v205, %v134
    %v207 = vmax.f32 %v206, %v140
    %v208 = vmax.f32 %v207, %v146
    %v209 = vmax.f32 %v208, %v152
    %v210 = vmax.f32 %v45, %v51
    %v211 = vmax.f32 %v210, %v57
    %v212 = vmax.f32 %v211, %v63
    %v213 = vmax.f32 %v212, %v69
    %v214 = vmax.f32 %v213, %v75
    %v215 = vmax.f32 %v214, %v81
    %v216 = vmax.f32 %v215, %v87
    %v217 = vmax.f32 %v216, %v93
    %v218 = vmax.f32 %v217, %v99
    %v219 = vmax.f32 %v218, %v105
    %v220 = vmax.f32 %v219, %v111
    %v221 = vmax.f32 %v220, %v117
    %v222 = vmax.f32 %v221, %v123
    %v223 = vmax.f32 %v222, %v129
    %v224 = vmax.f32 %v223, %v135
    %v225 = vmax.f32 %v224, %v141
    %v226 = vmax.f32 %v225, %v147
    %v227 = vmax.f32 %v226, %v153
    %v228 = vmax.f32 %v46, %v52
    %v229 = vmax.f32 %v228, %v58
    %v230 = vmax.f32 %v229, %v64
    %v231 = vmax.f32 %v230, %v70
    %v232 = vmax.f32 %v231, %v76
    %v233 = vmax.f32 %v232, %v82
    %v234 = vmax.f32 %v233, %v88
    %v235 = vmax.f32 %v234, %v94
    %v236 = vmax.f32 %v235, %v100
    %v237 = vmax.f32 %v236, %v106
    %v238 = vmax.f32 %v237, %v112
    %v239 = vmax.f32 %v238, %v118
    %v240 = vmax.f32 %v239, %v124
    %v241 = vmax.f32 %v240, %v130
    %v242 = vmax.f32 %v241, %v136
    %v243 = vmax.f32 %v242, %v142
    %v244 = vmax.f32 %v243, %v148
    %v245 = vmax.f32 %v244, %v154
    %v246 = vmax.f32 %v47, %v53
    %v247 = vmax.f32 %v246, %v59
    %v248 = vmax.f32 %v247, %v65
    %v249 = vmax.f32 %v248, %v71
    %v250 = vmax.f32 %v249, %v77
    %v251 = vmax.f32 %v250, %v83
    %v252 = vmax.f32 %v251, %v89
    %v253 = vmax.f32 %v252, %v95
    %v254 = vmax.f32 %v253, %v101
    %v255 = vmax.f32 %v254, %v107
    %v256 = vmax.f32 %v255, %v113
    %v257 = vmax.f32 %v256, %v119
    %v258 = vmax.f32 %v257, %v125
    %v259 = vmax.f32 %v258, %v131
    %v260 = vmax.f32 %v259, %v137
    %v261 = vmax.f32 %v260, %v143
    %v262 = vmax.f32 %v261, %v149
    %v263 = vmax.f32 %v262, %v155
    %v264 = vsub.f32 %v42, %v173
    %v265 = vsub.f32 %v43, %v191
    %v266 = vsub.f32 %v44, %v209
    %v267 = vsub.f32 %v45, %v227
    %v268 = vsub.f32 %v46, %v245
    %v269 = vsub.f32 %v47, %v263
    %v270 = vsub.f32 %v48, %v173
    %v271 = vsub.f32 %v49, %v191
    %v272 = vsub.f32 %v50, %v209
    %v273 = vsub.f32 %v51, %v227
    %v274 = vsub.f32 %v52, %v245
    %v275 = vsub.f32 %v53, %v263
    %v276 = vsub.f32 %v54, %v173
    %v277 = vsub.f32 %v55, %v191
    %v278 = vsub.f32 %v56, %v209
    %v279 = vsub.f32 %v57, %v227
    %v280 = vsub.f32 %v58, %v245
    %v281 = vsub.f32 %v59, %v263
    %v282 = vsub.f32 %v60, %v173
    %v283 = vsub.f32 %v61, %v191
    %v284 = vsub.f32 %v62, %v209
    %v285 = vsub.f32 %v63, %v227
    %v286 = vsub.f32 %v64, %v245
    %v287 = vsub.f32 %v65, %v263
    %v288 = vsub.f32 %v66, %v173
    %v289 = vsub.f32 %v67, %v191
    %v290 = vsub.f32 %v68, %v209
    %v291 = vsub.f32 %v69, %v227
    %v292 = vsub.f32 %v70, %v245
    %v293 = vsub.f32 %v71, %v263
    %v294 = vsub.f32 %v72, %v173
    %v295 = vsub.f32 %v73, %v191
    %v296 = vsub.f32 %v74, %v209
    %v297 = vsub.f32 %v75, %v227
    %v298 = vsub.f32 %v76, %v245
    %v299 = vsub.f32 %v77, %v263
    %v300 = vsub.f32 %v78, %v173
    %v301 = vsub.f32 %v79, %v191
    %v302 = vsub.f32 %v80, %v209
    %v303 = vsub.f32 %v81, %v227
    %v304 = vsub.f32 %v82, %v245
    %v305 = vsub.f32 %v83, %v263
    %v306 = vsub.f32 %v84, %v173
    %v307 = vsub.f32 %v85, %v191
    %v308 = vsub.f32 %v86, %v209
    %v309 = vsub.f32 %v87, %v227
    %v310 = vsub.f32 %v88, %v245
    %v311 = vsub.f32 %v89, %v263
    %v312 = vsub.f32 %v90, %v173
    %v313 = vsub.f32 %v91, %v191
    %v314 = vsub.f32 %v92, %v209
    %v315 = vsub.f32 %v93, %v227
    %v316 = vsub.f32 %v94, %v245
    %v317 = vsub.f32 %v95, %v263
    %v318 = vsub.f32 %v96, %v173
    %v319 = vsub.f32 %v97, %v191
    %v320 = vsub.f32 %v98, %v209
    %v321 = vsub.f32 %v99, %v227
    %v322 = vsub.f32 %v100, %v245
    %v323 = vsub.f32 %v101, %v263
    %v324 = vsub.f32 %v102, %v173
    %v325 = vsub.f32 %v103, %v191
    %v326 = vsub.f32 %v104, %v209
    %v327 = vsub.f32 %v105, %v227
    %v328 = vsub.f32 %v106, %v245
    %v329 = vsub.f32 %v107, %v263
    %v330 = vsub.f32 %v108, %v173
    %v331 = vsub.f32 %v109, %v191
    %v332 = vsub.f32 %v110, %v209
    %v333 = vsub.f32 %v111, %v227
    %v334 = vsub.f32 %v112, %v245
    %v335 = vsub.f32 %v113, %v263
    %v336 = vsub.f32 %v114, %v173
    %v337 = vsub.f32 %v115, %v191
    %v338 = vsub.f32 %v116, %v209
    %v339 = vsub.f32 %v117, %v227
    %v340 = vsub.f32 %v118, %v245
    %v341 = vsub.f32 %v119, %v263
    %v342 = vsub.f32 %v120, %v173
    %v343 = vsub.f32 %v121, %v191
    %v344 = vsub.f32 %v122, %v209
    %v345 = vsub.f32 %v123, %v227
    %v346 = vsub.f32 %v124, %v245
    %v347 = vsub.f32 %v125, %v263
    %v348 = vsub.f32 %v126, %v173
    %v349 = vsub.f32 %v127, %v191
    %v350 = vsub.f32 %v128, %v209
    %v351 = vsub.f32 %v129, %v227
    %v352 = vsub.f32 %v130, %v245
    %v353 = vsub.f32 %v131, %v263
    %v354 = vsub.f32 %v132, %v173
    %v355 = vsub.f32 %v133, %v191
    %v356 = vsub.f32 %v134, %v209
    %v357 = vsub.f32 %v135, %v227
    %v358 = vsub.f32 %v136, %v245
    %v359 = vsub.f32 %v137, %v263
    %v360 = vsub.f32 %v138, %v173
    %v361 = vsub.f32 %v139, %v191
    %v362 = vsub.f32 %v140, %v209
    %v363 = vsub.f32 %v141, %v227
    %v364 = vsub.f32 %v142, %v245
    %v365 = vsub.f32 %v143, %v263
    %v366 = vsub.f32 %v144, %v173
    %v367 = vsub.f32 %v145, %v191
    %v368 = vsub.f32 %v146, %v209
    %v369 = vsub.f32 %v147, %v227
    %v370 = vsub.f32 %v148, %v245
    %v371 = vsub.f32 %v149, %v263
    %v372 = vsub.f32 %v150, %v173
    %v373 = vsub.f32 %v151, %v191
    %v374 = vsub.f32 %v152, %v209
    %v375 = vsub.f32 %v153, %v227
    %v376 = vsub.f32 %v154, %v245
    %v377 = vsub.f32 %v155, %v263
    %v378 = vmul.f32 %v264, 1.442695
    %v379 = vpow.pop %v378
    %v380 = vmul.f32 %v265, 1.442695
    %v381 = vpow.pop %v380
    %v382 = vmul.f32 %v266, 1.442695
    %v383 = vpow.pop %v382
    %v384 = vmul.f32 %v267, 1.442695
    %v385 = vpow.pop %v384
    %v386 = vmul.f32 %v268, 1.442695
    %v387 = vpow.pop %v386
    %v388 = vmul.f32 %v269, 1.442695
    %v389 = vpow.pop %v388
    %v390 = vmul.f32 %v270, 1.442695
    %v391 = vpow.pop %v390
    %v392 = vmul.f32 %v271, 1.442695
    %v393 = vpow.pop %v392
    %v394 = vmul.f32 %v272, 1.442695
    %v395 = vpow.pop %v394
    %v396 = vmul.f32 %v273, 1.442695
    %v397 = vpow.pop %v396
    %v398 = vmul.f32 %v274, 1.442695
    %v399 = vpow.pop %v398
    %v400 = vmul.f32 %v275, 1.442695
    %v401 = vpow.pop %v400
    %v402 = vmul.f32 %v276, 1.442695
    %v403 = vpow.pop %v402
    %v404 = vmul.f32 %v277, 1.442695
    %v405 = vpow.pop %v404
    %v406 = vmul.f32 %v278, 1.442695
    %v407 = vpow.pop %v406
    %v408 = vmul.f32 %v279, 1.442695
    %v409 = vpow.pop %v408
    %v410 = vmul.f32 %v280, 1.442695
    %v411 = vpow.pop %v410
    %v412 = vmul.f32 %v281, 1.442695
    %v413 = vpow.pop %v412
    %v414 = vmul.f32 %v282, 1.442695
    %v415 = vpow.pop %v414
    %v416 = vmul.f32 %v283, 1.442695
    %v417 = vpow.pop %v416
    %v418 = vmul.f32 %v284, 1.442695
    %v419 = vpow.pop %v418
    %v420 = vmul.f32 %v285, 1.442695
    %v421 = vpow.pop %v420
    %v422 = vmul.f32 %v286, 1.442695
    %v423 = vpow.pop %v422
    %v424 = vmul.f32 %v287, 1.442695
    %v425 = vpow.pop %v424
    %v426 = vmul.f32 %v288, 1.442695
    %v427 = vpow.pop %v426
    %v428 = vmul.f32 %v289, 1.442695
    %v429 = vpow.pop %v428
    %v430 = vmul.f32 %v290, 1.442695
    %v431 = vpow.pop %v430
    %v432 = vmul.f32 %v291, 1.442695
    %v433 = vpow.pop %v432
    %v434 = vmul.f32 %v292, 1.442695
    %v435 = vpow.pop %v434
    %v436 = vmul.f32 %v293, 1.442695
    %v437 = vpow.pop %v436
    %v438 = vmul.f32 %v294, 1.442695
    %v439 = vpow.pop %v438
    %v440 = vmul.f32 %v295, 1.442695
    %v441 = vpow.pop %v440
    %v442 = vmul.f32 %v296, 1.442695
    %v443 = vpow.pop %v442
    %v444 = vmul.f32 %v297, 1.442695
    %v445 = vpow.pop %v444
    %v446 = vmul.f32 %v298, 1.442695
    %v447 = vpow.pop %v446
    %v448 = vmul.f32 %v299, 1.442695
    %v449 = vpow.pop %v448
    %v450 = vmul.f32 %v300, 1.442695
    %v451 = vpow.pop %v450
    %v452 = vmul.f32 %v301, 1.442695
    %v453 = vpow.pop %v452
    %v454 = vmul.f32 %v302, 1.442695
    %v455 = vpow.pop %v454
    %v456 = vmul.f32 %v303, 1.442695
    %v457 = vpow.pop %v456
    %v458 = vmul.f32 %v304, 1.442695
    %v459 = vpow.pop %v458
    %v460 = vmul.f32 %v305, 1.442695
    %v461 = vpow.pop %v460
    %v462 = vmul.f32 %v306, 1.442695
    %v463 = vpow.pop %v462
    %v464 = vmul.f32 %v307, 1.442695
    %v465 = vpow.pop %v464
    %v466 = vmul.f32 %v308, 1.442695
    %v467 = vpow.pop %v466
    %v468 = vmul.f32 %v309, 1.442695
    %v469 = vpow.pop %v468
    %v470 = vmul.f32 %v310, 1.442695
    %v471 = vpow.pop %v470
    %v472 = vmul.f32 %v311, 1.442695
    %v473 = vpow.pop %v472
    %v474 = vmul.f32 %v312, 1.442695
    %v475 = vpow.pop %v474
    %v476 = vmul.f32 %v313, 1.442695
    %v477 = vpow.pop %v476
    %v478 = vmul.f32 %v314, 1.442695
    %v479 = vpow.pop %v478
    %v480 = vmul.f32 %v315, 1.442695
    %v481 = vpow.pop %v480
    %v482 = vmul.f32 %v316, 1.442695
    %v483 = vpow.pop %v482
    %v484 = vmul.f32 %v317, 1.442695
    %v485 = vpow.pop %v484
    %v486 = vmul.f32 %v318, 1.442695
    %v487 = vpow.pop %v486
    %v488 = vmul.f32 %v319, 1.442695
    %v489 = vpow.pop %v488
    %v490 = vmul.f32 %v320, 1.442695
    %v491 = vpow.pop %v490
    %v492 = vmul.f32 %v321, 1.442695
    %v493 = vpow.pop %v492
    %v494 = vmul.f32 %v322, 1.442695
    %v495 = vpow.pop %v494
    %v496 = vmul.f32 %v323, 1.442695
    %v497 = vpow.pop %v496
    %v498 = vmul.f32 %v324, 1.442695
    %v499 = vpow.pop %v498
    %v500 = vmul.f32 %v325, 1.442695
    %v501 = vpow.pop %v500
    %v502 = vmul.f32 %v326, 1.442695
    %v503 = vpow.pop %v502
    %v504 = vmul.f32 %v327, 1.442695
    %v505 = vpow.pop %v504
    %v506 = vmul.f32 %v328, 1.442695
    %v507 = vpow.pop %v506
    %v508 = vmul.f32 %v329, 1.442695
    %v509 = vpow.pop %v508
    %v510 = vmul.f32 %v330, 1.442695
    %v511 = vpow.pop %v510
    %v512 = vmul.f32 %v331, 1.442695
    %v513 = vpow.pop %v512
    %v514 = vmul.f32 %v332, 1.442695
    %v515 = vpow.pop %v514
    %v516 = vmul.f32 %v333, 1.442695
    %v517 = vpow.pop %v516
    %v518 = vmul.f32 %v334, 1.442695
    %v519 = vpow.pop %v518
    %v520 = vmul.f32 %v335, 1.442695
    %v521 = vpow.pop %v520
    %v522 = vmul.f32 %v336, 1.442695
    %v523 = vpow.pop %v522
    %v524 = vmul.f32 %v337, 1.442695
    %v525 = vpow.pop %v524
    %v526 = vmul.f32 %v338, 1.442695
    %v527 = vpow.pop %v526
    %v528 = vmul.f32 %v339, 1.442695
    %v529 = vpow.pop %v528
    %v530 = vmul.f32 %v340, 1.442695
    %v531 = vpow.pop %v530
    %v532 = vmul.f32 %v341, 1.442695
    %v533 = vpow.pop %v532
    %v534 = vmul.f32 %v342, 1.442695
    %v535 = vpow.pop %v534
    %v536 = vmul.f32 %v343, 1.442695
    %v537 = vpow.pop %v536
    %v538 = vmul.f32 %v344, 1.442695
    %v539 = vpow.pop %v538
    %v540 = vmul.f32 %v345, 1.442695
    %v541 = vpow.pop %v540
    %v542 = vmul.f32 %v346, 1.442695
    %v543 = vpow.pop %v542
    %v544 = vmul.f32 %v347, 1.442695
    %v545 = vpow.pop %v544
    %v546 = vmul.f32 %v348, 1.442695
    %v547 = vpow.pop %v546
    %v548 = vmul.f32 %v349, 1.442695
    %v549 = vpow.pop %v548
    %v550 = vmul.f32 %v350, 1.442695
    %v551 = vpow.pop %v550
    %v552 = vmul.f32 %v351, 1.442695
    %v553 = vpow.pop %v552
    %v554 = vmul.f32 %v352, 1.442695
    %v555 = vpow.pop %v554
    %v556 = vmul.f32 %v353, 1.442695
    %v557 = vpow.pop %v556
    %v558 = vmul.f32 %v354, 1.442695
    %v559 = vpow.pop %v558
    %v560 = vmul.f32 %v355, 1.442695
    %v561 = vpow.pop %v560
    %v562 = vmul.f32 %v356, 1.442695
    %v563 = vpow.pop %v562
    %v564 = vmul.f32 %v357, 1.442695
    %v565 = vpow.pop %v564
    %v566 = vmul.f32 %v358, 1.442695
    %v567 = vpow.pop %v566
    %v568 = vmul.f32 %v359, 1.442695
    %v569 = vpow.pop %v568
    %v570 = vmul.f32 %v360, 1.442695
    %v571 = vpow.pop %v570
    %v572 = vmul.f32 %v361, 1.442695
    %v573 = vpow.pop %v572
    %v574 = vmul.f32 %v362, 1.442695
    %v575 = vpow.pop %v574
    %v576 = vmul.f32 %v363, 1.442695
    %v577 = vpow.pop %v576
    %v578 = vmul.f32 %v364, 1.442695
    %v579 = vpow.pop %v578
    %v580 = vmul.f32 %v365, 1.442695
    %v581 = vpow.pop %v580
    %v582 = vmul.f32 %v366, 1.442695
    %v583 = vpow.pop %v582
    %v584 = vmul.f32 %v367, 1.442695
    %v585 = vpow.pop %v584
    %v586 = vmul.f32 %v368, 1.442695
    %v587 = vpow.pop %v586
    %v588 = vmul.f32 %v369, 1.442695
    %v589 = vpow.pop %v588
    %v590 = vmul.f32 %v370, 1.442695
    %v591 = vpow.pop %v590
    %v592 = vmul.f32 %v371, 1.442695
    %v593 = vpow.pop %v592
    %v594 = vmul.f32 %v372, 1.442695
    %v595 = vpow.pop %v594
    %v596 = vmul.f32 %v373, 1.442695
    %v597 = vpow.pop %v596
    %v598 = vmul.f32 %v374, 1.442695
    %v599 = vpow.pop %v598
    %v600 = vmul.f32 %v375, 1.442695
    %v601 = vpow.pop %v600
    %v602 = vmul.f32 %v376, 1.442695
    %v603 = vpow.pop %v602
    %v604 = vmul.f32 %v377, 1.442695
    %v605 = vpow.pop %v604
    %v606 = vadd.f32 %v379, %v391
    %v607 = vadd.f32 %v606, %v403
    %v608 = vadd.f32 %v607, %v415
    %v609 = vadd.f32 %v608, %v427
    %v610 = vadd.f32 %v609, %v439
    %v611 = vadd.f32 %v610, %v451
    %v612 = vadd.f32 %v611, %v463
    %v613 = vadd.f32 %v612, %v475
    %v614 = vadd.f32 %v613, %v487
    %v615 = vadd.f32 %v614, %v499
    %v616 = vadd.f32 %v615, %v511
    %v617 = vadd.f32 %v616, %v523
    %v618 = vadd.f32 %v617, %v535
    %v619 = vadd.f32 %v618, %v547
    %v620 = vadd.f32 %v619, %v559
    %v621 = vadd.f32 %v620, %v571
    %v622 = vadd.f32 %v621, %v583
    %v623 = vadd.f32 %v622, %v595
    %v624 = vadd.f32 %v381, %v393
    %v625 = vadd.f32 %v624, %v405
    %v626 = vadd.f32 %v625, %v417
    %v627 = vadd.f32 %v626, %v429
    %v628 = vadd.f32 %v627, %v441
    %v629 = vadd.f32 %v628, %v453
    %v630 = vadd.f32 %v629, %v465
    %v631 = vadd.f32 %v630, %v477
    %v632 = vadd.f32 %v631, %v489
    %v633 = vadd.f32 %v632, %v501
    %v634 = vadd.f32 %v633, %v513
    %v635 = vadd.f32 %v634, %v525
    %v636 = vadd.f32 %v635, %v537
    %v637 = vadd.f32 %v636, %v549
    %v638 = vadd.f32 %v637, %v561
    %v639 = vadd.f32 %v638, %v573
    %v640 = vadd.f32 %v639, %v585
    %v641 = vadd.f32 %v640, %v597
    %v642 = vadd.f32 %v383, %v395
    %v643 = vadd.f32 %v642, %v407
    %v644 = vadd.f32 %v643, %v419
    %v645 = vadd.f32 %v644, %v431
    %v646 = vadd.f32 %v645, %v443
    %v647 = vadd.f32 %v646, %v455
    %v648 = vadd.f32 %v647, %v467
    %v649 = vadd.f32 %v648, %v479
    %v650 = vadd.f32 %v649, %v491
    %v651 = vadd.f32 %v650, %v503
    %v652 = vadd.f32 %v651, %v515
    %v653 = vadd.f32 %v652, %v527
    %v654 = vadd.f32 %v653, %v539
    %v655 = vadd.f32 %v654, %v551
    %v656 = vadd.f32 %v655, %v563
    %v657 = vadd.f32 %v656, %v575
    %v658 = vadd.f32 %v657, %v587
    %v659 = vadd.f32 %v658, %v599
    %v660 = vadd.f32 %v385, %v397
    %v661 = vadd.f32 %v660, %v409
    %v662 = vadd.f32 %v661, %v421
    %v663 = vadd.f32 %v662, %v433
    %v664 = vadd.f32 %v663, %v445
    %v665 = vadd.f32 %v664, %v457
    %v666 = vadd.f32 %v665, %v469
    %v667 = vadd.f32 %v666, %v481
    %v668 = vadd.f32 %v667, %v493
    %v669 = vadd.f32 %v668, %v505
    %v670 = vadd.f32 %v669, %v517
    %v671 = vadd.f32 %v670, %v529
    %v672 = vadd.f32 %v671, %v541
    %v673 = vadd.f32 %v672, %v553
    %v674 = vadd.f32 %v673, %v565
    %v675 = vadd.f32 %v674, %v577
    %v676 = vadd.f32 %v675, %v589
    %v677 = vadd.f32 %v676, %v601
    %v678 = vadd.f32 %v387, %v399
    %v679 = vadd.f32 %v678, %v411
    %v680 = vadd.f32 %v679, %v423
    %v681 = vadd.f32 %v680, %v435
    %v682 = vadd.f32 %v681, %v447
    %v683 = vadd.f32 %v682, %v459
    %v684 = vadd.f32 %v683, %v471
    %v685 = vadd.f32 %v684, %v483
    %v686 = vadd.f32 %v685, %v495
    %v687 = vadd.f32 %v686, %v507
    %v688 = vadd.f32 %v687, %v519
    %v689 = vadd.f32 %v688, %v531
    %v690 = vadd.f32 %v689, %v543
    %v691 = vadd.f32 %v690, %v555
    %v692 = vadd.f32 %v691, %v567
    %v693 = vadd.f32 %v692, %v579
    %v694 = vadd.f32 %v693, %v591
    %v695 = vadd.f32 %v694, %v603
    %v696 = vadd.f32 %v389, %v401
    %v697 = vadd.f32 %v696, %v413
    %v698 = vadd.f32 %v697, %v425
    %v699 = vadd.f32 %v698, %v437
    %v700 = vadd.f32 %v699, %v449
    %v701 = vadd.f32 %v700, %v461
    %v702 = vadd.f32 %v701, %v473
    %v703 = vadd.f32 %v702, %v485
    %v704 = vadd.f32 %v703, %v497
    %v705 = vadd.f32 %v704, %v509
    %v706 = vadd.f32 %v705, %v521
    %v707 = vadd.f32 %v706, %v533
    %v708 = vadd.f32 %v707, %v545
    %v709 = vadd.f32 %v708, %v557
    %v710 = vadd.f32 %v709, %v569
    %v711 = vadd.f32 %v710, %v581
    %v712 = vadd.f32 %v711, %v593
    %v713 = vadd.f32 %v712, %v605
    %v714 = vrcp.pop %v623
    %v715 = vrcp.pop %v641
    %v716 = vrcp.pop %v659
    %v717 = vrcp.pop %v677
    %v718 = vrcp.pop %v695
    %v719 = vrcp.pop %v713
    %v720 = vmul.f32 %v379, %v714
    %v721 = vmul.f32 %v381, %v715
    %v722 = vmul.f32 %v383, %v716
    %v723 = vmul.f32 %v385, %v717
    %v724 = vmul.f32 %v387, %v718
    %v725 = vmul.f32 %v389, %v719
    %v726 = vmul.f32 %v391, %v714
    %v727 = vmul.f32 %v393, %v715
    %v728 = vmul.f32 %v395, %v716
    %v729 = vmul.f32 %v397, %v717
    %v730 = vmul.f32 %v399, %v718
    %v731 = vmul.f32 %v401, %v719
    %v732 = vmul.f32 %v403, %v714
    %v733 = vmul.f32 %v405, %v715
    %v734 = vmul.f32 %v407, %v716
    %v735 = vmul.f32 %v409, %v717
    %v736 = vmul.f32 %v411, %v718
    %v737 = vmul.f32 %v413, %v719
    %v738 = vmul.f32 %v415, %v714
    %v739 = vmul.f32 %v417, %v715
    %v740 = vmul.f32 %v419, %v716
    %v741 = vmul.f32 %v421, %v717
    %v742 = vmul.f32 %v423, %v718
    %v743 = vmul.f32 %v425, %v719
    %v744 = vmul.f32 %v427, %v714
    %v745 = vmul.f32 %v429, %v715
    %v746 = vmul.f32 %v431, %v716
    %v747 = vmul.f32 %v433, %v717
    %v748 = vmul.f32 %v435, %v718
    %v749 = vmul.f32 %v437, %v719
    %v750 = vmul.f32 %v439, %v714
    %v751 = vmul.f32 %v441, %v715
    %v752 = vmul.f32 %v443, %v716
    %v753 = vmul.f32 %v445, %v717
    %v754 = vmul.f32 %v447, %v718
    %v755 = vmul.f32 %v449, %v719
    %v756 = vmul.f32 %v451, %v714
    %v757 = vmul.f32 %v453, %v715
    %v758 = vmul.f32 %v455, %v716
    %v759 = vmul.f32 %v457, %v717
    %v760 = vmul.f32 %v459, %v718
    %v761 = vmul.f32 %v461, %v719
    %v762 = vmul.f32 %v463, %v714
    %v763 = vmul.f32 %v465, %v715
    %v764 = vmul.f32 %v467, %v716
    %v765 = vmul.f32 %v469, %v717
    %v766 = vmul.f32 %v471, %v718
    %v767 = vmul.f32 %v473, %v719
    %v768 = vmul.f32 %v475, %v714
    %v769 = vmul.f32 %v477, %v715
    %v770 = vmul.f32 %v479, %v716
    %v771 = vmul.f32 %v481, %v717
    %v772 = vmul.f32 %v483, %v718
    %v773 = vmul.f32 %v485, %v719
    %v774 = vmul.f32 %v487, %v714
    %v775 = vmul.f32 %v489, %v715
    %v776 = vmul.f32 %v491, %v716
    %v777 = vmul.f32 %v493, %v717
    %v778 = vmul.f32 %v495, %v718
    %v779 = vmul.f32 %v497, %v719
    %v780 = vmul.f32 %v499, %v714
    %v781 = vmul.f32 %v501, %v715
    %v782 = vmul.f32 %v503, %v716
    %v783 = vmul.f32 %v505, %v717
    %v784 = vmul.f32 %v507, %v718
    %v785 = vmul.f32 %v509, %v719
    %v786 = vmul.f32 %v511, %v714
    %v787 = vmul.f32 %v513, %v715
    %v788 = vmul.f32 %v515, %v716
    %v789 = vmul.f32 %v517, %v717
    %v790 = vmul.f32 %v519, %v718
    %v791 = vmul.f32 %v521, %v719
    %v792 = vmul.f32 %v523, %v714
    %v793 = vmul.f32 %v525, %v715
    %v794 = vmul.f32 %v527, %v716
    %v795 = vmul.f32 %v529, %v717
    %v796 = vmul.f32 %v531, %v718
    %v797 = vmul.f32 %v533, %v719
    %v798 = vmul.f32 %v535, %v714
    %v799 = vmul.f32 %v537, %v715
    %v800 = vmul.f32 %v539, %v716
    %v801 = vmul.f32 %v541, %v717
    %v802 = vmul.f32 %v543, %v718
    %v803 = vmul.f32 %v545, %v719
    %v804 = vmul.f32 %v547, %v714
    %v805 = vmul.f32 %v549, %v715
    %v806 = vmul.f32 %v551, %v716
    %v807 = vmul.f32 %v553, %v717
    %v808 = vmul.f32 %v555, %v718
    %v809 = vmul.f32 %v557, %v719
    %v810 = vmul.f32 %v559, %v714
    %v811 = vmul.f32 %v561, %v715
    %v812 = vmul.f32 %v563, %v716
    %v813 = vmul.f32 %v565, %v717
    %v814 = vmul.f32 %v567, %v718
    %v815 = vmul.f32 %v569, %v719
    %v816 = vmul.f32 %v571, %v714
    %v817 = vmul.f32 %v573, %v715
    %v818 = vmul.f32 %v575, %v716
    %v819 = vmul.f32 %v577, %v717
    %v820 = vmul.f32 %v579, %v718
    %v821 = vmul.f32 %v581, %v719
    %v822 = vmul.f32 %v583, %v714
    %v823 = vmul.f32 %v585, %v715
    %v824 = vmul.f32 %v587, %v716
    %v825 = vmul.f32 %v589, %v717
    %v826 = vmul.f32 %v591, %v718
    %v827 = vmul.f32 %v593, %v719
    %v828 = vmul.f32 %v595, %v714
    %v829 = vmul.f32 %v597, %v715
    %v830 = vmul.f32 %v599, %v716
    %v831 = vmul.f32 %v601, %v717
    %v832 = vmul.f32 %v603, %v718
    %v833 = vmul.f32 %v605, %v719
    %v834 = vld [vmem:[%s0] sm:$0xff]
    %v835 = vld [vmem:[%s0 + $0x8] sm:$0xff]
    %v836 = vld [vmem:[%s0 + $0x10] sm:$0xff]
    %v837 = vld [vmem:[%s0 + $0x18] sm:$0xff]
    %v838 = vld [vmem:[%s0 + $0x20] sm:$0xff]
    %v839 = vld [vmem:[%s0 + $0x28] sm:$0xff]
    %v840 = vld [vmem:[%s0 + $0x30] sm:$0xff]
    %v841 = vld [vmem:[%s0 + $0x38] sm:$0xff]
    %v842 = vld [vmem:[%s0 + $0x40] sm:$0xff]
    %v843 = vld [vmem:[%s0 + $0x48] sm:$0xff]
    %v844 = vld [vmem:[%s0 + $0x50] sm:$0xff]
    %v845 = vld [vmem:[%s0 + $0x58] sm:$0xff]
    %v846 = vld [vmem:[%s0 + $0x60] sm:$0xff]
    %v847 = vld [vmem:[%s0 + $0x68] sm:$0xff]
    %v848 = vld [vmem:[%s0 + $0x70] sm:$0xff]
    %v849 = vld [vmem:[%s0 + $0x78] sm:$0xff]
    %v850 = vld [vmem:[%s0 + $0x80] sm:$0xff]
    %v851 = vld [vmem:[%s0 + $0x88] sm:$0xff]
    %v852 = vld [vmem:[%s0 + $0x90] sm:$0xff]
    %v853 = vld [vmem:[%s0 + $0x98] sm:$0xff]
    %v854 = vld [vmem:[%s0 + $0xa0] sm:$0xff]
    %v855 = vld [vmem:[%s0 + $0xa8] sm:$0xff]
    %v856 = vld [vmem:[%s0 + $0xb0] sm:$0xff]
    %v857 = vld [vmem:[%s0 + $0xb8] sm:$0xff]
    %v858 = vld [vmem:[%s0 + $0xc0] sm:$0xff]
    %v859 = vld [vmem:[%s0 + $0xc8] sm:$0xff]
    %v860 = vld [vmem:[%s0 + $0xd0] sm:$0xff]
    %v861 = vld [vmem:[%s0 + $0xd8] sm:$0xff]
    %v862 = vld [vmem:[%s0 + $0xe0] sm:$0xff]
    %v863 = vld [vmem:[%s0 + $0xe8] sm:$0xff]
    %v864 = vld [vmem:[%s0 + $0xf0] sm:$0xff]
    %v865 = vld [vmem:[%s0 + $0xf8] sm:$0xff]
    %v866 = vld [vmem:[%s0 + $0x100] sm:$0xff]
    %v867 = vld [vmem:[%s0 + $0x108] sm:$0xff]
    %v868 = vld [vmem:[%s0 + $0x110] sm:$0xff]
    %v869 = vld [vmem:[%s0 + $0x118] sm:$0xff]
    %v870 = vld [vmem:[%s0 + $0x120] sm:$0xff]
    %v871 = vld [vmem:[%s0 + $0x128] sm:$0xff]
    %v872 = vld [vmem:[%s0 + $0x130] sm:$0xff]
    %v873 = vld [vmem:[%s0 + $0x138] sm:$0xff]
    %v874 = vld [vmem:[%s0 + $0x140] sm:$0xff]
    %v875 = vld [vmem:[%s0 + $0x148] sm:$0xff]
    %v876 = vld [vmem:[%s0 + $0x150] sm:$0xff]
    %v877 = vld [vmem:[%s0 + $0x158] sm:$0xff]
    %v878 = vld [vmem:[%s0 + $0x160] sm:$0xff]
    %v879 = vld [vmem:[%s0 + $0x168] sm:$0xff]
    %v880 = vld [vmem:[%s0 + $0x170] sm:$0xff]
    %v881 = vld [vmem:[%s0 + $0x178] sm:$0xff]
    %v882 = vld [vmem:[%s0 + $0x180] sm:$0xff]
    %v883 = vld [vmem:[%s0 + $0x188] sm:$0xff]
    %v884 = vld [vmem:[%s0 + $0x190] sm:$0xff]
    %v885 = vld [vmem:[%s0 + $0x198] sm:$0xff]
    %v886 = vld [vmem:[%s0 + $0x1a0] sm:$0xff]
    %v887 = vld [vmem:[%s0 + $0x1a8] sm:$0xff]
    %v888 = vld [vmem:[%s0 + $0x1b0] sm:$0xff]
    %v889 = vld [vmem:[%s0 + $0x1b8] sm:$0xff]
    %v890 = vld [vmem:[%s0 + $0x1c0] sm:$0xff]
    %v891 = vld [vmem:[%s0 + $0x1c8] sm:$0xff]
    %v892 = vld [vmem:[%s0 + $0x1d0] sm:$0xff]
    %v893 = vld [vmem:[%s0 + $0x1d8] sm:$0xff]
    %v894 = vld [vmem:[%s0 + $0x1e0] sm:$0xff]
    %v895 = vld [vmem:[%s0 + $0x1e8] sm:$0xff]
    %v896 = vld [vmem:[%s0 + $0x1f0] sm:$0xff]
    %v897 = vld [vmem:[%s0 + $0x1f8] sm:$0xff]
    %v898 = vld [vmem:[%s0 + $0x200] sm:$0xff]
    %v899 = vld [vmem:[%s0 + $0x208] sm:$0xff]
    %v900 = vld [vmem:[%s0 + $0x210] sm:$0xff]
    %v901 = vld [vmem:[%s0 + $0x218] sm:$0xff]
    %v902 = vld [vmem:[%s0 + $0x220] sm:$0xff]
    %v903 = vld [vmem:[%s0 + $0x228] sm:$0xff]
    %v904 = vld [vmem:[%s0 + $0x230] sm:$0xff]
    %v905 = vld [vmem:[%s0 + $0x238] sm:$0xff]
    %v906 = vld [vmem:[%s0 + $0x240] sm:$0xff]
    %v907 = vld [vmem:[%s0 + $0x248] sm:$0xff]
    %v908 = vld [vmem:[%s0 + $0x250] sm:$0xff]
    %v909 = vld [vmem:[%s0 + $0x258] sm:$0xff]
    %v910 = vld [vmem:[%s0 + $0x260] sm:$0xff]
    %v911 = vld [vmem:[%s0 + $0x268] sm:$0xff]
    %v912 = vld [vmem:[%s0 + $0x270] sm:$0xff]
    %v913 = vld [vmem:[%s0 + $0x278] sm:$0xff]
    %v914 = vld [vmem:[%s0 + $0x280] sm:$0xff]
    %v915 = vld [vmem:[%s0 + $0x288] sm:$0xff]
    %v916 = vld [vmem:[%s0 + $0x290] sm:$0xff]
    %v917 = vld [vmem:[%s0 + $0x298] sm:$0xff]
    %v918 = vld [vmem:[%s0 + $0x2a0] sm:$0xff]
    %v919 = vld [vmem:[%s0 + $0x2a8] sm:$0xff]
    %v920 = vld [vmem:[%s0 + $0x2b0] sm:$0xff]
    %v921 = vld [vmem:[%s0 + $0x2b8] sm:$0xff]
    %v922 = vld [vmem:[%s0 + $0x2c0] sm:$0xff]
    %v923 = vld [vmem:[%s0 + $0x2c8] sm:$0xff]
    %v924 = vld [vmem:[%s0 + $0x2d0] sm:$0xff]
    %v925 = vld [vmem:[%s0 + $0x2d8] sm:$0xff]
    %v926 = vld [vmem:[%s0 + $0x2e0] sm:$0xff]
    %v927 = vld [vmem:[%s0 + $0x2e8] sm:$0xff]
    %v928 = vld [vmem:[%s0 + $0x2f0] sm:$0xff]
    %v929 = vld [vmem:[%s0 + $0x2f8] sm:$0xff]
    %v930 = vld [vmem:[%s0 + $0x300] sm:$0xff]
    %v931 = vld [vmem:[%s0 + $0x308] sm:$0xff]
    %v932 = vld [vmem:[%s0 + $0x310] sm:$0xff]
    %v933 = vld [vmem:[%s0 + $0x318] sm:$0xff]
    %v934 = vld [vmem:[%s0 + $0x320] sm:$0xff]
    %v935 = vld [vmem:[%s0 + $0x328] sm:$0xff]
    %v936 = vld [vmem:[%s0 + $0x330] sm:$0xff]
    %v937 = vld [vmem:[%s0 + $0x338] sm:$0xff]
    %v938 = vld [vmem:[%s0 + $0x340] sm:$0xff]
    %v939 = vld [vmem:[%s0 + $0x348] sm:$0xff]
    %v940 = vld [vmem:[%s0 + $0x350] sm:$0xff]
    %v941 = vld [vmem:[%s0 + $0x358] sm:$0xff]
    %v942 = vld [vmem:[%s0 + $0x360] sm:$0xff]
    %v943 = vld [vmem:[%s0 + $0x368] sm:$0xff]
    %v944 = vld [vmem:[%s0 + $0x370] sm:$0xff]
    %v945 = vld [vmem:[%s0 + $0x378] sm:$0xff]
    %v946 = vld [vmem:[%s0 + $0x380] sm:$0xff]
    %v947 = vld [vmem:[%s0 + $0x388] sm:$0xff]
    %v948 = vmul.f32 %v834, %v720
    %v949 = vmul.f32 %v835, %v721
    %v950 = vmul.f32 %v836, %v722
    %v951 = vmul.f32 %v837, %v723
    %v952 = vmul.f32 %v838, %v724
    %v953 = vmul.f32 %v839, %v725
    %v954 = vmul.f32 %v840, %v726
    %v955 = vmul.f32 %v841, %v727
    %v956 = vmul.f32 %v842, %v728
    %v957 = vmul.f32 %v843, %v729
    %v958 = vmul.f32 %v844, %v730
    %v959 = vmul.f32 %v845, %v731
    %v960 = vmul.f32 %v846, %v732
    %v961 = vmul.f32 %v847, %v733
    %v962 = vmul.f32 %v848, %v734
    %v963 = vmul.f32 %v849, %v735
    %v964 = vmul.f32 %v850, %v736
    %v965 = vmul.f32 %v851, %v737
    %v966 = vmul.f32 %v852, %v738
    %v967 = vmul.f32 %v853, %v739
    %v968 = vmul.f32 %v854, %v740
    %v969 = vmul.f32 %v855, %v741
    %v970 = vmul.f32 %v856, %v742
    %v971 = vmul.f32 %v857, %v743
    %v972 = vmul.f32 %v858, %v744
    %v973 = vmul.f32 %v859, %v745
    %v974 = vmul.f32 %v860, %v746
    %v975 = vmul.f32 %v861, %v747
    %v976 = vmul.f32 %v862, %v748
    %v977 = vmul.f32 %v863, %v749
    %v978 = vmul.f32 %v864, %v750
    %v979 = vmul.f32 %v865, %v751
    %v980 = vmul.f32 %v866, %v752
    %v981 = vmul.f32 %v867, %v753
    %v982 = vmul.f32 %v868, %v754
    %v983 = vmul.f32 %v869, %v755
    %v984 = vmul.f32 %v870, %v756
    %v985 = vmul.f32 %v871, %v757
    %v986 = vmul.f32 %v872, %v758
    %v987 = vmul.f32 %v873, %v759
    %v988 = vmul.f32 %v874, %v760
    %v989 = vmul.f32 %v875, %v761
    %v990 = vmul.f32 %v876, %v762
    %v991 = vmul.f32 %v877, %v763
    %v992 = vmul.f32 %v878, %v764
    %v993 = vmul.f32 %v879, %v765
    %v994 = vmul.f32 %v880, %v766
    %v995 = vmul.f32 %v881, %v767
    %v996 = vmul.f32 %v882, %v768
    %v997 = vmul.f32 %v883, %v769
    %v998 = vmul.f32 %v884, %v770
    %v999 = vmul.f32 %v885, %v771
    %v1000 = vmul.f32 %v886, %v772
    %v1001 = vmul.f32 %v887, %v773
    %v1002 = vmul.f32 %v888, %v774
    %v1003 = vmul.f32 %v889, %v775
    %v1004 = vmul.f32 %v890, %v776
    %v1005 = vmul.f32 %v891, %v777
    %v1006 = vmul.f32 %v892, %v778
    %v1007 = vmul.f32 %v893, %v779
    %v1008 = vmul.f32 %v894, %v780
    %v1009 = vmul.f32 %v895, %v781
    %v1010 = vmul.f32 %v896, %v782
    %v1011 = vmul.f32 %v897, %v783
    %v1012 = vmul.f32 %v898, %v784
    %v1013 = vmul.f32 %v899, %v785
    %v1014 = vmul.f32 %v900, %v786
    %v1015 = vmul.f32 %v901, %v787
    %v1016 = vmul.f32 %v902, %v788
    %v1017 = vmul.f32 %v903, %v789
    %v1018 = vmul.f32 %v904, %v790
    %v1019 = vmul.f32 %v905, %v791
    %v1020 = vmul.f32 %v906, %v792
    %v1021 = vmul.f32 %v907, %v793
    %v1022 = vmul.f32 %v908, %v794
    %v1023 = vmul.f32 %v909, %v795
    %v1024 = vmul.f32 %v910, %v796
    %v1025 = vmul.f32 %v911, %v797
    %v1026 = vmul.f32 %v912, %v798
    %v1027 = vmul.f32 %v913, %v799
    %v1028 = vmul.f32 %v914, %v800
    %v1029 = vmul.f32 %v915, %v801
    %v1030 = vmul.f32 %v916, %v802
    %v1031 = vmul.f32 %v917, %v803
    %v1032 = vmul.f32 %v918, %v804
    %v1033 = vmul.f32 %v919, %v805
    %v1034 = vmul.f32 %v920, %v806
    %v1035 = vmul.f32 %v921, %v807
    %v1036 = vmul.f32 %v922, %v808
    %v1037 = vmul.f32 %v923, %v809
    %v1038 = vmul.f32 %v924, %v810
    %v1039 = vmul.f32 %v925, %v811
    %v1040 = vmul.f32 %v926, %v812
    %v1041 = vmul.f32 %v927, %v813
    %v1042 = vmul.f32 %v928, %v814
    %v1043 = vmul.f32 %v929, %v815
    %v1044 = vmul.f32 %v930, %v816
    %v1045 = vmul.f32 %v931, %v817
    %v1046 = vmul.f32 %v932, %v818
    %v1047 = vmul.f32 %v933, %v819
    %v1048 = vmul.f32 %v934, %v820
    %v1049 = vmul.f32 %v935, %v821
    %v1050 = vmul.f32 %v936, %v822
    %v1051 = vmul.f32 %v937, %v823
    %v1052 = vmul.f32 %v938, %v824
    %v1053 = vmul.f32 %v939, %v825
    %v1054 = vmul.f32 %v940, %v826
    %v1055 = vmul.f32 %v941, %v827
    %v1056 = vmul.f32 %v942, %v828
    %v1057 = vmul.f32 %v943, %v829
    %v1058 = vmul.f32 %v944, %v830
    %v1059 = vmul.f32 %v945, %v831
    %v1060 = vmul.f32 %v946, %v832
    %v1061 = vmul.f32 %v947, %v833
    %v1062 = vadd.f32 %v948, %v954
    %v1063 = vadd.f32 %v1062, %v960
    %v1064 = vadd.f32 %v1063, %v966
    %v1065 = vadd.f32 %v1064, %v972
    %v1066 = vadd.f32 %v1065, %v978
    %v1067 = vadd.f32 %v1066, %v984
    %v1068 = vadd.f32 %v1067, %v990
    %v1069 = vadd.f32 %v1068, %v996
    %v1070 = vadd.f32 %v1069, %v1002
    %v1071 = vadd.f32 %v1070, %v1008
    %v1072 = vadd.f32 %v1071, %v1014
    %v1073 = vadd.f32 %v1072, %v1020
    %v1074 = vadd.f32 %v1073, %v1026
    %v1075 = vadd.f32 %v1074, %v1032
    %v1076 = vadd.f32 %v1075, %v1038
    %v1077 = vadd.f32 %v1076, %v1044
    %v1078 = vadd.f32 %v1077, %v1050
    %v1079 = vadd.f32 %v1078, %v1056
    %v1080 = vadd.f32 %v949, %v955
    %v1081 = vadd.f32 %v1080, %v961
    %v1082 = vadd.f32 %v1081, %v967
    %v1083 = vadd.f32 %v1082, %v973
    %v1084 = vadd.f32 %v1083, %v979
    %v1085 = vadd.f32 %v1084, %v985
    %v1086 = vadd.f32 %v1085, %v991
    %v1087 = vadd.f32 %v1086, %v997
    %v1088 = vadd.f32 %v1087, %v1003
    %v1089 = vadd.f32 %v1088, %v1009
    %v1090 = vadd.f32 %v1089, %v1015
    %v1091 = vadd.f32 %v1090, %v1021
    %v1092 = vadd.f32 %v1091, %v1027
    %v1093 = vadd.f32 %v1092, %v1033
    %v1094 = vadd.f32 %v1093, %v1039
    %v1095 = vadd.f32 %v1094, %v1045
    %v1096 = vadd.f32 %v1095, %v1051
    %v1097 = vadd.f32 %v1096, %v1057
    %v1098 = vadd.f32 %v950, %v956
    %v1099 = vadd.f32 %v1098, %v962
    %v1100 = vadd.f32 %v1099, %v968
    %v1101 = vadd.f32 %v1100, %v974
    %v1102 = vadd.f32 %v1101, %v980
    %v1103 = vadd.f32 %v1102, %v986
    %v1104 = vadd.f32 %v1103, %v992
    %v1105 = vadd.f32 %v1104, %v998
    %v1106 = vadd.f32 %v1105, %v1004
    %v1107 = vadd.f32 %v1106, %v1010
    %v1108 = vadd.f32 %v1107, %v1016
    %v1109 = vadd.f32 %v1108, %v1022
    %v1110 = vadd.f32 %v1109, %v1028
    %v1111 = vadd.f32 %v1110, %v1034
    %v1112 = vadd.f32 %v1111, %v1040
    %v1113 = vadd.f32 %v1112, %v1046
    %v1114 = vadd.f32 %v1113, %v1052
    %v1115 = vadd.f32 %v1114, %v1058
    %v1116 = vadd.f32 %v951, %v957
    %v1117 = vadd.f32 %v1116, %v963
    %v1118 = vadd.f32 %v1117, %v969
    %v1119 = vadd.f32 %v1118, %v975
    %v1120 = vadd.f32 %v1119, %v981
    %v1121 = vadd.f32 %v1120, %v987
    %v1122 = vadd.f32 %v1121, %v993
    %v1123 = vadd.f32 %v1122, %v999
    %v1124 = vadd.f32 %v1123, %v1005
    %v1125 = vadd.f32 %v1124, %v1011
    %v1126 = vadd.f32 %v1125, %v1017
    %v1127 = vadd.f32 %v1126, %v1023
    %v1128 = vadd.f32 %v1127, %v1029
    %v1129 = vadd.f32 %v1128, %v1035
    %v1130 = vadd.f32 %v1129, %v1041
    %v1131 = vadd.f32 %v1130, %v1047
    %v1132 = vadd.f32 %v1131, %v1053
    %v1133 = vadd.f32 %v1132, %v1059
    %v1134 = vadd.f32 %v952, %v958
    %v1135 = vadd.f32 %v1134, %v964
    %v1136 = vadd.f32 %v1135, %v970
    %v1137 = vadd.f32 %v1136, %v976
    %v1138 = vadd.f32 %v1137, %v982
    %v1139 = vadd.f32 %v1138, %v988
    %v1140 = vadd.f32 %v1139, %v994
    %v1141 = vadd.f32 %v1140, %v1000
    %v1142 = vadd.f32 %v1141, %v1006
    %v1143 = vadd.f32 %v1142, %v1012
    %v1144 = vadd.f32 %v1143, %v1018
    %v1145 = vadd.f32 %v1144, %v1024
    %v1146 = vadd.f32 %v1145, %v1030
    %v1147 = vadd.f32 %v1146, %v1036
    %v1148 = vadd.f32 %v1147, %v1042
    %v1149 = vadd.f32 %v1148, %v1048
    %v1150 = vadd.f32 %v1149, %v1054
    %v1151 = vadd.f32 %v1150, %v1060
    %v1152 = vadd.f32 %v953, %v959
    %v1153 = vadd.f32 %v1152, %v965
    %v1154 = vadd.f32 %v1153, %v971
    %v1155 = vadd.f32 %v1154, %v977
    %v1156 = vadd.f32 %v1155, %v983
    %v1157 = vadd.f32 %v1156, %v989
    %v1158 = vadd.f32 %v1157, %v995
    %v1159 = vadd.f32 %v1158, %v1001
    %v1160 = vadd.f32 %v1159, %v1007
    %v1161 = vadd.f32 %v1160, %v1013
    %v1162 = vadd.f32 %v1161, %v1019
    %v1163 = vadd.f32 %v1162, %v1025
    %v1164 = vadd.f32 %v1163, %v1031
    %v1165 = vadd.f32 %v1164, %v1037
    %v1166 = vadd.f32 %v1165, %v1043
    %v1167 = vadd.f32 %v1166, %v1049
    %v1168 = vadd.f32 %v1167, %v1055
    %v1169 = vadd.f32 %v1168, %v1061
    %v1170 = vld [vmem:[%s2] sm:$0xff]
    %v1171 = vld [vmem:[%s2 + $0x8] sm:$0xff]
    %v1172 = vld [vmem:[%s2 + $0x10] sm:$0xff]
    %v1173 = vld [vmem:[%s2 + $0x18] sm:$0xff]
    %v1174 = vld [vmem:[%s2 + $0x20] sm:$0xff]
    %v1175 = vld [vmem:[%s2 + $0x28] sm:$0xff]
    %v1176 = vld [vmem:[%s2 + $0x30] sm:$0xff]
    %v1177 = vld [vmem:[%s2 + $0x38] sm:$0xff]
    %v1178 = vld [vmem:[%s2 + $0x40] sm:$0xff]
    %v1179 = vld [vmem:[%s2 + $0x48] sm:$0xff]
    %v1180 = vld [vmem:[%s2 + $0x50] sm:$0xff]
    %v1181 = vld [vmem:[%s2 + $0x58] sm:$0xff]
    %v1182 = vld [vmem:[%s2 + $0x60] sm:$0xff]
    %v1183 = vld [vmem:[%s2 + $0x68] sm:$0xff]
    %v1184 = vld [vmem:[%s2 + $0x70] sm:$0xff]
    %v1185 = vld [vmem:[%s2 + $0x78] sm:$0xff]
    %v1186 = vld [vmem:[%s2 + $0x80] sm:$0xff]
    %v1187 = vld [vmem:[%s2 + $0x88] sm:$0xff]
    %v1188 = vld [vmem:[%s2 + $0x90] sm:$0xff]
    %v1189 = vld [vmem:[%s2 + $0x98] sm:$0xff]
    %v1190 = vld [vmem:[%s2 + $0xa0] sm:$0xff]
    %v1191 = vld [vmem:[%s2 + $0xa8] sm:$0xff]
    %v1192 = vld [vmem:[%s2 + $0xb0] sm:$0xff]
    %v1193 = vld [vmem:[%s2 + $0xb8] sm:$0xff]
    %v1194 = vld [vmem:[%s2 + $0xc0] sm:$0xff]
    %v1195 = vld [vmem:[%s2 + $0xc8] sm:$0xff]
    %v1196 = vld [vmem:[%s2 + $0xd0] sm:$0xff]
    %v1197 = vld [vmem:[%s2 + $0xd8] sm:$0xff]
    %v1198 = vld [vmem:[%s2 + $0xe0] sm:$0xff]
    %v1199 = vld [vmem:[%s2 + $0xe8] sm:$0xff]
    %v1200 = vld [vmem:[%s2 + $0xf0] sm:$0xff]
    %v1201 = vld [vmem:[%s2 + $0xf8] sm:$0xff]
    %v1202 = vld [vmem:[%s2 + $0x100] sm:$0xff]
    %v1203 = vld [vmem:[%s2 + $0x108] sm:$0xff]
    %v1204 = vld [vmem:[%s2 + $0x110] sm:$0xff]
    %v1205 = vld [vmem:[%s2 + $0x118] sm:$0xff]
    %v1206 = vld [vmem:[%s2 + $0x120] sm:$0xff]
    %v1207 = vld [vmem:[%s2 + $0x128] sm:$0xff]
    %v1208 = vld [vmem:[%s2 + $0x130] sm:$0xff]
    %v1209 = vld [vmem:[%s2 + $0x138] sm:$0xff]
    %v1210 = vld [vmem:[%s2 + $0x140] sm:$0xff]
    %v1211 = vld [vmem:[%s2 + $0x148] sm:$0xff]
    %v1212 = vld [vmem:[%s2 + $0x150] sm:$0xff]
    %v1213 = vld [vmem:[%s2 + $0x158] sm:$0xff]
    %v1214 = vld [vmem:[%s2 + $0x160] sm:$0xff]
    %v1215 = vld [vmem:[%s2 + $0x168] sm:$0xff]
    %v1216 = vld [vmem:[%s2 + $0x170] sm:$0xff]
    %v1217 = vld [vmem:[%s2 + $0x178] sm:$0xff]
    %v1218 = vld [vmem:[%s2 + $0x180] sm:$0xff]
    %v1219 = vld [vmem:[%s2 + $0x188] sm:$0xff]
    %v1220 = vld [vmem:[%s2 + $0x190] sm:$0xff]
    %v1221 = vld [vmem:[%s2 + $0x198] sm:$0xff]
    %v1222 = vld [vmem:[%s2 + $0x1a0] sm:$0xff]
    %v1223 = vld [vmem:[%s2 + $0x1a8] sm:$0xff]
    %v1224 = vld [vmem:[%s2 + $0x1b0] sm:$0xff]
    %v1225 = vld [vmem:[%s2 + $0x1b8] sm:$0xff]
    %v1226 = vld [vmem:[%s2 + $0x1c0] sm:$0xff]
    %v1227 = vld [vmem:[%s2 + $0x1c8] sm:$0xff]
    %v1228 = vld [vmem:[%s2 + $0x1d0] sm:$0xff]
    %v1229 = vld [vmem:[%s2 + $0x1d8] sm:$0xff]
    %v1230 = vld [vmem:[%s2 + $0x1e0] sm:$0xff]
    %v1231 = vld [vmem:[%s2 + $0x1e8] sm:$0xff]
    %v1232 = vld [vmem:[%s2 + $0x1f0] sm:$0xff]
    %v1233 = vld [vmem:[%s2 + $0x1f8] sm:$0xff]
    %v1234 = vld [vmem:[%s2 + $0x200] sm:$0xff]
    %v1235 = vld [vmem:[%s2 + $0x208] sm:$0xff]
    %v1236 = vld [vmem:[%s2 + $0x210] sm:$0xff]
    %v1237 = vld [vmem:[%s2 + $0x218] sm:$0xff]
    %v1238 = vld [vmem:[%s2 + $0x220] sm:$0xff]
    %v1239 = vld [vmem:[%s2 + $0x228] sm:$0xff]
    %v1240 = vld [vmem:[%s2 + $0x230] sm:$0xff]
    %v1241 = vld [vmem:[%s2 + $0x238] sm:$0xff]
    %v1242 = vld [vmem:[%s2 + $0x240] sm:$0xff]
    %v1243 = vld [vmem:[%s2 + $0x248] sm:$0xff]
    %v1244 = vld [vmem:[%s2 + $0x250] sm:$0xff]
    %v1245 = vld [vmem:[%s2 + $0x258] sm:$0xff]
    %v1246 = vld [vmem:[%s2 + $0x260] sm:$0xff]
    %v1247 = vld [vmem:[%s2 + $0x268] sm:$0xff]
    %v1248 = vld [vmem:[%s2 + $0x270] sm:$0xff]
    %v1249 = vld [vmem:[%s2 + $0x278] sm:$0xff]
    %v1250 = vld [vmem:[%s2 + $0x280] sm:$0xff]
    %v1251 = vld [vmem:[%s2 + $0x288] sm:$0xff]
    %v1252 = vld [vmem:[%s2 + $0x290] sm:$0xff]
    %v1253 = vld [vmem:[%s2 + $0x298] sm:$0xff]
    %v1254 = vld [vmem:[%s2 + $0x2a0] sm:$0xff]
    %v1255 = vld [vmem:[%s2 + $0x2a8] sm:$0xff]
    %v1256 = vld [vmem:[%s2 + $0x2b0] sm:$0xff]
    %v1257 = vld [vmem:[%s2 + $0x2b8] sm:$0xff]
    %v1258 = vld [vmem:[%s2 + $0x2c0] sm:$0xff]
    %v1259 = vld [vmem:[%s2 + $0x2c8] sm:$0xff]
    %v1260 = vld [vmem:[%s2 + $0x2d0] sm:$0xff]
    %v1261 = vld [vmem:[%s2 + $0x2d8] sm:$0xff]
    %v1262 = vld [vmem:[%s2 + $0x2e0] sm:$0xff]
    %v1263 = vld [vmem:[%s2 + $0x2e8] sm:$0xff]
    %v1264 = vld [vmem:[%s2 + $0x2f0] sm:$0xff]
    %v1265 = vld [vmem:[%s2 + $0x2f8] sm:$0xff]
    %v1266 = vld [vmem:[%s3] sm:$0x1]
    %v1268 = vlaneseq
    %v1269 = vshrl.u32 %v1268, 7
    %v1270 = vsub.s32 0, %v1269
    %v1271 = vrot.slane %v1266, %v1270
    %1273 = vmatprep.subr.mxu0 0.0
    %1274 = vmatpush1.msra.mxu0 %v1170
    %1275 = vmatprep.subr.mxu0 0.0
    %1276 = vmatpush1.msra.mxu0 %v1171
    %1277 = vmatprep.subr.mxu0 0.0
    %1278 = vmatpush1.msra.mxu0 %v1172
    %1279 = vmatprep.subr.mxu0 0.0
    %1280 = vmatpush1.msra.mxu0 %v1173
    %1281 = vmatprep.subr.mxu0 0.0
    %1282 = vmatpush1.msra.mxu0 %v1174
    %1283 = vmatprep.subr.mxu0 0.0
    %1284 = vmatpush1.msra.mxu0 %v1175
    %1285 = vmatprep.subr.mxu0 0.0
    %1286 = vmatpush1.msra.mxu0 %v1176
    %1287 = vmatprep.subr.mxu0 0.0
    %1288 = vmatpush1.msra.mxu0 %v1177
    %1289 = vmatprep.subr.mxu0 0.0
    %1290 = vmatpush1.msra.mxu0 %v1178
    %1291 = vmatprep.subr.mxu0 0.0
    %1292 = vmatpush1.msra.mxu0 %v1179
    %1293 = vmatprep.subr.mxu0 0.0
    %1294 = vmatpush1.msra.mxu0 %v1180
    %1295 = vmatprep.subr.mxu0 0.0
    %1296 = vmatpush1.msra.mxu0 %v1181
    %1297 = vmatprep.subr.mxu0 0.0
    %1298 = vmatpush1.msra.mxu0 %v1182
    %1299 = vmatprep.subr.mxu0 0.0
    %1300 = vmatpush1.msra.mxu0 %v1183
    %1301 = vmatprep.subr.mxu0 0.0
    %1302 = vmatpush1.msra.mxu0 %v1184
    %1303 = vmatprep.subr.mxu0 0.0
    %1304 = vmatpush1.msra.mxu0 %v1185
    %1305 = vmatprep.subr.mxu0 0.0
    %1306 = vmatpush1.msra.mxu0 %v1186
    %1307 = vmatprep.subr.mxu0 0.0
    %1308 = vmatpush1.msra.mxu0 %v1187
    %1309 = vmatprep.subr.mxu0 0.0
    %1310 = vmatpush1.msra.mxu0 %v1188
    %1311 = vmatprep.subr.mxu0 0.0
    %1312 = vmatpush1.msra.mxu0 %v1189
    %1313 = vmatprep.subr.mxu0 0.0
    %1314 = vmatpush1.msra.mxu0 %v1190
    %1315 = vmatprep.subr.mxu0 0.0
    %1316 = vmatpush1.msra.mxu0 %v1191
    %1317 = vmatprep.subr.mxu0 0.0
    %1318 = vmatpush1.msra.mxu0 %v1192
    %1319 = vmatprep.subr.mxu0 0.0
    %1320 = vmatpush1.msra.mxu0 %v1193
    %1321 = vmatprep.subr.mxu0 0.0
    %1322 = vmatpush1.msra.mxu0 %v1194
    %1323 = vmatprep.subr.mxu0 0.0
    %1324 = vmatpush1.msra.mxu0 %v1195
    %1325 = vmatprep.subr.mxu0 0.0
    %1326 = vmatpush1.msra.mxu0 %v1196
    %1327 = vmatprep.subr.mxu0 0.0
    %1328 = vmatpush1.msra.mxu0 %v1197
    %1329 = vmatprep.subr.mxu0 0.0
    %1330 = vmatpush1.msra.mxu0 %v1198
    %1331 = vmatprep.subr.mxu0 0.0
    %1332 = vmatpush1.msra.mxu0 %v1199
    %1333 = vmatprep.subr.mxu0 0.0
    %1334 = vmatpush1.msra.mxu0 %v1200
    %1335 = vmatprep.subr.mxu0 0.0
    %1336 = vmatpush1.msra.mxu0 %v1201
    %1337 = vmatprep.mubr.f32.mxu0 %v1097
    %1338 = vmatmul.mubr.f32.gmra.mrb[0].mxu0 %v1079
    %v1339 = vpop.f32.mrb[0].mxu0
    %v1340 = vadd.f32 %v1271, %v1339
    %v1341 = vpop.f32.mrb[0].mxu0
    %1342 = vdwg.mxu0
    %1343 = vmatprep.subr.mxu0 0.0
    %1344 = vmatpush1.msra.mxu0 %v1202
    %1345 = vmatprep.subr.mxu0 0.0
    %1346 = vmatpush1.msra.mxu0 %v1203
    %1347 = vmatprep.subr.mxu0 0.0
    %1348 = vmatpush1.msra.mxu0 %v1204
    %1349 = vmatprep.subr.mxu0 0.0
    %1350 = vmatpush1.msra.mxu0 %v1205
    %1351 = vmatprep.subr.mxu0 0.0
    %1352 = vmatpush1.msra.mxu0 %v1206
    %1353 = vmatprep.subr.mxu0 0.0
    %1354 = vmatpush1.msra.mxu0 %v1207
    %1355 = vmatprep.subr.mxu0 0.0
    %1356 = vmatpush1.msra.mxu0 %v1208
    %1357 = vmatprep.subr.mxu0 0.0
    %1358 = vmatpush1.msra.mxu0 %v1209
    %1359 = vmatprep.subr.mxu0 0.0
    %1360 = vmatpush1.msra.mxu0 %v1210
    %1361 = vmatprep.subr.mxu0 0.0
    %1362 = vmatpush1.msra.mxu0 %v1211
    %1363 = vmatprep.subr.mxu0 0.0
    %1364 = vmatpush1.msra.mxu0 %v1212
    %1365 = vmatprep.subr.mxu0 0.0
    %1366 = vmatpush1.msra.mxu0 %v1213
    %1367 = vmatprep.subr.mxu0 0.0
    %1368 = vmatpush1.msra.mxu0 %v1214
    %1369 = vmatprep.subr.mxu0 0.0
    %1370 = vmatpush1.msra.mxu0 %v1215
    %1371 = vmatprep.subr.mxu0 0.0
    %1372 = vmatpush1.msra.mxu0 %v1216
    %1373 = vmatprep.subr.mxu0 0.0
    %1374 = vmatpush1.msra.mxu0 %v1217
    %1375 = vmatprep.subr.mxu0 0.0
    %1376 = vmatpush1.msra.mxu0 %v1218
    %1377 = vmatprep.subr.mxu0 0.0
    %1378 = vmatpush1.msra.mxu0 %v1219
    %1379 = vmatprep.subr.mxu0 0.0
    %1380 = vmatpush1.msra.mxu0 %v1220
    %1381 = vmatprep.subr.mxu0 0.0
    %1382 = vmatpush1.msra.mxu0 %v1221
    %1383 = vmatprep.subr.mxu0 0.0
    %1384 = vmatpush1.msra.mxu0 %v1222
    %1385 = vmatprep.subr.mxu0 0.0
    %1386 = vmatpush1.msra.mxu0 %v1223
    %1387 = vmatprep.subr.mxu0 0.0
    %1388 = vmatpush1.msra.mxu0 %v1224
    %1389 = vmatprep.subr.mxu0 0.0
    %1390 = vmatpush1.msra.mxu0 %v1225
    %1391 = vmatprep.subr.mxu0 0.0
    %1392 = vmatpush1.msra.mxu0 %v1226
    %1393 = vmatprep.subr.mxu0 0.0
    %1394 = vmatpush1.msra.mxu0 %v1227
    %1395 = vmatprep.subr.mxu0 0.0
    %1396 = vmatpush1.msra.mxu0 %v1228
    %1397 = vmatprep.subr.mxu0 0.0
    %1398 = vmatpush1.msra.mxu0 %v1229
    %1399 = vmatprep.subr.mxu0 0.0
    %1400 = vmatpush1.msra.mxu0 %v1230
    %1401 = vmatprep.subr.mxu0 0.0
    %1402 = vmatpush1.msra.mxu0 %v1231
    %1403 = vmatprep.subr.mxu0 0.0
    %1404 = vmatpush1.msra.mxu0 %v1232
    %1405 = vmatprep.subr.mxu0 0.0
    %1406 = vmatpush1.msra.mxu0 %v1233
    %1407 = vmatprep.mubr.f32.mxu0 %v1133
    %1408 = vmatmul.mubr.f32.gmra.mrb[0].mxu0 %v1115
    %v1409 = vpop.f32.mrb[0].mxu0
    %v1410 = vadd.f32 %v1340, %v1409
    %v1411 = vpop.f32.mrb[0].mxu0
    %1412 = vdwg.mxu0
    %1413 = vmatprep.subr.mxu0 0.0
    %1414 = vmatpush1.msra.mxu0 %v1234
    %1415 = vmatprep.subr.mxu0 0.0
    %1416 = vmatpush1.msra.mxu0 %v1235
    %1417 = vmatprep.subr.mxu0 0.0
    %1418 = vmatpush1.msra.mxu0 %v1236
    %1419 = vmatprep.subr.mxu0 0.0
    %1420 = vmatpush1.msra.mxu0 %v1237
    %1421 = vmatprep.subr.mxu0 0.0
    %1422 = vmatpush1.msra.mxu0 %v1238
    %1423 = vmatprep.subr.mxu0 0.0
    %1424 = vmatpush1.msra.mxu0 %v1239
    %1425 = vmatprep.subr.mxu0 0.0
    %1426 = vmatpush1.msra.mxu0 %v1240
    %1427 = vmatprep.subr.mxu0 0.0
    %1428 = vmatpush1.msra.mxu0 %v1241
    %1429 = vmatprep.subr.mxu0 0.0
    %1430 = vmatpush1.msra.mxu0 %v1242
    %1431 = vmatprep.subr.mxu0 0.0
    %1432 = vmatpush1.msra.mxu0 %v1243
    %1433 = vmatprep.subr.mxu0 0.0
    %1434 = vmatpush1.msra.mxu0 %v1244
    %1435 = vmatprep.subr.mxu0 0.0
    %1436 = vmatpush1.msra.mxu0 %v1245
    %1437 = vmatprep.subr.mxu0 0.0
    %1438 = vmatpush1.msra.mxu0 %v1246
    %1439 = vmatprep.subr.mxu0 0.0
    %1440 = vmatpush1.msra.mxu0 %v1247
    %1441 = vmatprep.subr.mxu0 0.0
    %1442 = vmatpush1.msra.mxu0 %v1248
    %1443 = vmatprep.subr.mxu0 0.0
    %1444 = vmatpush1.msra.mxu0 %v1249
    %1445 = vmatprep.subr.mxu0 0.0
    %1446 = vmatpush1.msra.mxu0 %v1250
    %1447 = vmatprep.subr.mxu0 0.0
    %1448 = vmatpush1.msra.mxu0 %v1251
    %1449 = vmatprep.subr.mxu0 0.0
    %1450 = vmatpush1.msra.mxu0 %v1252
    %1451 = vmatprep.subr.mxu0 0.0
    %1452 = vmatpush1.msra.mxu0 %v1253
    %1453 = vmatprep.subr.mxu0 0.0
    %1454 = vmatpush1.msra.mxu0 %v1254
    %1455 = vmatprep.subr.mxu0 0.0
    %1456 = vmatpush1.msra.mxu0 %v1255
    %1457 = vmatprep.subr.mxu0 0.0
    %1458 = vmatpush1.msra.mxu0 %v1256
    %1459 = vmatprep.subr.mxu0 0.0
    %1460 = vmatpush1.msra.mxu0 %v1257
    %1461 = vmatprep.subr.mxu0 0.0
    %1462 = vmatpush1.msra.mxu0 %v1258
    %1463 = vmatprep.subr.mxu0 0.0
    %1464 = vmatpush1.msra.mxu0 %v1259
    %1465 = vmatprep.subr.mxu0 0.0
    %1466 = vmatpush1.msra.mxu0 %v1260
    %1467 = vmatprep.subr.mxu0 0.0
    %1468 = vmatpush1.msra.mxu0 %v1261
    %1469 = vmatprep.subr.mxu0 0.0
    %1470 = vmatpush1.msra.mxu0 %v1262
    %1471 = vmatprep.subr.mxu0 0.0
    %1472 = vmatpush1.msra.mxu0 %v1263
    %1473 = vmatprep.subr.mxu0 0.0
    %1474 = vmatpush1.msra.mxu0 %v1264
    %1475 = vmatprep.subr.mxu0 0.0
    %1476 = vmatpush1.msra.mxu0 %v1265
    %1477 = vmatprep.mubr.f32.mxu0 %v1169
    %1478 = vmatmul.mubr.f32.gmra.mrb[0].mxu0 %v1151
    %v1479 = vpop.f32.mrb[0].mxu0
    %v1480 = vadd.f32 %v1410, %v1479
    %v1481 = vpop.f32.mrb[0].mxu0
    %1482 = vdwg.mxu0
    %v1483 = vmax.f32 %v1480, 0.0
    %v1484 = vld [vmem:[%s4] sm:$0x1]
    %v1486 = vlaneseq
    %v1487 = vshrl.u32 %v1486, 7
    %v1488 = vsub.s32 0, %v1487
    %v1489 = vrot.slane %v1484, %v1488
    %v1491 = vmul.f32 %v1483, %v1489
    %v1492 = vld [vmem:[%s5] sm:$0x1]
    %v1494 = vlaneseq
    %v1495 = vshrl.u32 %v1494, 7
    %v1496 = vsub.s32 0, %v1495
    %v1497 = vrot.slane %v1492, %v1496
    %v1499 = vadd.f32 %v1491, %v1497
    %v1500 = vld [vmem:[%s6] sm:$0xff]
    %v1501 = vld [vmem:[%s6 + $0x8] sm:$0xff]
    %v1502 = vld [vmem:[%s6 + $0x10] sm:$0xff]
    %v1503 = vld [vmem:[%s6 + $0x18] sm:$0xff]
    %v1504 = vld [vmem:[%s6 + $0x20] sm:$0xff]
    %v1505 = vld [vmem:[%s6 + $0x28] sm:$0xff]
    %v1506 = vld [vmem:[%s6 + $0x30] sm:$0xff]
    %v1507 = vld [vmem:[%s6 + $0x38] sm:$0xff]
    %v1508 = vld [vmem:[%s6 + $0x40] sm:$0xff]
    %v1509 = vld [vmem:[%s6 + $0x48] sm:$0xff]
    %v1510 = vld [vmem:[%s6 + $0x50] sm:$0xff]
    %v1511 = vld [vmem:[%s6 + $0x58] sm:$0xff]
    %v1512 = vld [vmem:[%s6 + $0x60] sm:$0xff]
    %v1513 = vld [vmem:[%s6 + $0x68] sm:$0xff]
    %v1514 = vld [vmem:[%s6 + $0x70] sm:$0xff]
    %v1515 = vld [vmem:[%s6 + $0x78] sm:$0xff]
    %v1516 = vld [vmem:[%s7] sm:$0x1]
    %v1518 = vlaneseq
    %v1519 = vshrl.u32 %v1518, 7
    %v1520 = vsub.s32 0, %v1519
    %v1521 = vrot.slane %v1516, %v1520
    %1523 = vmatprep.subr.mxu0 0.0
    %1524 = vmatpush1.msra.mxu0 %v1500
    %1525 = vmatprep.subr.mxu0 0.0
    %1526 = vmatpush1.msra.mxu0 %v1501
    %1527 = vmatprep.subr.mxu0 0.0
    %1528 = vmatpush1.msra.mxu0 %v1502
    %1529 = vmatprep.subr.mxu0 0.0
    %1530 = vmatpush1.msra.mxu0 %v1503
    %1531 = vmatprep.subr.mxu0 0.0
    %1532 = vmatpush1.msra.mxu0 %v1504
    %1533 = vmatprep.subr.mxu0 0.0
    %1534 = vmatpush1.msra.mxu0 %v1505
    %1535 = vmatprep.subr.mxu0 0.0
    %1536 = vmatpush1.msra.mxu0 %v1506
    %1537 = vmatprep.subr.mxu0 0.0
    %1538 = vmatpush1.msra.mxu0 %v1507
    %1539 = vmatprep.subr.mxu0 0.0
    %1540 = vmatpush1.msra.mxu0 %v1508
    %1541 = vmatprep.subr.mxu0 0.0
    %1542 = vmatpush1.msra.mxu0 %v1509
    %1543 = vmatprep.subr.mxu0 0.0
    %1544 = vmatpush1.msra.mxu0 %v1510
    %1545 = vmatprep.subr.mxu0 0.0
    %1546 = vmatpush1.msra.mxu0 %v1511
    %1547 = vmatprep.subr.mxu0 0.0
    %1548 = vmatpush1.msra.mxu0 %v1512
    %1549 = vmatprep.subr.mxu0 0.0
    %1550 = vmatpush1.msra.mxu0 %v1513
    %1551 = vmatprep.subr.mxu0 0.0
    %1552 = vmatpush1.msra.mxu0 %v1514
    %1553 = vmatprep.subr.mxu0 0.0
    %1554 = vmatpush1.msra.mxu0 %v1515
    %1555 = vmatprep.subr.mxu0 0.0
    %1556 = vmatpush1.msra.mxu0 0.0
    %1557 = vmatprep.subr.mxu0 0.0
    %1558 = vmatpush1.msra.mxu0 0.0
    %1559 = vmatprep.subr.mxu0 0.0
    %1560 = vmatpush1.msra.mxu0 0.0
    %1561 = vmatprep.subr.mxu0 0.0
    %1562 = vmatpush1.msra.mxu0 0.0
    %1563 = vmatprep.subr.mxu0 0.0
    %1564 = vmatpush1.msra.mxu0 0.0
    %1565 = vmatprep.subr.mxu0 0.0
    %1566 = vmatpush1.msra.mxu0 0.0
    %1567 = vmatprep.subr.mxu0 0.0
    %1568 = vmatpush1.msra.mxu0 0.0
    %1569 = vmatprep.subr.mxu0 0.0
    %1570 = vmatpush1.msra.mxu0 0.0
    %1571 = vmatprep.subr.mxu0 0.0
    %1572 = vmatpush1.msra.mxu0 0.0
    %1573 = vmatprep.subr.mxu0 0.0
    %1574 = vmatpush1.msra.mxu0 0.0
    %1575 = vmatprep.subr.mxu0 0.0
    %1576 = vmatpush1.msra.mxu0 0.0
    %1577 = vmatprep.subr.mxu0 0.0
    %1578 = vmatpush1.msra.mxu0 0.0
    %1579 = vmatprep.subr.mxu0 0.0
    %1580 = vmatpush1.msra.mxu0 0.0
    %1581 = vmatprep.subr.mxu0 0.0
    %1582 = vmatpush1.msra.mxu0 0.0
    %1583 = vmatprep.subr.mxu0 0.0
    %1584 = vmatpush1.msra.mxu0 0.0
    %1585 = vmatprep.subr.mxu0 0.0
    %1586 = vmatpush1.msra.mxu0 0.0
    %1587 = vmatprep.mubr.f32.mxu0 0.0
    %1588 = vmatmul.mubr.f32.gmra.mrb[0].mxu0 %v1499
    %v1589 = vpop.f32.mrb[0].mxu0
    %v1590 = vadd.f32 %v1521, %v1589
    %v1591 = vpop.f32.mrb[0].mxu0
    %1592 = vdwg.mxu0
    %v1593 = vmax.f32 %v1590, 0.0
    %v1594 = vld [vmem:[%s8] sm:$0x1]
    %v1596 = vlaneseq
    %v1597 = vshrl.u32 %v1596, 7
    %v1598 = vsub.s32 0, %v1597
    %v1599 = vrot.slane %v1594, %v1598
    %v1601 = vmul.f32 %v1593, %v1599
    %v1602 = vld [vmem:[%s9] sm:$0x1]
    %v1604 = vlaneseq
    %v1605 = vshrl.u32 %v1604, 7
    %v1606 = vsub.s32 0, %v1605
    %v1607 = vrot.slane %v1602, %v1606
    %v1609 = vadd.f32 %v1601, %v1607
    %v1610 = vld [vmem:[%s10] sm:$0xff]
    %v1611 = vld [vmem:[%s10 + $0x8] sm:$0xff]
    %v1612 = vld [vmem:[%s10 + $0x10] sm:$0xff]
    %v1613 = vld [vmem:[%s10 + $0x18] sm:$0xff]
    %v1614 = vld [vmem:[%s11] sm:$0x1]
    %v1616 = vlaneseq
    %v1617 = vshrl.u32 %v1616, 7
    %v1618 = vsub.s32 0, %v1617
    %v1619 = vrot.slane %v1614, %v1618
    %vm1621 = vcmask 261120
    %v1623 = vsel %vm1621, %v1609, 0
    %1625 = vmatprep.subr.mxu0 0.0
    %1626 = vmatpush1.msra.mxu0 %v1610
    %1627 = vmatprep.subr.mxu0 0.0
    %1628 = vmatpush1.msra.mxu0 %v1611
    %1629 = vmatprep.subr.mxu0 0.0
    %1630 = vmatpush1.msra.mxu0 %v1612
    %1631 = vmatprep.subr.mxu0 0.0
    %1632 = vmatpush1.msra.mxu0 %v1613
    %1633 = vmatprep.subr.mxu0 0.0
    %1634 = vmatpush1.msra.mxu0 0.0
    %1635 = vmatprep.subr.mxu0 0.0
    %1636 = vmatpush1.msra.mxu0 0.0
    %1637 = vmatprep.subr.mxu0 0.0
    %1638 = vmatpush1.msra.mxu0 0.0
    %1639 = vmatprep.subr.mxu0 0.0
    %1640 = vmatpush1.msra.mxu0 0.0
    %1641 = vmatprep.subr.mxu0 0.0
    %1642 = vmatpush1.msra.mxu0 0.0
    %1643 = vmatprep.subr.mxu0 0.0
    %1644 = vmatpush1.msra.mxu0 0.0
    %1645 = vmatprep.subr.mxu0 0.0
    %1646 = vmatpush1.msra.mxu0 0.0
    %1647 = vmatprep.subr.mxu0 0.0
    %1648 = vmatpush1.msra.mxu0 0.0
    %1649 = vmatprep.subr.mxu0 0.0
    %1650 = vmatpush1.msra.mxu0 0.0
    %1651 = vmatprep.subr.mxu0 0.0
    %1652 = vmatpush1.msra.mxu0 0.0
    %1653 = vmatprep.subr.mxu0 0.0
    %1654 = vmatpush1.msra.mxu0 0.0
    %1655 = vmatprep.subr.mxu0 0.0
    %1656 = vmatpush1.msra.mxu0 0.0
    %1657 = vmatprep.subr.mxu0 0.0
    %1658 = vmatpush1.msra.mxu0 0.0
    %1659 = vmatprep.subr.mxu0 0.0
    %1660 = vmatpush1.msra.mxu0 0.0
    %1661 = vmatprep.subr.mxu0 0.0
    %1662 = vmatpush1.msra.mxu0 0.0
    %1663 = vmatprep.subr.mxu0 0.0
    %1664 = vmatpush1.msra.mxu0 0.0
    %1665 = vmatprep.subr.mxu0 0.0
    %1666 = vmatpush1.msra.mxu0 0.0
    %1667 = vmatprep.subr.mxu0 0.0
    %1668 = vmatpush1.msra.mxu0 0.0
    %1669 = vmatprep.subr.mxu0 0.0
    %1670 = vmatpush1.msra.mxu0 0.0
    %1671 = vmatprep.subr.mxu0 0.0
    %1672 = vmatpush1.msra.mxu0 0.0
    %1673 = vmatprep.subr.mxu0 0.0
    %1674 = vmatpush1.msra.mxu0 0.0
    %1675 = vmatprep.subr.mxu0 0.0
    %1676 = vmatpush1.msra.mxu0 0.0
    %1677 = vmatprep.subr.mxu0 0.0
    %1678 = vmatpush1.msra.mxu0 0.0
    %1679 = vmatprep.subr.mxu0 0.0
    %1680 = vmatpush1.msra.mxu0 0.0
    %1681 = vmatprep.subr.mxu0 0.0
    %1682 = vmatpush1.msra.mxu0 0.0
    %1683 = vmatprep.subr.mxu0 0.0
    %1684 = vmatpush1.msra.mxu0 0.0
    %1685 = vmatprep.subr.mxu0 0.0
    %1686 = vmatpush1.msra.mxu0 0.0
    %1687 = vmatprep.subr.mxu0 0.0
    %1688 = vmatpush1.msra.mxu0 0.0
    %1689 = vmatprep.mubr.f32.mxu0 0.0
    %1690 = vmatmul.mubr.f32.gmra.mrb[0].mxu0 %v1623
    %v1691 = vpop.f32.mrb[0].mxu0
    %v1692 = vadd.f32 %v1619, %v1691
    %v1693 = vpop.f32.mrb[0].mxu0
    %1694 = vdwg.mxu0
    %1695 = vst [vmem:[#allocation2] sm:$0xff] %v1692
    // Predicated region
    $region50: #{forward.3} parent=1 // pred_check
      _
    $region51: #{forward.3} parent=1 // pred_check_branch
      %1697 = sbr.rel (0) target = $region53
    $region52: #{forward.3} parent=1 // pred_region
      %s1699 = ssub.s32 128, 128
      %1700 = vsyncadd [#allocation3], %s1699
      %s1702 = sshll.u32 [#allocation2], 4
      %s1703 = int_to_ptr.vmem [resolvable:$true] %s1702
      %1705 = dma.vmem_to_hbm [thread:$0]  %s1703, 128, %s12, [#allocation3]
    $region53: #{forward.3} parent=1 // pred_fallthru
      _
    // Predicated region
    $region54: #{forward.3} parent=1 // pred_check
      _
    $region55: #{forward.3} parent=1 // pred_check_branch
      %1707 = sbr.rel (0) target = $region57
    $region56: #{forward.3} parent=1 // pred_region
      %1708 = dma.done [#allocation3], 128
    $region57: #{forward.3} parent=1 // pred_fallthru
      _
    %1709 = vsyncpa [#allocation3], 1

// kernel: forward.2
$region0: #{forward.2}
  #allocation0 [shape = 'u32[]', space=smem, size = 0x4, offset = 0x4, fixed_abs, tag = 'smem constant byte address 0x4 - core index']
  #allocation1 [shape = 'u32[144,128]{1,0:T(1,128)}', space=vmem, size = 0x12000, scoped, tag = 'internal scratch']
  %s0 = inlined_call_operand.hbm [shape: f32[19,8,768], index: 0, kind: input, shape index: {}]
  %s1 = inlined_call_operand.hbm [shape: bf16[768,384], index: 1, kind: input, shape index: {}]
  %s2 = inlined_call_operand.hbm [shape: f32[1,384], index: 2, kind: input, shape index: {}]
  %s3 = inlined_call_operand.hbm [shape: f32[1,384], index: 3, kind: input, shape index: {}]
  %s4 = inlined_call_operand.hbm [shape: f32[1,384], index: 4, kind: input, shape index: {}]
  %s5 = inlined_call_operand.hbm [shape: bf16[384,384], index: 5, kind: input, shape index: {}]
  %s6 = inlined_call_operand.hbm [shape: f32[1,384], index: 6, kind: input, shape index: {}]
  %s7 = inlined_call_operand.vmem [shape: f32[20,8,768], index: 7, kind: input, shape index: {}]
  %s8 = inlined_call_operand.hbm [shape: bf16[20,384,768], index: 8, kind: input, shape index: {}]
  %s9 = inlined_call_operand.hbm [shape: bf16[20,768,768], index: 9, kind: input, shape index: {}]
  %s10 = inlined_call_operand.hbm [shape: f32[20,1,768], index: 10, kind: input, shape index: {}]
  %s11 = inlined_call_operand.vmem [shape: f32[20,8,768], index: 11, kind: output, shape index: {}]
  %s12 = sld [smem:[#allocation0]]
  $region117: #{forward.2} parent=0
    _
  %s14 = ssub.s32 1, %s12
  %s15 = scalar_select 0, %s14, %s12
  $region1: #{forward.2} parent=0
    #allocation2 [shape = 'u8[466944]{0}', space=vmem, size = 0x72000, scoped, tag = 'input window, operand 0, single buffered']
    #allocation3 [shape = 's32[2]{0}', space=sflag, size = 0x8, scoped, tag = 'scoped memory for forward.2']
    #allocation4 [shape = 'u8[589824]{0}', space=vmem, size = 0x90000, scoped, tag = 'input window, operand 1, single buffered']
    #allocation5 [shape = 's32[1]{0}', space=sflag, size = 0x4, scoped, tag = 'scoped memory for forward.2']
    #allocation6 [shape = 'u8[1536]{0}', space=vmem, size = 0x800, scoped, tag = 'input window, operand 2, single buffered']
    #allocation7 [shape = 'u8[1536]{0}', space=vmem, size = 0x800, scoped, tag = 'input window, operand 3, single buffered']
    #allocation8 [shape = 's32[1]{0}', space=sflag, size = 0x4, scoped, tag = 'scoped memory for forward.2']
    #allocation9 [shape = 'u8[1536]{0}', space=vmem, size = 0x800, scoped, tag = 'input window, operand 4, single buffered']
    #allocation10 [shape = 'u8[294912]{0}', space=vmem, size = 0x48000, scoped, tag = 'input window, operand 5, single buffered']
    #allocation11 [shape = 's32[1]{0}', space=sflag, size = 0x4, scoped, tag = 'scoped memory for forward.2']
    #allocation12 [shape = 'u8[1536]{0}', space=vmem, size = 0x800, scoped, tag = 'input window, operand 6, single buffered']
    #allocation13 [shape = 'u8[2359296]{0}', space=vmem, size = 0x240000, scoped, tag = 'input window, operand 8']
    #allocation14 [shape = 's32[2]{0}', space=sflag, size = 0x8, scoped, tag = 'scoped memory for forward.2']
    #allocation15 [shape = 'u8[4718592]{0}', space=vmem, size = 0x480000, scoped, tag = 'input window, operand 9']
    #allocation16 [shape = 'u8[12288]{0}', space=vmem, size = 0x3000, scoped, tag = 'input window, operand 10']
    #allocation17 [shape = 's32[2]{0}', space=sflag, size = 0x8, scoped, tag = 'scoped memory for forward.2']
    %16 = vsyncpa [#allocation3], 0
    %17 = vsyncpa [#allocation5], 0
    %18 = vsyncpa [#allocation8], 0
    %19 = vsyncpa [#allocation11], 0
    %20 = vsyncpa [#allocation14], 0
    %s21 = scalar_lea.sflag [#allocation14], 1
    %22 = vsyncpa %s21, 0
    %23 = vsyncpa [#allocation17], 0
    %s24 = scalar_lea.sflag [#allocation17], 1
    %25 = vsyncpa %s24, 0
    loop: start=0, step=1, limit=12
    $region2: #{forward.2} parent=1 // loop_pre_header
      _
    $region3: #{forward.2} parent=1 // loop_header
      %s27 = sphi 0, %s31
      %p28 = scmp.ge.s32.totalorder %s27, 12
      %s35 = sphi 0, %s35
      %s37 = sphi 0, %s35
      %s38 = sphi 0, %s37
      %s52 = sphi 0, %s38
      %s56 = sphi 0, %s56
      %s58 = sphi 0, %s56
      %s59 = sphi 0, %s58
      %s73 = sphi 0, %s59
      %s77 = sphi 0, %s77
      %s79 = sphi 0, %s77
      %s80 = sphi 0, %s79
      %s94 = sphi 0, %s80
      %s98 = sphi 0, %s98
      %s100 = sphi 0, %s98
      %s101 = sphi 0, %s100
      %s115 = sphi 0, %s101
      %s119 = sphi 0, %s119
      %s121 = sphi 0, %s119
      %s122 = sphi 0, %s121
      %s136 = sphi 0, %s122
      %s140 = sphi 0, %s140
      %s142 = sphi 0, %s140
      %s143 = sphi 0, %s142
      %s157 = sphi 0, %s143
      %s161 = sphi 0, %s161
      %s163 = sphi 0, %s161
      %s164 = sphi 0, %s163
      %s178 = sphi 0, %s164
      %s184 = sphi 0, %s186
      %s187 = sphi 0, %s184
      %s188 = sphi 0, %s187
      %s204 = sphi 0, %s188
      %s210 = sphi 0, %s212
      %s213 = sphi 0, %s210
      %s214 = sphi 0, %s213
      %s230 = sphi 0, %s214
      %s236 = sphi 0, %s238
      %s239 = sphi 0, %s236
      %s240 = sphi 0, %s239
      %s256 = sphi 0, %s240
      %s262 = sphi 0, %s264
      %s265 = sphi 0, %s262
      %s266 = sphi 0, %s265
      %s282 = sphi 0, %s266
      %s288 = sphi 0, %s290
      %s291 = sphi 0, %s288
      %s292 = sphi 0, %s291
      %s308 = sphi 0, %s292
    $region4: #{forward.2} parent=1 // loop_header_branch
      %30 = sbr.rel (%p28) target = $region8
    $region5: #{forward.2} parent=1 // loop_body
      %s32 = ssub.s32 %s27, 1
      %s33 = ssub.s32 %s27, 2
      %s34 = sadd.s32 %s27, 1
      %s36 = sadd.s32 %s35, 1
      %p39 = scmp.eq.s32.totalorder %s27, 9
      %p40 = scmp.ne.s32.totalorder %s35, %s37
      %p41 = scmp.eq.s32.totalorder %s27, 0
      %p42 = por %p40, %p41
      %p43 = scmp.ne.s32.totalorder %s35, %s37
      %p44 = scmp.eq.s32.totalorder %s32, 9
      %p45 = por %p43, %p44
      %p46 = scmp.ne.s32.totalorder %s37, %s38
      %p47 = scmp.eq.s32.totalorder %s32, 0
      %p48 = por %p46, %p47
      %p49 = scmp.ne.s32.totalorder %s37, %s38
      %p50 = scmp.eq.s32.totalorder %s33, 9
      %p51 = por %p49, %p50
      %p53 = scmp.ne.s32.totalorder %s38, %s52
      %p54 = scmp.eq.s32.totalorder %s33, 0
      %p55 = por %p53, %p54
      %s57 = sadd.s32 %s56, 1
      %p60 = scmp.eq.s32.totalorder %s27, 9
      %p61 = scmp.ne.s32.totalorder %s56, %s58
      %p62 = scmp.eq.s32.totalorder %s27, 0
      %p63 = por %p61, %p62
      %p64 = scmp.ne.s32.totalorder %s56, %s58
      %p65 = scmp.eq.s32.totalorder %s32, 9
      %p66 = por %p64, %p65
      %p67 = scmp.ne.s32.totalorder %s58, %s59
      %p68 = scmp.eq.s32.totalorder %s32, 0
      %p69 = por %p67, %p68
      %p70 = scmp.ne.s32.totalorder %s58, %s59
      %p71 = scmp.eq.s32.totalorder %s33, 9
      %p72 = por %p70, %p71
      %p74 = scmp.ne.s32.totalorder %s59, %s73
      %p75 = scmp.eq.s32.totalorder %s33, 0
      %p76 = por %p74, %p75
      %s78 = sadd.s32 %s77, 1
      %p81 = scmp.eq.s32.totalorder %s27, 9
      %p82 = scmp.ne.s32.totalorder %s77, %s79
      %p83 = scmp.eq.s32.totalorder %s27, 0
      %p84 = por %p82, %p83
      %p85 = scmp.ne.s32.totalorder %s77, %s79
      %p86 = scmp.eq.s32.totalorder %s32, 9
      %p87 = por %p85, %p86
      %p88 = scmp.ne.s32.totalorder %s79, %s80
      %p89 = scmp.eq.s32.totalorder %s32, 0
      %p90 = por %p88, %p89
      %p91 = scmp.ne.s32.totalorder %s79, %s80
      %p92 = scmp.eq.s32.totalorder %s33, 9
      %p93 = por %p91, %p92
      %p95 = scmp.ne.s32.totalorder %s80, %s94
      %p96 = scmp.eq.s32.totalorder %s33, 0
      %p97 = por %p95, %p96
      %s99 = sadd.s32 %s98, 1
      %p102 = scmp.eq.s32.totalorder %s27, 9
      %p103 = scmp.ne.s32.totalorder %s98, %s100
      %p104 = scmp.eq.s32.totalorder %s27, 0
      %p105 = por %p103, %p104
      %p106 = scmp.ne.s32.totalorder %s98, %s100
      %p107 = scmp.eq.s32.totalorder %s32, 9
      %p108 = por %p106, %p107
      %p109 = scmp.ne.s32.totalorder %s100, %s101
      %p110 = scmp.eq.s32.totalorder %s32, 0
      %p111 = por %p109, %p110
      %p112 = scmp.ne.s32.totalorder %s100, %s101
      %p113 = scmp.eq.s32.totalorder %s33, 9
      %p114 = por %p112, %p113
      %p116 = scmp.ne.s32.totalorder %s101, %s115
      %p117 = scmp.eq.s32.totalorder %s33, 0
      %p118 = por %p116, %p117
      %s120 = sadd.s32 %s119, 1
      %p123 = scmp.eq.s32.totalorder %s27, 9
      %p124 = scmp.ne.s32.totalorder %s119, %s121
      %p125 = scmp.eq.s32.totalorder %s27, 0
      %p126 = por %p124, %p125
      %p127 = scmp.ne.s32.totalorder %s119, %s121
      %p128 = scmp.eq.s32.totalorder %s32, 9
      %p129 = por %p127, %p128
      %p130 = scmp.ne.s32.totalorder %s121, %s122
      %p131 = scmp.eq.s32.totalorder %s32, 0
      %p132 = por %p130, %p131
      %p133 = scmp.ne.s32.totalorder %s121, %s122
      %p134 = scmp.eq.s32.totalorder %s33, 9
      %p135 = por %p133, %p134
      %p137 = scmp.ne.s32.totalorder %s122, %s136
      %p138 = scmp.eq.s32.totalorder %s33, 0
      %p139 = por %p137, %p138
      %s141 = sadd.s32 %s140, 1
      %p144 = scmp.eq.s32.totalorder %s27, 9
      %p145 = scmp.ne.s32.totalorder %s140, %s142
      %p146 = scmp.eq.s32.totalorder %s27, 0
      %p147 = por %p145, %p146
      %p148 = scmp.ne.s32.totalorder %s140, %s142
      %p149 = scmp.eq.s32.totalorder %s32, 9
      %p150 = por %p148, %p149
      %p151 = scmp.ne.s32.totalorder %s142, %s143
      %p152 = scmp.eq.s32.totalorder %s32, 0
      %p153 = por %p151, %p152
      %p154 = scmp.ne.s32.totalorder %s142, %s143
      %p155 = scmp.eq.s32.totalorder %s33, 9
      %p156 = por %p154, %p155
      %p158 = scmp.ne.s32.totalorder %s143, %s157
      %p159 = scmp.eq.s32.totalorder %s33, 0
      %p160 = por %p158, %p159
      %s162 = sadd.s32 %s161, 1
      %p165 = scmp.eq.s32.totalorder %s27, 9
      %p166 = scmp.ne.s32.totalorder %s161, %s163
      %p167 = scmp.eq.s32.totalorder %s27, 0
      %p168 = por %p166, %p167
      %p169 = scmp.ne.s32.totalorder %s161, %s163
      %p170 = scmp.eq.s32.totalorder %s32, 9
      %p171 = por %p169, %p170
      %p172 = scmp.ne.s32.totalorder %s163, %s164
      %p173 = scmp.eq.s32.totalorder %s32, 0
      %p174 = por %p172, %p173
      %p175 = scmp.ne.s32.totalorder %s163, %s164
      %p176 = scmp.eq.s32.totalorder %s33, 9
      %p177 = por %p175, %p176
      %p179 = scmp.ne.s32.totalorder %s164, %s178
      %p180 = scmp.eq.s32.totalorder %s33, 0
      %p181 = por %p179, %p180
      %s182 = ssub.s32 %s27, %s34
      %p183 = scmp.eq.s32.totalorder %s182, 0
      %s185 = sadd.s32 %s184, 1
      %s186 = scalar_select %p183, %s184, %s185
      %p189 = pneg %p183
      %p190 = scmp.eq.s32.totalorder %s27, 9
      %p191 = por %p189, %p190
      %p192 = scmp.ne.s32.totalorder %s184, %s187
      %p193 = scmp.eq.s32.totalorder %s27, 0
      %p194 = por %p192, %p193
      %p195 = scmp.ne.s32.totalorder %s184, %s187
      %p196 = scmp.eq.s32.totalorder %s32, 9
      %p197 = por %p195, %p196
      %p198 = scmp.ne.s32.totalorder %s187, %s188
      %p199 = scmp.eq.s32.totalorder %s32, 0
      %p200 = por %p198, %p199
      %p201 = scmp.ne.s32.totalorder %s187, %s188
      %p202 = scmp.eq.s32.totalorder %s33, 9
      %p203 = por %p201, %p202
      %p205 = scmp.ne.s32.totalorder %s188, %s204
      %p206 = scmp.eq.s32.totalorder %s33, 0
      %p207 = por %p205, %p206
      %s208 = ssub.s32 %s27, %s34
      %p209 = scmp.eq.s32.totalorder %s208, 0
      %s211 = sadd.s32 %s210, 1
      %s212 = scalar_select %p209, %s210, %s211
      %p215 = pneg %p209
      %p216 = scmp.eq.s32.totalorder %s27, 9
      %p217 = por %p215, %p216
      %p218 = scmp.ne.s32.totalorder %s210, %s213
      %p219 = scmp.eq.s32.totalorder %s27, 0
      %p220 = por %p218, %p219
      %p221 = scmp.ne.s32.totalorder %s210, %s213
      %p222 = scmp.eq.s32.totalorder %s32, 9
      %p223 = por %p221, %p222
      %p224 = scmp.ne.s32.totalorder %s213, %s214
      %p225 = scmp.eq.s32.totalorder %s32, 0
      %p226 = por %p224, %p225
      %p227 = scmp.ne.s32.totalorder %s213, %s214
      %p228 = scmp.eq.s32.totalorder %s33, 9
      %p229 = por %p227, %p228
      %p231 = scmp.ne.s32.totalorder %s214, %s230
      %p232 = scmp.eq.s32.totalorder %s33, 0
      %p233 = por %p231, %p232
      %s234 = ssub.s32 %s27, %s34
      %p235 = scmp.eq.s32.totalorder %s234, 0
      %s237 = sadd.s32 %s236, 1
      %s238 = scalar_select %p235, %s236, %s237
      %p241 = pneg %p235
      %p242 = scmp.eq.s32.totalorder %s27, 9
      %p243 = por %p241, %p242
      %p244 = scmp.ne.s32.totalorder %s236, %s239
      %p245 = scmp.eq.s32.totalorder %s27, 0
      %p246 = por %p244, %p245
      %p247 = scmp.ne.s32.totalorder %s236, %s239
      %p248 = scmp.eq.s32.totalorder %s32, 9
      %p249 = por %p247, %p248
      %p250 = scmp.ne.s32.totalorder %s239, %s240
      %p251 = scmp.eq.s32.totalorder %s32, 0
      %p252 = por %p250, %p251
      %p253 = scmp.ne.s32.totalorder %s239, %s240
      %p254 = scmp.eq.s32.totalorder %s33, 9
      %p255 = por %p253, %p254
      %p257 = scmp.ne.s32.totalorder %s240, %s256
      %p258 = scmp.eq.s32.totalorder %s33, 0
      %p259 = por %p257, %p258
      %s260 = ssub.s32 %s27, %s34
      %p261 = scmp.eq.s32.totalorder %s260, 0
      %s263 = sadd.s32 %s262, 1
      %s264 = scalar_select %p261, %s262, %s263
      %p267 = pneg %p261
      %p268 = scmp.eq.s32.totalorder %s27, 9
      %p269 = por %p267, %p268
      %p270 = scmp.ne.s32.totalorder %s262, %s265
      %p271 = scmp.eq.s32.totalorder %s27, 0
      %p272 = por %p270, %p271
      %p273 = scmp.ne.s32.totalorder %s262, %s265
      %p274 = scmp.eq.s32.totalorder %s32, 9
      %p275 = por %p273, %p274
      %p276 = scmp.ne.s32.totalorder %s265, %s266
      %p277 = scmp.eq.s32.totalorder %s32, 0
      %p278 = por %p276, %p277
      %p279 = scmp.ne.s32.totalorder %s265, %s266
      %p280 = scmp.eq.s32.totalorder %s33, 9
      %p281 = por %p279, %p280
      %p283 = scmp.ne.s32.totalorder %s266, %s282
      %p284 = scmp.eq.s32.totalorder %s33, 0
      %p285 = por %p283, %p284
      %s286 = ssub.s32 %s27, %s34
      %p287 = scmp.eq.s32.totalorder %s286, 0
      %s289 = sadd.s32 %s288, 1
      %s290 = scalar_select %p287, %s288, %s289
      %p293 = pneg %p287
      %p294 = scmp.eq.s32.totalorder %s27, 9
      %p295 = por %p293, %p294
      %p296 = scmp.ne.s32.totalorder %s288, %s291
      %p297 = scmp.eq.s32.totalorder %s27, 0
      %p298 = por %p296, %p297
      %p299 = scmp.ne.s32.totalorder %s288, %s291
      %p300 = scmp.eq.s32.totalorder %s32, 9
      %p301 = por %p299, %p300
      %p302 = scmp.ne.s32.totalorder %s291, %s292
      %p303 = scmp.eq.s32.totalorder %s32, 0
      %p304 = por %p302, %p303
      %p305 = scmp.ne.s32.totalorder %s291, %s292
      %p306 = scmp.eq.s32.totalorder %s33, 9
      %p307 = por %p305, %p306
      %p309 = scmp.ne.s32.totalorder %s292, %s308
      %p310 = scmp.eq.s32.totalorder %s33, 0
      %p311 = por %p309, %p310
      %p312 = scmp.le.s32.totalorder 1, %s27
      %p313 = scmp.lt.s32.totalorder %s27, 11
      %p314 = pnand %p312, %p313
      %p315 = pneg %p314
      // Predicated region
      $region9: #{forward.2} parent=5 // pred_check
        _
      $region10: #{forward.2} parent=5 // pred_check_branch
        %317 = sbr.rel (%p314) target = $region12
      $region11: #{forward.2} parent=5 // pred_region
        %s318 = ssub.s32 %s27, 1
        // Predicated region
        $region13: #{forward.2} parent=11 // pred_check
          %p319 = pneg %p48
        $region14: #{forward.2} parent=11 // pred_check_branch
          %321 = sbr.rel (%p319) target = $region16
        $region15: #{forward.2} parent=11 // pred_region
          %s323 = ssub.s32 14592, 14592
          %324 = vsyncadd [#allocation3], %s323
          %s325 = sshll.u32 [#allocation2], 4
          %s326 = int_to_ptr.vmem [resolvable:$true] %s325
          %331 = dma.hbm_to_vmem [thread:$0]  %s0, 14592, %s326, [#allocation3], 768, 768, 48
        $region16: #{forward.2} parent=11 // pred_fallthru
          _
        // Predicated region
        $region17: #{forward.2} parent=11 // pred_check
          %p332 = pneg %p69
        $region18: #{forward.2} parent=11 // pred_check_branch
          %334 = sbr.rel (%p332) target = $region20
        $region19: #{forward.2} parent=11 // pred_region
          %s336 = ssub.s32 18432, 18432
          %337 = vsyncadd [#allocation5], %s336
          %s338 = sshll.u32 [#allocation4], 4
          %s339 = int_to_ptr.vmem [resolvable:$true] %s338
          %344 = dma.hbm_to_vmem [thread:$0]  %s1, 18432, %s339, [#allocation5], 192, 192, 12
        $region20: #{forward.2} parent=11 // pred_fallthru
          _
        // Predicated region
        $region21: #{forward.2} parent=11 // pred_check
          %p345 = pneg %p90
        $region22: #{forward.2} parent=11 // pred_check_branch
          %347 = sbr.rel (%p345) target = $region24
        $region23: #{forward.2} parent=11 // pred_region
          %s349 = ssub.s32 48, 48
          %350 = vsyncadd [#allocation5], %s349
          %s352 = sshll.u32 [#allocation6], 4
          %s353 = int_to_ptr.vmem [resolvable:$true] %s352
          %355 = dma.hbm_to_vmem [thread:$0]  %s2, 48, %s353, [#allocation5]
        $region24: #{forward.2} parent=11 // pred_fallthru
          _
        // Predicated region
        $region25: #{forward.2} parent=11 // pred_check
          %p356 = pneg %p111
        $region26: #{forward.2} parent=11 // pred_check_branch
          %358 = sbr.rel (%p356) target = $region28
        $region27: #{forward.2} parent=11 // pred_region
          %s360 = ssub.s32 48, 48
          %361 = vsyncadd [#allocation8], %s360
          %s363 = sshll.u32 [#allocation7], 4
          %s364 = int_to_ptr.vmem [resolvable:$true] %s363
          %366 = dma.hbm_to_vmem [thread:$0]  %s3, 48, %s364, [#allocation8]
        $region28: #{forward.2} parent=11 // pred_fallthru
          _
        // Predicated region
        $region29: #{forward.2} parent=11 // pred_check
          %p367 = pneg %p132
        $region30: #{forward.2} parent=11 // pred_check_branch
          %369 = sbr.rel (%p367) target = $region32
        $region31: #{forward.2} parent=11 // pred_region
          %s371 = ssub.s32 48, 48
          %372 = vsyncadd [#allocation8], %s371
          %s374 = sshll.u32 [#allocation9], 4
          %s375 = int_to_ptr.vmem [resolvable:$true] %s374
          %377 = dma.hbm_to_vmem [thread:$0]  %s4, 48, %s375, [#allocation8]
        $region32: #{forward.2} parent=11 // pred_fallthru
          _
        // Predicated region
        $region33: #{forward.2} parent=11 // pred_check
          %p378 = pneg %p153
        $region34: #{forward.2} parent=11 // pred_check_branch
          %380 = sbr.rel (%p378) target = $region36
        $region35: #{forward.2} parent=11 // pred_region
          %s382 = ssub.s32 9216, 9216
          %383 = vsyncadd [#allocation11], %s382
          %s384 = sshll.u32 [#allocation10], 4
          %s385 = int_to_ptr.vmem [resolvable:$true] %s384
          %390 = dma.hbm_to_vmem [thread:$0]  %s5, 9216, %s385, [#allocation11], 192, 192, 12
        $region36: #{forward.2} parent=11 // pred_fallthru
          _
        // Predicated region
        $region37: #{forward.2} parent=11 // pred_check
          %p391 = pneg %p174
        $region38: #{forward.2} parent=11 // pred_check_branch
          %393 = sbr.rel (%p391) target = $region40
        $region39: #{forward.2} parent=11 // pred_region
          %s395 = ssub.s32 48, 48
          %396 = vsyncadd [#allocation11], %s395
          %s398 = sshll.u32 [#allocation12], 4
          %s399 = int_to_ptr.vmem [resolvable:$true] %s398
          %401 = dma.hbm_to_vmem [thread:$0]  %s6, 48, %s399, [#allocation11]
        $region40: #{forward.2} parent=11 // pred_fallthru
          _
      $region12: #{forward.2} parent=5 // pred_fallthru
        _
      %p402 = scmp.lt.s32.totalorder %s27, 10
      // Predicated region
      $region41: #{forward.2} parent=5 // pred_check
        %p403 = pneg %p402
      $region42: #{forward.2} parent=5 // pred_check_branch
        %405 = sbr.rel (%p403) target = $region44
      $region43: #{forward.2} parent=5 // pred_region
        // Predicated region
        $region45: #{forward.2} parent=43 // pred_check
          %p406 = pneg %p194
        $region46: #{forward.2} parent=43 // pred_check_branch
          %408 = sbr.rel (%p406) target = $region48
        $region47: #{forward.2} parent=43 // pred_region
          %s409 = smul.u32 2, %s27
          %p410 = scmp.lt.s32.totalorder %s409, 19
          %s411 = scalar_select %p410, %s409, 19
          %s412 = smul.addr %s411, 6
          %s413 = smul.addr %s412, 8
          %s414 = scalar_lea.vmem %s7, %s413
          %s415 = smul.u32 2, %s27
        $region48: #{forward.2} parent=43 // pred_fallthru
          _
        // Predicated region
        $region49: #{forward.2} parent=43 // pred_check
          %p416 = pneg %p220
        $region50: #{forward.2} parent=43 // pred_check_branch
          %418 = sbr.rel (%p416) target = $region52
        $region51: #{forward.2} parent=43 // pred_region
          %s419 = sand.u32 %s27, 1
          %s420 = scalar_lea.sflag [#allocation14], %s419
          %s421 = sand.u32 %s210, 1
          %s422 = smul.addr %s421, 2304
          %s423 = scalar_lea.vmem [#allocation13], %s422
          %s424 = smul.u32 2, %s27
          %s426 = ssub.s32 36864, 36864
          %427 = vsyncadd %s420, %s426
          %s428 = smul.addr %s424, 288
          %s429 = smul.addr %s428, 64
          %s430 = scalar_lea.hbm %s8, %s429
          %s431 = sshll.u32 %s423, 4
          %s432 = int_to_ptr.vmem [resolvable:$true] %s431
          %437 = dma.hbm_to_vmem [thread:$0]  %s430, 36864, %s432, %s420, 384, 384, 24
        $region52: #{forward.2} parent=43 // pred_fallthru
          _
        // Predicated region
        $region53: #{forward.2} parent=43 // pred_check
          %p438 = pneg %p246
        $region54: #{forward.2} parent=43 // pred_check_branch
          %440 = sbr.rel (%p438) target = $region56
        $region55: #{forward.2} parent=43 // pred_region
          %s441 = sand.u32 %s27, 1
          %s442 = scalar_lea.sflag [#allocation14], %s441
          %s443 = sand.u32 %s236, 1
          %s444 = smul.addr %s443, 4608
          %s445 = scalar_lea.vmem [#allocation15], %s444
          %s446 = smul.u32 2, %s27
          %s448 = ssub.s32 73728, 73728
          %449 = vsyncadd %s442, %s448
          %s450 = smul.addr %s446, 576
          %s451 = smul.addr %s450, 64
          %s452 = scalar_lea.hbm %s9, %s451
          %s453 = sshll.u32 %s445, 4
          %s454 = int_to_ptr.vmem [resolvable:$true] %s453
          %459 = dma.hbm_to_vmem [thread:$0]  %s452, 73728, %s454, %s442, 384, 384, 24
        $region56: #{forward.2} parent=43 // pred_fallthru
          _
        // Predicated region
        $region57: #{forward.2} parent=43 // pred_check
          %p460 = pneg %p272
        $region58: #{forward.2} parent=43 // pred_check_branch
          %462 = sbr.rel (%p460) target = $region60
        $region59: #{forward.2} parent=43 // pred_region
          %s463 = sand.u32 %s262, 1
          %s464 = scalar_lea.sflag [#allocation17], %s463
          %s465 = sand.u32 %s262, 1
          %s466 = smul.addr %s465, 12
          %s467 = scalar_lea.vmem [#allocation16], %s466
          %s468 = smul.u32 2, %s27
          %s470 = ssub.s32 192, 192
          %471 = vsyncadd %s464, %s470
          %s472 = smul.addr %s468, 6
          %s473 = smul.addr %s472, 16
          %s474 = scalar_lea.hbm %s10, %s473
          %s475 = sshll.u32 %s467, 4
          %s476 = int_to_ptr.vmem [resolvable:$true] %s475
          %481 = dma.hbm_to_vmem [thread:$0]  %s474, 192, %s476, %s464, 96, 96, 6
        $region60: #{forward.2} parent=43 // pred_fallthru
          _
      $region44: #{forward.2} parent=5 // pred_fallthru
        _
      %p482 = scmp.le.s32.totalorder 1, %s27
      %p483 = scmp.lt.s32.totalorder %s27, 11
      %p484 = pnand %p482, %p483
      %p485 = pneg %p484
      // Predicated region
      $region61: #{forward.2} parent=5 // pred_check
        _
      $region62: #{forward.2} parent=5 // pred_check_branch
        %487 = sbr.rel (%p484) target = $region64
      $region63: #{forward.2} parent=5 // pred_region
        %s488 = ssub.s32 %s27, 1
        // Predicated region
        $region65: #{forward.2} parent=63 // pred_check
          %p489 = pneg %p48
        $region66: #{forward.2} parent=63 // pred_check_branch
          %491 = sbr.rel (%p489) target = $region68
        $region67: #{forward.2} parent=63 // pred_region
          %492 = dma.done [#allocation3], 14592
        $region68: #{forward.2} parent=63 // pred_fallthru
          _
        // Predicated region
        $region69: #{forward.2} parent=63 // pred_check
          %p493 = pneg %p69
        $region70: #{forward.2} parent=63 // pred_check_branch
          %495 = sbr.rel (%p493) target = $region72
        $region71: #{forward.2} parent=63 // pred_region
          %496 = dma.done [#allocation5], 18432
        $region72: #{forward.2} parent=63 // pred_fallthru
          _
        // Predicated region
        $region73: #{forward.2} parent=63 // pred_check
          %p497 = pneg %p90
        $region74: #{forward.2} parent=63 // pred_check_branch
          %499 = sbr.rel (%p497) target = $region76
        $region75: #{forward.2} parent=63 // pred_region
          %500 = dma.done [#allocation5], 48
        $region76: #{forward.2} parent=63 // pred_fallthru
          _
        // Predicated region
        $region77: #{forward.2} parent=63 // pred_check
          %p501 = pneg %p111
        $region78: #{forward.2} parent=63 // pred_check_branch
          %503 = sbr.rel (%p501) target = $region80
        $region79: #{forward.2} parent=63 // pred_region
          %504 = dma.done [#allocation8], 48
        $region80: #{forward.2} parent=63 // pred_fallthru
          _
        // Predicated region
        $region81: #{forward.2} parent=63 // pred_check
          %p505 = pneg %p132
        $region82: #{forward.2} parent=63 // pred_check_branch
          %507 = sbr.rel (%p505) target = $region84
        $region83: #{forward.2} parent=63 // pred_region
          %508 = dma.done [#allocation8], 48
        $region84: #{forward.2} parent=63 // pred_fallthru
          _
        // Predicated region
        $region85: #{forward.2} parent=63 // pred_check
          %p509 = pneg %p153
        $region86: #{forward.2} parent=63 // pred_check_branch
          %511 = sbr.rel (%p509) target = $region88
        $region87: #{forward.2} parent=63 // pred_region
          %512 = dma.done [#allocation11], 9216
        $region88: #{forward.2} parent=63 // pred_fallthru
          _
        // Predicated region
        $region89: #{forward.2} parent=63 // pred_check
          %p513 = pneg %p174
        $region90: #{forward.2} parent=63 // pred_check_branch
          %515 = sbr.rel (%p513) target = $region92
        $region91: #{forward.2} parent=63 // pred_region
          %516 = dma.done [#allocation11], 48
        $region92: #{forward.2} parent=63 // pred_fallthru
          _
        %s517 = sand.u32 %s32, 1
        %s518 = scalar_lea.sflag [#allocation14], %s517
        %s519 = sand.u32 %s213, 1
        %s520 = smul.addr %s519, 2304
        %s521 = scalar_lea.vmem [#allocation13], %s520
        // Predicated region
        $region93: #{forward.2} parent=63 // pred_check
          %p522 = pneg %p226
        $region94: #{forward.2} parent=63 // pred_check_branch
          %524 = sbr.rel (%p522) target = $region96
        $region95: #{forward.2} parent=63 // pred_region
          %525 = dma.done %s518, 36864
        $region96: #{forward.2} parent=63 // pred_fallthru
          _
        %s526 = sand.u32 %s32, 1
        %s527 = scalar_lea.sflag [#allocation14], %s526
        %s528 = sand.u32 %s239, 1
        %s529 = smul.addr %s528, 4608
        %s530 = scalar_lea.vmem [#allocation15], %s529
        // Predicated region
        $region97: #{forward.2} parent=63 // pred_check
          %p531 = pneg %p252
        $region98: #{forward.2} parent=63 // pred_check_branch
          %533 = sbr.rel (%p531) target = $region100
        $region99: #{forward.2} parent=63 // pred_region
          %534 = dma.done %s527, 73728
        $region100: #{forward.2} parent=63 // pred_fallthru
          _
        %s535 = sand.u32 %s265, 1
        %s536 = scalar_lea.sflag [#allocation17], %s535
        %s537 = sand.u32 %s265, 1
        %s538 = smul.addr %s537, 12
        %s539 = scalar_lea.vmem [#allocation16], %s538
        // Predicated region
        $region101: #{forward.2} parent=63 // pred_check
          %p540 = pneg %p278
        $region102: #{forward.2} parent=63 // pred_check_branch
          %542 = sbr.rel (%p540) target = $region104
        $region103: #{forward.2} parent=63 // pred_region
          %543 = dma.done %s536, 192
        $region104: #{forward.2} parent=63 // pred_fallthru
          _
        %p544 = pneg %p48
        %p545 = pneg %p45
        %p546 = pneg %p69
        %p547 = pneg %p66
        %p548 = pneg %p90
        %p549 = pneg %p87
        %p550 = pneg %p111
        %p551 = pneg %p108
        %p552 = pneg %p132
        %p553 = pneg %p129
        %p554 = pneg %p153
        %p555 = pneg %p150
        %p556 = pneg %p174
        %p557 = pneg %p171
        %s558 = smul.u32 2, %s32
        %p559 = scmp.lt.s32.totalorder %s558, 19
        %s560 = scalar_select %p559, %s558, 19
        %s561 = smul.addr %s560, 6
        %s562 = smul.addr %s561, 8
        %s563 = scalar_lea.vmem %s7, %s562
        %p564 = pneg %p200
        %p565 = pneg %p197
        %s566 = sand.u32 %s32, 1
        %s567 = scalar_lea.sflag [#allocation14], %s566
        %s568 = sand.u32 %s213, 1
        %s569 = smul.addr %s568, 2304
        %s570 = scalar_lea.vmem [#allocation13], %s569
        %p571 = pneg %p226
        %p572 = pneg %p223
        %s573 = sand.u32 %s32, 1
        %s574 = scalar_lea.sflag [#allocation14], %s573
        %s575 = sand.u32 %s239, 1
        %s576 = smul.addr %s575, 4608
        %s577 = scalar_lea.vmem [#allocation15], %s576
        %p578 = pneg %p252
        %p579 = pneg %p249
        %s580 = sand.u32 %s265, 1
        %s581 = scalar_lea.sflag [#allocation17], %s580
        %s582 = sand.u32 %s265, 1
        %s583 = smul.addr %s582, 12
        %s584 = scalar_lea.vmem [#allocation16], %s583
        %p585 = pneg %p278
        %p586 = pneg %p275
        %p587 = pneg %p304
        %p588 = pneg %p301
        %s589 = smul.u32 2, %s32
        %p590 = scmp.lt.s32.totalorder %s589, 19
        %s591 = scalar_select %p590, %s589, 19
        %s592 = smul.addr %s591, 6
        %s593 = smul.addr %s592, 8
        %s594 = scalar_lea.vmem %s11, %s593
        %s595 = smul.u32 2, %s32
        %p596 = scmp.lt.s32.totalorder %s595, 19
        %s597 = scalar_select %p596, %s595, 19
        %s598 = smul.addr %s597, 6
        %s599 = smul.addr %s598, 8
        %s600 = scalar_lea.vmem %s7, %s599
        %s601 = smul.u32 2, %s32
        %s602 = smul.u32 2, %s32
        %s603 = smul.u32 2, %s32
        %s604 = smul.u32 2, %s32
        %s605 = smul.u32 2, %s32
        %p606 = scmp.lt.s32.totalorder %s605, 19
        %s607 = scalar_select %p606, %s605, 19
        %s608 = smul.addr %s607, 6
        %s609 = smul.addr %s608, 8
        %s610 = scalar_lea.vmem %s11, %s609
        %s611 = smul.u32 2, %s32
        %v613 = vld [vmem:[#allocation2] sm:$0xff]
        %v614 = vld [vmem:[#allocation2 + $0x8] sm:$0xff]
        %v615 = vld [vmem:[#allocation2 + $0x10] sm:$0xff]
        %v616 = vld [vmem:[#allocation2 + $0x18] sm:$0xff]
        %v617 = vld [vmem:[#allocation2 + $0x20] sm:$0xff]
        %v618 = vld [vmem:[#allocation2 + $0x28] sm:$0xff]
        %v619 = vld [vmem:[#allocation2 + $0x30] sm:$0xff]
        %v620 = vld [vmem:[#allocation2 + $0x38] sm:$0xff]
        %v621 = vld [vmem:[#allocation2 + $0x40] sm:$0xff]
        %v622 = vld [vmem:[#allocation2 + $0x48] sm:$0xff]
        %v623 = vld [vmem:[#allocation2 + $0x50] sm:$0xff]
        %v624 = vld [vmem:[#allocation2 + $0x58] sm:$0xff]
        %v625 = vld [vmem:[#allocation2 + $0x60] sm:$0xff]
        %v626 = vld [vmem:[#allocation2 + $0x68] sm:$0xff]
        %v627 = vld [vmem:[#allocation2 + $0x70] sm:$0xff]
        %v628 = vld [vmem:[#allocation2 + $0x78] sm:$0xff]
        %v629 = vld [vmem:[#allocation2 + $0x80] sm:$0xff]
        %v630 = vld [vmem:[#allocation2 + $0x88] sm:$0xff]
        %v631 = vld [vmem:[#allocation2 + $0x90] sm:$0xff]
        %v632 = vld [vmem:[#allocation2 + $0x98] sm:$0xff]
        %v633 = vld [vmem:[#allocation2 + $0xa0] sm:$0xff]
        %v634 = vld [vmem:[#allocation2 + $0xa8] sm:$0xff]
        %v635 = vld [vmem:[#allocation2 + $0xb0] sm:$0xff]
        %v636 = vld [vmem:[#allocation2 + $0xb8] sm:$0xff]
        %v637 = vld [vmem:[#allocation2 + $0xc0] sm:$0xff]
        %v638 = vld [vmem:[#allocation2 + $0xc8] sm:$0xff]
        %v639 = vld [vmem:[#allocation2 + $0xd0] sm:$0xff]
        %v640 = vld [vmem:[#allocation2 + $0xd8] sm:$0xff]
        %v641 = vld [vmem:[#allocation2 + $0xe0] sm:$0xff]
        %v642 = vld [vmem:[#allocation2 + $0xe8] sm:$0xff]
        %v643 = vld [vmem:[#allocation2 + $0xf0] sm:$0xff]
        %v644 = vld [vmem:[#allocation2 + $0xf8] sm:$0xff]
        %v645 = vld [vmem:[#allocation2 + $0x100] sm:$0xff]
        %v646 = vld [vmem:[#allocation2 + $0x108] sm:$0xff]
        %v647 = vld [vmem:[#allocation2 + $0x110] sm:$0xff]
        %v648 = vld [vmem:[#allocation2 + $0x118] sm:$0xff]
        %v649 = vld [vmem:[#allocation2 + $0x120] sm:$0xff]
        %v650 = vld [vmem:[#allocation2 + $0x128] sm:$0xff]
        %v651 = vld [vmem:[#allocation2 + $0x130] sm:$0xff]
        %v652 = vld [vmem:[#allocation2 + $0x138] sm:$0xff]
        %v653 = vld [vmem:[#allocation2 + $0x140] sm:$0xff]
        %v654 = vld [vmem:[#allocation2 + $0x148] sm:$0xff]
        %v655 = vld [vmem:[#allocation2 + $0x150] sm:$0xff]
        %v656 = vld [vmem:[#allocation2 + $0x158] sm:$0xff]
        %v657 = vld [vmem:[#allocation2 + $0x160] sm:$0xff]
        %v658 = vld [vmem:[#allocation2 + $0x168] sm:$0xff]
        %v659 = vld [vmem:[#allocation2 + $0x170] sm:$0xff]
        %v660 = vld [vmem:[#allocation2 + $0x178] sm:$0xff]
        %v661 = vld [vmem:[#allocation2 + $0x180] sm:$0xff]
        %v662 = vld [vmem:[#allocation2 + $0x188] sm:$0xff]
        %v663 = vld [vmem:[#allocation2 + $0x190] sm:$0xff]
        %v664 = vld [vmem:[#allocation2 + $0x198] sm:$0xff]
        %v665 = vld [vmem:[#allocation2 + $0x1a0] sm:$0xff]
        %v666 = vld [vmem:[#allocation2 + $0x1a8] sm:$0xff]
        %v667 = vld [vmem:[#allocation2 + $0x1b0] sm:$0xff]
        %v668 = vld [vmem:[#allocation2 + $0x1b8] sm:$0xff]
        %v669 = vld [vmem:[#allocation2 + $0x1c0] sm:$0xff]
        %v670 = vld [vmem:[#allocation2 + $0x1c8] sm:$0xff]
        %v671 = vld [vmem:[#allocation2 + $0x1d0] sm:$0xff]
        %v672 = vld [vmem:[#allocation2 + $0x1d8] sm:$0xff]
        %v673 = vld [vmem:[#allocation2 + $0x1e0] sm:$0xff]
        %v674 = vld [vmem:[#allocation2 + $0x1e8] sm:$0xff]
        %v675 = vld [vmem:[#allocation2 + $0x1f0] sm:$0xff]
        %v676 = vld [vmem:[#allocation2 + $0x1f8] sm:$0xff]
        %v677 = vld [vmem:[#allocation2 + $0x200] sm:$0xff]
        %v678 = vld [vmem:[#allocation2 + $0x208] sm:$0xff]
        %v679 = vld [vmem:[#allocation2 + $0x210] sm:$0xff]
        %v680 = vld [vmem:[#allocation2 + $0x218] sm:$0xff]
        %v681 = vld [vmem:[#allocation2 + $0x220] sm:$0xff]
        %v682 = vld [vmem:[#allocation2 + $0x228] sm:$0xff]
        %v683 = vld [vmem:[#allocation2 + $0x230] sm:$0xff]
        %v684 = vld [vmem:[#allocation2 + $0x238] sm:$0xff]
        %v685 = vld [vmem:[#allocation2 + $0x240] sm:$0xff]
        %v686 = vld [vmem:[#allocation2 + $0x248] sm:$0xff]
        %v687 = vld [vmem:[#allocation2 + $0x250] sm:$0xff]
        %v688 = vld [vmem:[#allocation2 + $0x258] sm:$0xff]
        %v689 = vld [vmem:[#allocation2 + $0x260] sm:$0xff]
        %v690 = vld [vmem:[#allocation2 + $0x268] sm:$0xff]
        %v691 = vld [vmem:[#allocation2 + $0x270] sm:$0xff]
        %v692 = vld [vmem:[#allocation2 + $0x278] sm:$0xff]
        %v693 = vld [vmem:[#allocation2 + $0x280] sm:$0xff]
        %v694 = vld [vmem:[#allocation2 + $0x288] sm:$0xff]
        %v695 = vld [vmem:[#allocation2 + $0x290] sm:$0xff]
        %v696 = vld [vmem:[#allocation2 + $0x298] sm:$0xff]
        %v697 = vld [vmem:[#allocation2 + $0x2a0] sm:$0xff]
        %v698 = vld [vmem:[#allocation2 + $0x2a8] sm:$0xff]
        %v699 = vld [vmem:[#allocation2 + $0x2b0] sm:$0xff]
        %v700 = vld [vmem:[#allocation2 + $0x2b8] sm:$0xff]
        %v701 = vld [vmem:[#allocation2 + $0x2c0] sm:$0xff]
        %v702 = vld [vmem:[#allocation2 + $0x2c8] sm:$0xff]
        %v703 = vld [vmem:[#allocation2 + $0x2d0] sm:$0xff]
        %v704 = vld [vmem:[#allocation2 + $0x2d8] sm:$0xff]
        %v705 = vld [vmem:[#allocation2 + $0x2e0] sm:$0xff]
        %v706 = vld [vmem:[#allocation2 + $0x2e8] sm:$0xff]
        %v707 = vld [vmem:[#allocation2 + $0x2f0] sm:$0xff]
        %v708 = vld [vmem:[#allocation2 + $0x2f8] sm:$0xff]
        %v709 = vld [vmem:[#allocation2 + $0x300] sm:$0xff]
        %v710 = vld [vmem:[#allocation2 + $0x308] sm:$0xff]
        %v711 = vld [vmem:[#allocation2 + $0x310] sm:$0xff]
        %v712 = vld [vmem:[#allocation2 + $0x318] sm:$0xff]
        %v713 = vld [vmem:[#allocation2 + $0x320] sm:$0xff]
        %v714 = vld [vmem:[#allocation2 + $0x328] sm:$0xff]
        %v715 = vld [vmem:[#allocation2 + $0x330] sm:$0xff]
        %v716 = vld [vmem:[#allocation2 + $0x338] sm:$0xff]
        %v717 = vld [vmem:[#allocation2 + $0x340] sm:$0xff]
        %v718 = vld [vmem:[#allocation2 + $0x348] sm:$0xff]
        %v719 = vld [vmem:[#allocation2 + $0x350] sm:$0xff]
        %v720 = vld [vmem:[#allocation2 + $0x358] sm:$0xff]
        %v721 = vld [vmem:[#allocation2 + $0x360] sm:$0xff]
        %v722 = vld [vmem:[#allocation2 + $0x368] sm:$0xff]
        %v723 = vld [vmem:[#allocation2 + $0x370] sm:$0xff]
        %v724 = vld [vmem:[#allocation2 + $0x378] sm:$0xff]
        %v725 = vld [vmem:[#allocation2 + $0x380] sm:$0xff]
        %v726 = vld [vmem:[#allocation2 + $0x388] sm:$0xff]
        %v727 = vadd.f32 %v613, %v619
        %v728 = vadd.f32 %v727, %v625
        %v729 = vadd.f32 %v728, %v631
        %v730 = vadd.f32 %v729, %v637
        %v731 = vadd.f32 %v730, %v643
        %v732 = vadd.f32 %v731, %v649
        %v733 = vadd.f32 %v732, %v655
        %v734 = vadd.f32 %v733, %v661
        %v735 = vadd.f32 %v734, %v667
        %v736 = vadd.f32 %v735, %v673
        %v737 = vadd.f32 %v736, %v679
        %v738 = vadd.f32 %v737, %v685
        %v739 = vadd.f32 %v738, %v691
        %v740 = vadd.f32 %v739, %v697
        %v741 = vadd.f32 %v740, %v703
        %v742 = vadd.f32 %v741, %v709
        %v743 = vadd.f32 %v742, %v715
        %v744 = vadd.f32 %v743, %v721
        %v745 = vadd.f32 %v614, %v620
        %v746 = vadd.f32 %v745, %v626
        %v747 = vadd.f32 %v746, %v632
        %v748 = vadd.f32 %v747, %v638
        %v749 = vadd.f32 %v748, %v644
        %v750 = vadd.f32 %v749, %v650
        %v751 = vadd.f32 %v750, %v656
        %v752 = vadd.f32 %v751, %v662
        %v753 = vadd.f32 %v752, %v668
        %v754 = vadd.f32 %v753, %v674
        %v755 = vadd.f32 %v754, %v680
        %v756 = vadd.f32 %v755, %v686
        %v757 = vadd.f32 %v756, %v692
        %v758 = vadd.f32 %v757, %v698
        %v759 = vadd.f32 %v758, %v704
        %v760 = vadd.f32 %v759, %v710
        %v761 = vadd.f32 %v760, %v716
        %v762 = vadd.f32 %v761, %v722
        %v763 = vadd.f32 %v615, %v621
        %v764 = vadd.f32 %v763, %v627
        %v765 = vadd.f32 %v764, %v633
        %v766 = vadd.f32 %v765, %v639
        %v767 = vadd.f32 %v766, %v645
        %v768 = vadd.f32 %v767, %v651
        %v769 = vadd.f32 %v768, %v657
        %v770 = vadd.f32 %v769, %v663
        %v771 = vadd.f32 %v770, %v669
        %v772 = vadd.f32 %v771, %v675
        %v773 = vadd.f32 %v772, %v681
        %v774 = vadd.f32 %v773, %v687
        %v775 = vadd.f32 %v774, %v693
        %v776 = vadd.f32 %v775, %v699
        %v777 = vadd.f32 %v776, %v705
        %v778 = vadd.f32 %v777, %v711
        %v779 = vadd.f32 %v778, %v717
        %v780 = vadd.f32 %v779, %v723
        %v781 = vadd.f32 %v616, %v622
        %v782 = vadd.f32 %v781, %v628
        %v783 = vadd.f32 %v782, %v634
        %v784 = vadd.f32 %v783, %v640
        %v785 = vadd.f32 %v784, %v646
        %v786 = vadd.f32 %v785, %v652
        %v787 = vadd.f32 %v786, %v658
        %v788 = vadd.f32 %v787, %v664
        %v789 = vadd.f32 %v788, %v670
        %v790 = vadd.f32 %v789, %v676
        %v791 = vadd.f32 %v790, %v682
        %v792 = vadd.f32 %v791, %v688
        %v793 = vadd.f32 %v792, %v694
        %v794 = vadd.f32 %v793, %v700
        %v795 = vadd.f32 %v794, %v706
        %v796 = vadd.f32 %v795, %v712
        %v797 = vadd.f32 %v796, %v718
        %v798 = vadd.f32 %v797, %v724
        %v799 = vadd.f32 %v617, %v623
        %v800 = vadd.f32 %v799, %v629
        %v801 = vadd.f32 %v800, %v635
        %v802 = vadd.f32 %v801, %v641
        %v803 = vadd.f32 %v802, %v647
        %v804 = vadd.f32 %v803, %v653
        %v805 = vadd.f32 %v804, %v659
        %v806 = vadd.f32 %v805, %v665
        %v807 = vadd.f32 %v806, %v671
        %v808 = vadd.f32 %v807, %v677
        %v809 = vadd.f32 %v808, %v683
        %v810 = vadd.f32 %v809, %v689
        %v811 = vadd.f32 %v810, %v695
        %v812 = vadd.f32 %v811, %v701
        %v813 = vadd.f32 %v812, %v707
        %v814 = vadd.f32 %v813, %v713
        %v815 = vadd.f32 %v814, %v719
        %v816 = vadd.f32 %v815, %v725
        %v817 = vadd.f32 %v618, %v624
        %v818 = vadd.f32 %v817, %v630
        %v819 = vadd.f32 %v818, %v636
        %v820 = vadd.f32 %v819, %v642
        %v821 = vadd.f32 %v820, %v648
        %v822 = vadd.f32 %v821, %v654
        %v823 = vadd.f32 %v822, %v660
        %v824 = vadd.f32 %v823, %v666
        %v825 = vadd.f32 %v824, %v672
        %v826 = vadd.f32 %v825, %v678
        %v827 = vadd.f32 %v826, %v684
        %v828 = vadd.f32 %v827, %v690
        %v829 = vadd.f32 %v828, %v696
        %v830 = vadd.f32 %v829, %v702
        %v831 = vadd.f32 %v830, %v708
        %v832 = vadd.f32 %v831, %v714
        %v833 = vadd.f32 %v832, %v720
        %v834 = vadd.f32 %v833, %v726
        %v835 = vpack.c.bf16 %v744, %v744
        %v836 = vpack.c.bf16 %v762, %v762
        %v837 = vpack.c.bf16 %v780, %v780
        %v838 = vpack.c.bf16 %v798, %v798
        %v839 = vpack.c.bf16 %v816, %v816
        %v840 = vpack.c.bf16 %v834, %v834
        %v841 = vld [vmem:[#allocation4] sm:$0xff]
        %v842 = vld [vmem:[#allocation4 + $0x8] sm:$0xf]
        %v843 = vld [vmem:[#allocation4 + $0xc] sm:$0xff]
        %v844 = vld [vmem:[#allocation4 + $0x14] sm:$0xf]
        %v845 = vld [vmem:[#allocation4 + $0x18] sm:$0xff]
        %v846 = vld [vmem:[#allocation4 + $0x20] sm:$0xf]
        %v847 = vld [vmem:[#allocation4 + $0x24] sm:$0xff]
        %v848 = vld [vmem:[#allocation4 + $0x2c] sm:$0xf]
        %v849 = vld [vmem:[#allocation4 + $0x30] sm:$0xff]
        %v850 = vld [vmem:[#allocation4 + $0x38] sm:$0xf]
        %v851 = vld [vmem:[#allocation4 + $0x3c] sm:$0xff]
        %v852 = vld [vmem:[#allocation4 + $0x44] sm:$0xf]
        %v853 = vld [vmem:[#allocation4 + $0x48] sm:$0xff]
        %v854 = vld [vmem:[#allocation4 + $0x50] sm:$0xf]
        %v855 = vld [vmem:[#allocation4 + $0x54] sm:$0xff]
        %v856 = vld [vmem:[#allocation4 + $0x5c] sm:$0xf]
        %v857 = vld [vmem:[#allocation4 + $0x60] sm:$0xff]
        %v858 = vld [vmem:[#allocation4 + $0x68] sm:$0xf]
        %v859 = vld [vmem:[#allocation4 + $0x6c] sm:$0xff]
        %v860 = vld [vmem:[#allocation4 + $0x74] sm:$0xf]
        %v861 = vld [vmem:[#allocation4 + $0x78] sm:$0xff]
        %v862 = vld [vmem:[#allocation4 + $0x80] sm:$0xf]
        %v863 = vld [vmem:[#allocation4 + $0x84] sm:$0xff]
        %v864 = vld [vmem:[#allocation4 + $0x8c] sm:$0xf]
        %v865 = vld [vmem:[#allocation4 + $0x90] sm:$0xff]
        %v866 = vld [vmem:[#allocation4 + $0x98] sm:$0xf]
        %v867 = vld [vmem:[#allocation4 + $0x9c] sm:$0xff]
        %v868 = vld [vmem:[#allocation4 + $0xa4] sm:$0xf]
        %v869 = vld [vmem:[#allocation4 + $0xa8] sm:$0xff]
        %v870 = vld [vmem:[#allocation4 + $0xb0] sm:$0xf]
        %v871 = vld [vmem:[#allocation4 + $0xb4] sm:$0xff]
        %v872 = vld [vmem:[#allocation4 + $0xbc] sm:$0xf]
        %v873 = vld [vmem:[#allocation4 + $0xc0] sm:$0xff]
        %v874 = vld [vmem:[#allocation4 + $0xc8] sm:$0xf]
        %v875 = vld [vmem:[#allocation4 + $0xcc] sm:$0xff]
        %v876 = vld [vmem:[#allocation4 + $0xd4] sm:$0xf]
        %v877 = vld [vmem:[#allocation4 + $0xd8] sm:$0xff]
        %v878 = vld [vmem:[#allocation4 + $0xe0] sm:$0xf]
        %v879 = vld [vmem:[#allocation4 + $0xe4] sm:$0xff]
        %v880 = vld [vmem:[#allocation4 + $0xec] sm:$0xf]
        %v881 = vld [vmem:[#allocation4 + $0xf0] sm:$0xff]
        %v882 = vld [vmem:[#allocation4 + $0xf8] sm:$0xf]
        %v883 = vld [vmem:[#allocation4 + $0xfc] sm:$0xff]
        %v884 = vld [vmem:[#allocation4 + $0x104] sm:$0xf]
        %v885 = vld [vmem:[#allocation4 + $0x108] sm:$0xff]
        %v886 = vld [vmem:[#allocation4 + $0x110] sm:$0xf]
        %v887 = vld [vmem:[#allocation4 + $0x114] sm:$0xff]
        %v888 = vld [vmem:[#allocation4 + $0x11c] sm:$0xf]
        %v889 = vld [vmem:[#allocation4 + $0x120] sm:$0xff]
        %v890 = vld [vmem:[#allocation4 + $0x128] sm:$0xf]
        %v891 = vld [vmem:[#allocation4 + $0x12c] sm:$0xff]
        %v892 = vld [vmem:[#allocation4 + $0x134] sm:$0xf]
        %v893 = vld [vmem:[#allocation4 + $0x138] sm:$0xff]
        %v894 = vld [vmem:[#allocation4 + $0x140] sm:$0xf]
        %v895 = vld [vmem:[#allocation4 + $0x144] sm:$0xff]
        %v896 = vld [vmem:[#allocation4 + $0x14c] sm:$0xf]
        %v897 = vld [vmem:[#allocation4 + $0x150] sm:$0xff]
        %v898 = vld [vmem:[#allocation4 + $0x158] sm:$0xf]
        %v899 = vld [vmem:[#allocation4 + $0x15c] sm:$0xff]
        %v900 = vld [vmem:[#allocation4 + $0x164] sm:$0xf]
        %v901 = vld [vmem:[#allocation4 + $0x168] sm:$0xff]
        %v902 = vld [vmem:[#allocation4 + $0x170] sm:$0xf]
        %v903 = vld [vmem:[#allocation4 + $0x174] sm:$0xff]
        %v904 = vld [vmem:[#allocation4 + $0x17c] sm:$0xf]
        %v905 = vld [vmem:[#allocation4 + $0x180] sm:$0xff]
        %v906 = vld [vmem:[#allocation4 + $0x188] sm:$0xf]
        %v907 = vld [vmem:[#allocation4 + $0x18c] sm:$0xff]
        %v908 = vld [vmem:[#allocation4 + $0x194] sm:$0xf]
        %v909 = vld [vmem:[#allocation4 + $0x198] sm:$0xff]
        %v910 = vld [vmem:[#allocation4 + $0x1a0] sm:$0xf]
        %v911 = vld [vmem:[#allocation4 + $0x1a4] sm:$0xff]
        %v912 = vld [vmem:[#allocation4 + $0x1ac] sm:$0xf]
        %v913 = vld [vmem:[#allocation4 + $0x1b0] sm:$0xff]
        %v914 = vld [vmem:[#allocation4 + $0x1b8] sm:$0xf]
        %v915 = vld [vmem:[#allocation4 + $0x1bc] sm:$0xff]
        %v916 = vld [vmem:[#allocation4 + $0x1c4] sm:$0xf]
        %v917 = vld [vmem:[#allocation4 + $0x1c8] sm:$0xff]
        %v918 = vld [vmem:[#allocation4 + $0x1d0] sm:$0xf]
        %v919 = vld [vmem:[#allocation4 + $0x1d4] sm:$0xff]
        %v920 = vld [vmem:[#allocation4 + $0x1dc] sm:$0xf]
        %v921 = vld [vmem:[#allocation4 + $0x1e0] sm:$0xff]
        %v922 = vld [vmem:[#allocation4 + $0x1e8] sm:$0xf]
        %v923 = vld [vmem:[#allocation4 + $0x1ec] sm:$0xff]
        %v924 = vld [vmem:[#allocation4 + $0x1f4] sm:$0xf]
        %v925 = vld [vmem:[#allocation4 + $0x1f8] sm:$0xff]
        %v926 = vld [vmem:[#allocation4 + $0x200] sm:$0xf]
        %v927 = vld [vmem:[#allocation4 + $0x204] sm:$0xff]
        %v928 = vld [vmem:[#allocation4 + $0x20c] sm:$0xf]
        %v929 = vld [vmem:[#allocation4 + $0x210] sm:$0xff]
        %v930 = vld [vmem:[#allocation4 + $0x218] sm:$0xf]
        %v931 = vld [vmem:[#allocation4 + $0x21c] sm:$0xff]
        %v932 = vld [vmem:[#allocation4 + $0x224] sm:$0xf]
        %v933 = vld [vmem:[#allocation4 + $0x228] sm:$0xff]
        %v934 = vld [vmem:[#allocation4 + $0x230] sm:$0xf]
        %v935 = vld [vmem:[#allocation4 + $0x234] sm:$0xff]
        %v936 = vld [vmem:[#allocation4 + $0x23c] sm:$0xf]
        %v937 = vld [vmem:[#allocation4 + $0x240] sm:$0xff]
        %v938 = vld [vmem:[#allocation4 + $0x248] sm:$0xf]
        %v939 = vld [vmem:[#allocation4 + $0x24c] sm:$0xff]
        %v940 = vld [vmem:[#allocation4 + $0x254] sm:$0xf]
        %v941 = vld [vmem:[#allocation4 + $0x258] sm:$0xff]
        %v942 = vld [vmem:[#allocation4 + $0x260] sm:$0xf]
        %v943 = vld [vmem:[#allocation4 + $0x264] sm:$0xff]
        %v944 = vld [vmem:[#allocation4 + $0x26c] sm:$0xf]
        %v945 = vld [vmem:[#allocation4 + $0x270] sm:$0xff]
        %v946 = vld [vmem:[#allocation4 + $0x278] sm:$0xf]
        %v947 = vld [vmem:[#allocation4 + $0x27c] sm:$0xff]
        %v948 = vld [vmem:[#allocation4 + $0x284] sm:$0xf]
        %v949 = vld [vmem:[#allocation4 + $0x288] sm:$0xff]
        %v950 = vld [vmem:[#allocation4 + $0x290] sm:$0xf]
        %v951 = vld [vmem:[#allocation4 + $0x294] sm:$0xff]
        %v952 = vld [vmem:[#allocation4 + $0x29c] sm:$0xf]
        %v953 = vld [vmem:[#allocation4 + $0x2a0] sm:$0xff]
        %v954 = vld [vmem:[#allocation4 + $0x2a8] sm:$0xf]
        %v955 = vld [vmem:[#allocation4 + $0x2ac] sm:$0xff]
        %v956 = vld [vmem:[#allocation4 + $0x2b4] sm:$0xf]
        %v957 = vld [vmem:[#allocation4 + $0x2b8] sm:$0xff]
        %v958 = vld [vmem:[#allocation4 + $0x2c0] sm:$0xf]
        %v959 = vld [vmem:[#allocation4 + $0x2c4] sm:$0xff]
        %v960 = vld [vmem:[#allocation4 + $0x2cc] sm:$0xf]
        %v961 = vld [vmem:[#allocation4 + $0x2d0] sm:$0xff]
        %v962 = vld [vmem:[#allocation4 + $0x2d8] sm:$0xf]
        %v963 = vld [vmem:[#allocation4 + $0x2dc] sm:$0xff]
        %v964 = vld [vmem:[#allocation4 + $0x2e4] sm:$0xf]
        %v965 = vld [vmem:[#allocation4 + $0x2e8] sm:$0xff]
        %v966 = vld [vmem:[#allocation4 + $0x2f0] sm:$0xf]
        %v967 = vld [vmem:[#allocation4 + $0x2f4] sm:$0xff]
        %v968 = vld [vmem:[#allocation4 + $0x2fc] sm:$0xf]
        %v969 = vld [vmem:[#allocation4 + $0x300] sm:$0xff]
        %v970 = vld [vmem:[#allocation4 + $0x308] sm:$0xf]
        %v971 = vld [vmem:[#allocation4 + $0x30c] sm:$0xff]
        %v972 = vld [vmem:[#allocation4 + $0x314] sm:$0xf]
        %v973 = vld [vmem:[#allocation4 + $0x318] sm:$0xff]
        %v974 = vld [vmem:[#allocation4 + $0x320] sm:$0xf]
        %v975 = vld [vmem:[#allocation4 + $0x324] sm:$0xff]
        %v976 = vld [vmem:[#allocation4 + $0x32c] sm:$0xf]
        %v977 = vld [vmem:[#allocation4 + $0x330] sm:$0xff]
        %v978 = vld [vmem:[#allocation4 + $0x338] sm:$0xf]
        %v979 = vld [vmem:[#allocation4 + $0x33c] sm:$0xff]
        %v980 = vld [vmem:[#allocation4 + $0x344] sm:$0xf]
        %v981 = vld [vmem:[#allocation4 + $0x348] sm:$0xff]
        %v982 = vld [vmem:[#allocation4 + $0x350] sm:$0xf]
        %v983 = vld [vmem:[#allocation4 + $0x354] sm:$0xff]
        %v984 = vld [vmem:[#allocation4 + $0x35c] sm:$0xf]
        %v985 = vld [vmem:[#allocation4 + $0x360] sm:$0xff]
        %v986 = vld [vmem:[#allocation4 + $0x368] sm:$0xf]
        %v987 = vld [vmem:[#allocation4 + $0x36c] sm:$0xff]
        %v988 = vld [vmem:[#allocation4 + $0x374] sm:$0xf]
        %v989 = vld [vmem:[#allocation4 + $0x378] sm:$0xff]
        %v990 = vld [vmem:[#allocation4 + $0x380] sm:$0xf]
        %v991 = vld [vmem:[#allocation4 + $0x384] sm:$0xff]
        %v992 = vld [vmem:[#allocation4 + $0x38c] sm:$0xf]
        %v993 = vld [vmem:[#allocation4 + $0x390] sm:$0xff]
        %v994 = vld [vmem:[#allocation4 + $0x398] sm:$0xf]
        %v995 = vld [vmem:[#allocation4 + $0x39c] sm:$0xff]
        %v996 = vld [vmem:[#allocation4 + $0x3a4] sm:$0xf]
        %v997 = vld [vmem:[#allocation4 + $0x3a8] sm:$0xff]
        %v998 = vld [vmem:[#allocation4 + $0x3b0] sm:$0xf]
        %v999 = vld [vmem:[#allocation4 + $0x3b4] sm:$0xff]
        %v1000 = vld [vmem:[#allocation4 + $0x3bc] sm:$0xf]
        %v1001 = vld [vmem:[#allocation4 + $0x3c0] sm:$0xff]
        %v1002 = vld [vmem:[#allocation4 + $0x3c8] sm:$0xf]
        %v1003 = vld [vmem:[#allocation4 + $0x3cc] sm:$0xff]
        %v1004 = vld [vmem:[#allocation4 + $0x3d4] sm:$0xf]
        %v1005 = vld [vmem:[#allocation4 + $0x3d8] sm:$0xff]
        %v1006 = vld [vmem:[#allocation4 + $0x3e0] sm:$0xf]
        %v1007 = vld [vmem:[#allocation4 + $0x3e4] sm:$0xff]
        %v1008 = vld [vmem:[#allocation4 + $0x3ec] sm:$0xf]
        %v1009 = vld [vmem:[#allocation4 + $0x3f0] sm:$0xff]
        %v1010 = vld [vmem:[#allocation4 + $0x3f8] sm:$0xf]
        %v1011 = vld [vmem:[#allocation4 + $0x3fc] sm:$0xff]
        %v1012 = vld [vmem:[#allocation4 + $0x404] sm:$0xf]
        %v1013 = vld [vmem:[#allocation4 + $0x408] sm:$0xff]
        %v1014 = vld [vmem:[#allocation4 + $0x410] sm:$0xf]
        %v1015 = vld [vmem:[#allocation4 + $0x414] sm:$0xff]
        %v1016 = vld [vmem:[#allocation4 + $0x41c] sm:$0xf]
        %v1017 = vld [vmem:[#allocation4 + $0x420] sm:$0xff]
        %v1018 = vld [vmem:[#allocation4 + $0x428] sm:$0xf]
        %v1019 = vld [vmem:[#allocation4 + $0x42c] sm:$0xff]
        %v1020 = vld [vmem:[#allocation4 + $0x434] sm:$0xf]
        %v1021 = vld [vmem:[#allocation4 + $0x438] sm:$0xff]
        %v1022 = vld [vmem:[#allocation4 + $0x440] sm:$0xf]
        %v1023 = vld [vmem:[#allocation4 + $0x444] sm:$0xff]
        %v1024 = vld [vmem:[#allocation4 + $0x44c] sm:$0xf]
        %v1025 = vld [vmem:[#allocation4 + $0x450] sm:$0xff]
        %v1026 = vld [vmem:[#allocation4 + $0x458] sm:$0xf]
        %v1027 = vld [vmem:[#allocation4 + $0x45c] sm:$0xff]
        %v1028 = vld [vmem:[#allocation4 + $0x464] sm:$0xf]
        %v1029 = vld [vmem:[#allocation4 + $0x468] sm:$0xff]
        %v1030 = vld [vmem:[#allocation4 + $0x470] sm:$0xf]
        %v1031 = vld [vmem:[#allocation4 + $0x474] sm:$0xff]
        %v1032 = vld [vmem:[#allocation4 + $0x47c] sm:$0xf]
        %v1033 = vld [vmem:[#allocation6] sm:$0x7]
        %v1035 = vlaneseq
        %v1036 = vshrl.u32 %v1035, 7
        %v1037 = vsub.s32 0, %v1036
        %v1038 = vrot.slane %v1033, %v1037
        %v1039 = vlaneseq
        %v1040 = vshrl.u32 %v1039, 7
        %v1041 = vsub.s32 1, %v1040
        %v1042 = vrot.slane %v1033, %v1041
        %v1043 = vlaneseq
        %v1044 = vshrl.u32 %v1043, 7
        %v1045 = vsub.s32 2, %v1044
        %v1046 = vrot.slane %v1033, %v1045
        %v1242 = vunpack.c.l.b16 %v841
        %v1243 = vunpack.c.h.b16 %v841
        %v1244 = vunpack.c.l.b16 %v842
        %v1245 = vunpack.c.l.b16 %v843
        %v1246 = vunpack.c.h.b16 %v843
        %v1247 = vunpack.c.l.b16 %v844
        %v1248 = vunpack.c.l.b16 %v845
        %v1249 = vunpack.c.h.b16 %v845
        %v1250 = vunpack.c.l.b16 %v846
        %v1251 = vunpack.c.l.b16 %v847
        %v1252 = vunpack.c.h.b16 %v847
        %v1253 = vunpack.c.l.b16 %v848
        %v1254 = vunpack.c.l.b16 %v849
        %v1255 = vunpack.c.h.b16 %v849
        %v1256 = vunpack.c.l.b16 %v850
        %v1257 = vunpack.c.l.b16 %v851
        %v1258 = vunpack.c.h.b16 %v851
        %v1259 = vunpack.c.l.b16 %v852
        %v1260 = vunpack.c.l.b16 %v853
        %v1261 = vunpack.c.h.b16 %v853
        %v1262 = vunpack.c.l.b16 %v854
        %v1263 = vunpack.c.l.b16 %v855
        %v1264 = vunpack.c.h.b16 %v855
        %v1265 = vunpack.c.l.b16 %v856
        %v1266 = vunpack.c.l.b16 %v857
        %v1267 = vunpack.c.h.b16 %v857
        %v1268 = vunpack.c.l.b16 %v858
        %v1269 = vunpack.c.l.b16 %v859
        %v1270 = vunpack.c.h.b16 %v859
        %v1271 = vunpack.c.l.b16 %v860
        %v1272 = vunpack.c.l.b16 %v861
        %v1273 = vunpack.c.h.b16 %v861
        %v1274 = vunpack.c.l.b16 %v862
        %v1275 = vunpack.c.l.b16 %v863
        %v1276 = vunpack.c.h.b16 %v863
        %v1277 = vunpack.c.l.b16 %v864
        %v1278 = vunpack.c.l.b16 %v865
        %v1279 = vunpack.c.h.b16 %v865
        %v1280 = vunpack.c.l.b16 %v866
        %v1281 = vunpack.c.l.b16 %v867
        %v1282 = vunpack.c.h.b16 %v867
        %v1283 = vunpack.c.l.b16 %v868
        %v1284 = vunpack.c.l.b16 %v869
        %v1285 = vunpack.c.h.b16 %v869
        %v1286 = vunpack.c.l.b16 %v870
        %v1287 = vunpack.c.l.b16 %v871
        %v1288 = vunpack.c.h.b16 %v871
        %v1289 = vunpack.c.l.b16 %v872
        %v1290 = vunpack.c.l.b16 %v873
        %v1291 = vunpack.c.h.b16 %v873
        %v1292 = vunpack.c.l.b16 %v874
        %v1293 = vunpack.c.l.b16 %v875
        %v1294 = vunpack.c.h.b16 %v875
        %v1295 = vunpack.c.l.b16 %v876
        %v1296 = vunpack.c.l.b16 %v877
        %v1297 = vunpack.c.h.b16 %v877
        %v1298 = vunpack.c.l.b16 %v878
        %v1299 = vunpack.c.l.b16 %v879
        %v1300 = vunpack.c.h.b16 %v879
        %v1301 = vunpack.c.l.b16 %v880
        %v1302 = vunpack.c.l.b16 %v881
        %v1303 = vunpack.c.h.b16 %v881
        %v1304 = vunpack.c.l.b16 %v882
        %v1305 = vunpack.c.l.b16 %v883
        %v1306 = vunpack.c.h.b16 %v883
        %v1307 = vunpack.c.l.b16 %v884
        %v1308 = vunpack.c.l.b16 %v885
        %v1309 = vunpack.c.h.b16 %v885
        %v1310 = vunpack.c.l.b16 %v886
        %v1311 = vunpack.c.l.b16 %v887
        %v1312 = vunpack.c.h.b16 %v887
        %v1313 = vunpack.c.l.b16 %v888
        %v1314 = vunpack.c.l.b16 %v889
        %v1315 = vunpack.c.h.b16 %v889
        %v1316 = vunpack.c.l.b16 %v890
        %v1317 = vunpack.c.l.b16 %v891
        %v1318 = vunpack.c.h.b16 %v891
        %v1319 = vunpack.c.l.b16 %v892
        %v1320 = vunpack.c.l.b16 %v893
        %v1321 = vunpack.c.h.b16 %v893
        %v1322 = vunpack.c.l.b16 %v894
        %v1323 = vunpack.c.l.b16 %v895
        %v1324 = vunpack.c.h.b16 %v895
        %v1325 = vunpack.c.l.b16 %v896
        %v1326 = vunpack.c.l.b16 %v897
        %v1327 = vunpack.c.h.b16 %v897
        %v1328 = vunpack.c.l.b16 %v898
        %v1329 = vunpack.c.l.b16 %v899
        %v1330 = vunpack.c.h.b16 %v899
        %v1331 = vunpack.c.l.b16 %v900
        %v1332 = vunpack.c.l.b16 %v901
        %v1333 = vunpack.c.h.b16 %v901
        %v1334 = vunpack.c.l.b16 %v902
        %v1335 = vunpack.c.l.b16 %v903
        %v1336 = vunpack.c.h.b16 %v903
        %v1337 = vunpack.c.l.b16 %v904
        %v1338 = vunpack.c.l.b16 %v905
        %v1339 = vunpack.c.h.b16 %v905
        %v1340 = vunpack.c.l.b16 %v906
        %v1341 = vunpack.c.l.b16 %v907
        %v1342 = vunpack.c.h.b16 %v907
        %v1343 = vunpack.c.l.b16 %v908
        %v1344 = vunpack.c.l.b16 %v909
        %v1345 = vunpack.c.h.b16 %v909
        %v1346 = vunpack.c.l.b16 %v910
        %v1347 = vunpack.c.l.b16 %v911
        %v1348 = vunpack.c.h.b16 %v911
        %v1349 = vunpack.c.l.b16 %v912
        %v1350 = vunpack.c.l.b16 %v913
        %v1351 = vunpack.c.h.b16 %v913
        %v1352 = vunpack.c.l.b16 %v914
        %v1353 = vunpack.c.l.b16 %v915
        %v1354 = vunpack.c.h.b16 %v915
        %v1355 = vunpack.c.l.b16 %v916
        %v1356 = vunpack.c.l.b16 %v917
        %v1357 = vunpack.c.h.b16 %v917
        %v1358 = vunpack.c.l.b16 %v918
        %v1359 = vunpack.c.l.b16 %v919
        %v1360 = vunpack.c.h.b16 %v919
        %v1361 = vunpack.c.l.b16 %v920
        %v1362 = vunpack.c.l.b16 %v921
        %v1363 = vunpack.c.h.b16 %v921
        %v1364 = vunpack.c.l.b16 %v922
        %v1365 = vunpack.c.l.b16 %v923
        %v1366 = vunpack.c.h.b16 %v923
        %v1367 = vunpack.c.l.b16 %v924
        %v1368 = vunpack.c.l.b16 %v925
        %v1369 = vunpack.c.h.b16 %v925
        %v1370 = vunpack.c.l.b16 %v926
        %v1371 = vunpack.c.l.b16 %v927
        %v1372 = vunpack.c.h.b16 %v927
        %v1373 = vunpack.c.l.b16 %v928
        %v1374 = vunpack.c.l.b16 %v929
        %v1375 = vunpack.c.h.b16 %v929
        %v1376 = vunpack.c.l.b16 %v930
        %v1377 = vunpack.c.l.b16 %v931
        %v1378 = vunpack.c.h.b16 %v931
        %v1379 = vunpack.c.l.b16 %v932
        %v1380 = vunpack.c.l.b16 %v933
        %v1381 = vunpack.c.h.b16 %v933
        %v1382 = vunpack.c.l.b16 %v934
        %v1383 = vunpack.c.l.b16 %v935
        %v1384 = vunpack.c.h.b16 %v935
        %v1385 = vunpack.c.l.b16 %v936
        %v1386 = vunpack.c.l.b16 %v937
        %v1387 = vunpack.c.h.b16 %v937
        %v1388 = vunpack.c.l.b16 %v938
        %v1389 = vunpack.c.l.b16 %v939
        %v1390 = vunpack.c.h.b16 %v939
        %v1391 = vunpack.c.l.b16 %v940
        %v1392 = vunpack.c.l.b16 %v941
        %v1393 = vunpack.c.h.b16 %v941
        %v1394 = vunpack.c.l.b16 %v942
        %v1395 = vunpack.c.l.b16 %v943
        %v1396 = vunpack.c.h.b16 %v943
        %v1397 = vunpack.c.l.b16 %v944
        %v1398 = vunpack.c.l.b16 %v945
        %v1399 = vunpack.c.h.b16 %v945
        %v1400 = vunpack.c.l.b16 %v946
        %v1401 = vunpack.c.l.b16 %v947
        %v1402 = vunpack.c.h.b16 %v947
        %v1403 = vunpack.c.l.b16 %v948
        %v1404 = vunpack.c.l.b16 %v949
        %v1405 = vunpack.c.h.b16 %v949
        %v1406 = vunpack.c.l.b16 %v950
        %v1407 = vunpack.c.l.b16 %v951
        %v1408 = vunpack.c.h.b16 %v951
        %v1409 = vunpack.c.l.b16 %v952
        %v1410 = vunpack.c.l.b16 %v953
        %v1411 = vunpack.c.h.b16 %v953
        %v1412 = vunpack.c.l.b16 %v954
        %v1413 = vunpack.c.l.b16 %v955
        %v1414 = vunpack.c.h.b16 %v955
        %v1415 = vunpack.c.l.b16 %v956
        %v1416 = vunpack.c.l.b16 %v957
        %v1417 = vunpack.c.h.b16 %v957
        %v1418 = vunpack.c.l.b16 %v958
        %v1419 = vunpack.c.l.b16 %v959
        %v1420 = vunpack.c.h.b16 %v959
        %v1421 = vunpack.c.l.b16 %v960
        %v1422 = vunpack.c.l.b16 %v961
        %v1423 = vunpack.c.h.b16 %v961
        %v1424 = vunpack.c.l.b16 %v962
        %v1425 = vunpack.c.l.b16 %v963
        %v1426 = vunpack.c.h.b16 %v963
        %v1427 = vunpack.c.l.b16 %v964
        %v1428 = vunpack.c.l.b16 %v965
        %v1429 = vunpack.c.h.b16 %v965
        %v1430 = vunpack.c.l.b16 %v966
        %v1431 = vunpack.c.l.b16 %v967
        %v1432 = vunpack.c.h.b16 %v967
        %v1433 = vunpack.c.l.b16 %v968
        %v1434 = vunpack.c.l.b16 %v969
        %v1435 = vunpack.c.h.b16 %v969
        %v1436 = vunpack.c.l.b16 %v970
        %v1437 = vunpack.c.l.b16 %v971
        %v1438 = vunpack.c.h.b16 %v971
        %v1439 = vunpack.c.l.b16 %v972
        %v1440 = vunpack.c.l.b16 %v973
        %v1441 = vunpack.c.h.b16 %v973
        %v1442 = vunpack.c.l.b16 %v974
        %v1443 = vunpack.c.l.b16 %v975
        %v1444 = vunpack.c.h.b16 %v975
        %v1445 = vunpack.c.l.b16 %v976
        %v1446 = vunpack.c.l.b16 %v977
        %v1447 = vunpack.c.h.b16 %v977
        %v1448 = vunpack.c.l.b16 %v978
        %v1449 = vunpack.c.l.b16 %v979
        %v1450 = vunpack.c.h.b16 %v979
        %v1451 = vunpack.c.l.b16 %v980
        %v1452 = vunpack.c.l.b16 %v981
        %v1453 = vunpack.c.h.b16 %v981
        %v1454 = vunpack.c.l.b16 %v982
        %v1455 = vunpack.c.l.b16 %v983
        %v1456 = vunpack.c.h.b16 %v983
        %v1457 = vunpack.c.l.b16 %v984
        %v1458 = vunpack.c.l.b16 %v985
        %v1459 = vunpack.c.h.b16 %v985
        %v1460 = vunpack.c.l.b16 %v986
        %v1461 = vunpack.c.l.b16 %v987
        %v1462 = vunpack.c.h.b16 %v987
        %v1463 = vunpack.c.l.b16 %v988
        %v1464 = vunpack.c.l.b16 %v989
        %v1465 = vunpack.c.h.b16 %v989
        %v1466 = vunpack.c.l.b16 %v990
        %v1467 = vunpack.c.l.b16 %v991
        %v1468 = vunpack.c.h.b16 %v991
        %v1469 = vunpack.c.l.b16 %v992
        %v1470 = vunpack.c.l.b16 %v993
        %v1471 = vunpack.c.h.b16 %v993
        %v1472 = vunpack.c.l.b16 %v994
        %v1473 = vunpack.c.l.b16 %v995
        %v1474 = vunpack.c.h.b16 %v995
        %v1475 = vunpack.c.l.b16 %v996
        %v1476 = vunpack.c.l.b16 %v997
        %v1477 = vunpack.c.h.b16 %v997
        %v1478 = vunpack.c.l.b16 %v998
        %v1479 = vunpack.c.l.b16 %v999
        %v1480 = vunpack.c.h.b16 %v999
        %v1481 = vunpack.c.l.b16 %v1000
        %v1482 = vunpack.c.l.b16 %v1001
        %v1483 = vunpack.c.h.b16 %v1001
        %v1484 = vunpack.c.l.b16 %v1002
        %v1485 = vunpack.c.l.b16 %v1003
        %v1486 = vunpack.c.h.b16 %v1003
        %v1487 = vunpack.c.l.b16 %v1004
        %v1488 = vunpack.c.l.b16 %v1005
        %v1489 = vunpack.c.h.b16 %v1005
        %v1490 = vunpack.c.l.b16 %v1006
        %v1491 = vunpack.c.l.b16 %v1007
        %v1492 = vunpack.c.h.b16 %v1007
        %v1493 = vunpack.c.l.b16 %v1008
        %v1494 = vunpack.c.l.b16 %v1009
        %v1495 = vunpack.c.h.b16 %v1009
        %v1496 = vunpack.c.l.b16 %v1010
        %v1497 = vunpack.c.l.b16 %v1011
        %v1498 = vunpack.c.h.b16 %v1011
        %v1499 = vunpack.c.l.b16 %v1012
        %v1500 = vunpack.c.l.b16 %v1013
        %v1501 = vunpack.c.h.b16 %v1013
        %v1502 = vunpack.c.l.b16 %v1014
        %v1503 = vunpack.c.l.b16 %v1015
        %v1504 = vunpack.c.h.b16 %v1015
        %v1505 = vunpack.c.l.b16 %v1016
        %v1506 = vunpack.c.l.b16 %v1017
        %v1507 = vunpack.c.h.b16 %v1017
        %v1508 = vunpack.c.l.b16 %v1018
        %v1509 = vunpack.c.l.b16 %v1019
        %v1510 = vunpack.c.h.b16 %v1019
        %v1511 = vunpack.c.l.b16 %v1020
        %v1512 = vunpack.c.l.b16 %v1021
        %v1513 = vunpack.c.h.b16 %v1021
        %v1514 = vunpack.c.l.b16 %v1022
        %v1515 = vunpack.c.l.b16 %v1023
        %v1516 = vunpack.c.h.b16 %v1023
        %v1517 = vunpack.c.l.b16 %v1024
        %v1518 = vunpack.c.l.b16 %v1025
        %v1519 = vunpack.c.h.b16 %v1025
        %v1520 = vunpack.c.l.b16 %v1026
        %v1521 = vunpack.c.l.b16 %v1027
        %v1522 = vunpack.c.h.b16 %v1027
        %v1523 = vunpack.c.l.b16 %v1028
        %v1524 = vunpack.c.l.b16 %v1029
        %v1525 = vunpack.c.h.b16 %v1029
        %v1526 = vunpack.c.l.b16 %v1030
        %v1527 = vunpack.c.l.b16 %v1031
        %v1528 = vunpack.c.h.b16 %v1031
        %v1529 = vunpack.c.l.b16 %v1032
        %v1530 = vpack.c.b16 %v1245, %v1242
        %v1531 = vpack.c.b16 %v1246, %v1243
        %v1532 = vpack.c.b16 %v1247, %v1244
        %v1533 = vpack.c.b16 %v1251, %v1248
        %v1534 = vpack.c.b16 %v1252, %v1249
        %v1535 = vpack.c.b16 %v1253, %v1250
        %v1536 = vpack.c.b16 %v1257, %v1254
        %v1537 = vpack.c.b16 %v1258, %v1255
        %v1538 = vpack.c.b16 %v1259, %v1256
        %v1539 = vpack.c.b16 %v1263, %v1260
        %v1540 = vpack.c.b16 %v1264, %v1261
        %v1541 = vpack.c.b16 %v1265, %v1262
        %v1542 = vpack.c.b16 %v1269, %v1266
        %v1543 = vpack.c.b16 %v1270, %v1267
        %v1544 = vpack.c.b16 %v1271, %v1268
        %v1545 = vpack.c.b16 %v1275, %v1272
        %v1546 = vpack.c.b16 %v1276, %v1273
        %v1547 = vpack.c.b16 %v1277, %v1274
        %v1548 = vpack.c.b16 %v1281, %v1278
        %v1549 = vpack.c.b16 %v1282, %v1279
        %v1550 = vpack.c.b16 %v1283, %v1280
        %v1551 = vpack.c.b16 %v1287, %v1284
        %v1552 = vpack.c.b16 %v1288, %v1285
        %v1553 = vpack.c.b16 %v1289, %v1286
        %v1554 = vpack.c.b16 %v1293, %v1290
        %v1555 = vpack.c.b16 %v1294, %v1291
        %v1556 = vpack.c.b16 %v1295, %v1292
        %v1557 = vpack.c.b16 %v1299, %v1296
        %v1558 = vpack.c.b16 %v1300, %v1297
        %v1559 = vpack.c.b16 %v1301, %v1298
        %v1560 = vpack.c.b16 %v1305, %v1302
        %v1561 = vpack.c.b16 %v1306, %v1303
        %v1562 = vpack.c.b16 %v1307, %v1304
        %v1563 = vpack.c.b16 %v1311, %v1308
        %v1564 = vpack.c.b16 %v1312, %v1309
        %v1565 = vpack.c.b16 %v1313, %v1310
        %v1566 = vpack.c.b16 %v1317, %v1314
        %v1567 = vpack.c.b16 %v1318, %v1315
        %v1568 = vpack.c.b16 %v1319, %v1316
        %v1569 = vpack.c.b16 %v1323, %v1320
        %v1570 = vpack.c.b16 %v1324, %v1321
        %v1571 = vpack.c.b16 %v1325, %v1322
        %v1572 = vpack.c.b16 %v1329, %v1326
        %v1573 = vpack.c.b16 %v1330, %v1327
        %v1574 = vpack.c.b16 %v1331, %v1328
        %v1575 = vpack.c.b16 %v1335, %v1332
        %v1576 = vpack.c.b16 %v1336, %v1333
        %v1577 = vpack.c.b16 %v1337, %v1334
        %v1578 = vpack.c.b16 %v1341, %v1338
        %v1579 = vpack.c.b16 %v1342, %v1339
        %v1580 = vpack.c.b16 %v1343, %v1340
        %v1581 = vpack.c.b16 %v1347, %v1344
        %v1582 = vpack.c.b16 %v1348, %v1345
        %v1583 = vpack.c.b16 %v1349, %v1346
        %v1584 = vpack.c.b16 %v1353, %v1350
        %v1585 = vpack.c.b16 %v1354, %v1351
        %v1586 = vpack.c.b16 %v1355, %v1352
        %v1587 = vpack.c.b16 %v1359, %v1356
        %v1588 = vpack.c.b16 %v1360, %v1357
        %v1589 = vpack.c.b16 %v1361, %v1358
        %v1590 = vpack.c.b16 %v1365, %v1362
        %v1591 = vpack.c.b16 %v1366, %v1363
        %v1592 = vpack.c.b16 %v1367, %v1364
        %v1593 = vpack.c.b16 %v1371, %v1368
        %v1594 = vpack.c.b16 %v1372, %v1369
        %v1595 = vpack.c.b16 %v1373, %v1370
        %v1596 = vpack.c.b16 %v1377, %v1374
        %v1597 = vpack.c.b16 %v1378, %v1375
        %v1598 = vpack.c.b16 %v1379, %v1376
        %v1599 = vpack.c.b16 %v1383, %v1380
        %v1600 = vpack.c.b16 %v1384, %v1381
        %v1601 = vpack.c.b16 %v1385, %v1382
        %v1602 = vpack.c.b16 %v1389, %v1386
        %v1603 = vpack.c.b16 %v1390, %v1387
        %v1604 = vpack.c.b16 %v1391, %v1388
        %v1605 = vpack.c.b16 %v1395, %v1392
        %v1606 = vpack.c.b16 %v1396, %v1393
        %v1607 = vpack.c.b16 %v1397, %v1394
        %v1608 = vpack.c.b16 %v1401, %v1398
        %v1609 = vpack.c.b16 %v1402, %v1399
        %v1610 = vpack.c.b16 %v1403, %v1400
        %v1611 = vpack.c.b16 %v1407, %v1404
        %v1612 = vpack.c.b16 %v1408, %v1405
        %v1613 = vpack.c.b16 %v1409, %v1406
        %v1614 = vpack.c.b16 %v1413, %v1410
        %v1615 = vpack.c.b16 %v1414, %v1411
        %v1616 = vpack.c.b16 %v1415, %v1412
        %v1617 = vpack.c.b16 %v1419, %v1416
        %v1618 = vpack.c.b16 %v1420, %v1417
        %v1619 = vpack.c.b16 %v1421, %v1418
        %v1620 = vpack.c.b16 %v1425, %v1422
        %v1621 = vpack.c.b16 %v1426, %v1423
        %v1622 = vpack.c.b16 %v1427, %v1424
        %v1623 = vpack.c.b16 %v1431, %v1428
        %v1624 = vpack.c.b16 %v1432, %v1429
        %v1625 = vpack.c.b16 %v1433, %v1430
        %v1626 = vpack.c.b16 %v1437, %v1434
        %v1627 = vpack.c.b16 %v1438, %v1435
        %v1628 = vpack.c.b16 %v1439, %v1436
        %v1629 = vpack.c.b16 %v1443, %v1440
        %v1630 = vpack.c.b16 %v1444, %v1441
        %v1631 = vpack.c.b16 %v1445, %v1442
        %v1632 = vpack.c.b16 %v1449, %v1446
        %v1633 = vpack.c.b16 %v1450, %v1447
        %v1634 = vpack.c.b16 %v1451, %v1448
        %v1635 = vpack.c.b16 %v1455, %v1452
        %v1636 = vpack.c.b16 %v1456, %v1453
        %v1637 = vpack.c.b16 %v1457, %v1454
        %v1638 = vpack.c.b16 %v1461, %v1458
        %v1639 = vpack.c.b16 %v1462, %v1459
        %v1640 = vpack.c.b16 %v1463, %v1460
        %v1641 = vpack.c.b16 %v1467, %v1464
        %v1642 = vpack.c.b16 %v1468, %v1465
        %v1643 = vpack.c.b16 %v1469, %v1466
        %v1644 = vpack.c.b16 %v1473, %v1470
        %v1645 = vpack.c.b16 %v1474, %v1471
        %v1646 = vpack.c.b16 %v1475, %v1472
        %v1647 = vpack.c.b16 %v1479, %v1476
        %v1648 = vpack.c.b16 %v1480, %v1477
        %v1649 = vpack.c.b16 %v1481, %v1478
        %v1650 = vpack.c.b16 %v1485, %v1482
        %v1651 = vpack.c.b16 %v1486, %v1483
        %v1652 = vpack.c.b16 %v1487, %v1484
        %v1653 = vpack.c.b16 %v1491, %v1488
        %v1654 = vpack.c.b16 %v1492, %v1489
        %v1655 = vpack.c.b16 %v1493, %v1490
        %v1656 = vpack.c.b16 %v1497, %v1494
        %v1657 = vpack.c.b16 %v1498, %v1495
        %v1658 = vpack.c.b16 %v1499, %v1496
        %v1659 = vpack.c.b16 %v1503, %v1500
        %v1660 = vpack.c.b16 %v1504, %v1501
        %v1661 = vpack.c.b16 %v1505, %v1502
        %v1662 = vpack.c.b16 %v1509, %v1506
        %v1663 = vpack.c.b16 %v1510, %v1507
        %v1664 = vpack.c.b16 %v1511, %v1508
        %v1665 = vpack.c.b16 %v1515, %v1512
        %v1666 = vpack.c.b16 %v1516, %v1513
        %v1667 = vpack.c.b16 %v1517, %v1514
        %v1668 = vpack.c.b16 %v1521, %v1518
        %v1669 = vpack.c.b16 %v1522, %v1519
        %v1670 = vpack.c.b16 %v1523, %v1520
        %v1671 = vpack.c.b16 %v1527, %v1524
        %v1672 = vpack.c.b16 %v1528, %v1525
        %v1673 = vpack.c.b16 %v1529, %v1526
        %1818 = vmatprep.subr.bf16.mxu0 %v1531
        %1819 = vmatpush1.bf16.msra.mxu0 %v1530
        %1820 = vmatprep.subr.bf16.mxu0 %v1534
        %1821 = vmatpush1.bf16.msra.mxu0 %v1533
        %1822 = vmatprep.subr.bf16.mxu0 %v1537
        %1823 = vmatpush1.bf16.msra.mxu0 %v1536
        %1824 = vmatprep.subr.bf16.mxu0 %v1540
        %1825 = vmatpush1.bf16.msra.mxu0 %v1539
        %1826 = vmatprep.subr.bf16.mxu0 %v1543
        %1827 = vmatpush1.bf16.msra.mxu0 %v1542
        %1828 = vmatprep.subr.bf16.mxu0 %v1546
        %1829 = vmatpush1.bf16.msra.mxu0 %v1545
        %1830 = vmatprep.subr.bf16.mxu0 %v1549
        %1831 = vmatpush1.bf16.msra.mxu0 %v1548
        %1832 = vmatprep.subr.bf16.mxu0 %v1552
        %1833 = vmatpush1.bf16.msra.mxu0 %v1551
        %1834 = vmatprep.subr.bf16.mxu0 %v1555
        %1835 = vmatpush1.bf16.msra.mxu0 %v1554
        %1836 = vmatprep.subr.bf16.mxu0 %v1558
        %1837 = vmatpush1.bf16.msra.mxu0 %v1557
        %1838 = vmatprep.subr.bf16.mxu0 %v1561
        %1839 = vmatpush1.bf16.msra.mxu0 %v1560
        %1840 = vmatprep.subr.bf16.mxu0 %v1564
        %1841 = vmatpush1.bf16.msra.mxu0 %v1563
        %1842 = vmatprep.subr.bf16.mxu0 %v1567
        %1843 = vmatpush1.bf16.msra.mxu0 %v1566
        %1844 = vmatprep.subr.bf16.mxu0 %v1570
        %1845 = vmatpush1.bf16.msra.mxu0 %v1569
        %1846 = vmatprep.subr.bf16.mxu0 %v1573
        %1847 = vmatpush1.bf16.msra.mxu0 %v1572
        %1848 = vmatprep.subr.bf16.mxu0 %v1576
        %1849 = vmatpush1.bf16.msra.mxu0 %v1575
        %1850 = vmatprep.mubr.bf16.mxu0 %v836
        %1851 = vmatmul.mubr.bf16.gmra.mrb[0].mxu0 %v835
        %v1852 = vpop.f32.mrb[0].mxu0
        %v1853 = vadd.f32 %v1038, %v1852
        %v1854 = vpop.f32.mrb[0].mxu0
        %v1855 = vadd.f32 %v1042, %v1854
        %v1856 = vpop.f32.mrb[0].mxu0
        %v1857 = vpop.f32.mrb[0].mxu0
        %1858 = vdwg.mxu0
        %1859 = vmatprep.subr.bf16.mxu0 %v1579
        %1860 = vmatpush1.bf16.msra.mxu0 %v1578
        %1861 = vmatprep.subr.bf16.mxu0 %v1582
        %1862 = vmatpush1.bf16.msra.mxu0 %v1581
        %1863 = vmatprep.subr.bf16.mxu0 %v1585
        %1864 = vmatpush1.bf16.msra.mxu0 %v1584
        %1865 = vmatprep.subr.bf16.mxu0 %v1588
        %1866 = vmatpush1.bf16.msra.mxu0 %v1587
        %1867 = vmatprep.subr.bf16.mxu0 %v1591
        %1868 = vmatpush1.bf16.msra.mxu0 %v1590
        %1869 = vmatprep.subr.bf16.mxu0 %v1594
        %1870 = vmatpush1.bf16.msra.mxu0 %v1593
        %1871 = vmatprep.subr.bf16.mxu0 %v1597
        %1872 = vmatpush1.bf16.msra.mxu0 %v1596
        %1873 = vmatprep.subr.bf16.mxu0 %v1600
        %1874 = vmatpush1.bf16.msra.mxu0 %v1599
        %1875 = vmatprep.subr.bf16.mxu0 %v1603
        %1876 = vmatpush1.bf16.msra.mxu0 %v1602
        %1877 = vmatprep.subr.bf16.mxu0 %v1606
        %1878 = vmatpush1.bf16.msra.mxu0 %v1605
        %1879 = vmatprep.subr.bf16.mxu0 %v1609
        %1880 = vmatpush1.bf16.msra.mxu0 %v1608
        %1881 = vmatprep.subr.bf16.mxu0 %v1612
        %1882 = vmatpush1.bf16.msra.mxu0 %v1611
        %1883 = vmatprep.subr.bf16.mxu0 %v1615
        %1884 = vmatpush1.bf16.msra.mxu0 %v1614
        %1885 = vmatprep.subr.bf16.mxu0 %v1618
        %1886 = vmatpush1.bf16.msra.mxu0 %v1617
        %1887 = vmatprep.subr.bf16.mxu0 %v1621
        %1888 = vmatpush1.bf16.msra.mxu0 %v1620
        %1889 = vmatprep.subr.bf16.mxu0 %v1624
        %1890 = vmatpush1.bf16.msra.mxu0 %v1623
        %1891 = vmatprep.mubr.bf16.mxu0 %v838
        %1892 = vmatmul.mubr.bf16.gmra.mrb[0].mxu0 %v837
        %v1893 = vpop.f32.mrb[0].mxu0
        %v1894 = vadd.f32 %v1853, %v1893
        %v1895 = vpop.f32.mrb[0].mxu0
        %v1896 = vadd.f32 %v1855, %v1895
        %v1897 = vpop.f32.mrb[0].mxu0
        %v1898 = vpop.f32.mrb[0].mxu0
        %1899 = vdwg.mxu0
        %1900 = vmatprep.subr.bf16.mxu0 %v1627
        %1901 = vmatpush1.bf16.msra.mxu0 %v1626
        %1902 = vmatprep.subr.bf16.mxu0 %v1630
        %1903 = vmatpush1.bf16.msra.mxu0 %v1629
        %1904 = vmatprep.subr.bf16.mxu0 %v1633
        %1905 = vmatpush1.bf16.msra.mxu0 %v1632
        %1906 = vmatprep.subr.bf16.mxu0 %v1636
        %1907 = vmatpush1.bf16.msra.mxu0 %v1635
        %1908 = vmatprep.subr.bf16.mxu0 %v1639
        %1909 = vmatpush1.bf16.msra.mxu0 %v1638
        %1910 = vmatprep.subr.bf16.mxu0 %v1642
        %1911 = vmatpush1.bf16.msra.mxu0 %v1641
        %1912 = vmatprep.subr.bf16.mxu0 %v1645
        %1913 = vmatpush1.bf16.msra.mxu0 %v1644
        %1914 = vmatprep.subr.bf16.mxu0 %v1648
        %1915 = vmatpush1.bf16.msra.mxu0 %v1647
        %1916 = vmatprep.subr.bf16.mxu0 %v1651
        %1917 = vmatpush1.bf16.msra.mxu0 %v1650
        %1918 = vmatprep.subr.bf16.mxu0 %v1654
        %1919 = vmatpush1.bf16.msra.mxu0 %v1653
        %1920 = vmatprep.subr.bf16.mxu0 %v1657
        %1921 = vmatpush1.bf16.msra.mxu0 %v1656
        %1922 = vmatprep.subr.bf16.mxu0 %v1660
        %1923 = vmatpush1.bf16.msra.mxu0 %v1659
        %1924 = vmatprep.subr.bf16.mxu0 %v1663
        %1925 = vmatpush1.bf16.msra.mxu0 %v1662
        %1926 = vmatprep.subr.bf16.mxu0 %v1666
        %1927 = vmatpush1.bf16.msra.mxu0 %v1665
        %1928 = vmatprep.subr.bf16.mxu0 %v1669
        %1929 = vmatpush1.bf16.msra.mxu0 %v1668
        %1930 = vmatprep.subr.bf16.mxu0 %v1672
        %1931 = vmatpush1.bf16.msra.mxu0 %v1671
        %1932 = vmatprep.mubr.bf16.mxu0 %v840
        %1933 = vmatmul.mubr.bf16.gmra.mrb[0].mxu0 %v839
        %v1934 = vpop.f32.mrb[0].mxu0
        %v1935 = vadd.f32 %v1894, %v1934
        %v1936 = vpop.f32.mrb[0].mxu0
        %v1937 = vadd.f32 %v1896, %v1936
        %v1938 = vpop.f32.mrb[0].mxu0
        %v1939 = vpop.f32.mrb[0].mxu0
        %1940 = vdwg.mxu0
        %1941 = vmatprep.subr.bf16.mxu0 0
        %1942 = vmatpush1.bf16.msra.mxu0 %v1532
        %1943 = vmatprep.subr.bf16.mxu0 0
        %1944 = vmatpush1.bf16.msra.mxu0 %v1535
        %1945 = vmatprep.subr.bf16.mxu0 0
        %1946 = vmatpush1.bf16.msra.mxu0 %v1538
        %1947 = vmatprep.subr.bf16.mxu0 0
        %1948 = vmatpush1.bf16.msra.mxu0 %v1541
        %1949 = vmatprep.subr.bf16.mxu0 0
        %1950 = vmatpush1.bf16.msra.mxu0 %v1544
        %1951 = vmatprep.subr.bf16.mxu0 0
        %1952 = vmatpush1.bf16.msra.mxu0 %v1547
        %1953 = vmatprep.subr.bf16.mxu0 0
        %1954 = vmatpush1.bf16.msra.mxu0 %v1550
        %1955 = vmatprep.subr.bf16.mxu0 0
        %1956 = vmatpush1.bf16.msra.mxu0 %v1553
        %1957 = vmatprep.subr.bf16.mxu0 0
        %1958 = vmatpush1.bf16.msra.mxu0 %v1556
        %1959 = vmatprep.subr.bf16.mxu0 0
        %1960 = vmatpush1.bf16.msra.mxu0 %v1559
        %1961 = vmatprep.subr.bf16.mxu0 0
        %1962 = vmatpush1.bf16.msra.mxu0 %v1562
        %1963 = vmatprep.subr.bf16.mxu0 0
        %1964 = vmatpush1.bf16.msra.mxu0 %v1565
        %1965 = vmatprep.subr.bf16.mxu0 0
        %1966 = vmatpush1.bf16.msra.mxu0 %v1568
        %1967 = vmatprep.subr.bf16.mxu0 0
        %1968 = vmatpush1.bf16.msra.mxu0 %v1571
        %1969 = vmatprep.subr.bf16.mxu0 0
        %1970 = vmatpush1.bf16.msra.mxu0 %v1574
        %1971 = vmatprep.subr.bf16.mxu0 0
        %1972 = vmatpush1.bf16.msra.mxu0 %v1577
        %1973 = vmatprep.mubr.bf16.mxu0 %v836
        %1974 = vmatmul.mubr.bf16.gmra.mrb[0].mxu0 %v835
        %v1975 = vpop.f32.mrb[0].mxu0
        %v1976 = vadd.f32 %v1046, %v1975
        %v1977 = vpop.f32.mrb[0].mxu0
        %v1978 = vpop.f32.mrb[0].mxu0
        %v1979 = vpop.f32.mrb[0].mxu0
        %1980 = vdwg.mxu0
        %1981 = vmatprep.subr.bf16.mxu0 0
        %1982 = vmatpush1.bf16.msra.mxu0 %v1580
        %1983 = vmatprep.subr.bf16.mxu0 0
        %1984 = vmatpush1.bf16.msra.mxu0 %v1583
        %1985 = vmatprep.subr.bf16.mxu0 0
        %1986 = vmatpush1.bf16.msra.mxu0 %v1586
        %1987 = vmatprep.subr.bf16.mxu0 0
        %1988 = vmatpush1.bf16.msra.mxu0 %v1589
        %1989 = vmatprep.subr.bf16.mxu0 0
        %1990 = vmatpush1.bf16.msra.mxu0 %v1592
        %1991 = vmatprep.subr.bf16.mxu0 0
        %1992 = vmatpush1.bf16.msra.mxu0 %v1595
        %1993 = vmatprep.subr.bf16.mxu0 0
        %1994 = vmatpush1.bf16.msra.mxu0 %v1598
        %1995 = vmatprep.subr.bf16.mxu0 0
        %1996 = vmatpush1.bf16.msra.mxu0 %v1601
        %1997 = vmatprep.subr.bf16.mxu0 0
        %1998 = vmatpush1.bf16.msra.mxu0 %v1604
        %1999 = vmatprep.subr.bf16.mxu0 0
        %2000 = vmatpush1.bf16.msra.mxu0 %v1607
        %2001 = vmatprep.subr.bf16.mxu0 0
        %2002 = vmatpush1.bf16.msra.mxu0 %v1610
        %2003 = vmatprep.subr.bf16.mxu0 0
        %2004 = vmatpush1.bf16.msra.mxu0 %v1613
        %2005 = vmatprep.subr.bf16.mxu0 0
        %2006 = vmatpush1.bf16.msra.mxu0 %v1616
        %2007 = vmatprep.subr.bf16.mxu0 0
        %2008 = vmatpush1.bf16.msra.mxu0 %v1619
        %2009 = vmatprep.subr.bf16.mxu0 0
        %2010 = vmatpush1.bf16.msra.mxu0 %v1622
        %2011 = vmatprep.subr.bf16.mxu0 0
        %2012 = vmatpush1.bf16.msra.mxu0 %v1625
        %2013 = vmatprep.mubr.bf16.mxu0 %v838
        %2014 = vmatmul.mubr.bf16.gmra.mrb[0].mxu0 %v837
        %v2015 = vpop.f32.mrb[0].mxu0
        %v2016 = vadd.f32 %v1976, %v2015
        %v2017 = vpop.f32.mrb[0].mxu0
        %v2018 = vpop.f32.mrb[0].mxu0
        %v2019 = vpop.f32.mrb[0].mxu0
        %2020 = vdwg.mxu0
        %2021 = vmatprep.subr.bf16.mxu0 0
        %2022 = vmatpush1.bf16.msra.mxu0 %v1628
        %2023 = vmatprep.subr.bf16.mxu0 0
        %2024 = vmatpush1.bf16.msra.mxu0 %v1631
        %2025 = vmatprep.subr.bf16.mxu0 0
        %2026 = vmatpush1.bf16.msra.mxu0 %v1634
        %2027 = vmatprep.subr.bf16.mxu0 0
        %2028 = vmatpush1.bf16.msra.mxu0 %v1637
        %2029 = vmatprep.subr.bf16.mxu0 0
        %2030 = vmatpush1.bf16.msra.mxu0 %v1640
        %2031 = vmatprep.subr.bf16.mxu0 0
        %2032 = vmatpush1.bf16.msra.mxu0 %v1643
        %2033 = vmatprep.subr.bf16.mxu0 0
        %2034 = vmatpush1.bf16.msra.mxu0 %v1646
        %2035 = vmatprep.subr.bf16.mxu0 0
        %2036 = vmatpush1.bf16.msra.mxu0 %v1649
        %2037 = vmatprep.subr.bf16.mxu0 0
        %2038 = vmatpush1.bf16.msra.mxu0 %v1652
        %2039 = vmatprep.subr.bf16.mxu0 0
        %2040 = vmatpush1.bf16.msra.mxu0 %v1655
        %2041 = vmatprep.subr.bf16.mxu0 0
        %2042 = vmatpush1.bf16.msra.mxu0 %v1658
        %2043 = vmatprep.subr.bf16.mxu0 0
        %2044 = vmatpush1.bf16.msra.mxu0 %v1661
        %2045 = vmatprep.subr.bf16.mxu0 0
        %2046 = vmatpush1.bf16.msra.mxu0 %v1664
        %2047 = vmatprep.subr.bf16.mxu0 0
        %2048 = vmatpush1.bf16.msra.mxu0 %v1667
        %2049 = vmatprep.subr.bf16.mxu0 0
        %2050 = vmatpush1.bf16.msra.mxu0 %v1670
        %2051 = vmatprep.subr.bf16.mxu0 0
        %2052 = vmatpush1.bf16.msra.mxu0 %v1673
        %2053 = vmatprep.mubr.bf16.mxu0 %v840
        %2054 = vmatmul.mubr.bf16.gmra.mrb[0].mxu0 %v839
        %v2055 = vpop.f32.mrb[0].mxu0
        %v2056 = vadd.f32 %v2016, %v2055
        %v2057 = vpop.f32.mrb[0].mxu0
        %v2058 = vpop.f32.mrb[0].mxu0
        %v2059 = vpop.f32.mrb[0].mxu0
        %2060 = vdwg.mxu0
        %v2061 = vmax.f32 %v1935, 0.0
        %v2062 = vmax.f32 %v1937, 0.0
        %v2063 = vmax.f32 %v2056, 0.0
        %v2064 = vld [vmem:[#allocation7] sm:$0x7]
        %v2066 = vlaneseq
        %v2067 = vshrl.u32 %v2066, 7
        %v2068 = vsub.s32 0, %v2067
        %v2069 = vrot.slane %v2064, %v2068
        %v2070 = vlaneseq
        %v2071 = vshrl.u32 %v2070, 7
        %v2072 = vsub.s32 1, %v2071
        %v2073 = vrot.slane %v2064, %v2072
        %v2074 = vlaneseq
        %v2075 = vshrl.u32 %v2074, 7
        %v2076 = vsub.s32 2, %v2075
        %v2077 = vrot.slane %v2064, %v2076
        %v2081 = vmul.f32 %v2061, %v2069
        %v2082 = vmul.f32 %v2062, %v2073
        %v2083 = vmul.f32 %v2063, %v2077
        %v2084 = vld [vmem:[#allocation9] sm:$0x7]
        %v2086 = vlaneseq
        %v2087 = vshrl.u32 %v2086, 7
        %v2088 = vsub.s32 0, %v2087
        %v2089 = vrot.slane %v2084, %v2088
        %v2090 = vlaneseq
        %v2091 = vshrl.u32 %v2090, 7
        %v2092 = vsub.s32 1, %v2091
        %v2093 = vrot.slane %v2084, %v2092
        %v2094 = vlaneseq
        %v2095 = vshrl.u32 %v2094, 7
        %v2096 = vsub.s32 2, %v2095
        %v2097 = vrot.slane %v2084, %v2096
        %v2101 = vadd.f32 %v2081, %v2089
        %v2102 = vadd.f32 %v2082, %v2093
        %v2103 = vadd.f32 %v2083, %v2097
        %v2104 = vpack.c.bf16 %v2101, %v2101
        %v2105 = vpack.c.bf16 %v2102, %v2102
        %v2106 = vpack.c.bf16 %v2103, %v2103
        %v2107 = vld [vmem:[#allocation10] sm:$0xff]
        %v2108 = vld [vmem:[#allocation10 + $0x8] sm:$0xf]
        %v2109 = vld [vmem:[#allocation10 + $0xc] sm:$0xff]
        %v2110 = vld [vmem:[#allocation10 + $0x14] sm:$0xf]
        %v2111 = vld [vmem:[#allocation10 + $0x18] sm:$0xff]
        %v2112 = vld [vmem:[#allocation10 + $0x20] sm:$0xf]
        %v2113 = vld [vmem:[#allocation10 + $0x24] sm:$0xff]
        %v2114 = vld [vmem:[#allocation10 + $0x2c] sm:$0xf]
        %v2115 = vld [vmem:[#allocation10 + $0x30] sm:$0xff]
        %v2116 = vld [vmem:[#allocation10 + $0x38] sm:$0xf]
        %v2117 = vld [vmem:[#allocation10 + $0x3c] sm:$0xff]
        %v2118 = vld [vmem:[#allocation10 + $0x44] sm:$0xf]
        %v2119 = vld [vmem:[#allocation10 + $0x48] sm:$0xff]
        %v2120 = vld [vmem:[#allocation10 + $0x50] sm:$0xf]
        %v2121 = vld [vmem:[#allocation10 + $0x54] sm:$0xff]
        %v2122 = vld [vmem:[#allocation10 + $0x5c] sm:$0xf]
        %v2123 = vld [vmem:[#allocation10 + $0x60] sm:$0xff]
        %v2124 = vld [vmem:[#allocation10 + $0x68] sm:$0xf]
        %v2125 = vld [vmem:[#allocation10 + $0x6c] sm:$0xff]
        %v2126 = vld [vmem:[#allocation10 + $0x74] sm:$0xf]
        %v2127 = vld [vmem:[#allocation10 + $0x78] sm:$0xff]
        %v2128 = vld [vmem:[#allocation10 + $0x80] sm:$0xf]
        %v2129 = vld [vmem:[#allocation10 + $0x84] sm:$0xff]
        %v2130 = vld [vmem:[#allocation10 + $0x8c] sm:$0xf]
        %v2131 = vld [vmem:[#allocation10 + $0x90] sm:$0xff]
        %v2132 = vld [vmem:[#allocation10 + $0x98] sm:$0xf]
        %v2133 = vld [vmem:[#allocation10 + $0x9c] sm:$0xff]
        %v2134 = vld [vmem:[#allocation10 + $0xa4] sm:$0xf]
        %v2135 = vld [vmem:[#allocation10 + $0xa8] sm:$0xff]
        %v2136 = vld [vmem:[#allocation10 + $0xb0] sm:$0xf]
        %v2137 = vld [vmem:[#allocation10 + $0xb4] sm:$0xff]
        %v2138 = vld [vmem:[#allocation10 + $0xbc] sm:$0xf]
        %v2139 = vld [vmem:[#allocation10 + $0xc0] sm:$0xff]
        %v2140 = vld [vmem:[#allocation10 + $0xc8] sm:$0xf]
        %v2141 = vld [vmem:[#allocation10 + $0xcc] sm:$0xff]
        %v2142 = vld [vmem:[#allocation10 + $0xd4] sm:$0xf]
        %v2143 = vld [vmem:[#allocation10 + $0xd8] sm:$0xff]
        %v2144 = vld [vmem:[#allocation10 + $0xe0] sm:$0xf]
        %v2145 = vld [vmem:[#allocation10 + $0xe4] sm:$0xff]
        %v2146 = vld [vmem:[#allocation10 + $0xec] sm:$0xf]
        %v2147 = vld [vmem:[#allocation10 + $0xf0] sm:$0xff]
        %v2148 = vld [vmem:[#allocation10 + $0xf8] sm:$0xf]
        %v2149 = vld [vmem:[#allocation10 + $0xfc] sm:$0xff]
        %v2150 = vld [vmem:[#allocation10 + $0x104] sm:$0xf]
        %v2151 = vld [vmem:[#allocation10 + $0x108] sm:$0xff]
        %v2152 = vld [vmem:[#allocation10 + $0x110] sm:$0xf]
        %v2153 = vld [vmem:[#allocation10 + $0x114] sm:$0xff]
        %v2154 = vld [vmem:[#allocation10 + $0x11c] sm:$0xf]
        %v2155 = vld [vmem:[#allocation10 + $0x120] sm:$0xff]
        %v2156 = vld [vmem:[#allocation10 + $0x128] sm:$0xf]
        %v2157 = vld [vmem:[#allocation10 + $0x12c] sm:$0xff]
        %v2158 = vld [vmem:[#allocation10 + $0x134] sm:$0xf]
        %v2159 = vld [vmem:[#allocation10 + $0x138] sm:$0xff]
        %v2160 = vld [vmem:[#allocation10 + $0x140] sm:$0xf]
        %v2161 = vld [vmem:[#allocation10 + $0x144] sm:$0xff]
        %v2162 = vld [vmem:[#allocation10 + $0x14c] sm:$0xf]
        %v2163 = vld [vmem:[#allocation10 + $0x150] sm:$0xff]
        %v2164 = vld [vmem:[#allocation10 + $0x158] sm:$0xf]
        %v2165 = vld [vmem:[#allocation10 + $0x15c] sm:$0xff]
        %v2166 = vld [vmem:[#allocation10 + $0x164] sm:$0xf]
        %v2167 = vld [vmem:[#allocation10 + $0x168] sm:$0xff]
        %v2168 = vld [vmem:[#allocation10 + $0x170] sm:$0xf]
        %v2169 = vld [vmem:[#allocation10 + $0x174] sm:$0xff]
        %v2170 = vld [vmem:[#allocation10 + $0x17c] sm:$0xf]
        %v2171 = vld [vmem:[#allocation10 + $0x180] sm:$0xff]
        %v2172 = vld [vmem:[#allocation10 + $0x188] sm:$0xf]
        %v2173 = vld [vmem:[#allocation10 + $0x18c] sm:$0xff]
        %v2174 = vld [vmem:[#allocation10 + $0x194] sm:$0xf]
        %v2175 = vld [vmem:[#allocation10 + $0x198] sm:$0xff]
        %v2176 = vld [vmem:[#allocation10 + $0x1a0] sm:$0xf]
        %v2177 = vld [vmem:[#allocation10 + $0x1a4] sm:$0xff]
        %v2178 = vld [vmem:[#allocation10 + $0x1ac] sm:$0xf]
        %v2179 = vld [vmem:[#allocation10 + $0x1b0] sm:$0xff]
        %v2180 = vld [vmem:[#allocation10 + $0x1b8] sm:$0xf]
        %v2181 = vld [vmem:[#allocation10 + $0x1bc] sm:$0xff]
        %v2182 = vld [vmem:[#allocation10 + $0x1c4] sm:$0xf]
        %v2183 = vld [vmem:[#allocation10 + $0x1c8] sm:$0xff]
        %v2184 = vld [vmem:[#allocation10 + $0x1d0] sm:$0xf]
        %v2185 = vld [vmem:[#allocation10 + $0x1d4] sm:$0xff]
        %v2186 = vld [vmem:[#allocation10 + $0x1dc] sm:$0xf]
        %v2187 = vld [vmem:[#allocation10 + $0x1e0] sm:$0xff]
        %v2188 = vld [vmem:[#allocation10 + $0x1e8] sm:$0xf]
        %v2189 = vld [vmem:[#allocation10 + $0x1ec] sm:$0xff]
        %v2190 = vld [vmem:[#allocation10 + $0x1f4] sm:$0xf]
        %v2191 = vld [vmem:[#allocation10 + $0x1f8] sm:$0xff]
        %v2192 = vld [vmem:[#allocation10 + $0x200] sm:$0xf]
        %v2193 = vld [vmem:[#allocation10 + $0x204] sm:$0xff]
        %v2194 = vld [vmem:[#allocation10 + $0x20c] sm:$0xf]
        %v2195 = vld [vmem:[#allocation10 + $0x210] sm:$0xff]
        %v2196 = vld [vmem:[#allocation10 + $0x218] sm:$0xf]
        %v2197 = vld [vmem:[#allocation10 + $0x21c] sm:$0xff]
        %v2198 = vld [vmem:[#allocation10 + $0x224] sm:$0xf]
        %v2199 = vld [vmem:[#allocation10 + $0x228] sm:$0xff]
        %v2200 = vld [vmem:[#allocation10 + $0x230] sm:$0xf]
        %v2201 = vld [vmem:[#allocation10 + $0x234] sm:$0xff]
        %v2202 = vld [vmem:[#allocation10 + $0x23c] sm:$0xf]
        %v2203 = vld [vmem:[#allocation12] sm:$0x7]
        %v2205 = vlaneseq
        %v2206 = vshrl.u32 %v2205, 7
        %v2207 = vsub.s32 0, %v2206
        %v2208 = vrot.slane %v2203, %v2207
        %v2209 = vlaneseq
        %v2210 = vshrl.u32 %v2209, 7
        %v2211 = vsub.s32 1, %v2210
        %v2212 = vrot.slane %v2203, %v2211
        %v2213 = vlaneseq
        %v2214 = vshrl.u32 %v2213, 7
        %v2215 = vsub.s32 2, %v2214
        %v2216 = vrot.slane %v2203, %v2215
        %v2316 = vunpack.c.l.b16 %v2107
        %v2317 = vunpack.c.h.b16 %v2107
        %v2318 = vunpack.c.l.b16 %v2108
        %v2319 = vunpack.c.l.b16 %v2109
        %v2320 = vunpack.c.h.b16 %v2109
        %v2321 = vunpack.c.l.b16 %v2110
        %v2322 = vunpack.c.l.b16 %v2111
        %v2323 = vunpack.c.h.b16 %v2111
        %v2324 = vunpack.c.l.b16 %v2112
        %v2325 = vunpack.c.l.b16 %v2113
        %v2326 = vunpack.c.h.b16 %v2113
        %v2327 = vunpack.c.l.b16 %v2114
        %v2328 = vunpack.c.l.b16 %v2115
        %v2329 = vunpack.c.h.b16 %v2115
        %v2330 = vunpack.c.l.b16 %v2116
        %v2331 = vunpack.c.l.b16 %v2117
        %v2332 = vunpack.c.h.b16 %v2117
        %v2333 = vunpack.c.l.b16 %v2118
        %v2334 = vunpack.c.l.b16 %v2119
        %v2335 = vunpack.c.h.b16 %v2119
        %v2336 = vunpack.c.l.b16 %v2120
        %v2337 = vunpack.c.l.b16 %v2121
        %v2338 = vunpack.c.h.b16 %v2121
        %v2339 = vunpack.c.l.b16 %v2122
        %v2340 = vunpack.c.l.b16 %v2123
        %v2341 = vunpack.c.h.b16 %v2123
        %v2342 = vunpack.c.l.b16 %v2124
        %v2343 = vunpack.c.l.b16 %v2125
        %v2344 = vunpack.c.h.b16 %v2125
        %v2345 = vunpack.c.l.b16 %v2126
        %v2346 = vunpack.c.l.b16 %v2127
        %v2347 = vunpack.c.h.b16 %v2127
        %v2348 = vunpack.c.l.b16 %v2128
        %v2349 = vunpack.c.l.b16 %v2129
        %v2350 = vunpack.c.h.b16 %v2129
        %v2351 = vunpack.c.l.b16 %v2130
        %v2352 = vunpack.c.l.b16 %v2131
        %v2353 = vunpack.c.h.b16 %v2131
        %v2354 = vunpack.c.l.b16 %v2132
        %v2355 = vunpack.c.l.b16 %v2133
        %v2356 = vunpack.c.h.b16 %v2133
        %v2357 = vunpack.c.l.b16 %v2134
        %v2358 = vunpack.c.l.b16 %v2135
        %v2359 = vunpack.c.h.b16 %v2135
        %v2360 = vunpack.c.l.b16 %v2136
        %v2361 = vunpack.c.l.b16 %v2137
        %v2362 = vunpack.c.h.b16 %v2137
        %v2363 = vunpack.c.l.b16 %v2138
        %v2364 = vunpack.c.l.b16 %v2139
        %v2365 = vunpack.c.h.b16 %v2139
        %v2366 = vunpack.c.l.b16 %v2140
        %v2367 = vunpack.c.l.b16 %v2141
        %v2368 = vunpack.c.h.b16 %v2141
        %v2369 = vunpack.c.l.b16 %v2142
        %v2370 = vunpack.c.l.b16 %v2143
        %v2371 = vunpack.c.h.b16 %v2143
        %v2372 = vunpack.c.l.b16 %v2144
        %v2373 = vunpack.c.l.b16 %v2145
        %v2374 = vunpack.c.h.b16 %v2145
        %v2375 = vunpack.c.l.b16 %v2146
        %v2376 = vunpack.c.l.b16 %v2147
        %v2377 = vunpack.c.h.b16 %v2147
        %v2378 = vunpack.c.l.b16 %v2148
        %v2379 = vunpack.c.l.b16 %v2149
        %v2380 = vunpack.c.h.b16 %v2149
        %v2381 = vunpack.c.l.b16 %v2150
        %v2382 = vunpack.c.l.b16 %v2151
        %v2383 = vunpack.c.h.b16 %v2151
        %v2384 = vunpack.c.l.b16 %v2152
        %v2385 = vunpack.c.l.b16 %v2153
        %v2386 = vunpack.c.h.b16 %v2153
        %v2387 = vunpack.c.l.b16 %v2154
        %v2388 = vunpack.c.l.b16 %v2155
        %v2389 = vunpack.c.h.b16 %v2155
        %v2390 = vunpack.c.l.b16 %v2156
        %v2391 = vunpack.c.l.b16 %v2157
        %v2392 = vunpack.c.h.b16 %v2157
        %v2393 = vunpack.c.l.b16 %v2158
        %v2394 = vunpack.c.l.b16 %v2159
        %v2395 = vunpack.c.h.b16 %v2159
        %v2396 = vunpack.c.l.b16 %v2160
        %v2397 = vunpack.c.l.b16 %v2161
        %v2398 = vunpack.c.h.b16 %v2161
        %v2399 = vunpack.c.l.b16 %v2162
        %v2400 = vunpack.c.l.b16 %v2163
        %v2401 = vunpack.c.h.b16 %v2163
        %v2402 = vunpack.c.l.b16 %v2164
        %v2403 = vunpack.c.l.b16 %v2165
        %v2404 = vunpack.c.h.b16 %v2165
        %v2405 = vunpack.c.l.b16 %v2166
        %v2406 = vunpack.c.l.b16 %v2167
        %v2407 = vunpack.c.h.b16 %v2167
        %v2408 = vunpack.c.l.b16 %v2168
        %v2409 = vunpack.c.l.b16 %v2169
        %v2410 = vunpack.c.h.b16 %v2169
        %v2411 = vunpack.c.l.b16 %v2170
        %v2412 = vunpack.c.l.b16 %v2171
        %v2413 = vunpack.c.h.b16 %v2171
        %v2414 = vunpack.c.l.b16 %v2172
        %v2415 = vunpack.c.l.b16 %v2173
        %v2416 = vunpack.c.h.b16 %v2173
        %v2417 = vunpack.c.l.b16 %v2174
        %v2418 = vunpack.c.l.b16 %v2175
        %v2419 = vunpack.c.h.b16 %v2175
        %v2420 = vunpack.c.l.b16 %v2176
        %v2421 = vunpack.c.l.b16 %v2177
        %v2422 = vunpack.c.h.b16 %v2177
        %v2423 = vunpack.c.l.b16 %v2178
        %v2424 = vunpack.c.l.b16 %v2179
        %v2425 = vunpack.c.h.b16 %v2179
        %v2426 = vunpack.c.l.b16 %v2180
        %v2427 = vunpack.c.l.b16 %v2181
        %v2428 = vunpack.c.h.b16 %v2181
        %v2429 = vunpack.c.l.b16 %v2182
        %v2430 = vunpack.c.l.b16 %v2183
        %v2431 = vunpack.c.h.b16 %v2183
        %v2432 = vunpack.c.l.b16 %v2184
        %v2433 = vunpack.c.l.b16 %v2185
        %v2434 = vunpack.c.h.b16 %v2185
        %v2435 = vunpack.c.l.b16 %v2186
        %v2436 = vunpack.c.l.b16 %v2187
        %v2437 = vunpack.c.h.b16 %v2187
        %v2438 = vunpack.c.l.b16 %v2188
        %v2439 = vunpack.c.l.b16 %v2189
        %v2440 = vunpack.c.h.b16 %v2189
        %v2441 = vunpack.c.l.b16 %v2190
        %v2442 = vunpack.c.l.b16 %v2191
        %v2443 = vunpack.c.h.b16 %v2191
        %v2444 = vunpack.c.l.b16 %v2192
        %v2445 = vunpack.c.l.b16 %v2193
        %v2446 = vunpack.c.h.b16 %v2193
        %v2447 = vunpack.c.l.b16 %v2194
        %v2448 = vunpack.c.l.b16 %v2195
        %v2449 = vunpack.c.h.b16 %v2195
        %v2450 = vunpack.c.l.b16 %v2196
        %v2451 = vunpack.c.l.b16 %v2197
        %v2452 = vunpack.c.h.b16 %v2197
        %v2453 = vunpack.c.l.b16 %v2198
        %v2454 = vunpack.c.l.b16 %v2199
        %v2455 = vunpack.c.h.b16 %v2199
        %v2456 = vunpack.c.l.b16 %v2200
        %v2457 = vunpack.c.l.b16 %v2201
        %v2458 = vunpack.c.h.b16 %v2201
        %v2459 = vunpack.c.l.b16 %v2202
        %v2460 = vpack.c.b16 %v2319, %v2316
        %v2461 = vpack.c.b16 %v2320, %v2317
        %v2462 = vpack.c.b16 %v2321, %v2318
        %v2463 = vpack.c.b16 %v2325, %v2322
        %v2464 = vpack.c.b16 %v2326, %v2323
        %v2465 = vpack.c.b16 %v2327, %v2324
        %v2466 = vpack.c.b16 %v2331, %v2328
        %v2467 = vpack.c.b16 %v2332, %v2329
        %v2468 = vpack.c.b16 %v2333, %v2330
        %v2469 = vpack.c.b16 %v2337, %v2334
        %v2470 = vpack.c.b16 %v2338, %v2335
        %v2471 = vpack.c.b16 %v2339, %v2336
        %v2472 = vpack.c.b16 %v2343, %v2340
        %v2473 = vpack.c.b16 %v2344, %v2341
        %v2474 = vpack.c.b16 %v2345, %v2342
        %v2475 = vpack.c.b16 %v2349, %v2346
        %v2476 = vpack.c.b16 %v2350, %v2347
        %v2477 = vpack.c.b16 %v2351, %v2348
        %v2478 = vpack.c.b16 %v2355, %v2352
        %v2479 = vpack.c.b16 %v2356, %v2353
        %v2480 = vpack.c.b16 %v2357, %v2354
        %v2481 = vpack.c.b16 %v2361, %v2358
        %v2482 = vpack.c.b16 %v2362, %v2359
        %v2483 = vpack.c.b16 %v2363, %v2360
        %v2484 = vpack.c.b16 %v2367, %v2364
        %v2485 = vpack.c.b16 %v2368, %v2365
        %v2486 = vpack.c.b16 %v2369, %v2366
        %v2487 = vpack.c.b16 %v2373, %v2370
        %v2488 = vpack.c.b16 %v2374, %v2371
        %v2489 = vpack.c.b16 %v2375, %v2372
        %v2490 = vpack.c.b16 %v2379, %v2376
        %v2491 = vpack.c.b16 %v2380, %v2377
        %v2492 = vpack.c.b16 %v2381, %v2378
        %v2493 = vpack.c.b16 %v2385, %v2382
        %v2494 = vpack.c.b16 %v2386, %v2383
        %v2495 = vpack.c.b16 %v2387, %v2384
        %v2496 = vpack.c.b16 %v2391, %v2388
        %v2497 = vpack.c.b16 %v2392, %v2389
        %v2498 = vpack.c.b16 %v2393, %v2390
        %v2499 = vpack.c.b16 %v2397, %v2394
        %v2500 = vpack.c.b16 %v2398, %v2395
        %v2501 = vpack.c.b16 %v2399, %v2396
        %v2502 = vpack.c.b16 %v2403, %v2400
        %v2503 = vpack.c.b16 %v2404, %v2401
        %v2504 = vpack.c.b16 %v2405, %v2402
        %v2505 = vpack.c.b16 %v2409, %v2406
        %v2506 = vpack.c.b16 %v2410, %v2407
        %v2507 = vpack.c.b16 %v2411, %v2408
        %v2508 = vpack.c.b16 %v2415, %v2412
        %v2509 = vpack.c.b16 %v2416, %v2413
        %v2510 = vpack.c.b16 %v2417, %v2414
        %v2511 = vpack.c.b16 %v2421, %v2418
        %v2512 = vpack.c.b16 %v2422, %v2419
        %v2513 = vpack.c.b16 %v2423, %v2420
        %v2514 = vpack.c.b16 %v2427, %v2424
        %v2515 = vpack.c.b16 %v2428, %v2425
        %v2516 = vpack.c.b16 %v2429, %v2426
        %v2517 = vpack.c.b16 %v2433, %v2430
        %v2518 = vpack.c.b16 %v2434, %v2431
        %v2519 = vpack.c.b16 %v2435, %v2432
        %v2520 = vpack.c.b16 %v2439, %v2436
        %v2521 = vpack.c.b16 %v2440, %v2437
        %v2522 = vpack.c.b16 %v2441, %v2438
        %v2523 = vpack.c.b16 %v2445, %v2442
        %v2524 = vpack.c.b16 %v2446, %v2443
        %v2525 = vpack.c.b16 %v2447, %v2444
        %v2526 = vpack.c.b16 %v2451, %v2448
        %v2527 = vpack.c.b16 %v2452, %v2449
        %v2528 = vpack.c.b16 %v2453, %v2450
        %v2529 = vpack.c.b16 %v2457, %v2454
        %v2530 = vpack.c.b16 %v2458, %v2455
        %v2531 = vpack.c.b16 %v2459, %v2456
        %2604 = vmatprep.subr.bf16.mxu0 %v2461
        %2605 = vmatpush1.bf16.msra.mxu0 %v2460
        %2606 = vmatprep.subr.bf16.mxu0 %v2464
        %2607 = vmatpush1.bf16.msra.mxu0 %v2463
        %2608 = vmatprep.subr.bf16.mxu0 %v2467
        %2609 = vmatpush1.bf16.msra.mxu0 %v2466
        %2610 = vmatprep.subr.bf16.mxu0 %v2470
        %2611 = vmatpush1.bf16.msra.mxu0 %v2469
        %2612 = vmatprep.subr.bf16.mxu0 %v2473
        %2613 = vmatpush1.bf16.msra.mxu0 %v2472
        %2614 = vmatprep.subr.bf16.mxu0 %v2476
        %2615 = vmatpush1.bf16.msra.mxu0 %v2475
        %2616 = vmatprep.subr.bf16.mxu0 %v2479
        %2617 = vmatpush1.bf16.msra.mxu0 %v2478
        %2618 = vmatprep.subr.bf16.mxu0 %v2482
        %2619 = vmatpush1.bf16.msra.mxu0 %v2481
        %2620 = vmatprep.subr.bf16.mxu0 %v2485
        %2621 = vmatpush1.bf16.msra.mxu0 %v2484
        %2622 = vmatprep.subr.bf16.mxu0 %v2488
        %2623 = vmatpush1.bf16.msra.mxu0 %v2487
        %2624 = vmatprep.subr.bf16.mxu0 %v2491
        %2625 = vmatpush1.bf16.msra.mxu0 %v2490
        %2626 = vmatprep.subr.bf16.mxu0 %v2494
        %2627 = vmatpush1.bf16.msra.mxu0 %v2493
        %2628 = vmatprep.subr.bf16.mxu0 %v2497
        %2629 = vmatpush1.bf16.msra.mxu0 %v2496
        %2630 = vmatprep.subr.bf16.mxu0 %v2500
        %2631 = vmatpush1.bf16.msra.mxu0 %v2499
        %2632 = vmatprep.subr.bf16.mxu0 %v2503
        %2633 = vmatpush1.bf16.msra.mxu0 %v2502
        %2634 = vmatprep.subr.bf16.mxu0 %v2506
        %2635 = vmatpush1.bf16.msra.mxu0 %v2505
        %2636 = vmatprep.mubr.bf16.mxu0 %v2105
        %2637 = vmatmul.mubr.bf16.gmra.mrb[0].mxu0 %v2104
        %v2638 = vpop.f32.mrb[0].mxu0
        %v2639 = vadd.f32 %v2208, %v2638
        %v2640 = vpop.f32.mrb[0].mxu0
        %v2641 = vadd.f32 %v2212, %v2640
        %v2642 = vpop.f32.mrb[0].mxu0
        %v2643 = vpop.f32.mrb[0].mxu0
        %2644 = vdwg.mxu0
        %2645 = vmatprep.subr.bf16.mxu0 %v2509
        %2646 = vmatpush1.bf16.msra.mxu0 %v2508
        %2647 = vmatprep.subr.bf16.mxu0 %v2512
        %2648 = vmatpush1.bf16.msra.mxu0 %v2511
        %2649 = vmatprep.subr.bf16.mxu0 %v2515
        %2650 = vmatpush1.bf16.msra.mxu0 %v2514
        %2651 = vmatprep.subr.bf16.mxu0 %v2518
        %2652 = vmatpush1.bf16.msra.mxu0 %v2517
        %2653 = vmatprep.subr.bf16.mxu0 %v2521
        %2654 = vmatpush1.bf16.msra.mxu0 %v2520
        %2655 = vmatprep.subr.bf16.mxu0 %v2524
        %2656 = vmatpush1.bf16.msra.mxu0 %v2523
        %2657 = vmatprep.subr.bf16.mxu0 %v2527
        %2658 = vmatpush1.bf16.msra.mxu0 %v2526
        %2659 = vmatprep.subr.bf16.mxu0 %v2530
        %2660 = vmatpush1.bf16.msra.mxu0 %v2529
        %2661 = vmatprep.subr.bf16.mxu0 0
        %2662 = vmatpush1.bf16.msra.mxu0 0
        %2663 = vmatprep.subr.bf16.mxu0 0
        %2664 = vmatpush1.bf16.msra.mxu0 0
        %2665 = vmatprep.subr.bf16.mxu0 0
        %2666 = vmatpush1.bf16.msra.mxu0 0
        %2667 = vmatprep.subr.bf16.mxu0 0
        %2668 = vmatpush1.bf16.msra.mxu0 0
        %2669 = vmatprep.subr.bf16.mxu0 0
        %2670 = vmatpush1.bf16.msra.mxu0 0
        %2671 = vmatprep.subr.bf16.mxu0 0
        %2672 = vmatpush1.bf16.msra.mxu0 0
        %2673 = vmatprep.subr.bf16.mxu0 0
        %2674 = vmatpush1.bf16.msra.mxu0 0
        %2675 = vmatprep.subr.bf16.mxu0 0
        %2676 = vmatpush1.bf16.msra.mxu0 0
        %2677 = vmatprep.mubr.bf16.mxu0 0
        %2678 = vmatmul.mubr.bf16.gmra.mrb[0].mxu0 %v2106
        %v2679 = vpop.f32.mrb[0].mxu0
        %v2680 = vadd.f32 %v2639, %v2679
        %v2681 = vpop.f32.mrb[0].mxu0
        %v2682 = vadd.f32 %v2641, %v2681
        %v2683 = vpop.f32.mrb[0].mxu0
        %v2684 = vpop.f32.mrb[0].mxu0
        %2685 = vdwg.mxu0
        %2686 = vmatprep.subr.bf16.mxu0 0
        %2687 = vmatpush1.bf16.msra.mxu0 %v2462
        %2688 = vmatprep.subr.bf16.mxu0 0
        %2689 = vmatpush1.bf16.msra.mxu0 %v2465
        %2690 = vmatprep.subr.bf16.mxu0 0
        %2691 = vmatpush1.bf16.msra.mxu0 %v2468
        %2692 = vmatprep.subr.bf16.mxu0 0
        %2693 = vmatpush1.bf16.msra.mxu0 %v2471
        %2694 = vmatprep.subr.bf16.mxu0 0
        %2695 = vmatpush1.bf16.msra.mxu0 %v2474
        %2696 = vmatprep.subr.bf16.mxu0 0
        %2697 = vmatpush1.bf16.msra.mxu0 %v2477
        %2698 = vmatprep.subr.bf16.mxu0 0
        %2699 = vmatpush1.bf16.msra.mxu0 %v2480
        %2700 = vmatprep.subr.bf16.mxu0 0
        %2701 = vmatpush1.bf16.msra.mxu0 %v2483
        %2702 = vmatprep.subr.bf16.mxu0 0
        %2703 = vmatpush1.bf16.msra.mxu0 %v2486
        %2704 = vmatprep.subr.bf16.mxu0 0
        %2705 = vmatpush1.bf16.msra.mxu0 %v2489
        %2706 = vmatprep.subr.bf16.mxu0 0
        %2707 = vmatpush1.bf16.msra.mxu0 %v2492
        %2708 = vmatprep.subr.bf16.mxu0 0
        %2709 = vmatpush1.bf16.msra.mxu0 %v2495
        %2710 = vmatprep.subr.bf16.mxu0 0
        %2711 = vmatpush1.bf16.msra.mxu0 %v2498
        %2712 = vmatprep.subr.bf16.mxu0 0
        %2713 = vmatpush1.bf16.msra.mxu0 %v2501
        %2714 = vmatprep.subr.bf16.mxu0 0
        %2715 = vmatpush1.bf16.msra.mxu0 %v2504
        %2716 = vmatprep.subr.bf16.mxu0 0
        %2717 = vmatpush1.bf16.msra.mxu0 %v2507
        %2718 = vmatprep.mubr.bf16.mxu0 %v2105
        %2719 = vmatmul.mubr.bf16.gmra.mrb[0].mxu0 %v2104
        %v2720 = vpop.f32.mrb[0].mxu0
        %v2721 = vadd.f32 %v2216, %v2720
        %v2722 = vpop.f32.mrb[0].mxu0
        %v2723 = vpop.f32.mrb[0].mxu0
        %v2724 = vpop.f32.mrb[0].mxu0
        %2725 = vdwg.mxu0
        %2726 = vmatprep.subr.bf16.mxu0 0
        %2727 = vmatpush1.bf16.msra.mxu0 %v2510
        %2728 = vmatprep.subr.bf16.mxu0 0
        %2729 = vmatpush1.bf16.msra.mxu0 %v2513
        %2730 = vmatprep.subr.bf16.mxu0 0
        %2731 = vmatpush1.bf16.msra.mxu0 %v2516
        %2732 = vmatprep.subr.bf16.mxu0 0
        %2733 = vmatpush1.bf16.msra.mxu0 %v2519
        %2734 = vmatprep.subr.bf16.mxu0 0
        %2735 = vmatpush1.bf16.msra.mxu0 %v2522
        %2736 = vmatprep.subr.bf16.mxu0 0
        %2737 = vmatpush1.bf16.msra.mxu0 %v2525
        %2738 = vmatprep.subr.bf16.mxu0 0
        %2739 = vmatpush1.bf16.msra.mxu0 %v2528
        %2740 = vmatprep.subr.bf16.mxu0 0
        %2741 = vmatpush1.bf16.msra.mxu0 %v2531
        %2742 = vmatprep.subr.bf16.mxu0 0
        %2743 = vmatpush1.bf16.msra.mxu0 0
        %2744 = vmatprep.subr.bf16.mxu0 0
        %2745 = vmatpush1.bf16.msra.mxu0 0
        %2746 = vmatprep.subr.bf16.mxu0 0
        %2747 = vmatpush1.bf16.msra.mxu0 0
        %2748 = vmatprep.subr.bf16.mxu0 0
        %2749 = vmatpush1.bf16.msra.mxu0 0
        %2750 = vmatprep.subr.bf16.mxu0 0
        %2751 = vmatpush1.bf16.msra.mxu0 0
        %2752 = vmatprep.subr.bf16.mxu0 0
        %2753 = vmatpush1.bf16.msra.mxu0 0
        %2754 = vmatprep.subr.bf16.mxu0 0
        %2755 = vmatpush1.bf16.msra.mxu0 0
        %2756 = vmatprep.subr.bf16.mxu0 0
        %2757 = vmatpush1.bf16.msra.mxu0 0
        %2758 = vmatprep.mubr.bf16.mxu0 0
        %2759 = vmatmul.mubr.bf16.gmra.mrb[0].mxu0 %v2106
        %v2760 = vpop.f32.mrb[0].mxu0
        %v2761 = vadd.f32 %v2721, %v2760
        %v2762 = vpop.f32.mrb[0].mxu0
        %v2763 = vpop.f32.mrb[0].mxu0
        %v2764 = vpop.f32.mrb[0].mxu0
        %2765 = vdwg.mxu0
        %v2766 = vpack.c.bf16 %v2680, %v2680
        %v2767 = vpack.c.bf16 %v2682, %v2682
        %v2768 = vpack.c.bf16 %v2761, %v2761
        %v2769 = vld [vmem:[%s600] sm:$0xff]
        %v2770 = vld [vmem:[%s600 + $0x8] sm:$0xff]
        %v2771 = vld [vmem:[%s600 + $0x10] sm:$0xff]
        %v2772 = vld [vmem:[%s600 + $0x18] sm:$0xff]
        %v2773 = vld [vmem:[%s600 + $0x20] sm:$0xff]
        %v2774 = vld [vmem:[%s600 + $0x28] sm:$0xff]
        %v2775 = vpack.c.bf16 %v2769, %v2769
        %v2776 = vpack.c.bf16 %v2770, %v2770
        %v2777 = vpack.c.bf16 %v2771, %v2771
        %v2778 = vpack.c.bf16 %v2772, %v2772
        %v2779 = vpack.c.bf16 %v2773, %v2773
        %v2780 = vpack.c.bf16 %v2774, %v2774
        %v2781 = vld [vmem:[%s521] sm:$0xff]
        %v2782 = vld [vmem:[%s521 + $0x8] sm:$0xff]
        %v2783 = vld [vmem:[%s521 + $0x10] sm:$0xff]
        %v2784 = vld [vmem:[%s521 + $0x18] sm:$0xff]
        %v2785 = vld [vmem:[%s521 + $0x20] sm:$0xff]
        %v2786 = vld [vmem:[%s521 + $0x28] sm:$0xff]
        %v2787 = vld [vmem:[%s521 + $0x30] sm:$0xff]
        %v2788 = vld [vmem:[%s521 + $0x38] sm:$0xff]
        %v2789 = vld [vmem:[%s521 + $0x40] sm:$0xff]
        %v2790 = vld [vmem:[%s521 + $0x48] sm:$0xff]
        %v2791 = vld [vmem:[%s521 + $0x50] sm:$0xff]
        %v2792 = vld [vmem:[%s521 + $0x58] sm:$0xff]
        %v2793 = vld [vmem:[%s521 + $0x60] sm:$0xff]
        %v2794 = vld [vmem:[%s521 + $0x68] sm:$0xff]
        %v2795 = vld [vmem:[%s521 + $0x70] sm:$0xff]
        %v2796 = vld [vmem:[%s521 + $0x78] sm:$0xff]
        %v2797 = vld [vmem:[%s521 + $0x80] sm:$0xff]
        %v2798 = vld [vmem:[%s521 + $0x88] sm:$0xff]
        %v2799 = vld [vmem:[%s521 + $0x90] sm:$0xff]
        %v2800 = vld [vmem:[%s521 + $0x98] sm:$0xff]
        %v2801 = vld [vmem:[%s521 + $0xa0] sm:$0xff]
        %v2802 = vld [vmem:[%s521 + $0xa8] sm:$0xff]
        %v2803 = vld [vmem:[%s521 + $0xb0] sm:$0xff]
        %v2804 = vld [vmem:[%s521 + $0xb8] sm:$0xff]
        %v2805 = vld [vmem:[%s521 + $0xc0] sm:$0xff]
        %v2806 = vld [vmem:[%s521 + $0xc8] sm:$0xff]
        %v2807 = vld [vmem:[%s521 + $0xd0] sm:$0xff]
        %v2808 = vld [vmem:[%s521 + $0xd8] sm:$0xff]
        %v2809 = vld [vmem:[%s521 + $0xe0] sm:$0xff]
        %v2810 = vld [vmem:[%s521 + $0xe8] sm:$0xff]
        %v2811 = vld [vmem:[%s521 + $0xf0] sm:$0xff]
        %v2812 = vld [vmem:[%s521 + $0xf8] sm:$0xff]
        %v2813 = vld [vmem:[%s521 + $0x100] sm:$0xff]
        %v2814 = vld [vmem:[%s521 + $0x108] sm:$0xff]
        %v2815 = vld [vmem:[%s521 + $0x110] sm:$0xff]
        %v2816 = vld [vmem:[%s521 + $0x118] sm:$0xff]
        %v2817 = vld [vmem:[%s521 + $0x120] sm:$0xff]
        %v2818 = vld [vmem:[%s521 + $0x128] sm:$0xff]
        %v2819 = vld [vmem:[%s521 + $0x130] sm:$0xff]
        %v2820 = vld [vmem:[%s521 + $0x138] sm:$0xff]
        %v2821 = vld [vmem:[%s521 + $0x140] sm:$0xff]
        %v2822 = vld [vmem:[%s521 + $0x148] sm:$0xff]
        %v2823 = vld [vmem:[%s521 + $0x150] sm:$0xff]
        %v2824 = vld [vmem:[%s521 + $0x158] sm:$0xff]
        %v2825 = vld [vmem:[%s521 + $0x160] sm:$0xff]
        %v2826 = vld [vmem:[%s521 + $0x168] sm:$0xff]
        %v2827 = vld [vmem:[%s521 + $0x170] sm:$0xff]
        %v2828 = vld [vmem:[%s521 + $0x178] sm:$0xff]
        %v2829 = vld [vmem:[%s521 + $0x180] sm:$0xff]
        %v2830 = vld [vmem:[%s521 + $0x188] sm:$0xff]
        %v2831 = vld [vmem:[%s521 + $0x190] sm:$0xff]
        %v2832 = vld [vmem:[%s521 + $0x198] sm:$0xff]
        %v2833 = vld [vmem:[%s521 + $0x1a0] sm:$0xff]
        %v2834 = vld [vmem:[%s521 + $0x1a8] sm:$0xff]
        %v2835 = vld [vmem:[%s521 + $0x1b0] sm:$0xff]
        %v2836 = vld [vmem:[%s521 + $0x1b8] sm:$0xff]
        %v2837 = vld [vmem:[%s521 + $0x1c0] sm:$0xff]
        %v2838 = vld [vmem:[%s521 + $0x1c8] sm:$0xff]
        %v2839 = vld [vmem:[%s521 + $0x1d0] sm:$0xff]
        %v2840 = vld [vmem:[%s521 + $0x1d8] sm:$0xff]
        %v2841 = vld [vmem:[%s521 + $0x1e0] sm:$0xff]
        %v2842 = vld [vmem:[%s521 + $0x1e8] sm:$0xff]
        %v2843 = vld [vmem:[%s521 + $0x1f0] sm:$0xff]
        %v2844 = vld [vmem:[%s521 + $0x1f8] sm:$0xff]
        %v2845 = vld [vmem:[%s521 + $0x200] sm:$0xff]
        %v2846 = vld [vmem:[%s521 + $0x208] sm:$0xff]
        %v2847 = vld [vmem:[%s521 + $0x210] sm:$0xff]
        %v2848 = vld [vmem:[%s521 + $0x218] sm:$0xff]
        %v2849 = vld [vmem:[%s521 + $0x220] sm:$0xff]
        %v2850 = vld [vmem:[%s521 + $0x228] sm:$0xff]
        %v2851 = vld [vmem:[%s521 + $0x230] sm:$0xff]
        %v2852 = vld [vmem:[%s521 + $0x238] sm:$0xff]
        %v2853 = vld [vmem:[%s521 + $0x240] sm:$0xff]
        %v2854 = vld [vmem:[%s521 + $0x248] sm:$0xff]
        %v2855 = vld [vmem:[%s521 + $0x250] sm:$0xff]
        %v2856 = vld [vmem:[%s521 + $0x258] sm:$0xff]
        %v2857 = vld [vmem:[%s521 + $0x260] sm:$0xff]
        %v2858 = vld [vmem:[%s521 + $0x268] sm:$0xff]
        %v2859 = vld [vmem:[%s521 + $0x270] sm:$0xff]
        %v2860 = vld [vmem:[%s521 + $0x278] sm:$0xff]
        %v2861 = vld [vmem:[%s521 + $0x280] sm:$0xff]
        %v2862 = vld [vmem:[%s521 + $0x288] sm:$0xff]
        %v2863 = vld [vmem:[%s521 + $0x290] sm:$0xff]
        %v2864 = vld [vmem:[%s521 + $0x298] sm:$0xff]
        %v2865 = vld [vmem:[%s521 + $0x2a0] sm:$0xff]
        %v2866 = vld [vmem:[%s521 + $0x2a8] sm:$0xff]
        %v2867 = vld [vmem:[%s521 + $0x2b0] sm:$0xff]
        %v2868 = vld [vmem:[%s521 + $0x2b8] sm:$0xff]
        %v2869 = vld [vmem:[%s521 + $0x2c0] sm:$0xff]
        %v2870 = vld [vmem:[%s521 + $0x2c8] sm:$0xff]
        %v2871 = vld [vmem:[%s521 + $0x2d0] sm:$0xff]
        %v2872 = vld [vmem:[%s521 + $0x2d8] sm:$0xff]
        %v2873 = vld [vmem:[%s521 + $0x2e0] sm:$0xff]
        %v2874 = vld [vmem:[%s521 + $0x2e8] sm:$0xff]
        %v2875 = vld [vmem:[%s521 + $0x2f0] sm:$0xff]
        %v2876 = vld [vmem:[%s521 + $0x2f8] sm:$0xff]
        %v2877 = vld [vmem:[%s521 + $0x300] sm:$0xff]
        %v2878 = vld [vmem:[%s521 + $0x308] sm:$0xff]
        %v2879 = vld [vmem:[%s521 + $0x310] sm:$0xff]
        %v2880 = vld [vmem:[%s521 + $0x318] sm:$0xff]
        %v2881 = vld [vmem:[%s521 + $0x320] sm:$0xff]
        %v2882 = vld [vmem:[%s521 + $0x328] sm:$0xff]
        %v2883 = vld [vmem:[%s521 + $0x330] sm:$0xff]
        %v2884 = vld [vmem:[%s521 + $0x338] sm:$0xff]
        %v2885 = vld [vmem:[%s521 + $0x340] sm:$0xff]
        %v2886 = vld [vmem:[%s521 + $0x348] sm:$0xff]
        %v2887 = vld [vmem:[%s521 + $0x350] sm:$0xff]
        %v2888 = vld [vmem:[%s521 + $0x358] sm:$0xff]
        %v2889 = vld [vmem:[%s521 + $0x360] sm:$0xff]
        %v2890 = vld [vmem:[%s521 + $0x368] sm:$0xff]
        %v2891 = vld [vmem:[%s521 + $0x370] sm:$0xff]
        %v2892 = vld [vmem:[%s521 + $0x378] sm:$0xff]
        %v2893 = vld [vmem:[%s521 + $0x380] sm:$0xff]
        %v2894 = vld [vmem:[%s521 + $0x388] sm:$0xff]
        %v2895 = vld [vmem:[%s521 + $0x390] sm:$0xff]
        %v2896 = vld [vmem:[%s521 + $0x398] sm:$0xff]
        %v2897 = vld [vmem:[%s521 + $0x3a0] sm:$0xff]
        %v2898 = vld [vmem:[%s521 + $0x3a8] sm:$0xff]
        %v2899 = vld [vmem:[%s521 + $0x3b0] sm:$0xff]
        %v2900 = vld [vmem:[%s521 + $0x3b8] sm:$0xff]
        %v2901 = vld [vmem:[%s521 + $0x3c0] sm:$0xff]
        %v2902 = vld [vmem:[%s521 + $0x3c8] sm:$0xff]
        %v2903 = vld [vmem:[%s521 + $0x3d0] sm:$0xff]
        %v2904 = vld [vmem:[%s521 + $0x3d8] sm:$0xff]
        %v2905 = vld [vmem:[%s521 + $0x3e0] sm:$0xff]
        %v2906 = vld [vmem:[%s521 + $0x3e8] sm:$0xff]
        %v2907 = vld [vmem:[%s521 + $0x3f0] sm:$0xff]
        %v2908 = vld [vmem:[%s521 + $0x3f8] sm:$0xff]
        %v2909 = vld [vmem:[%s521 + $0x400] sm:$0xff]
        %v2910 = vld [vmem:[%s521 + $0x408] sm:$0xff]
        %v2911 = vld [vmem:[%s521 + $0x410] sm:$0xff]
        %v2912 = vld [vmem:[%s521 + $0x418] sm:$0xff]
        %v2913 = vld [vmem:[%s521 + $0x420] sm:$0xff]
        %v2914 = vld [vmem:[%s521 + $0x428] sm:$0xff]
        %v2915 = vld [vmem:[%s521 + $0x430] sm:$0xff]
        %v2916 = vld [vmem:[%s521 + $0x438] sm:$0xff]
        %v2917 = vld [vmem:[%s521 + $0x440] sm:$0xff]
        %v2918 = vld [vmem:[%s521 + $0x448] sm:$0xff]
        %v2919 = vld [vmem:[%s521 + $0x450] sm:$0xff]
        %v2920 = vld [vmem:[%s521 + $0x458] sm:$0xff]
        %v2921 = vld [vmem:[%s521 + $0x460] sm:$0xff]
        %v2922 = vld [vmem:[%s521 + $0x468] sm:$0xff]
        %v2923 = vld [vmem:[%s521 + $0x470] sm:$0xff]
        %v2924 = vld [vmem:[%s521 + $0x478] sm:$0xff]
        %v2925 = vld [vmem:[%s530] sm:$0xff]
        %v2926 = vld [vmem:[%s530 + $0x8] sm:$0xff]
        %v2927 = vld [vmem:[%s530 + $0x10] sm:$0xff]
        %v2928 = vld [vmem:[%s530 + $0x18] sm:$0xff]
        %v2929 = vld [vmem:[%s530 + $0x20] sm:$0xff]
        %v2930 = vld [vmem:[%s530 + $0x28] sm:$0xff]
        %v2931 = vld [vmem:[%s530 + $0x30] sm:$0xff]
        %v2932 = vld [vmem:[%s530 + $0x38] sm:$0xff]
        %v2933 = vld [vmem:[%s530 + $0x40] sm:$0xff]
        %v2934 = vld [vmem:[%s530 + $0x48] sm:$0xff]
        %v2935 = vld [vmem:[%s530 + $0x50] sm:$0xff]
        %v2936 = vld [vmem:[%s530 + $0x58] sm:$0xff]
        %v2937 = vld [vmem:[%s530 + $0x60] sm:$0xff]
        %v2938 = vld [vmem:[%s530 + $0x68] sm:$0xff]
        %v2939 = vld [vmem:[%s530 + $0x70] sm:$0xff]
        %v2940 = vld [vmem:[%s530 + $0x78] sm:$0xff]
        %v2941 = vld [vmem:[%s530 + $0x80] sm:$0xff]
        %v2942 = vld [vmem:[%s530 + $0x88] sm:$0xff]
        %v2943 = vld [vmem:[%s530 + $0x90] sm:$0xff]
        %v2944 = vld [vmem:[%s530 + $0x98] sm:$0xff]
        %v2945 = vld [vmem:[%s530 + $0xa0] sm:$0xff]
        %v2946 = vld [vmem:[%s530 + $0xa8] sm:$0xff]
        %v2947 = vld [vmem:[%s530 + $0xb0] sm:$0xff]
        %v2948 = vld [vmem:[%s530 + $0xb8] sm:$0xff]
        %v2949 = vld [vmem:[%s530 + $0xc0] sm:$0xff]
        %v2950 = vld [vmem:[%s530 + $0xc8] sm:$0xff]
        %v2951 = vld [vmem:[%s530 + $0xd0] sm:$0xff]
        %v2952 = vld [vmem:[%s530 + $0xd8] sm:$0xff]
        %v2953 = vld [vmem:[%s530 + $0xe0] sm:$0xff]
        %v2954 = vld [vmem:[%s530 + $0xe8] sm:$0xff]
        %v2955 = vld [vmem:[%s530 + $0xf0] sm:$0xff]
        %v2956 = vld [vmem:[%s530 + $0xf8] sm:$0xff]
        %v2957 = vld [vmem:[%s530 + $0x100] sm:$0xff]
        %v2958 = vld [vmem:[%s530 + $0x108] sm:$0xff]
        %v2959 = vld [vmem:[%s530 + $0x110] sm:$0xff]
        %v2960 = vld [vmem:[%s530 + $0x118] sm:$0xff]
        %v2961 = vld [vmem:[%s530 + $0x120] sm:$0xff]
        %v2962 = vld [vmem:[%s530 + $0x128] sm:$0xff]
        %v2963 = vld [vmem:[%s530 + $0x130] sm:$0xff]
        %v2964 = vld [vmem:[%s530 + $0x138] sm:$0xff]
        %v2965 = vld [vmem:[%s530 + $0x140] sm:$0xff]
        %v2966 = vld [vmem:[%s530 + $0x148] sm:$0xff]
        %v2967 = vld [vmem:[%s530 + $0x150] sm:$0xff]
        %v2968 = vld [vmem:[%s530 + $0x158] sm:$0xff]
        %v2969 = vld [vmem:[%s530 + $0x160] sm:$0xff]
        %v2970 = vld [vmem:[%s530 + $0x168] sm:$0xff]
        %v2971 = vld [vmem:[%s530 + $0x170] sm:$0xff]
        %v2972 = vld [vmem:[%s530 + $0x178] sm:$0xff]
        %v2973 = vld [vmem:[%s530 + $0x180] sm:$0xff]
        %v2974 = vld [vmem:[%s530 + $0x188] sm:$0xff]
        %v2975 = vld [vmem:[%s530 + $0x190] sm:$0xff]
        %v2976 = vld [vmem:[%s530 + $0x198] sm:$0xff]
        %v2977 = vld [vmem:[%s530 + $0x1a0] sm:$0xff]
        %v2978 = vld [vmem:[%s530 + $0x1a8] sm:$0xff]
        %v2979 = vld [vmem:[%s530 + $0x1b0] sm:$0xff]
        %v2980 = vld [vmem:[%s530 + $0x1b8] sm:$0xff]
        %v2981 = vld [vmem:[%s530 + $0x1c0] sm:$0xff]
        %v2982 = vld [vmem:[%s530 + $0x1c8] sm:$0xff]
        %v2983 = vld [vmem:[%s530 + $0x1d0] sm:$0xff]
        %v2984 = vld [vmem:[%s530 + $0x1d8] sm:$0xff]
        %v2985 = vld [vmem:[%s530 + $0x1e0] sm:$0xff]
        %v2986 = vld [vmem:[%s530 + $0x1e8] sm:$0xff]
        %v2987 = vld [vmem:[%s530 + $0x1f0] sm:$0xff]
        %v2988 = vld [vmem:[%s530 + $0x1f8] sm:$0xff]
        %v2989 = vld [vmem:[%s530 + $0x200] sm:$0xff]
        %v2990 = vld [vmem:[%s530 + $0x208] sm:$0xff]
        %v2991 = vld [vmem:[%s530 + $0x210] sm:$0xff]
        %v2992 = vld [vmem:[%s530 + $0x218] sm:$0xff]
        %v2993 = vld [vmem:[%s530 + $0x220] sm:$0xff]
        %v2994 = vld [vmem:[%s530 + $0x228] sm:$0xff]
        %v2995 = vld [vmem:[%s530 + $0x230] sm:$0xff]
        %v2996 = vld [vmem:[%s530 + $0x238] sm:$0xff]
        %v2997 = vld [vmem:[%s530 + $0x240] sm:$0xff]
        %v2998 = vld [vmem:[%s530 + $0x248] sm:$0xff]
        %v2999 = vld [vmem:[%s530 + $0x250] sm:$0xff]
        %v3000 = vld [vmem:[%s530 + $0x258] sm:$0xff]
        %v3001 = vld [vmem:[%s530 + $0x260] sm:$0xff]
        %v3002 = vld [vmem:[%s530 + $0x268] sm:$0xff]
        %v3003 = vld [vmem:[%s530 + $0x270] sm:$0xff]
        %v3004 = vld [vmem:[%s530 + $0x278] sm:$0xff]
        %v3005 = vld [vmem:[%s530 + $0x280] sm:$0xff]
        %v3006 = vld [vmem:[%s530 + $0x288] sm:$0xff]
        %v3007 = vld [vmem:[%s530 + $0x290] sm:$0xff]
        %v3008 = vld [vmem:[%s530 + $0x298] sm:$0xff]
        %v3009 = vld [vmem:[%s530 + $0x2a0] sm:$0xff]
        %v3010 = vld [vmem:[%s530 + $0x2a8] sm:$0xff]
        %v3011 = vld [vmem:[%s530 + $0x2b0] sm:$0xff]
        %v3012 = vld [vmem:[%s530 + $0x2b8] sm:$0xff]
        %v3013 = vld [vmem:[%s530 + $0x2c0] sm:$0xff]
        %v3014 = vld [vmem:[%s530 + $0x2c8] sm:$0xff]
        %v3015 = vld [vmem:[%s530 + $0x2d0] sm:$0xff]
        %v3016 = vld [vmem:[%s530 + $0x2d8] sm:$0xff]
        %v3017 = vld [vmem:[%s530 + $0x2e0] sm:$0xff]
        %v3018 = vld [vmem:[%s530 + $0x2e8] sm:$0xff]
        %v3019 = vld [vmem:[%s530 + $0x2f0] sm:$0xff]
        %v3020 = vld [vmem:[%s530 + $0x2f8] sm:$0xff]
        %v3021 = vld [vmem:[%s530 + $0x300] sm:$0xff]
        %v3022 = vld [vmem:[%s530 + $0x308] sm:$0xff]
        %v3023 = vld [vmem:[%s530 + $0x310] sm:$0xff]
        %v3024 = vld [vmem:[%s530 + $0x318] sm:$0xff]
        %v3025 = vld [vmem:[%s530 + $0x320] sm:$0xff]
        %v3026 = vld [vmem:[%s530 + $0x328] sm:$0xff]
        %v3027 = vld [vmem:[%s530 + $0x330] sm:$0xff]
        %v3028 = vld [vmem:[%s530 + $0x338] sm:$0xff]
        %v3029 = vld [vmem:[%s530 + $0x340] sm:$0xff]
        %v3030 = vld [vmem:[%s530 + $0x348] sm:$0xff]
        %v3031 = vld [vmem:[%s530 + $0x350] sm:$0xff]
        %v3032 = vld [vmem:[%s530 + $0x358] sm:$0xff]
        %v3033 = vld [vmem:[%s530 + $0x360] sm:$0xff]
        %v3034 = vld [vmem:[%s530 + $0x368] sm:$0xff]
        %v3035 = vld [vmem:[%s530 + $0x370] sm:$0xff]
        %v3036 = vld [vmem:[%s530 + $0x378] sm:$0xff]
        %v3037 = vld [vmem:[%s530 + $0x380] sm:$0xff]
        %v3038 = vld [vmem:[%s530 + $0x388] sm:$0xff]
        %v3039 = vld [vmem:[%s530 + $0x390] sm:$0xff]
        %v3040 = vld [vmem:[%s530 + $0x398] sm:$0xff]
        %v3041 = vld [vmem:[%s530 + $0x3a0] sm:$0xff]
        %v3042 = vld [vmem:[%s530 + $0x3a8] sm:$0xff]
        %v3043 = vld [vmem:[%s530 + $0x3b0] sm:$0xff]
        %v3044 = vld [vmem:[%s530 + $0x3b8] sm:$0xff]
        %v3045 = vld [vmem:[%s530 + $0x3c0] sm:$0xff]
        %v3046 = vld [vmem:[%s530 + $0x3c8] sm:$0xff]
        %v3047 = vld [vmem:[%s530 + $0x3d0] sm:$0xff]
        %v3048 = vld [vmem:[%s530 + $0x3d8] sm:$0xff]
        %v3049 = vld [vmem:[%s530 + $0x3e0] sm:$0xff]
        %v3050 = vld [vmem:[%s530 + $0x3e8] sm:$0xff]
        %v3051 = vld [vmem:[%s530 + $0x3f0] sm:$0xff]
        %v3052 = vld [vmem:[%s530 + $0x3f8] sm:$0xff]
        %v3053 = vld [vmem:[%s530 + $0x400] sm:$0xff]
        %v3054 = vld [vmem:[%s530 + $0x408] sm:$0xff]
        %v3055 = vld [vmem:[%s530 + $0x410] sm:$0xff]
        %v3056 = vld [vmem:[%s530 + $0x418] sm:$0xff]
        %v3057 = vld [vmem:[%s530 + $0x420] sm:$0xff]
        %v3058 = vld [vmem:[%s530 + $0x428] sm:$0xff]
        %v3059 = vld [vmem:[%s530 + $0x430] sm:$0xff]
        %v3060 = vld [vmem:[%s530 + $0x438] sm:$0xff]
        %v3061 = vld [vmem:[%s530 + $0x440] sm:$0xff]
        %v3062 = vld [vmem:[%s530 + $0x448] sm:$0xff]
        %v3063 = vld [vmem:[%s530 + $0x450] sm:$0xff]
        %v3064 = vld [vmem:[%s530 + $0x458] sm:$0xff]
        %v3065 = vld [vmem:[%s530 + $0x460] sm:$0xff]
        %v3066 = vld [vmem:[%s530 + $0x468] sm:$0xff]
        %v3067 = vld [vmem:[%s530 + $0x470] sm:$0xff]
        %v3068 = vld [vmem:[%s530 + $0x478] sm:$0xff]
        %v3069 = vld [vmem:[%s530 + $0x480] sm:$0xff]
        %v3070 = vld [vmem:[%s530 + $0x488] sm:$0xff]
        %v3071 = vld [vmem:[%s530 + $0x490] sm:$0xff]
        %v3072 = vld [vmem:[%s530 + $0x498] sm:$0xff]
        %v3073 = vld [vmem:[%s530 + $0x4a0] sm:$0xff]
        %v3074 = vld [vmem:[%s530 + $0x4a8] sm:$0xff]
        %v3075 = vld [vmem:[%s530 + $0x4b0] sm:$0xff]
        %v3076 = vld [vmem:[%s530 + $0x4b8] sm:$0xff]
        %v3077 = vld [vmem:[%s530 + $0x4c0] sm:$0xff]
        %v3078 = vld [vmem:[%s530 + $0x4c8] sm:$0xff]
        %v3079 = vld [vmem:[%s530 + $0x4d0] sm:$0xff]
        %v3080 = vld [vmem:[%s530 + $0x4d8] sm:$0xff]
        %v3081 = vld [vmem:[%s530 + $0x4e0] sm:$0xff]
        %v3082 = vld [vmem:[%s530 + $0x4e8] sm:$0xff]
        %v3083 = vld [vmem:[%s530 + $0x4f0] sm:$0xff]
        %v3084 = vld [vmem:[%s530 + $0x4f8] sm:$0xff]
        %v3085 = vld [vmem:[%s530 + $0x500] sm:$0xff]
        %v3086 = vld [vmem:[%s530 + $0x508] sm:$0xff]
        %v3087 = vld [vmem:[%s530 + $0x510] sm:$0xff]
        %v3088 = vld [vmem:[%s530 + $0x518] sm:$0xff]
        %v3089 = vld [vmem:[%s530 + $0x520] sm:$0xff]
        %v3090 = vld [vmem:[%s530 + $0x528] sm:$0xff]
        %v3091 = vld [vmem:[%s530 + $0x530] sm:$0xff]
        %v3092 = vld [vmem:[%s530 + $0x538] sm:$0xff]
        %v3093 = vld [vmem:[%s530 + $0x540] sm:$0xff]
        %v3094 = vld [vmem:[%s530 + $0x548] sm:$0xff]
        %v3095 = vld [vmem:[%s530 + $0x550] sm:$0xff]
        %v3096 = vld [vmem:[%s530 + $0x558] sm:$0xff]
        %v3097 = vld [vmem:[%s530 + $0x560] sm:$0xff]
        %v3098 = vld [vmem:[%s530 + $0x568] sm:$0xff]
        %v3099 = vld [vmem:[%s530 + $0x570] sm:$0xff]
        %v3100 = vld [vmem:[%s530 + $0x578] sm:$0xff]
        %v3101 = vld [vmem:[%s530 + $0x580] sm:$0xff]
        %v3102 = vld [vmem:[%s530 + $0x588] sm:$0xff]
        %v3103 = vld [vmem:[%s530 + $0x590] sm:$0xff]
        %v3104 = vld [vmem:[%s530 + $0x598] sm:$0xff]
        %v3105 = vld [vmem:[%s530 + $0x5a0] sm:$0xff]
        %v3106 = vld [vmem:[%s530 + $0x5a8] sm:$0xff]
        %v3107 = vld [vmem:[%s530 + $0x5b0] sm:$0xff]
        %v3108 = vld [vmem:[%s530 + $0x5b8] sm:$0xff]
        %v3109 = vld [vmem:[%s530 + $0x5c0] sm:$0xff]
        %v3110 = vld [vmem:[%s530 + $0x5c8] sm:$0xff]
        %v3111 = vld [vmem:[%s530 + $0x5d0] sm:$0xff]
        %v3112 = vld [vmem:[%s530 + $0x5d8] sm:$0xff]
        %v3113 = vld [vmem:[%s530 + $0x5e0] sm:$0xff]
        %v3114 = vld [vmem:[%s530 + $0x5e8] sm:$0xff]
        %v3115 = vld [vmem:[%s530 + $0x5f0] sm:$0xff]
        %v3116 = vld [vmem:[%s530 + $0x5f8] sm:$0xff]
        %v3117 = vld [vmem:[%s530 + $0x600] sm:$0xff]
        %v3118 = vld [vmem:[%s530 + $0x608] sm:$0xff]
        %v3119 = vld [vmem:[%s530 + $0x610] sm:$0xff]
        %v3120 = vld [vmem:[%s530 + $0x618] sm:$0xff]
        %v3121 = vld [vmem:[%s530 + $0x620] sm:$0xff]
        %v3122 = vld [vmem:[%s530 + $0x628] sm:$0xff]
        %v3123 = vld [vmem:[%s530 + $0x630] sm:$0xff]
        %v3124 = vld [vmem:[%s530 + $0x638] sm:$0xff]
        %v3125 = vld [vmem:[%s530 + $0x640] sm:$0xff]
        %v3126 = vld [vmem:[%s530 + $0x648] sm:$0xff]
        %v3127 = vld [vmem:[%s530 + $0x650] sm:$0xff]
        %v3128 = vld [vmem:[%s530 + $0x658] sm:$0xff]
        %v3129 = vld [vmem:[%s530 + $0x660] sm:$0xff]
        %v3130 = vld [vmem:[%s530 + $0x668] sm:$0xff]
        %v3131 = vld [vmem:[%s530 + $0x670] sm:$0xff]
        %v3132 = vld [vmem:[%s530 + $0x678] sm:$0xff]
        %v3133 = vld [vmem:[%s530 + $0x680] sm:$0xff]
        %v3134 = vld [vmem:[%s530 + $0x688] sm:$0xff]
        %v3135 = vld [vmem:[%s530 + $0x690] sm:$0xff]
        %v3136 = vld [vmem:[%s530 + $0x698] sm:$0xff]
        %v3137 = vld [vmem:[%s530 + $0x6a0] sm:$0xff]
        %v3138 = vld [vmem:[%s530 + $0x6a8] sm:$0xff]
        %v3139 = vld [vmem:[%s530 + $0x6b0] sm:$0xff]
        %v3140 = vld [vmem:[%s530 + $0x6b8] sm:$0xff]
        %v3141 = vld [vmem:[%s530 + $0x6c0] sm:$0xff]
        %v3142 = vld [vmem:[%s530 + $0x6c8] sm:$0xff]
        %v3143 = vld [vmem:[%s530 + $0x6d0] sm:$0xff]
        %v3144 = vld [vmem:[%s530 + $0x6d8] sm:$0xff]
        %v3145 = vld [vmem:[%s530 + $0x6e0] sm:$0xff]
        %v3146 = vld [vmem:[%s530 + $0x6e8] sm:$0xff]
        %v3147 = vld [vmem:[%s530 + $0x6f0] sm:$0xff]
        %v3148 = vld [vmem:[%s530 + $0x6f8] sm:$0xff]
        %v3149 = vld [vmem:[%s530 + $0x700] sm:$0xff]
        %v3150 = vld [vmem:[%s530 + $0x708] sm:$0xff]
        %v3151 = vld [vmem:[%s530 + $0x710] sm:$0xff]
        %v3152 = vld [vmem:[%s530 + $0x718] sm:$0xff]
        %v3153 = vld [vmem:[%s530 + $0x720] sm:$0xff]
        %v3154 = vld [vmem:[%s530 + $0x728] sm:$0xff]
        %v3155 = vld [vmem:[%s530 + $0x730] sm:$0xff]
        %v3156 = vld [vmem:[%s530 + $0x738] sm:$0xff]
        %v3157 = vld [vmem:[%s530 + $0x740] sm:$0xff]
        %v3158 = vld [vmem:[%s530 + $0x748] sm:$0xff]
        %v3159 = vld [vmem:[%s530 + $0x750] sm:$0xff]
        %v3160 = vld [vmem:[%s530 + $0x758] sm:$0xff]
        %v3161 = vld [vmem:[%s530 + $0x760] sm:$0xff]
        %v3162 = vld [vmem:[%s530 + $0x768] sm:$0xff]
        %v3163 = vld [vmem:[%s530 + $0x770] sm:$0xff]
        %v3164 = vld [vmem:[%s530 + $0x778] sm:$0xff]
        %v3165 = vld [vmem:[%s530 + $0x780] sm:$0xff]
        %v3166 = vld [vmem:[%s530 + $0x788] sm:$0xff]
        %v3167 = vld [vmem:[%s530 + $0x790] sm:$0xff]
        %v3168 = vld [vmem:[%s530 + $0x798] sm:$0xff]
        %v3169 = vld [vmem:[%s530 + $0x7a0] sm:$0xff]
        %v3170 = vld [vmem:[%s530 + $0x7a8] sm:$0xff]
        %v3171 = vld [vmem:[%s530 + $0x7b0] sm:$0xff]
        %v3172 = vld [vmem:[%s530 + $0x7b8] sm:$0xff]
        %v3173 = vld [vmem:[%s530 + $0x7c0] sm:$0xff]
        %v3174 = vld [vmem:[%s530 + $0x7c8] sm:$0xff]
        %v3175 = vld [vmem:[%s530 + $0x7d0] sm:$0xff]
        %v3176 = vld [vmem:[%s530 + $0x7d8] sm:$0xff]
        %v3177 = vld [vmem:[%s530 + $0x7e0] sm:$0xff]
        %v3178 = vld [vmem:[%s530 + $0x7e8] sm:$0xff]
        %v3179 = vld [vmem:[%s530 + $0x7f0] sm:$0xff]
        %v3180 = vld [vmem:[%s530 + $0x7f8] sm:$0xff]
        %v3181 = vld [vmem:[%s530 + $0x800] sm:$0xff]
        %v3182 = vld [vmem:[%s530 + $0x808] sm:$0xff]
        %v3183 = vld [vmem:[%s530 + $0x810] sm:$0xff]
        %v3184 = vld [vmem:[%s530 + $0x818] sm:$0xff]
        %v3185 = vld [vmem:[%s530 + $0x820] sm:$0xff]
        %v3186 = vld [vmem:[%s530 + $0x828] sm:$0xff]
        %v3187 = vld [vmem:[%s530 + $0x830] sm:$0xff]
        %v3188 = vld [vmem:[%s530 + $0x838] sm:$0xff]
        %v3189 = vld [vmem:[%s530 + $0x840] sm:$0xff]
        %v3190 = vld [vmem:[%s530 + $0x848] sm:$0xff]
        %v3191 = vld [vmem:[%s530 + $0x850] sm:$0xff]
        %v3192 = vld [vmem:[%s530 + $0x858] sm:$0xff]
        %v3193 = vld [vmem:[%s530 + $0x860] sm:$0xff]
        %v3194 = vld [vmem:[%s530 + $0x868] sm:$0xff]
        %v3195 = vld [vmem:[%s530 + $0x870] sm:$0xff]
        %v3196 = vld [vmem:[%s530 + $0x878] sm:$0xff]
        %v3197 = vld [vmem:[%s530 + $0x880] sm:$0xff]
        %v3198 = vld [vmem:[%s530 + $0x888] sm:$0xff]
        %v3199 = vld [vmem:[%s530 + $0x890] sm:$0xff]
        %v3200 = vld [vmem:[%s530 + $0x898] sm:$0xff]
        %v3201 = vld [vmem:[%s530 + $0x8a0] sm:$0xff]
        %v3202 = vld [vmem:[%s530 + $0x8a8] sm:$0xff]
        %v3203 = vld [vmem:[%s530 + $0x8b0] sm:$0xff]
        %v3204 = vld [vmem:[%s530 + $0x8b8] sm:$0xff]
        %v3205 = vld [vmem:[%s530 + $0x8c0] sm:$0xff]
        %v3206 = vld [vmem:[%s530 + $0x8c8] sm:$0xff]
        %v3207 = vld [vmem:[%s530 + $0x8d0] sm:$0xff]
        %v3208 = vld [vmem:[%s530 + $0x8d8] sm:$0xff]
        %v3209 = vld [vmem:[%s530 + $0x8e0] sm:$0xff]
        %v3210 = vld [vmem:[%s530 + $0x8e8] sm:$0xff]
        %v3211 = vld [vmem:[%s530 + $0x8f0] sm:$0xff]
        %v3212 = vld [vmem:[%s530 + $0x8f8] sm:$0xff]
        %v3501 = vunpack.c.l.b16 %v2925
        %v3502 = vunpack.c.h.b16 %v2925
        %v3503 = vunpack.c.l.b16 %v2926
        %v3504 = vunpack.c.h.b16 %v2926
        %v3505 = vunpack.c.l.b16 %v2927
        %v3506 = vunpack.c.h.b16 %v2927
        %v3507 = vunpack.c.l.b16 %v2928
        %v3508 = vunpack.c.h.b16 %v2928
        %v3509 = vunpack.c.l.b16 %v2929
        %v3510 = vunpack.c.h.b16 %v2929
        %v3511 = vunpack.c.l.b16 %v2930
        %v3512 = vunpack.c.h.b16 %v2930
        %v3513 = vunpack.c.l.b16 %v2931
        %v3514 = vunpack.c.h.b16 %v2931
        %v3515 = vunpack.c.l.b16 %v2932
        %v3516 = vunpack.c.h.b16 %v2932
        %v3517 = vunpack.c.l.b16 %v2933
        %v3518 = vunpack.c.h.b16 %v2933
        %v3519 = vunpack.c.l.b16 %v2934
        %v3520 = vunpack.c.h.b16 %v2934
        %v3521 = vunpack.c.l.b16 %v2935
        %v3522 = vunpack.c.h.b16 %v2935
        %v3523 = vunpack.c.l.b16 %v2936
        %v3524 = vunpack.c.h.b16 %v2936
        %v3525 = vunpack.c.l.b16 %v2937
        %v3526 = vunpack.c.h.b16 %v2937
        %v3527 = vunpack.c.l.b16 %v2938
        %v3528 = vunpack.c.h.b16 %v2938
        %v3529 = vunpack.c.l.b16 %v2939
        %v3530 = vunpack.c.h.b16 %v2939
        %v3531 = vunpack.c.l.b16 %v2940
        %v3532 = vunpack.c.h.b16 %v2940
        %v3533 = vunpack.c.l.b16 %v2941
        %v3534 = vunpack.c.h.b16 %v2941
        %v3535 = vunpack.c.l.b16 %v2942
        %v3536 = vunpack.c.h.b16 %v2942
        %v3537 = vunpack.c.l.b16 %v2943
        %v3538 = vunpack.c.h.b16 %v2943
        %v3539 = vunpack.c.l.b16 %v2944
        %v3540 = vunpack.c.h.b16 %v2944
        %v3541 = vunpack.c.l.b16 %v2945
        %v3542 = vunpack.c.h.b16 %v2945
        %v3543 = vunpack.c.l.b16 %v2946
        %v3544 = vunpack.c.h.b16 %v2946
        %v3545 = vunpack.c.l.b16 %v2947
        %v3546 = vunpack.c.h.b16 %v2947
        %v3547 = vunpack.c.l.b16 %v2948
        %v3548 = vunpack.c.h.b16 %v2948
        %v3549 = vunpack.c.l.b16 %v2949
        %v3550 = vunpack.c.h.b16 %v2949
        %v3551 = vunpack.c.l.b16 %v2950
        %v3552 = vunpack.c.h.b16 %v2950
        %v3553 = vunpack.c.l.b16 %v2951
        %v3554 = vunpack.c.h.b16 %v2951
        %v3555 = vunpack.c.l.b16 %v2952
        %v3556 = vunpack.c.h.b16 %v2952
        %v3557 = vunpack.c.l.b16 %v2953
        %v3558 = vunpack.c.h.b16 %v2953
        %v3559 = vunpack.c.l.b16 %v2954
        %v3560 = vunpack.c.h.b16 %v2954
        %v3561 = vunpack.c.l.b16 %v2955
        %v3562 = vunpack.c.h.b16 %v2955
        %v3563 = vunpack.c.l.b16 %v2956
        %v3564 = vunpack.c.h.b16 %v2956
        %v3565 = vunpack.c.l.b16 %v2957
        %v3566 = vunpack.c.h.b16 %v2957
        %v3567 = vunpack.c.l.b16 %v2958
        %v3568 = vunpack.c.h.b16 %v2958
        %v3569 = vunpack.c.l.b16 %v2959
        %v3570 = vunpack.c.h.b16 %v2959
        %v3571 = vunpack.c.l.b16 %v2960
        %v3572 = vunpack.c.h.b16 %v2960
        %v3573 = vunpack.c.l.b16 %v2961
        %v3574 = vunpack.c.h.b16 %v2961
        %v3575 = vunpack.c.l.b16 %v2962
        %v3576 = vunpack.c.h.b16 %v2962
        %v3577 = vunpack.c.l.b16 %v2963
        %v3578 = vunpack.c.h.b16 %v2963
        %v3579 = vunpack.c.l.b16 %v2964
        %v3580 = vunpack.c.h.b16 %v2964
        %v3581 = vunpack.c.l.b16 %v2965
        %v3582 = vunpack.c.h.b16 %v2965
        %v3583 = vunpack.c.l.b16 %v2966
        %v3584 = vunpack.c.h.b16 %v2966
        %v3585 = vunpack.c.l.b16 %v2967
        %v3586 = vunpack.c.h.b16 %v2967
        %v3587 = vunpack.c.l.b16 %v2968
        %v3588 = vunpack.c.h.b16 %v2968
        %v3589 = vunpack.c.l.b16 %v2969
        %v3590 = vunpack.c.h.b16 %v2969
        %v3591 = vunpack.c.l.b16 %v2970
        %v3592 = vunpack.c.h.b16 %v2970
        %v3593 = vunpack.c.l.b16 %v2971
        %v3594 = vunpack.c.h.b16 %v2971
        %v3595 = vunpack.c.l.b16 %v2972
        %v3596 = vunpack.c.h.b16 %v2972
        %v3597 = vunpack.c.l.b16 %v2973
        %v3598 = vunpack.c.h.b16 %v2973
        %v3599 = vunpack.c.l.b16 %v2974
        %v3600 = vunpack.c.h.b16 %v2974
        %v3601 = vunpack.c.l.b16 %v2975
        %v3602 = vunpack.c.h.b16 %v2975
        %v3603 = vunpack.c.l.b16 %v2976
        %v3604 = vunpack.c.h.b16 %v2976
        %v3605 = vunpack.c.l.b16 %v2977
        %v3606 = vunpack.c.h.b16 %v2977
        %v3607 = vunpack.c.l.b16 %v2978
        %v3608 = vunpack.c.h.b16 %v2978
        %v3609 = vunpack.c.l.b16 %v2979
        %v3610 = vunpack.c.h.b16 %v2979
        %v3611 = vunpack.c.l.b16 %v2980
        %v3612 = vunpack.c.h.b16 %v2980
        %v3613 = vunpack.c.l.b16 %v2981
        %v3614 = vunpack.c.h.b16 %v2981
        %v3615 = vunpack.c.l.b16 %v2982
        %v3616 = vunpack.c.h.b16 %v2982
        %v3617 = vunpack.c.l.b16 %v2983
        %v3618 = vunpack.c.h.b16 %v2983
        %v3619 = vunpack.c.l.b16 %v2984
        %v3620 = vunpack.c.h.b16 %v2984
        %v3621 = vunpack.c.l.b16 %v2985
        %v3622 = vunpack.c.h.b16 %v2985
        %v3623 = vunpack.c.l.b16 %v2986
        %v3624 = vunpack.c.h.b16 %v2986
        %v3625 = vunpack.c.l.b16 %v2987
        %v3626 = vunpack.c.h.b16 %v2987
        %v3627 = vunpack.c.l.b16 %v2988
        %v3628 = vunpack.c.h.b16 %v2988
        %v3629 = vunpack.c.l.b16 %v2989
        %v3630 = vunpack.c.h.b16 %v2989
        %v3631 = vunpack.c.l.b16 %v2990
        %v3632 = vunpack.c.h.b16 %v2990
        %v3633 = vunpack.c.l.b16 %v2991
        %v3634 = vunpack.c.h.b16 %v2991
        %v3635 = vunpack.c.l.b16 %v2992
        %v3636 = vunpack.c.h.b16 %v2992
        %v3637 = vunpack.c.l.b16 %v2993
        %v3638 = vunpack.c.h.b16 %v2993
        %v3639 = vunpack.c.l.b16 %v2994
        %v3640 = vunpack.c.h.b16 %v2994
        %v3641 = vunpack.c.l.b16 %v2995
        %v3642 = vunpack.c.h.b16 %v2995
        %v3643 = vunpack.c.l.b16 %v2996
        %v3644 = vunpack.c.h.b16 %v2996
        %v3645 = vunpack.c.l.b16 %v2997
        %v3646 = vunpack.c.h.b16 %v2997
        %v3647 = vunpack.c.l.b16 %v2998
        %v3648 = vunpack.c.h.b16 %v2998
        %v3649 = vunpack.c.l.b16 %v2999
        %v3650 = vunpack.c.h.b16 %v2999
        %v3651 = vunpack.c.l.b16 %v3000
        %v3652 = vunpack.c.h.b16 %v3000
        %v3653 = vunpack.c.l.b16 %v3001
        %v3654 = vunpack.c.h.b16 %v3001
        %v3655 = vunpack.c.l.b16 %v3002
        %v3656 = vunpack.c.h.b16 %v3002
        %v3657 = vunpack.c.l.b16 %v3003
        %v3658 = vunpack.c.h.b16 %v3003
        %v3659 = vunpack.c.l.b16 %v3004
        %v3660 = vunpack.c.h.b16 %v3004
        %v3661 = vunpack.c.l.b16 %v3005
        %v3662 = vunpack.c.h.b16 %v3005
        %v3663 = vunpack.c.l.b16 %v3006
        %v3664 = vunpack.c.h.b16 %v3006
        %v3665 = vunpack.c.l.b16 %v3007
        %v3666 = vunpack.c.h.b16 %v3007
        %v3667 = vunpack.c.l.b16 %v3008
        %v3668 = vunpack.c.h.b16 %v3008
        %v3669 = vunpack.c.l.b16 %v3009
        %v3670 = vunpack.c.h.b16 %v3009
        %v3671 = vunpack.c.l.b16 %v3010
        %v3672 = vunpack.c.h.b16 %v3010
        %v3673 = vunpack.c.l.b16 %v3011
        %v3674 = vunpack.c.h.b16 %v3011
        %v3675 = vunpack.c.l.b16 %v3012
        %v3676 = vunpack.c.h.b16 %v3012
        %v3677 = vunpack.c.l.b16 %v3013
        %v3678 = vunpack.c.h.b16 %v3013
        %v3679 = vunpack.c.l.b16 %v3014
        %v3680 = vunpack.c.h.b16 %v3014
        %v3681 = vunpack.c.l.b16 %v3015
        %v3682 = vunpack.c.h.b16 %v3015
        %v3683 = vunpack.c.l.b16 %v3016
        %v3684 = vunpack.c.h.b16 %v3016
        %v3685 = vunpack.c.l.b16 %v3017
        %v3686 = vunpack.c.h.b16 %v3017
        %v3687 = vunpack.c.l.b16 %v3018
        %v3688 = vunpack.c.h.b16 %v3018
        %v3689 = vunpack.c.l.b16 %v3019
        %v3690 = vunpack.c.h.b16 %v3019
        %v3691 = vunpack.c.l.b16 %v3020
        %v3692 = vunpack.c.h.b16 %v3020
        %v3693 = vunpack.c.l.b16 %v3021
        %v3694 = vunpack.c.h.b16 %v3021
        %v3695 = vunpack.c.l.b16 %v3022
        %v3696 = vunpack.c.h.b16 %v3022
        %v3697 = vunpack.c.l.b16 %v3023
        %v3698 = vunpack.c.h.b16 %v3023
        %v3699 = vunpack.c.l.b16 %v3024
        %v3700 = vunpack.c.h.b16 %v3024
        %v3701 = vunpack.c.l.b16 %v3025
        %v3702 = vunpack.c.h.b16 %v3025
        %v3703 = vunpack.c.l.b16 %v3026
        %v3704 = vunpack.c.h.b16 %v3026
        %v3705 = vunpack.c.l.b16 %v3027
        %v3706 = vunpack.c.h.b16 %v3027
        %v3707 = vunpack.c.l.b16 %v3028
        %v3708 = vunpack.c.h.b16 %v3028
        %v3709 = vunpack.c.l.b16 %v3029
        %v3710 = vunpack.c.h.b16 %v3029
        %v3711 = vunpack.c.l.b16 %v3030
        %v3712 = vunpack.c.h.b16 %v3030
        %v3713 = vunpack.c.l.b16 %v3031
        %v3714 = vunpack.c.h.b16 %v3031
        %v3715 = vunpack.c.l.b16 %v3032
        %v3716 = vunpack.c.h.b16 %v3032
        %v3717 = vunpack.c.l.b16 %v3033
        %v3718 = vunpack.c.h.b16 %v3033
        %v3719 = vunpack.c.l.b16 %v3034
        %v3720 = vunpack.c.h.b16 %v3034
        %v3721 = vunpack.c.l.b16 %v3035
        %v3722 = vunpack.c.h.b16 %v3035
        %v3723 = vunpack.c.l.b16 %v3036
        %v3724 = vunpack.c.h.b16 %v3036
        %v3725 = vunpack.c.l.b16 %v3037
        %v3726 = vunpack.c.h.b16 %v3037
        %v3727 = vunpack.c.l.b16 %v3038
        %v3728 = vunpack.c.h.b16 %v3038
        %v3729 = vunpack.c.l.b16 %v3039
        %v3730 = vunpack.c.h.b16 %v3039
        %v3731 = vunpack.c.l.b16 %v3040
        %v3732 = vunpack.c.h.b16 %v3040
        %v3733 = vunpack.c.l.b16 %v3041
        %v3734 = vunpack.c.h.b16 %v3041
        %v3735 = vunpack.c.l.b16 %v3042
        %v3736 = vunpack.c.h.b16 %v3042
        %v3737 = vunpack.c.l.b16 %v3043
        %v3738 = vunpack.c.h.b16 %v3043
        %v3739 = vunpack.c.l.b16 %v3044
        %v3740 = vunpack.c.h.b16 %v3044
        %v3741 = vunpack.c.l.b16 %v3045
        %v3742 = vunpack.c.h.b16 %v3045
        %v3743 = vunpack.c.l.b16 %v3046
        %v3744 = vunpack.c.h.b16 %v3046
        %v3745 = vunpack.c.l.b16 %v3047
        %v3746 = vunpack.c.h.b16 %v3047
        %v3747 = vunpack.c.l.b16 %v3048
        %v3748 = vunpack.c.h.b16 %v3048
        %v3749 = vunpack.c.l.b16 %v3049
        %v3750 = vunpack.c.h.b16 %v3049
        %v3751 = vunpack.c.l.b16 %v3050
        %v3752 = vunpack.c.h.b16 %v3050
        %v3753 = vunpack.c.l.b16 %v3051
        %v3754 = vunpack.c.h.b16 %v3051
        %v3755 = vunpack.c.l.b16 %v3052
        %v3756 = vunpack.c.h.b16 %v3052
        %v3757 = vunpack.c.l.b16 %v3053
        %v3758 = vunpack.c.h.b16 %v3053
        %v3759 = vunpack.c.l.b16 %v3054
        %v3760 = vunpack.c.h.b16 %v3054
        %v3761 = vunpack.c.l.b16 %v3055
        %v3762 = vunpack.c.h.b16 %v3055
        %v3763 = vunpack.c.l.b16 %v3056
        %v3764 = vunpack.c.h.b16 %v3056
        %v3765 = vunpack.c.l.b16 %v3057
        %v3766 = vunpack.c.h.b16 %v3057
        %v3767 = vunpack.c.l.b16 %v3058
        %v3768 = vunpack.c.h.b16 %v3058
        %v3769 = vunpack.c.l.b16 %v3059
        %v3770 = vunpack.c.h.b16 %v3059
        %v3771 = vunpack.c.l.b16 %v3060
        %v3772 = vunpack.c.h.b16 %v3060
        %v3773 = vunpack.c.l.b16 %v3061
        %v3774 = vunpack.c.h.b16 %v3061
        %v3775 = vunpack.c.l.b16 %v3062
        %v3776 = vunpack.c.h.b16 %v3062
        %v3777 = vunpack.c.l.b16 %v3063
        %v3778 = vunpack.c.h.b16 %v3063
        %v3779 = vunpack.c.l.b16 %v3064
        %v3780 = vunpack.c.h.b16 %v3064
        %v3781 = vunpack.c.l.b16 %v3065
        %v3782 = vunpack.c.h.b16 %v3065
        %v3783 = vunpack.c.l.b16 %v3066
        %v3784 = vunpack.c.h.b16 %v3066
        %v3785 = vunpack.c.l.b16 %v3067
        %v3786 = vunpack.c.h.b16 %v3067
        %v3787 = vunpack.c.l.b16 %v3068
        %v3788 = vunpack.c.h.b16 %v3068
        %v3789 = vunpack.c.l.b16 %v3069
        %v3790 = vunpack.c.h.b16 %v3069
        %v3791 = vunpack.c.l.b16 %v3070
        %v3792 = vunpack.c.h.b16 %v3070
        %v3793 = vunpack.c.l.b16 %v3071
        %v3794 = vunpack.c.h.b16 %v3071
        %v3795 = vunpack.c.l.b16 %v3072
        %v3796 = vunpack.c.h.b16 %v3072
        %v3797 = vunpack.c.l.b16 %v3073
        %v3798 = vunpack.c.h.b16 %v3073
        %v3799 = vunpack.c.l.b16 %v3074
        %v3800 = vunpack.c.h.b16 %v3074
        %v3801 = vunpack.c.l.b16 %v3075
        %v3802 = vunpack.c.h.b16 %v3075
        %v3803 = vunpack.c.l.b16 %v3076
        %v3804 = vunpack.c.h.b16 %v3076
        %v3805 = vunpack.c.l.b16 %v3077
        %v3806 = vunpack.c.h.b16 %v3077
        %v3807 = vunpack.c.l.b16 %v3078
        %v3808 = vunpack.c.h.b16 %v3078
        %v3809 = vunpack.c.l.b16 %v3079
        %v3810 = vunpack.c.h.b16 %v3079
        %v3811 = vunpack.c.l.b16 %v3080
        %v3812 = vunpack.c.h.b16 %v3080
        %v3813 = vunpack.c.l.b16 %v3081
        %v3814 = vunpack.c.h.b16 %v3081
        %v3815 = vunpack.c.l.b16 %v3082
        %v3816 = vunpack.c.h.b16 %v3082
        %v3817 = vunpack.c.l.b16 %v3083
        %v3818 = vunpack.c.h.b16 %v3083
        %v3819 = vunpack.c.l.b16 %v3084
        %v3820 = vunpack.c.h.b16 %v3084
        %v3821 = vunpack.c.l.b16 %v3085
        %v3822 = vunpack.c.h.b16 %v3085
        %v3823 = vunpack.c.l.b16 %v3086
        %v3824 = vunpack.c.h.b16 %v3086
        %v3825 = vunpack.c.l.b16 %v3087
        %v3826 = vunpack.c.h.b16 %v3087
        %v3827 = vunpack.c.l.b16 %v3088
        %v3828 = vunpack.c.h.b16 %v3088
        %v3829 = vunpack.c.l.b16 %v3089
        %v3830 = vunpack.c.h.b16 %v3089
        %v3831 = vunpack.c.l.b16 %v3090
        %v3832 = vunpack.c.h.b16 %v3090
        %v3833 = vunpack.c.l.b16 %v3091
        %v3834 = vunpack.c.h.b16 %v3091
        %v3835 = vunpack.c.l.b16 %v3092
        %v3836 = vunpack.c.h.b16 %v3092
        %v3837 = vunpack.c.l.b16 %v3093
        %v3838 = vunpack.c.h.b16 %v3093
        %v3839 = vunpack.c.l.b16 %v3094
        %v3840 = vunpack.c.h.b16 %v3094
        %v3841 = vunpack.c.l.b16 %v3095
        %v3842 = vunpack.c.h.b16 %v3095
        %v3843 = vunpack.c.l.b16 %v3096
        %v3844 = vunpack.c.h.b16 %v3096
        %v3845 = vunpack.c.l.b16 %v3097
        %v3846 = vunpack.c.h.b16 %v3097
        %v3847 = vunpack.c.l.b16 %v3098
        %v3848 = vunpack.c.h.b16 %v3098
        %v3849 = vunpack.c.l.b16 %v3099
        %v3850 = vunpack.c.h.b16 %v3099
        %v3851 = vunpack.c.l.b16 %v3100
        %v3852 = vunpack.c.h.b16 %v3100
        %v3853 = vunpack.c.l.b16 %v3101
        %v3854 = vunpack.c.h.b16 %v3101
        %v3855 = vunpack.c.l.b16 %v3102
        %v3856 = vunpack.c.h.b16 %v3102
        %v3857 = vunpack.c.l.b16 %v3103
        %v3858 = vunpack.c.h.b16 %v3103
        %v3859 = vunpack.c.l.b16 %v3104
        %v3860 = vunpack.c.h.b16 %v3104
        %v3861 = vunpack.c.l.b16 %v3105
        %v3862 = vunpack.c.h.b16 %v3105
        %v3863 = vunpack.c.l.b16 %v3106
        %v3864 = vunpack.c.h.b16 %v3106
        %v3865 = vunpack.c.l.b16 %v3107
        %v3866 = vunpack.c.h.b16 %v3107
        %v3867 = vunpack.c.l.b16 %v3108
        %v3868 = vunpack.c.h.b16 %v3108
        %v3869 = vunpack.c.l.b16 %v3109
        %v3870 = vunpack.c.h.b16 %v3109
        %v3871 = vunpack.c.l.b16 %v3110
        %v3872 = vunpack.c.h.b16 %v3110
        %v3873 = vunpack.c.l.b16 %v3111
        %v3874 = vunpack.c.h.b16 %v3111
        %v3875 = vunpack.c.l.b16 %v3112
        %v3876 = vunpack.c.h.b16 %v3112
        %v3877 = vunpack.c.l.b16 %v3113
        %v3878 = vunpack.c.h.b16 %v3113
        %v3879 = vunpack.c.l.b16 %v3114
        %v3880 = vunpack.c.h.b16 %v3114
        %v3881 = vunpack.c.l.b16 %v3115
        %v3882 = vunpack.c.h.b16 %v3115
        %v3883 = vunpack.c.l.b16 %v3116
        %v3884 = vunpack.c.h.b16 %v3116
        %v3885 = vunpack.c.l.b16 %v3117
        %v3886 = vunpack.c.h.b16 %v3117
        %v3887 = vunpack.c.l.b16 %v3118
        %v3888 = vunpack.c.h.b16 %v3118
        %v3889 = vunpack.c.l.b16 %v3119
        %v3890 = vunpack.c.h.b16 %v3119
        %v3891 = vunpack.c.l.b16 %v3120
        %v3892 = vunpack.c.h.b16 %v3120
        %v3893 = vunpack.c.l.b16 %v3121
        %v3894 = vunpack.c.h.b16 %v3121
        %v3895 = vunpack.c.l.b16 %v3122
        %v3896 = vunpack.c.h.b16 %v3122
        %v3897 = vunpack.c.l.b16 %v3123
        %v3898 = vunpack.c.h.b16 %v3123
        %v3899 = vunpack.c.l.b16 %v3124
        %v3900 = vunpack.c.h.b16 %v3124
        %v3901 = vunpack.c.l.b16 %v3125
        %v3902 = vunpack.c.h.b16 %v3125
        %v3903 = vunpack.c.l.b16 %v3126
        %v3904 = vunpack.c.h.b16 %v3126
        %v3905 = vunpack.c.l.b16 %v3127
        %v3906 = vunpack.c.h.b16 %v3127
        %v3907 = vunpack.c.l.b16 %v3128
        %v3908 = vunpack.c.h.b16 %v3128
        %v3909 = vunpack.c.l.b16 %v3129
        %v3910 = vunpack.c.h.b16 %v3129
        %v3911 = vunpack.c.l.b16 %v3130
        %v3912 = vunpack.c.h.b16 %v3130
        %v3913 = vunpack.c.l.b16 %v3131
        %v3914 = vunpack.c.h.b16 %v3131
        %v3915 = vunpack.c.l.b16 %v3132
        %v3916 = vunpack.c.h.b16 %v3132
        %v3917 = vunpack.c.l.b16 %v3133
        %v3918 = vunpack.c.h.b16 %v3133
        %v3919 = vunpack.c.l.b16 %v3134
        %v3920 = vunpack.c.h.b16 %v3134
        %v3921 = vunpack.c.l.b16 %v3135
        %v3922 = vunpack.c.h.b16 %v3135
        %v3923 = vunpack.c.l.b16 %v3136
        %v3924 = vunpack.c.h.b16 %v3136
        %v3925 = vunpack.c.l.b16 %v3137
        %v3926 = vunpack.c.h.b16 %v3137
        %v3927 = vunpack.c.l.b16 %v3138
        %v3928 = vunpack.c.h.b16 %v3138
        %v3929 = vunpack.c.l.b16 %v3139
        %v3930 = vunpack.c.h.b16 %v3139
        %v3931 = vunpack.c.l.b16 %v3140
        %v3932 = vunpack.c.h.b16 %v3140
        %v3933 = vunpack.c.l.b16 %v3141
        %v3934 = vunpack.c.h.b16 %v3141
        %v3935 = vunpack.c.l.b16 %v3142
        %v3936 = vunpack.c.h.b16 %v3142
        %v3937 = vunpack.c.l.b16 %v3143
        %v3938 = vunpack.c.h.b16 %v3143
        %v3939 = vunpack.c.l.b16 %v3144
        %v3940 = vunpack.c.h.b16 %v3144
        %v3941 = vunpack.c.l.b16 %v3145
        %v3942 = vunpack.c.h.b16 %v3145
        %v3943 = vunpack.c.l.b16 %v3146
        %v3944 = vunpack.c.h.b16 %v3146
        %v3945 = vunpack.c.l.b16 %v3147
        %v3946 = vunpack.c.h.b16 %v3147
        %v3947 = vunpack.c.l.b16 %v3148
        %v3948 = vunpack.c.h.b16 %v3148
        %v3949 = vunpack.c.l.b16 %v3149
        %v3950 = vunpack.c.h.b16 %v3149
        %v3951 = vunpack.c.l.b16 %v3150
        %v3952 = vunpack.c.h.b16 %v3150
        %v3953 = vunpack.c.l.b16 %v3151
        %v3954 = vunpack.c.h.b16 %v3151
        %v3955 = vunpack.c.l.b16 %v3152
        %v3956 = vunpack.c.h.b16 %v3152
        %v3957 = vunpack.c.l.b16 %v3153
        %v3958 = vunpack.c.h.b16 %v3153
        %v3959 = vunpack.c.l.b16 %v3154
        %v3960 = vunpack.c.h.b16 %v3154
        %v3961 = vunpack.c.l.b16 %v3155
        %v3962 = vunpack.c.h.b16 %v3155
        %v3963 = vunpack.c.l.b16 %v3156
        %v3964 = vunpack.c.h.b16 %v3156
        %v3965 = vunpack.c.l.b16 %v3157
        %v3966 = vunpack.c.h.b16 %v3157
        %v3967 = vunpack.c.l.b16 %v3158
        %v3968 = vunpack.c.h.b16 %v3158
        %v3969 = vunpack.c.l.b16 %v3159
        %v3970 = vunpack.c.h.b16 %v3159
        %v3971 = vunpack.c.l.b16 %v3160
        %v3972 = vunpack.c.h.b16 %v3160
        %v3973 = vunpack.c.l.b16 %v3161
        %v3974 = vunpack.c.h.b16 %v3161
        %v3975 = vunpack.c.l.b16 %v3162
        %v3976 = vunpack.c.h.b16 %v3162
        %v3977 = vunpack.c.l.b16 %v3163
        %v3978 = vunpack.c.h.b16 %v3163
        %v3979 = vunpack.c.l.b16 %v3164
        %v3980 = vunpack.c.h.b16 %v3164
        %v3981 = vunpack.c.l.b16 %v3165
        %v3982 = vunpack.c.h.b16 %v3165
        %v3983 = vunpack.c.l.b16 %v3166
        %v3984 = vunpack.c.h.b16 %v3166
        %v3985 = vunpack.c.l.b16 %v3167
        %v3986 = vunpack.c.h.b16 %v3167
        %v3987 = vunpack.c.l.b16 %v3168
        %v3988 = vunpack.c.h.b16 %v3168
        %v3989 = vunpack.c.l.b16 %v3169
        %v3990 = vunpack.c.h.b16 %v3169
        %v3991 = vunpack.c.l.b16 %v3170
        %v3992 = vunpack.c.h.b16 %v3170
        %v3993 = vunpack.c.l.b16 %v3171
        %v3994 = vunpack.c.h.b16 %v3171
        %v3995 = vunpack.c.l.b16 %v3172
        %v3996 = vunpack.c.h.b16 %v3172
        %v3997 = vunpack.c.l.b16 %v3173
        %v3998 = vunpack.c.h.b16 %v3173
        %v3999 = vunpack.c.l.b16 %v3174
        %v4000 = vunpack.c.h.b16 %v3174
        %v4001 = vunpack.c.l.b16 %v3175
        %v4002 = vunpack.c.h.b16 %v3175
        %v4003 = vunpack.c.l.b16 %v3176
        %v4004 = vunpack.c.h.b16 %v3176
        %v4005 = vunpack.c.l.b16 %v3177
        %v4006 = vunpack.c.h.b16 %v3177
        %v4007 = vunpack.c.l.b16 %v3178
        %v4008 = vunpack.c.h.b16 %v3178
        %v4009 = vunpack.c.l.b16 %v3179
        %v4010 = vunpack.c.h.b16 %v3179
        %v4011 = vunpack.c.l.b16 %v3180
        %v4012 = vunpack.c.h.b16 %v3180
        %v4013 = vunpack.c.l.b16 %v3181
        %v4014 = vunpack.c.h.b16 %v3181
        %v4015 = vunpack.c.l.b16 %v3182
        %v4016 = vunpack.c.h.b16 %v3182
        %v4017 = vunpack.c.l.b16 %v3183
        %v4018 = vunpack.c.h.b16 %v3183
        %v4019 = vunpack.c.l.b16 %v3184
        %v4020 = vunpack.c.h.b16 %v3184
        %v4021 = vunpack.c.l.b16 %v3185
        %v4022 = vunpack.c.h.b16 %v3185
        %v4023 = vunpack.c.l.b16 %v3186
        %v4024 = vunpack.c.h.b16 %v3186
        %v4025 = vunpack.c.l.b16 %v3187
        %v4026 = vunpack.c.h.b16 %v3187
        %v4027 = vunpack.c.l.b16 %v3188
        %v4028 = vunpack.c.h.b16 %v3188
        %v4029 = vunpack.c.l.b16 %v3189
        %v4030 = vunpack.c.h.b16 %v3189
        %v4031 = vunpack.c.l.b16 %v3190
        %v4032 = vunpack.c.h.b16 %v3190
        %v4033 = vunpack.c.l.b16 %v3191
        %v4034 = vunpack.c.h.b16 %v3191
        %v4035 = vunpack.c.l.b16 %v3192
        %v4036 = vunpack.c.h.b16 %v3192
        %v4037 = vunpack.c.l.b16 %v3193
        %v4038 = vunpack.c.h.b16 %v3193
        %v4039 = vunpack.c.l.b16 %v3194
        %v4040 = vunpack.c.h.b16 %v3194
        %v4041 = vunpack.c.l.b16 %v3195
        %v4042 = vunpack.c.h.b16 %v3195
        %v4043 = vunpack.c.l.b16 %v3196
        %v4044 = vunpack.c.h.b16 %v3196
        %v4045 = vunpack.c.l.b16 %v3197
        %v4046 = vunpack.c.h.b16 %v3197
        %v4047 = vunpack.c.l.b16 %v3198
        %v4048 = vunpack.c.h.b16 %v3198
        %v4049 = vunpack.c.l.b16 %v3199
        %v4050 = vunpack.c.h.b16 %v3199
        %v4051 = vunpack.c.l.b16 %v3200
        %v4052 = vunpack.c.h.b16 %v3200
        %v4053 = vunpack.c.l.b16 %v3201
        %v4054 = vunpack.c.h.b16 %v3201
        %v4055 = vunpack.c.l.b16 %v3202
        %v4056 = vunpack.c.h.b16 %v3202
        %v4057 = vunpack.c.l.b16 %v3203
        %v4058 = vunpack.c.h.b16 %v3203
        %v4059 = vunpack.c.l.b16 %v3204
        %v4060 = vunpack.c.h.b16 %v3204
        %v4061 = vunpack.c.l.b16 %v3205
        %v4062 = vunpack.c.h.b16 %v3205
        %v4063 = vunpack.c.l.b16 %v3206
        %v4064 = vunpack.c.h.b16 %v3206
        %v4065 = vunpack.c.l.b16 %v3207
        %v4066 = vunpack.c.h.b16 %v3207
        %v4067 = vunpack.c.l.b16 %v3208
        %v4068 = vunpack.c.h.b16 %v3208
        %v4069 = vunpack.c.l.b16 %v3209
        %v4070 = vunpack.c.h.b16 %v3209
        %v4071 = vunpack.c.l.b16 %v3210
        %v4072 = vunpack.c.h.b16 %v3210
        %v4073 = vunpack.c.l.b16 %v3211
        %v4074 = vunpack.c.h.b16 %v3211
        %v4075 = vunpack.c.l.b16 %v3212
        %v4076 = vunpack.c.h.b16 %v3212
        %v4077 = vpack.c.b16 %v3507, %v3501
        %v4078 = vpack.c.b16 %v3508, %v3502
        %v4079 = vpack.c.b16 %v3509, %v3503
        %v4080 = vpack.c.b16 %v3510, %v3504
        %v4081 = vpack.c.b16 %v3511, %v3505
        %v4082 = vpack.c.b16 %v3512, %v3506
        %v4083 = vpack.c.b16 %v3519, %v3513
        %v4084 = vpack.c.b16 %v3520, %v3514
        %v4085 = vpack.c.b16 %v3521, %v3515
        %v4086 = vpack.c.b16 %v3522, %v3516
        %v4087 = vpack.c.b16 %v3523, %v3517
        %v4088 = vpack.c.b16 %v3524, %v3518
        %v4089 = vpack.c.b16 %v3531, %v3525
        %v4090 = vpack.c.b16 %v3532, %v3526
        %v4091 = vpack.c.b16 %v3533, %v3527
        %v4092 = vpack.c.b16 %v3534, %v3528
        %v4093 = vpack.c.b16 %v3535, %v3529
        %v4094 = vpack.c.b16 %v3536, %v3530
        %v4095 = vpack.c.b16 %v3543, %v3537
        %v4096 = vpack.c.b16 %v3544, %v3538
        %v4097 = vpack.c.b16 %v3545, %v3539
        %v4098 = vpack.c.b16 %v3546, %v3540
        %v4099 = vpack.c.b16 %v3547, %v3541
        %v4100 = vpack.c.b16 %v3548, %v3542
        %v4101 = vpack.c.b16 %v3555, %v3549
        %v4102 = vpack.c.b16 %v3556, %v3550
        %v4103 = vpack.c.b16 %v3557, %v3551
        %v4104 = vpack.c.b16 %v3558, %v3552
        %v4105 = vpack.c.b16 %v3559, %v3553
        %v4106 = vpack.c.b16 %v3560, %v3554
        %v4107 = vpack.c.b16 %v3567, %v3561
        %v4108 = vpack.c.b16 %v3568, %v3562
        %v4109 = vpack.c.b16 %v3569, %v3563
        %v4110 = vpack.c.b16 %v3570, %v3564
        %v4111 = vpack.c.b16 %v3571, %v3565
        %v4112 = vpack.c.b16 %v3572, %v3566
        %v4113 = vpack.c.b16 %v3579, %v3573
        %v4114 = vpack.c.b16 %v3580, %v3574
        %v4115 = vpack.c.b16 %v3581, %v3575
        %v4116 = vpack.c.b16 %v3582, %v3576
        %v4117 = vpack.c.b16 %v3583, %v3577
        %v4118 = vpack.c.b16 %v3584, %v3578
        %v4119 = vpack.c.b16 %v3591, %v3585
        %v4120 = vpack.c.b16 %v3592, %v3586
        %v4121 = vpack.c.b16 %v3593, %v3587
        %v4122 = vpack.c.b16 %v3594, %v3588
        %v4123 = vpack.c.b16 %v3595, %v3589
        %v4124 = vpack.c.b16 %v3596, %v3590
        %v4125 = vpack.c.b16 %v3603, %v3597
        %v4126 = vpack.c.b16 %v3604, %v3598
        %v4127 = vpack.c.b16 %v3605, %v3599
        %v4128 = vpack.c.b16 %v3606, %v3600
        %v4129 = vpack.c.b16 %v3607, %v3601
        %v4130 = vpack.c.b16 %v3608, %v3602
        %v4131 = vpack.c.b16 %v3615, %v3609
        %v4132 = vpack.c.b16 %v3616, %v3610
        %v4133 = vpack.c.b16 %v3617, %v3611
        %v4134 = vpack.c.b16 %v3618, %v3612
        %v4135 = vpack.c.b16 %v3619, %v3613
        %v4136 = vpack.c.b16 %v3620, %v3614
        %v4137 = vpack.c.b16 %v3627, %v3621
        %v4138 = vpack.c.b16 %v3628, %v3622
        %v4139 = vpack.c.b16 %v3629, %v3623
        %v4140 = vpack.c.b16 %v3630, %v3624
        %v4141 = vpack.c.b16 %v3631, %v3625
        %v4142 = vpack.c.b16 %v3632, %v3626
        %v4143 = vpack.c.b16 %v3639, %v3633
        %v4144 = vpack.c.b16 %v3640, %v3634
        %v4145 = vpack.c.b16 %v3641, %v3635
        %v4146 = vpack.c.b16 %v3642, %v3636
        %v4147 = vpack.c.b16 %v3643, %v3637
        %v4148 = vpack.c.b16 %v3644, %v3638
        %v4149 = vpack.c.b16 %v3651, %v3645
        %v4150 = vpack.c.b16 %v3652, %v3646
        %v4151 = vpack.c.b16 %v3653, %v3647
        %v4152 = vpack.c.b16 %v3654, %v3648
        %v4153 = vpack.c.b16 %v3655, %v3649
        %v4154 = vpack.c.b16 %v3656, %v3650
        %v4155 = vpack.c.b16 %v3663, %v3657
        %v4156 = vpack.c.b16 %v3664, %v3658
        %v4157 = vpack.c.b16 %v3665, %v3659
        %v4158 = vpack.c.b16 %v3666, %v3660
        %v4159 = vpack.c.b16 %v3667, %v3661
        %v4160 = vpack.c.b16 %v3668, %v3662
        %v4161 = vpack.c.b16 %v3675, %v3669
        %v4162 = vpack.c.b16 %v3676, %v3670
        %v4163 = vpack.c.b16 %v3677, %v3671
        %v4164 = vpack.c.b16 %v3678, %v3672
        %v4165 = vpack.c.b16 %v3679, %v3673
        %v4166 = vpack.c.b16 %v3680, %v3674
        %v4167 = vpack.c.b16 %v3687, %v3681
        %v4168 = vpack.c.b16 %v3688, %v3682
        %v4169 = vpack.c.b16 %v3689, %v3683
        %v4170 = vpack.c.b16 %v3690, %v3684
        %v4171 = vpack.c.b16 %v3691, %v3685
        %v4172 = vpack.c.b16 %v3692, %v3686
        %v4173 = vpack.c.b16 %v3699, %v3693
        %v4174 = vpack.c.b16 %v3700, %v3694
        %v4175 = vpack.c.b16 %v3701, %v3695
        %v4176 = vpack.c.b16 %v3702, %v3696
        %v4177 = vpack.c.b16 %v3703, %v3697
        %v4178 = vpack.c.b16 %v3704, %v3698
        %v4179 = vpack.c.b16 %v3711, %v3705
        %v4180 = vpack.c.b16 %v3712, %v3706
        %v4181 = vpack.c.b16 %v3713, %v3707
        %v4182 = vpack.c.b16 %v3714, %v3708
        %v4183 = vpack.c.b16 %v3715, %v3709
        %v4184 = vpack.c.b16 %v3716, %v3710
        %v4185 = vpack.c.b16 %v3723, %v3717
        %v4186 = vpack.c.b16 %v3724, %v3718
        %v4187 = vpack.c.b16 %v3725, %v3719
        %v4188 = vpack.c.b16 %v3726, %v3720
        %v4189 = vpack.c.b16 %v3727, %v3721
        %v4190 = vpack.c.b16 %v3728, %v3722
        %v4191 = vpack.c.b16 %v3735, %v3729
        %v4192 = vpack.c.b16 %v3736, %v3730
        %v4193 = vpack.c.b16 %v3737, %v3731
        %v4194 = vpack.c.b16 %v3738, %v3732
        %v4195 = vpack.c.b16 %v3739, %v3733
        %v4196 = vpack.c.b16 %v3740, %v3734
        %v4197 = vpack.c.b16 %v3747, %v3741
        %v4198 = vpack.c.b16 %v3748, %v3742
        %v4199 = vpack.c.b16 %v3749, %v3743
        %v4200 = vpack.c.b16 %v3750, %v3744
        %v4201 = vpack.c.b16 %v3751, %v3745
        %v4202 = vpack.c.b16 %v3752, %v3746
        %v4203 = vpack.c.b16 %v3759, %v3753
        %v4204 = vpack.c.b16 %v3760, %v3754
        %v4205 = vpack.c.b16 %v3761, %v3755
        %v4206 = vpack.c.b16 %v3762, %v3756
        %v4207 = vpack.c.b16 %v3763, %v3757
        %v4208 = vpack.c.b16 %v3764, %v3758
        %v4209 = vpack.c.b16 %v3771, %v3765
        %v4210 = vpack.c.b16 %v3772, %v3766
        %v4211 = vpack.c.b16 %v3773, %v3767
        %v4212 = vpack.c.b16 %v3774, %v3768
        %v4213 = vpack.c.b16 %v3775, %v3769
        %v4214 = vpack.c.b16 %v3776, %v3770
        %v4215 = vpack.c.b16 %v3783, %v3777
        %v4216 = vpack.c.b16 %v3784, %v3778
        %v4217 = vpack.c.b16 %v3785, %v3779
        %v4218 = vpack.c.b16 %v3786, %v3780
        %v4219 = vpack.c.b16 %v3787, %v3781
        %v4220 = vpack.c.b16 %v3788, %v3782
        %v4221 = vpack.c.b16 %v3795, %v3789
        %v4222 = vpack.c.b16 %v3796, %v3790
        %v4223 = vpack.c.b16 %v3797, %v3791
        %v4224 = vpack.c.b16 %v3798, %v3792
        %v4225 = vpack.c.b16 %v3799, %v3793
        %v4226 = vpack.c.b16 %v3800, %v3794
        %v4227 = vpack.c.b16 %v3807, %v3801
        %v4228 = vpack.c.b16 %v3808, %v3802
        %v4229 = vpack.c.b16 %v3809, %v3803
        %v4230 = vpack.c.b16 %v3810, %v3804
        %v4231 = vpack.c.b16 %v3811, %v3805
        %v4232 = vpack.c.b16 %v3812, %v3806
        %v4233 = vpack.c.b16 %v3819, %v3813
        %v4234 = vpack.c.b16 %v3820, %v3814
        %v4235 = vpack.c.b16 %v3821, %v3815
        %v4236 = vpack.c.b16 %v3822, %v3816
        %v4237 = vpack.c.b16 %v3823, %v3817
        %v4238 = vpack.c.b16 %v3824, %v3818
        %v4239 = vpack.c.b16 %v3831, %v3825
        %v4240 = vpack.c.b16 %v3832, %v3826
        %v4241 = vpack.c.b16 %v3833, %v3827
        %v4242 = vpack.c.b16 %v3834, %v3828
        %v4243 = vpack.c.b16 %v3835, %v3829
        %v4244 = vpack.c.b16 %v3836, %v3830
        %v4245 = vpack.c.b16 %v3843, %v3837
        %v4246 = vpack.c.b16 %v3844, %v3838
        %v4247 = vpack.c.b16 %v3845, %v3839
        %v4248 = vpack.c.b16 %v3846, %v3840
        %v4249 = vpack.c.b16 %v3847, %v3841
        %v4250 = vpack.c.b16 %v3848, %v3842
        %v4251 = vpack.c.b16 %v3855, %v3849
        %v4252 = vpack.c.b16 %v3856, %v3850
        %v4253 = vpack.c.b16 %v3857, %v3851
        %v4254 = vpack.c.b16 %v3858, %v3852
        %v4255 = vpack.c.b16 %v3859, %v3853
        %v4256 = vpack.c.b16 %v3860, %v3854
        %v4257 = vpack.c.b16 %v3867, %v3861
        %v4258 = vpack.c.b16 %v3868, %v3862
        %v4259 = vpack.c.b16 %v3869, %v3863
        %v4260 = vpack.c.b16 %v3870, %v3864
        %v4261 = vpack.c.b16 %v3871, %v3865
        %v4262 = vpack.c.b16 %v3872, %v3866
        %v4263 = vpack.c.b16 %v3879, %v3873
        %v4264 = vpack.c.b16 %v3880, %v3874
        %v4265 = vpack.c.b16 %v3881, %v3875
        %v4266 = vpack.c.b16 %v3882, %v3876
        %v4267 = vpack.c.b16 %v3883, %v3877
        %v4268 = vpack.c.b16 %v3884, %v3878
        %v4269 = vpack.c.b16 %v3891, %v3885
        %v4270 = vpack.c.b16 %v3892, %v3886
        %v4271 = vpack.c.b16 %v3893, %v3887
        %v4272 = vpack.c.b16 %v3894, %v3888
        %v4273 = vpack.c.b16 %v3895, %v3889
        %v4274 = vpack.c.b16 %v3896, %v3890
        %v4275 = vpack.c.b16 %v3903, %v3897
        %v4276 = vpack.c.b16 %v3904, %v3898
        %v4277 = vpack.c.b16 %v3905, %v3899
        %v4278 = vpack.c.b16 %v3906, %v3900
        %v4279 = vpack.c.b16 %v3907, %v3901
        %v4280 = vpack.c.b16 %v3908, %v3902
        %v4281 = vpack.c.b16 %v3915, %v3909
        %v4282 = vpack.c.b16 %v3916, %v3910
        %v4283 = vpack.c.b16 %v3917, %v3911
        %v4284 = vpack.c.b16 %v3918, %v3912
        %v4285 = vpack.c.b16 %v3919, %v3913
        %v4286 = vpack.c.b16 %v3920, %v3914
        %v4287 = vpack.c.b16 %v3927, %v3921
        %v4288 = vpack.c.b16 %v3928, %v3922
        %v4289 = vpack.c.b16 %v3929, %v3923
        %v4290 = vpack.c.b16 %v3930, %v3924
        %v4291 = vpack.c.b16 %v3931, %v3925
        %v4292 = vpack.c.b16 %v3932, %v3926
        %v4293 = vpack.c.b16 %v3939, %v3933
        %v4294 = vpack.c.b16 %v3940, %v3934
        %v4295 = vpack.c.b16 %v3941, %v3935
        %v4296 = vpack.c.b16 %v3942, %v3936
        %v4297 = vpack.c.b16 %v3943, %v3937
        %v4298 = vpack.c.b16 %v3944, %v3938
        %v4299 = vpack.c.b16 %v3951, %v3945
        %v4300 = vpack.c.b16 %v3952, %v3946
        %v4301 = vpack.c.b16 %v3953, %v3947
        %v4302 = vpack.c.b16 %v3954, %v3948
        %v4303 = vpack.c.b16 %v3955, %v3949
        %v4304 = vpack.c.b16 %v3956, %v3950
        %v4305 = vpack.c.b16 %v3963, %v3957
        %v4306 = vpack.c.b16 %v3964, %v3958
        %v4307 = vpack.c.b16 %v3965, %v3959
        %v4308 = vpack.c.b16 %v3966, %v3960
        %v4309 = vpack.c.b16 %v3967, %v3961
        %v4310 = vpack.c.b16 %v3968, %v3962
        %v4311 = vpack.c.b16 %v3975, %v3969
        %v4312 = vpack.c.b16 %v3976, %v3970
        %v4313 = vpack.c.b16 %v3977, %v3971
        %v4314 = vpack.c.b16 %v3978, %v3972
        %v4315 = vpack.c.b16 %v3979, %v3973
        %v4316 = vpack.c.b16 %v3980, %v3974
        %v4317 = vpack.c.b16 %v3987, %v3981
        %v4318 = vpack.c.b16 %v3988, %v3982
        %v4319 = vpack.c.b16 %v3989, %v3983
        %v4320 = vpack.c.b16 %v3990, %v3984
        %v4321 = vpack.c.b16 %v3991, %v3985
        %v4322 = vpack.c.b16 %v3992, %v3986
        %v4323 = vpack.c.b16 %v3999, %v3993
        %v4324 = vpack.c.b16 %v4000, %v3994
        %v4325 = vpack.c.b16 %v4001, %v3995
        %v4326 = vpack.c.b16 %v4002, %v3996
        %v4327 = vpack.c.b16 %v4003, %v3997
        %v4328 = vpack.c.b16 %v4004, %v3998
        %v4329 = vpack.c.b16 %v4011, %v4005
        %v4330 = vpack.c.b16 %v4012, %v4006
        %v4331 = vpack.c.b16 %v4013, %v4007
        %v4332 = vpack.c.b16 %v4014, %v4008
        %v4333 = vpack.c.b16 %v4015, %v4009
        %v4334 = vpack.c.b16 %v4016, %v4010
        %v4335 = vpack.c.b16 %v4023, %v4017
        %v4336 = vpack.c.b16 %v4024, %v4018
        %v4337 = vpack.c.b16 %v4025, %v4019
        %v4338 = vpack.c.b16 %v4026, %v4020
        %v4339 = vpack.c.b16 %v4027, %v4021
        %v4340 = vpack.c.b16 %v4028, %v4022
        %v4341 = vpack.c.b16 %v4035, %v4029
        %v4342 = vpack.c.b16 %v4036, %v4030
        %v4343 = vpack.c.b16 %v4037, %v4031
        %v4344 = vpack.c.b16 %v4038, %v4032
        %v4345 = vpack.c.b16 %v4039, %v4033
        %v4346 = vpack.c.b16 %v4040, %v4034
        %v4347 = vpack.c.b16 %v4047, %v4041
        %v4348 = vpack.c.b16 %v4048, %v4042
        %v4349 = vpack.c.b16 %v4049, %v4043
        %v4350 = vpack.c.b16 %v4050, %v4044
        %v4351 = vpack.c.b16 %v4051, %v4045
        %v4352 = vpack.c.b16 %v4052, %v4046
        %v4353 = vpack.c.b16 %v4059, %v4053
        %v4354 = vpack.c.b16 %v4060, %v4054
        %v4355 = vpack.c.b16 %v4061, %v4055
        %v4356 = vpack.c.b16 %v4062, %v4056
        %v4357 = vpack.c.b16 %v4063, %v4057
        %v4358 = vpack.c.b16 %v4064, %v4058
        %v4359 = vpack.c.b16 %v4071, %v4065
        %v4360 = vpack.c.b16 %v4072, %v4066
        %v4361 = vpack.c.b16 %v4073, %v4067
        %v4362 = vpack.c.b16 %v4074, %v4068
        %v4363 = vpack.c.b16 %v4075, %v4069
        %v4364 = vpack.c.b16 %v4076, %v4070
        %4653 = vmatprep.subr.bf16.mxu0 %v4078
        %4654 = vmatpush1.bf16.msra.mxu0 %v4077
        %4655 = vmatprep.subr.bf16.mxu0 %v4084
        %4656 = vmatpush1.bf16.msra.mxu0 %v4083
        %4657 = vmatprep.subr.bf16.mxu0 %v4090
        %4658 = vmatpush1.bf16.msra.mxu0 %v4089
        %4659 = vmatprep.subr.bf16.mxu0 %v4096
        %4660 = vmatpush1.bf16.msra.mxu0 %v4095
        %4661 = vmatprep.subr.bf16.mxu0 %v4102
        %4662 = vmatpush1.bf16.msra.mxu0 %v4101
        %4663 = vmatprep.subr.bf16.mxu0 %v4108
        %4664 = vmatpush1.bf16.msra.mxu0 %v4107
        %4665 = vmatprep.subr.bf16.mxu0 %v4114
        %4666 = vmatpush1.bf16.msra.mxu0 %v4113
        %4667 = vmatprep.subr.bf16.mxu0 %v4120
        %4668 = vmatpush1.bf16.msra.mxu0 %v4119
        %4669 = vmatprep.subr.bf16.mxu0 %v4126
        %4670 = vmatpush1.bf16.msra.mxu0 %v4125
        %4671 = vmatprep.subr.bf16.mxu0 %v4132
        %4672 = vmatpush1.bf16.msra.mxu0 %v4131
        %4673 = vmatprep.subr.bf16.mxu0 %v4138
        %4674 = vmatpush1.bf16.msra.mxu0 %v4137
        %4675 = vmatprep.subr.bf16.mxu0 %v4144
        %4676 = vmatpush1.bf16.msra.mxu0 %v4143
        %4677 = vmatprep.subr.bf16.mxu0 %v4150
        %4678 = vmatpush1.bf16.msra.mxu0 %v4149
        %4679 = vmatprep.subr.bf16.mxu0 %v4156
        %4680 = vmatpush1.bf16.msra.mxu0 %v4155
        %4681 = vmatprep.subr.bf16.mxu0 %v4162
        %4682 = vmatpush1.bf16.msra.mxu0 %v4161
        %4683 = vmatprep.subr.bf16.mxu0 %v4168
        %4684 = vmatpush1.bf16.msra.mxu0 %v4167
        %4685 = vmatprep.mubr.bf16.mxu0 %v2776
        %4686 = vmatmul.mubr.bf16.gmra.mrb[0].mxu0 %v2775
        %v4687 = vpop.f32.mrb[0].mxu0
        %v4688 = vadd.f32 0.0, %v4687
        %v4689 = vpop.f32.mrb[0].mxu0
        %v4690 = vadd.f32 0.0, %v4689
        %v4691 = vpop.f32.mrb[0].mxu0
        %v4692 = vpop.f32.mrb[0].mxu0
        %4693 = vdwg.mxu0
        %4694 = vmatprep.subr.bf16.mxu0 %v4174
        %4695 = vmatpush1.bf16.msra.mxu0 %v4173
        %4696 = vmatprep.subr.bf16.mxu0 %v4180
        %4697 = vmatpush1.bf16.msra.mxu0 %v4179
        %4698 = vmatprep.subr.bf16.mxu0 %v4186
        %4699 = vmatpush1.bf16.msra.mxu0 %v4185
        %4700 = vmatprep.subr.bf16.mxu0 %v4192
        %4701 = vmatpush1.bf16.msra.mxu0 %v4191
        %4702 = vmatprep.subr.bf16.mxu0 %v4198
        %4703 = vmatpush1.bf16.msra.mxu0 %v4197
        %4704 = vmatprep.subr.bf16.mxu0 %v4204
        %4705 = vmatpush1.bf16.msra.mxu0 %v4203
        %4706 = vmatprep.subr.bf16.mxu0 %v4210
        %4707 = vmatpush1.bf16.msra.mxu0 %v4209
        %4708 = vmatprep.subr.bf16.mxu0 %v4216
        %4709 = vmatpush1.bf16.msra.mxu0 %v4215
        %4710 = vmatprep.subr.bf16.mxu0 %v4222
        %4711 = vmatpush1.bf16.msra.mxu0 %v4221
        %4712 = vmatprep.subr.bf16.mxu0 %v4228
        %4713 = vmatpush1.bf16.msra.mxu0 %v4227
        %4714 = vmatprep.subr.bf16.mxu0 %v4234
        %4715 = vmatpush1.bf16.msra.mxu0 %v4233
        %4716 = vmatprep.subr.bf16.mxu0 %v4240
        %4717 = vmatpush1.bf16.msra.mxu0 %v4239
        %4718 = vmatprep.subr.bf16.mxu0 %v4246
        %4719 = vmatpush1.bf16.msra.mxu0 %v4245
        %4720 = vmatprep.subr.bf16.mxu0 %v4252
        %4721 = vmatpush1.bf16.msra.mxu0 %v4251
        %4722 = vmatprep.subr.bf16.mxu0 %v4258
        %4723 = vmatpush1.bf16.msra.mxu0 %v4257
        %4724 = vmatprep.subr.bf16.mxu0 %v4264
        %4725 = vmatpush1.bf16.msra.mxu0 %v4263
        %4726 = vmatprep.mubr.bf16.mxu0 %v2778
        %4727 = vmatmul.mubr.bf16.gmra.mrb[0].mxu0 %v2777
        %v4728 = vpop.f32.mrb[0].mxu0
        %v4729 = vadd.f32 %v4688, %v4728
        %v4730 = vpop.f32.mrb[0].mxu0
        %v4731 = vadd.f32 %v4690, %v4730
        %v4732 = vpop.f32.mrb[0].mxu0
        %v4733 = vpop.f32.mrb[0].mxu0
        %4734 = vdwg.mxu0
        %4735 = vmatprep.subr.bf16.mxu0 %v4270
        %4736 = vmatpush1.bf16.msra.mxu0 %v4269
        %4737 = vmatprep.subr.bf16.mxu0 %v4276
        %4738 = vmatpush1.bf16.msra.mxu0 %v4275
        %4739 = vmatprep.subr.bf16.mxu0 %v4282
        %4740 = vmatpush1.bf16.msra.mxu0 %v4281
        %4741 = vmatprep.subr.bf16.mxu0 %v4288
        %4742 = vmatpush1.bf16.msra.mxu0 %v4287
        %4743 = vmatprep.subr.bf16.mxu0 %v4294
        %4744 = vmatpush1.bf16.msra.mxu0 %v4293
        %4745 = vmatprep.subr.bf16.mxu0 %v4300
        %4746 = vmatpush1.bf16.msra.mxu0 %v4299
        %4747 = vmatprep.subr.bf16.mxu0 %v4306
        %4748 = vmatpush1.bf16.msra.mxu0 %v4305
        %4749 = vmatprep.subr.bf16.mxu0 %v4312
        %4750 = vmatpush1.bf16.msra.mxu0 %v4311
        %4751 = vmatprep.subr.bf16.mxu0 %v4318
        %4752 = vmatpush1.bf16.msra.mxu0 %v4317
        %4753 = vmatprep.subr.bf16.mxu0 %v4324
        %4754 = vmatpush1.bf16.msra.mxu0 %v4323
        %4755 = vmatprep.subr.bf16.mxu0 %v4330
        %4756 = vmatpush1.bf16.msra.mxu0 %v4329
        %4757 = vmatprep.subr.bf16.mxu0 %v4336
        %4758 = vmatpush1.bf16.msra.mxu0 %v4335
        %4759 = vmatprep.subr.bf16.mxu0 %v4342
        %4760 = vmatpush1.bf16.msra.mxu0 %v4341
        %4761 = vmatprep.subr.bf16.mxu0 %v4348
        %4762 = vmatpush1.bf16.msra.mxu0 %v4347
        %4763 = vmatprep.subr.bf16.mxu0 %v4354
        %4764 = vmatpush1.bf16.msra.mxu0 %v4353
        %4765 = vmatprep.subr.bf16.mxu0 %v4360
        %4766 = vmatpush1.bf16.msra.mxu0 %v4359
        %4767 = vmatprep.mubr.bf16.mxu0 %v2780
        %4768 = vmatmul.mubr.bf16.gmra.mrb[0].mxu0 %v2779
        %v4769 = vpop.f32.mrb[0].mxu0
        %v4770 = vadd.f32 %v4729, %v4769
        %v4771 = vpop.f32.mrb[0].mxu0
        %v4772 = vadd.f32 %v4731, %v4771
        %v4773 = vpop.f32.mrb[0].mxu0
        %v4774 = vpop.f32.mrb[0].mxu0
        %4775 = vdwg.mxu0
        %4776 = vmatprep.subr.bf16.mxu0 %v4080
        %4777 = vmatpush1.bf16.msra.mxu0 %v4079
        %4778 = vmatprep.subr.bf16.mxu0 %v4086
        %4779 = vmatpush1.bf16.msra.mxu0 %v4085
        %4780 = vmatprep.subr.bf16.mxu0 %v4092
        %4781 = vmatpush1.bf16.msra.mxu0 %v4091
        %4782 = vmatprep.subr.bf16.mxu0 %v4098
        %4783 = vmatpush1.bf16.msra.mxu0 %v4097
        %4784 = vmatprep.subr.bf16.mxu0 %v4104
        %4785 = vmatpush1.bf16.msra.mxu0 %v4103
        %4786 = vmatprep.subr.bf16.mxu0 %v4110
        %4787 = vmatpush1.bf16.msra.mxu0 %v4109
        %4788 = vmatprep.subr.bf16.mxu0 %v4116
        %4789 = vmatpush1.bf16.msra.mxu0 %v4115
        %4790 = vmatprep.subr.bf16.mxu0 %v4122
        %4791 = vmatpush1.bf16.msra.mxu0 %v4121
        %4792 = vmatprep.subr.bf16.mxu0 %v4128
        %4793 = vmatpush1.bf16.msra.mxu0 %v4127
        %4794 = vmatprep.subr.bf16.mxu0 %v4134
        %4795 = vmatpush1.bf16.msra.mxu0 %v4133
        %4796 = vmatprep.subr.bf16.mxu0 %v4140
        %4797 = vmatpush1.bf16.msra.mxu0 %v4139
        %4798 = vmatprep.subr.bf16.mxu0 %v4146
        %4799 = vmatpush1.bf16.msra.mxu0 %v4145
        %4800 = vmatprep.subr.bf16.mxu0 %v4152
        %4801 = vmatpush1.bf16.msra.mxu0 %v4151
        %4802 = vmatprep.subr.bf16.mxu0 %v4158
        %4803 = vmatpush1.bf16.msra.mxu0 %v4157
        %4804 = vmatprep.subr.bf16.mxu0 %v4164
        %4805 = vmatpush1.bf16.msra.mxu0 %v4163
        %4806 = vmatprep.subr.bf16.mxu0 %v4170
        %4807 = vmatpush1.bf16.msra.mxu0 %v4169
        %4808 = vmatprep.mubr.bf16.mxu0 %v2776
        %4809 = vmatmul.mubr.bf16.gmra.mrb[0].mxu0 %v2775
        %v4810 = vpop.f32.mrb[0].mxu0
        %v4811 = vadd.f32 0.0, %v4810
        %v4812 = vpop.f32.mrb[0].mxu0
        %v4813 = vadd.f32 0.0, %v4812
        %v4814 = vpop.f32.mrb[0].mxu0
        %v4815 = vpop.f32.mrb[0].mxu0
        %4816 = vdwg.mxu0
        %4817 = vmatprep.subr.bf16.mxu0 %v4176
        %4818 = vmatpush1.bf16.msra.mxu0 %v4175
        %4819 = vmatprep.subr.bf16.mxu0 %v4182
        %4820 = vmatpush1.bf16.msra.mxu0 %v4181
        %4821 = vmatprep.subr.bf16.mxu0 %v4188
        %4822 = vmatpush1.bf16.msra.mxu0 %v4187
        %4823 = vmatprep.subr.bf16.mxu0 %v4194
        %4824 = vmatpush1.bf16.msra.mxu0 %v4193
        %4825 = vmatprep.subr.bf16.mxu0 %v4200
        %4826 = vmatpush1.bf16.msra.mxu0 %v4199
        %4827 = vmatprep.subr.bf16.mxu0 %v4206
        %4828 = vmatpush1.bf16.msra.mxu0 %v4205
        %4829 = vmatprep.subr.bf16.mxu0 %v4212
        %4830 = vmatpush1.bf16.msra.mxu0 %v4211
        %4831 = vmatprep.subr.bf16.mxu0 %v4218
        %4832 = vmatpush1.bf16.msra.mxu0 %v4217
        %4833 = vmatprep.subr.bf16.mxu0 %v4224
        %4834 = vmatpush1.bf16.msra.mxu0 %v4223
        %4835 = vmatprep.subr.bf16.mxu0 %v4230
        %4836 = vmatpush1.bf16.msra.mxu0 %v4229
        %4837 = vmatprep.subr.bf16.mxu0 %v4236
        %4838 = vmatpush1.bf16.msra.mxu0 %v4235
        %4839 = vmatprep.subr.bf16.mxu0 %v4242
        %4840 = vmatpush1.bf16.msra.mxu0 %v4241
        %4841 = vmatprep.subr.bf16.mxu0 %v4248
        %4842 = vmatpush1.bf16.msra.mxu0 %v4247
        %4843 = vmatprep.subr.bf16.mxu0 %v4254
        %4844 = vmatpush1.bf16.msra.mxu0 %v4253
        %4845 = vmatprep.subr.bf16.mxu0 %v4260
        %4846 = vmatpush1.bf16.msra.mxu0 %v4259
        %4847 = vmatprep.subr.bf16.mxu0 %v4266
        %4848 = vmatpush1.bf16.msra.mxu0 %v4265
        %4849 = vmatprep.mubr.bf16.mxu0 %v2778
        %4850 = vmatmul.mubr.bf16.gmra.mrb[0].mxu0 %v2777
        %v4851 = vpop.f32.mrb[0].mxu0
        %v4852 = vadd.f32 %v4811, %v4851
        %v4853 = vpop.f32.mrb[0].mxu0
        %v4854 = vadd.f32 %v4813, %v4853
        %v4855 = vpop.f32.mrb[0].mxu0
        %v4856 = vpop.f32.mrb[0].mxu0
        %4857 = vdwg.mxu0
        %4858 = vmatprep.subr.bf16.mxu0 %v4272
        %4859 = vmatpush1.bf16.msra.mxu0 %v4271
        %4860 = vmatprep.subr.bf16.mxu0 %v4278
        %4861 = vmatpush1.bf16.msra.mxu0 %v4277
        %4862 = vmatprep.subr.bf16.mxu0 %v4284
        %4863 = vmatpush1.bf16.msra.mxu0 %v4283
        %4864 = vmatprep.subr.bf16.mxu0 %v4290
        %4865 = vmatpush1.bf16.msra.mxu0 %v4289
        %4866 = vmatprep.subr.bf16.mxu0 %v4296
        %4867 = vmatpush1.bf16.msra.mxu0 %v4295
        %4868 = vmatprep.subr.bf16.mxu0 %v4302
        %4869 = vmatpush1.bf16.msra.mxu0 %v4301
        %4870 = vmatprep.subr.bf16.mxu0 %v4308
        %4871 = vmatpush1.bf16.msra.mxu0 %v4307
        %4872 = vmatprep.subr.bf16.mxu0 %v4314
        %4873 = vmatpush1.bf16.msra.mxu0 %v4313
        %4874 = vmatprep.subr.bf16.mxu0 %v4320
        %4875 = vmatpush1.bf16.msra.mxu0 %v4319
        %4876 = vmatprep.subr.bf16.mxu0 %v4326
        %4877 = vmatpush1.bf16.msra.mxu0 %v4325
        %4878 = vmatprep.subr.bf16.mxu0 %v4332
        %4879 = vmatpush1.bf16.msra.mxu0 %v4331
        %4880 = vmatprep.subr.bf16.mxu0 %v4338
        %4881 = vmatpush1.bf16.msra.mxu0 %v4337
        %4882 = vmatprep.subr.bf16.mxu0 %v4344
        %4883 = vmatpush1.bf16.msra.mxu0 %v4343
        %4884 = vmatprep.subr.bf16.mxu0 %v4350
        %4885 = vmatpush1.bf16.msra.mxu0 %v4349
        %4886 = vmatprep.subr.bf16.mxu0 %v4356
        %4887 = vmatpush1.bf16.msra.mxu0 %v4355
        %4888 = vmatprep.subr.bf16.mxu0 %v4362
        %4889 = vmatpush1.bf16.msra.mxu0 %v4361
        %4890 = vmatprep.mubr.bf16.mxu0 %v2780
        %4891 = vmatmul.mubr.bf16.gmra.mrb[0].mxu0 %v2779
        %v4892 = vpop.f32.mrb[0].mxu0
        %v4893 = vadd.f32 %v4852, %v4892
        %v4894 = vpop.f32.mrb[0].mxu0
        %v4895 = vadd.f32 %v4854, %v4894
        %v4896 = vpop.f32.mrb[0].mxu0
        %v4897 = vpop.f32.mrb[0].mxu0
        %4898 = vdwg.mxu0
        %4899 = vmatprep.subr.bf16.mxu0 %v4082
        %4900 = vmatpush1.bf16.msra.mxu0 %v4081
        %4901 = vmatprep.subr.bf16.mxu0 %v4088
        %4902 = vmatpush1.bf16.msra.mxu0 %v4087
        %4903 = vmatprep.subr.bf16.mxu0 %v4094
        %4904 = vmatpush1.bf16.msra.mxu0 %v4093
        %4905 = vmatprep.subr.bf16.mxu0 %v4100
        %4906 = vmatpush1.bf16.msra.mxu0 %v4099
        %4907 = vmatprep.subr.bf16.mxu0 %v4106
        %4908 = vmatpush1.bf16.msra.mxu0 %v4105
        %4909 = vmatprep.subr.bf16.mxu0 %v4112
        %4910 = vmatpush1.bf16.msra.mxu0 %v4111
        %4911 = vmatprep.subr.bf16.mxu0 %v4118
        %4912 = vmatpush1.bf16.msra.mxu0 %v4117
        %4913 = vmatprep.subr.bf16.mxu0 %v4124
        %4914 = vmatpush1.bf16.msra.mxu0 %v4123
        %4915 = vmatprep.subr.bf16.mxu0 %v4130
        %4916 = vmatpush1.bf16.msra.mxu0 %v4129
        %4917 = vmatprep.subr.bf16.mxu0 %v4136
        %4918 = vmatpush1.bf16.msra.mxu0 %v4135
        %4919 = vmatprep.subr.bf16.mxu0 %v4142
        %4920 = vmatpush1.bf16.msra.mxu0 %v4141
        %4921 = vmatprep.subr.bf16.mxu0 %v4148
        %4922 = vmatpush1.bf16.msra.mxu0 %v4147
        %4923 = vmatprep.subr.bf16.mxu0 %v4154
        %4924 = vmatpush1.bf16.msra.mxu0 %v4153
        %4925 = vmatprep.subr.bf16.mxu0 %v4160
        %4926 = vmatpush1.bf16.msra.mxu0 %v4159
        %4927 = vmatprep.subr.bf16.mxu0 %v4166
        %4928 = vmatpush1.bf16.msra.mxu0 %v4165
        %4929 = vmatprep.subr.bf16.mxu0 %v4172
        %4930 = vmatpush1.bf16.msra.mxu0 %v4171
        %4931 = vmatprep.mubr.bf16.mxu0 %v2776
        %4932 = vmatmul.mubr.bf16.gmra.mrb[0].mxu0 %v2775
        %v4933 = vpop.f32.mrb[0].mxu0
        %v4934 = vadd.f32 0.0, %v4933
        %v4935 = vpop.f32.mrb[0].mxu0
        %v4936 = vadd.f32 0.0, %v4935
        %v4937 = vpop.f32.mrb[0].mxu0
        %v4938 = vpop.f32.mrb[0].mxu0
        %4939 = vdwg.mxu0
        %4940 = vmatprep.subr.bf16.mxu0 %v4178
        %4941 = vmatpush1.bf16.msra.mxu0 %v4177
        %4942 = vmatprep.subr.bf16.mxu0 %v4184
        %4943 = vmatpush1.bf16.msra.mxu0 %v4183
        %4944 = vmatprep.subr.bf16.mxu0 %v4190
        %4945 = vmatpush1.bf16.msra.mxu0 %v4189
        %4946 = vmatprep.subr.bf16.mxu0 %v4196
        %4947 = vmatpush1.bf16.msra.mxu0 %v4195
        %4948 = vmatprep.subr.bf16.mxu0 %v4202
        %4949 = vmatpush1.bf16.msra.mxu0 %v4201
        %4950 = vmatprep.subr.bf16.mxu0 %v4208
        %4951 = vmatpush1.bf16.msra.mxu0 %v4207
        %4952 = vmatprep.subr.bf16.mxu0 %v4214
        %4953 = vmatpush1.bf16.msra.mxu0 %v4213
        %4954 = vmatprep.subr.bf16.mxu0 %v4220
        %4955 = vmatpush1.bf16.msra.mxu0 %v4219
        %4956 = vmatprep.subr.bf16.mxu0 %v4226
        %4957 = vmatpush1.bf16.msra.mxu0 %v4225
        %4958 = vmatprep.subr.bf16.mxu0 %v4232
        %4959 = vmatpush1.bf16.msra.mxu0 %v4231
        %4960 = vmatprep.subr.bf16.mxu0 %v4238
        %4961 = vmatpush1.bf16.msra.mxu0 %v4237
        %4962 = vmatprep.subr.bf16.mxu0 %v4244
        %4963 = vmatpush1.bf16.msra.mxu0 %v4243
        %4964 = vmatprep.subr.bf16.mxu0 %v4250
        %4965 = vmatpush1.bf16.msra.mxu0 %v4249
        %4966 = vmatprep.subr.bf16.mxu0 %v4256
        %4967 = vmatpush1.bf16.msra.mxu0 %v4255
        %4968 = vmatprep.subr.bf16.mxu0 %v4262
        %4969 = vmatpush1.bf16.msra.mxu0 %v4261
        %4970 = vmatprep.subr.bf16.mxu0 %v4268
        %4971 = vmatpush1.bf16.msra.mxu0 %v4267
        %4972 = vmatprep.mubr.bf16.mxu0 %v2778
        %4973 = vmatmul.mubr.bf16.gmra.mrb[0].mxu0 %v2777
        %v4974 = vpop.f32.mrb[0].mxu0
        %v4975 = vadd.f32 %v4934, %v4974
        %v4976 = vpop.f32.mrb[0].mxu0
        %v4977 = vadd.f32 %v4936, %v4976
        %v4978 = vpop.f32.mrb[0].mxu0
        %v4979 = vpop.f32.mrb[0].mxu0
        %4980 = vdwg.mxu0
        %4981 = vmatprep.subr.bf16.mxu0 %v4274
        %4982 = vmatpush1.bf16.msra.mxu0 %v4273
        %4983 = vmatprep.subr.bf16.mxu0 %v4280
        %4984 = vmatpush1.bf16.msra.mxu0 %v4279
        %4985 = vmatprep.subr.bf16.mxu0 %v4286
        %4986 = vmatpush1.bf16.msra.mxu0 %v4285
        %4987 = vmatprep.subr.bf16.mxu0 %v4292
        %4988 = vmatpush1.bf16.msra.mxu0 %v4291
        %4989 = vmatprep.subr.bf16.mxu0 %v4298
        %4990 = vmatpush1.bf16.msra.mxu0 %v4297
        %4991 = vmatprep.subr.bf16.mxu0 %v4304
        %4992 = vmatpush1.bf16.msra.mxu0 %v4303
        %4993 = vmatprep.subr.bf16.mxu0 %v4310
        %4994 = vmatpush1.bf16.msra.mxu0 %v4309
        %4995 = vmatprep.subr.bf16.mxu0 %v4316
        %4996 = vmatpush1.bf16.msra.mxu0 %v4315
        %4997 = vmatprep.subr.bf16.mxu0 %v4322
        %4998 = vmatpush1.bf16.msra.mxu0 %v4321
        %4999 = vmatprep.subr.bf16.mxu0 %v4328
        %5000 = vmatpush1.bf16.msra.mxu0 %v4327
        %5001 = vmatprep.subr.bf16.mxu0 %v4334
        %5002 = vmatpush1.bf16.msra.mxu0 %v4333
        %5003 = vmatprep.subr.bf16.mxu0 %v4340
        %5004 = vmatpush1.bf16.msra.mxu0 %v4339
        %5005 = vmatprep.subr.bf16.mxu0 %v4346
        %5006 = vmatpush1.bf16.msra.mxu0 %v4345
        %5007 = vmatprep.subr.bf16.mxu0 %v4352
        %5008 = vmatpush1.bf16.msra.mxu0 %v4351
        %5009 = vmatprep.subr.bf16.mxu0 %v4358
        %5010 = vmatpush1.bf16.msra.mxu0 %v4357
        %5011 = vmatprep.subr.bf16.mxu0 %v4364
        %5012 = vmatpush1.bf16.msra.mxu0 %v4363
        %5013 = vmatprep.mubr.bf16.mxu0 %v2780
        %5014 = vmatmul.mubr.bf16.gmra.mrb[0].mxu0 %v2779
        %v5015 = vpop.f32.mrb[0].mxu0
        %v5016 = vadd.f32 %v4975, %v5015
        %v5017 = vpop.f32.mrb[0].mxu0
        %v5018 = vadd.f32 %v4977, %v5017
        %v5019 = vpop.f32.mrb[0].mxu0
        %v5020 = vpop.f32.mrb[0].mxu0
        %5021 = vdwg.mxu0
        %v5166 = vunpack.c.l.b16 %v2781
        %v5167 = vunpack.c.h.b16 %v2781
        %v5168 = vunpack.c.l.b16 %v2782
        %v5169 = vunpack.c.h.b16 %v2782
        %v5170 = vunpack.c.l.b16 %v2783
        %v5171 = vunpack.c.h.b16 %v2783
        %v5172 = vunpack.c.l.b16 %v2784
        %v5173 = vunpack.c.h.b16 %v2784
        %v5174 = vunpack.c.l.b16 %v2785
        %v5175 = vunpack.c.h.b16 %v2785
        %v5176 = vunpack.c.l.b16 %v2786
        %v5177 = vunpack.c.h.b16 %v2786
        %v5178 = vunpack.c.l.b16 %v2787
        %v5179 = vunpack.c.h.b16 %v2787
        %v5180 = vunpack.c.l.b16 %v2788
        %v5181 = vunpack.c.h.b16 %v2788
        %v5182 = vunpack.c.l.b16 %v2789
        %v5183 = vunpack.c.h.b16 %v2789
        %v5184 = vunpack.c.l.b16 %v2790
        %v5185 = vunpack.c.h.b16 %v2790
        %v5186 = vunpack.c.l.b16 %v2791
        %v5187 = vunpack.c.h.b16 %v2791
        %v5188 = vunpack.c.l.b16 %v2792
        %v5189 = vunpack.c.h.b16 %v2792
        %v5190 = vunpack.c.l.b16 %v2793
        %v5191 = vunpack.c.h.b16 %v2793
        %v5192 = vunpack.c.l.b16 %v2794
        %v5193 = vunpack.c.h.b16 %v2794
        %v5194 = vunpack.c.l.b16 %v2795
        %v5195 = vunpack.c.h.b16 %v2795
        %v5196 = vunpack.c.l.b16 %v2796
        %v5197 = vunpack.c.h.b16 %v2796
        %v5198 = vunpack.c.l.b16 %v2797
        %v5199 = vunpack.c.h.b16 %v2797
        %v5200 = vunpack.c.l.b16 %v2798
        %v5201 = vunpack.c.h.b16 %v2798
        %v5202 = vunpack.c.l.b16 %v2799
        %v5203 = vunpack.c.h.b16 %v2799
        %v5204 = vunpack.c.l.b16 %v2800
        %v5205 = vunpack.c.h.b16 %v2800
        %v5206 = vunpack.c.l.b16 %v2801
        %v5207 = vunpack.c.h.b16 %v2801
        %v5208 = vunpack.c.l.b16 %v2802
        %v5209 = vunpack.c.h.b16 %v2802
        %v5210 = vunpack.c.l.b16 %v2803
        %v5211 = vunpack.c.h.b16 %v2803
        %v5212 = vunpack.c.l.b16 %v2804
        %v5213 = vunpack.c.h.b16 %v2804
        %v5214 = vunpack.c.l.b16 %v2805
        %v5215 = vunpack.c.h.b16 %v2805
        %v5216 = vunpack.c.l.b16 %v2806
        %v5217 = vunpack.c.h.b16 %v2806
        %v5218 = vunpack.c.l.b16 %v2807
        %v5219 = vunpack.c.h.b16 %v2807
        %v5220 = vunpack.c.l.b16 %v2808
        %v5221 = vunpack.c.h.b16 %v2808
        %v5222 = vunpack.c.l.b16 %v2809
        %v5223 = vunpack.c.h.b16 %v2809
        %v5224 = vunpack.c.l.b16 %v2810
        %v5225 = vunpack.c.h.b16 %v2810
        %v5226 = vunpack.c.l.b16 %v2811
        %v5227 = vunpack.c.h.b16 %v2811
        %v5228 = vunpack.c.l.b16 %v2812
        %v5229 = vunpack.c.h.b16 %v2812
        %v5230 = vunpack.c.l.b16 %v2813
        %v5231 = vunpack.c.h.b16 %v2813
        %v5232 = vunpack.c.l.b16 %v2814
        %v5233 = vunpack.c.h.b16 %v2814
        %v5234 = vunpack.c.l.b16 %v2815
        %v5235 = vunpack.c.h.b16 %v2815
        %v5236 = vunpack.c.l.b16 %v2816
        %v5237 = vunpack.c.h.b16 %v2816
        %v5238 = vunpack.c.l.b16 %v2817
        %v5239 = vunpack.c.h.b16 %v2817
        %v5240 = vunpack.c.l.b16 %v2818
        %v5241 = vunpack.c.h.b16 %v2818
        %v5242 = vunpack.c.l.b16 %v2819
        %v5243 = vunpack.c.h.b16 %v2819
        %v5244 = vunpack.c.l.b16 %v2820
        %v5245 = vunpack.c.h.b16 %v2820
        %v5246 = vunpack.c.l.b16 %v2821
        %v5247 = vunpack.c.h.b16 %v2821
        %v5248 = vunpack.c.l.b16 %v2822
        %v5249 = vunpack.c.h.b16 %v2822
        %v5250 = vunpack.c.l.b16 %v2823
        %v5251 = vunpack.c.h.b16 %v2823
        %v5252 = vunpack.c.l.b16 %v2824
        %v5253 = vunpack.c.h.b16 %v2824
        %v5254 = vunpack.c.l.b16 %v2825
        %v5255 = vunpack.c.h.b16 %v2825
        %v5256 = vunpack.c.l.b16 %v2826
        %v5257 = vunpack.c.h.b16 %v2826
        %v5258 = vunpack.c.l.b16 %v2827
        %v5259 = vunpack.c.h.b16 %v2827
        %v5260 = vunpack.c.l.b16 %v2828
        %v5261 = vunpack.c.h.b16 %v2828
        %v5262 = vunpack.c.l.b16 %v2829
        %v5263 = vunpack.c.h.b16 %v2829
        %v5264 = vunpack.c.l.b16 %v2830
        %v5265 = vunpack.c.h.b16 %v2830
        %v5266 = vunpack.c.l.b16 %v2831
        %v5267 = vunpack.c.h.b16 %v2831
        %v5268 = vunpack.c.l.b16 %v2832
        %v5269 = vunpack.c.h.b16 %v2832
        %v5270 = vunpack.c.l.b16 %v2833
        %v5271 = vunpack.c.h.b16 %v2833
        %v5272 = vunpack.c.l.b16 %v2834
        %v5273 = vunpack.c.h.b16 %v2834
        %v5274 = vunpack.c.l.b16 %v2835
        %v5275 = vunpack.c.h.b16 %v2835
        %v5276 = vunpack.c.l.b16 %v2836
        %v5277 = vunpack.c.h.b16 %v2836
        %v5278 = vunpack.c.l.b16 %v2837
        %v5279 = vunpack.c.h.b16 %v2837
        %v5280 = vunpack.c.l.b16 %v2838
        %v5281 = vunpack.c.h.b16 %v2838
        %v5282 = vunpack.c.l.b16 %v2839
        %v5283 = vunpack.c.h.b16 %v2839
        %v5284 = vunpack.c.l.b16 %v2840
        %v5285 = vunpack.c.h.b16 %v2840
        %v5286 = vunpack.c.l.b16 %v2841
        %v5287 = vunpack.c.h.b16 %v2841
        %v5288 = vunpack.c.l.b16 %v2842
        %v5289 = vunpack.c.h.b16 %v2842
        %v5290 = vunpack.c.l.b16 %v2843
        %v5291 = vunpack.c.h.b16 %v2843
        %v5292 = vunpack.c.l.b16 %v2844
        %v5293 = vunpack.c.h.b16 %v2844
        %v5294 = vunpack.c.l.b16 %v2845
        %v5295 = vunpack.c.h.b16 %v2845
        %v5296 = vunpack.c.l.b16 %v2846
        %v5297 = vunpack.c.h.b16 %v2846
        %v5298 = vunpack.c.l.b16 %v2847
        %v5299 = vunpack.c.h.b16 %v2847
        %v5300 = vunpack.c.l.b16 %v2848
        %v5301 = vunpack.c.h.b16 %v2848
        %v5302 = vunpack.c.l.b16 %v2849
        %v5303 = vunpack.c.h.b16 %v2849
        %v5304 = vunpack.c.l.b16 %v2850
        %v5305 = vunpack.c.h.b16 %v2850
        %v5306 = vunpack.c.l.b16 %v2851
        %v5307 = vunpack.c.h.b16 %v2851
        %v5308 = vunpack.c.l.b16 %v2852
        %v5309 = vunpack.c.h.b16 %v2852
        %v5310 = vunpack.c.l.b16 %v2853
        %v5311 = vunpack.c.h.b16 %v2853
        %v5312 = vunpack.c.l.b16 %v2854
        %v5313 = vunpack.c.h.b16 %v2854
        %v5314 = vunpack.c.l.b16 %v2855
        %v5315 = vunpack.c.h.b16 %v2855
        %v5316 = vunpack.c.l.b16 %v2856
        %v5317 = vunpack.c.h.b16 %v2856
        %v5318 = vunpack.c.l.b16 %v2857
        %v5319 = vunpack.c.h.b16 %v2857
        %v5320 = vunpack.c.l.b16 %v2858
        %v5321 = vunpack.c.h.b16 %v2858
        %v5322 = vunpack.c.l.b16 %v2859
        %v5323 = vunpack.c.h.b16 %v2859
        %v5324 = vunpack.c.l.b16 %v2860
        %v5325 = vunpack.c.h.b16 %v2860
        %v5326 = vunpack.c.l.b16 %v2861
        %v5327 = vunpack.c.h.b16 %v2861
        %v5328 = vunpack.c.l.b16 %v2862
        %v5329 = vunpack.c.h.b16 %v2862
        %v5330 = vunpack.c.l.b16 %v2863
        %v5331 = vunpack.c.h.b16 %v2863
        %v5332 = vunpack.c.l.b16 %v2864
        %v5333 = vunpack.c.h.b16 %v2864
        %v5334 = vunpack.c.l.b16 %v2865
        %v5335 = vunpack.c.h.b16 %v2865
        %v5336 = vunpack.c.l.b16 %v2866
        %v5337 = vunpack.c.h.b16 %v2866
        %v5338 = vunpack.c.l.b16 %v2867
        %v5339 = vunpack.c.h.b16 %v2867
        %v5340 = vunpack.c.l.b16 %v2868
        %v5341 = vunpack.c.h.b16 %v2868
        %v5342 = vunpack.c.l.b16 %v2869
        %v5343 = vunpack.c.h.b16 %v2869
        %v5344 = vunpack.c.l.b16 %v2870
        %v5345 = vunpack.c.h.b16 %v2870
        %v5346 = vunpack.c.l.b16 %v2871
        %v5347 = vunpack.c.h.b16 %v2871
        %v5348 = vunpack.c.l.b16 %v2872
        %v5349 = vunpack.c.h.b16 %v2872
        %v5350 = vunpack.c.l.b16 %v2873
        %v5351 = vunpack.c.h.b16 %v2873
        %v5352 = vunpack.c.l.b16 %v2874
        %v5353 = vunpack.c.h.b16 %v2874
        %v5354 = vunpack.c.l.b16 %v2875
        %v5355 = vunpack.c.h.b16 %v2875
        %v5356 = vunpack.c.l.b16 %v2876
        %v5357 = vunpack.c.h.b16 %v2876
        %v5358 = vunpack.c.l.b16 %v2877
        %v5359 = vunpack.c.h.b16 %v2877
        %v5360 = vunpack.c.l.b16 %v2878
        %v5361 = vunpack.c.h.b16 %v2878
        %v5362 = vunpack.c.l.b16 %v2879
        %v5363 = vunpack.c.h.b16 %v2879
        %v5364 = vunpack.c.l.b16 %v2880
        %v5365 = vunpack.c.h.b16 %v2880
        %v5366 = vunpack.c.l.b16 %v2881
        %v5367 = vunpack.c.h.b16 %v2881
        %v5368 = vunpack.c.l.b16 %v2882
        %v5369 = vunpack.c.h.b16 %v2882
        %v5370 = vunpack.c.l.b16 %v2883
        %v5371 = vunpack.c.h.b16 %v2883
        %v5372 = vunpack.c.l.b16 %v2884
        %v5373 = vunpack.c.h.b16 %v2884
        %v5374 = vunpack.c.l.b16 %v2885
        %v5375 = vunpack.c.h.b16 %v2885
        %v5376 = vunpack.c.l.b16 %v2886
        %v5377 = vunpack.c.h.b16 %v2886
        %v5378 = vunpack.c.l.b16 %v2887
        %v5379 = vunpack.c.h.b16 %v2887
        %v5380 = vunpack.c.l.b16 %v2888
        %v5381 = vunpack.c.h.b16 %v2888
        %v5382 = vunpack.c.l.b16 %v2889
        %v5383 = vunpack.c.h.b16 %v2889
        %v5384 = vunpack.c.l.b16 %v2890
        %v5385 = vunpack.c.h.b16 %v2890
        %v5386 = vunpack.c.l.b16 %v2891
        %v5387 = vunpack.c.h.b16 %v2891
        %v5388 = vunpack.c.l.b16 %v2892
        %v5389 = vunpack.c.h.b16 %v2892
        %v5390 = vunpack.c.l.b16 %v2893
        %v5391 = vunpack.c.h.b16 %v2893
        %v5392 = vunpack.c.l.b16 %v2894
        %v5393 = vunpack.c.h.b16 %v2894
        %v5394 = vunpack.c.l.b16 %v2895
        %v5395 = vunpack.c.h.b16 %v2895
        %v5396 = vunpack.c.l.b16 %v2896
        %v5397 = vunpack.c.h.b16 %v2896
        %v5398 = vunpack.c.l.b16 %v2897
        %v5399 = vunpack.c.h.b16 %v2897
        %v5400 = vunpack.c.l.b16 %v2898
        %v5401 = vunpack.c.h.b16 %v2898
        %v5402 = vunpack.c.l.b16 %v2899
        %v5403 = vunpack.c.h.b16 %v2899
        %v5404 = vunpack.c.l.b16 %v2900
        %v5405 = vunpack.c.h.b16 %v2900
        %v5406 = vunpack.c.l.b16 %v2901
        %v5407 = vunpack.c.h.b16 %v2901
        %v5408 = vunpack.c.l.b16 %v2902
        %v5409 = vunpack.c.h.b16 %v2902
        %v5410 = vunpack.c.l.b16 %v2903
        %v5411 = vunpack.c.h.b16 %v2903
        %v5412 = vunpack.c.l.b16 %v2904
        %v5413 = vunpack.c.h.b16 %v2904
        %v5414 = vunpack.c.l.b16 %v2905
        %v5415 = vunpack.c.h.b16 %v2905
        %v5416 = vunpack.c.l.b16 %v2906
        %v5417 = vunpack.c.h.b16 %v2906
        %v5418 = vunpack.c.l.b16 %v2907
        %v5419 = vunpack.c.h.b16 %v2907
        %v5420 = vunpack.c.l.b16 %v2908
        %v5421 = vunpack.c.h.b16 %v2908
        %v5422 = vunpack.c.l.b16 %v2909
        %v5423 = vunpack.c.h.b16 %v2909
        %v5424 = vunpack.c.l.b16 %v2910
        %v5425 = vunpack.c.h.b16 %v2910
        %v5426 = vunpack.c.l.b16 %v2911
        %v5427 = vunpack.c.h.b16 %v2911
        %v5428 = vunpack.c.l.b16 %v2912
        %v5429 = vunpack.c.h.b16 %v2912
        %v5430 = vunpack.c.l.b16 %v2913
        %v5431 = vunpack.c.h.b16 %v2913
        %v5432 = vunpack.c.l.b16 %v2914
        %v5433 = vunpack.c.h.b16 %v2914
        %v5434 = vunpack.c.l.b16 %v2915
        %v5435 = vunpack.c.h.b16 %v2915
        %v5436 = vunpack.c.l.b16 %v2916
        %v5437 = vunpack.c.h.b16 %v2916
        %v5438 = vunpack.c.l.b16 %v2917
        %v5439 = vunpack.c.h.b16 %v2917
        %v5440 = vunpack.c.l.b16 %v2918
        %v5441 = vunpack.c.h.b16 %v2918
        %v5442 = vunpack.c.l.b16 %v2919
        %v5443 = vunpack.c.h.b16 %v2919
        %v5444 = vunpack.c.l.b16 %v2920
        %v5445 = vunpack.c.h.b16 %v2920
        %v5446 = vunpack.c.l.b16 %v2921
        %v5447 = vunpack.c.h.b16 %v2921
        %v5448 = vunpack.c.l.b16 %v2922
        %v5449 = vunpack.c.h.b16 %v2922
        %v5450 = vunpack.c.l.b16 %v2923
        %v5451 = vunpack.c.h.b16 %v2923
        %v5452 = vunpack.c.l.b16 %v2924
        %v5453 = vunpack.c.h.b16 %v2924
        %v5454 = vpack.c.b16 %v5172, %v5166
        %v5455 = vpack.c.b16 %v5173, %v5167
        %v5456 = vpack.c.b16 %v5174, %v5168
        %v5457 = vpack.c.b16 %v5175, %v5169
        %v5458 = vpack.c.b16 %v5176, %v5170
        %v5459 = vpack.c.b16 %v5177, %v5171
        %v5460 = vpack.c.b16 %v5184, %v5178
        %v5461 = vpack.c.b16 %v5185, %v5179
        %v5462 = vpack.c.b16 %v5186, %v5180
        %v5463 = vpack.c.b16 %v5187, %v5181
        %v5464 = vpack.c.b16 %v5188, %v5182
        %v5465 = vpack.c.b16 %v5189, %v5183
        %v5466 = vpack.c.b16 %v5196, %v5190
        %v5467 = vpack.c.b16 %v5197, %v5191
        %v5468 = vpack.c.b16 %v5198, %v5192
        %v5469 = vpack.c.b16 %v5199, %v5193
        %v5470 = vpack.c.b16 %v5200, %v5194
        %v5471 = vpack.c.b16 %v5201, %v5195
        %v5472 = vpack.c.b16 %v5208, %v5202
        %v5473 = vpack.c.b16 %v5209, %v5203
        %v5474 = vpack.c.b16 %v5210, %v5204
        %v5475 = vpack.c.b16 %v5211, %v5205
        %v5476 = vpack.c.b16 %v5212, %v5206
        %v5477 = vpack.c.b16 %v5213, %v5207
        %v5478 = vpack.c.b16 %v5220, %v5214
        %v5479 = vpack.c.b16 %v5221, %v5215
        %v5480 = vpack.c.b16 %v5222, %v5216
        %v5481 = vpack.c.b16 %v5223, %v5217
        %v5482 = vpack.c.b16 %v5224, %v5218
        %v5483 = vpack.c.b16 %v5225, %v5219
        %v5484 = vpack.c.b16 %v5232, %v5226
        %v5485 = vpack.c.b16 %v5233, %v5227
        %v5486 = vpack.c.b16 %v5234, %v5228
        %v5487 = vpack.c.b16 %v5235, %v5229
        %v5488 = vpack.c.b16 %v5236, %v5230
        %v5489 = vpack.c.b16 %v5237, %v5231
        %v5490 = vpack.c.b16 %v5244, %v5238
        %v5491 = vpack.c.b16 %v5245, %v5239
        %v5492 = vpack.c.b16 %v5246, %v5240
        %v5493 = vpack.c.b16 %v5247, %v5241
        %v5494 = vpack.c.b16 %v5248, %v5242
        %v5495 = vpack.c.b16 %v5249, %v5243
        %v5496 = vpack.c.b16 %v5256, %v5250
        %v5497 = vpack.c.b16 %v5257, %v5251
        %v5498 = vpack.c.b16 %v5258, %v5252
        %v5499 = vpack.c.b16 %v5259, %v5253
        %v5500 = vpack.c.b16 %v5260, %v5254
        %v5501 = vpack.c.b16 %v5261, %v5255
        %v5502 = vpack.c.b16 %v5268, %v5262
        %v5503 = vpack.c.b16 %v5269, %v5263
        %v5504 = vpack.c.b16 %v5270, %v5264
        %v5505 = vpack.c.b16 %v5271, %v5265
        %v5506 = vpack.c.b16 %v5272, %v5266
        %v5507 = vpack.c.b16 %v5273, %v5267
        %v5508 = vpack.c.b16 %v5280, %v5274
        %v5509 = vpack.c.b16 %v5281, %v5275
        %v5510 = vpack.c.b16 %v5282, %v5276
        %v5511 = vpack.c.b16 %v5283, %v5277
        %v5512 = vpack.c.b16 %v5284, %v5278
        %v5513 = vpack.c.b16 %v5285, %v5279
        %v5514 = vpack.c.b16 %v5292, %v5286
        %v5515 = vpack.c.b16 %v5293, %v5287
        %v5516 = vpack.c.b16 %v5294, %v5288
        %v5517 = vpack.c.b16 %v5295, %v5289
        %v5518 = vpack.c.b16 %v5296, %v5290
        %v5519 = vpack.c.b16 %v5297, %v5291
        %v5520 = vpack.c.b16 %v5304, %v5298
        %v5521 = vpack.c.b16 %v5305, %v5299
        %v5522 = vpack.c.b16 %v5306, %v5300
        %v5523 = vpack.c.b16 %v5307, %v5301
        %v5524 = vpack.c.b16 %v5308, %v5302
        %v5525 = vpack.c.b16 %v5309, %v5303
        %v5526 = vpack.c.b16 %v5316, %v5310
        %v5527 = vpack.c.b16 %v5317, %v5311
        %v5528 = vpack.c.b16 %v5318, %v5312
        %v5529 = vpack.c.b16 %v5319, %v5313
        %v5530 = vpack.c.b16 %v5320, %v5314
        %v5531 = vpack.c.b16 %v5321, %v5315
        %v5532 = vpack.c.b16 %v5328, %v5322
        %v5533 = vpack.c.b16 %v5329, %v5323
        %v5534 = vpack.c.b16 %v5330, %v5324
        %v5535 = vpack.c.b16 %v5331, %v5325
        %v5536 = vpack.c.b16 %v5332, %v5326
        %v5537 = vpack.c.b16 %v5333, %v5327
        %v5538 = vpack.c.b16 %v5340, %v5334
        %v5539 = vpack.c.b16 %v5341, %v5335
        %v5540 = vpack.c.b16 %v5342, %v5336
        %v5541 = vpack.c.b16 %v5343, %v5337
        %v5542 = vpack.c.b16 %v5344, %v5338
        %v5543 = vpack.c.b16 %v5345, %v5339
        %v5544 = vpack.c.b16 %v5352, %v5346
        %v5545 = vpack.c.b16 %v5353, %v5347
        %v5546 = vpack.c.b16 %v5354, %v5348
        %v5547 = vpack.c.b16 %v5355, %v5349
        %v5548 = vpack.c.b16 %v5356, %v5350
        %v5549 = vpack.c.b16 %v5357, %v5351
        %v5550 = vpack.c.b16 %v5364, %v5358
        %v5551 = vpack.c.b16 %v5365, %v5359
        %v5552 = vpack.c.b16 %v5366, %v5360
        %v5553 = vpack.c.b16 %v5367, %v5361
        %v5554 = vpack.c.b16 %v5368, %v5362
        %v5555 = vpack.c.b16 %v5369, %v5363
        %v5556 = vpack.c.b16 %v5376, %v5370
        %v5557 = vpack.c.b16 %v5377, %v5371
        %v5558 = vpack.c.b16 %v5378, %v5372
        %v5559 = vpack.c.b16 %v5379, %v5373
        %v5560 = vpack.c.b16 %v5380, %v5374
        %v5561 = vpack.c.b16 %v5381, %v5375
        %v5562 = vpack.c.b16 %v5388, %v5382
        %v5563 = vpack.c.b16 %v5389, %v5383
        %v5564 = vpack.c.b16 %v5390, %v5384
        %v5565 = vpack.c.b16 %v5391, %v5385
        %v5566 = vpack.c.b16 %v5392, %v5386
        %v5567 = vpack.c.b16 %v5393, %v5387
        %v5568 = vpack.c.b16 %v5400, %v5394
        %v5569 = vpack.c.b16 %v5401, %v5395
        %v5570 = vpack.c.b16 %v5402, %v5396
        %v5571 = vpack.c.b16 %v5403, %v5397
        %v5572 = vpack.c.b16 %v5404, %v5398
        %v5573 = vpack.c.b16 %v5405, %v5399
        %v5574 = vpack.c.b16 %v5412, %v5406
        %v5575 = vpack.c.b16 %v5413, %v5407
        %v5576 = vpack.c.b16 %v5414, %v5408
        %v5577 = vpack.c.b16 %v5415, %v5409
        %v5578 = vpack.c.b16 %v5416, %v5410
        %v5579 = vpack.c.b16 %v5417, %v5411
        %v5580 = vpack.c.b16 %v5424, %v5418
        %v5581 = vpack.c.b16 %v5425, %v5419
        %v5582 = vpack.c.b16 %v5426, %v5420
        %v5583 = vpack.c.b16 %v5427, %v5421
        %v5584 = vpack.c.b16 %v5428, %v5422
        %v5585 = vpack.c.b16 %v5429, %v5423
        %v5586 = vpack.c.b16 %v5436, %v5430
        %v5587 = vpack.c.b16 %v5437, %v5431
        %v5588 = vpack.c.b16 %v5438, %v5432
        %v5589 = vpack.c.b16 %v5439, %v5433
        %v5590 = vpack.c.b16 %v5440, %v5434
        %v5591 = vpack.c.b16 %v5441, %v5435
        %v5592 = vpack.c.b16 %v5448, %v5442
        %v5593 = vpack.c.b16 %v5449, %v5443
        %v5594 = vpack.c.b16 %v5450, %v5444
        %v5595 = vpack.c.b16 %v5451, %v5445
        %v5596 = vpack.c.b16 %v5452, %v5446
        %v5597 = vpack.c.b16 %v5453, %v5447
        %5742 = vmatprep.subr.bf16.mxu0 %v5455
        %5743 = vmatpush1.bf16.msra.mxu0 %v5454
        %5744 = vmatprep.subr.bf16.mxu0 %v5461
        %5745 = vmatpush1.bf16.msra.mxu0 %v5460
        %5746 = vmatprep.subr.bf16.mxu0 %v5467
        %5747 = vmatpush1.bf16.msra.mxu0 %v5466
        %5748 = vmatprep.subr.bf16.mxu0 %v5473
        %5749 = vmatpush1.bf16.msra.mxu0 %v5472
        %5750 = vmatprep.subr.bf16.mxu0 %v5479
        %5751 = vmatpush1.bf16.msra.mxu0 %v5478
        %5752 = vmatprep.subr.bf16.mxu0 %v5485
        %5753 = vmatpush1.bf16.msra.mxu0 %v5484
        %5754 = vmatprep.subr.bf16.mxu0 %v5491
        %5755 = vmatpush1.bf16.msra.mxu0 %v5490
        %5756 = vmatprep.subr.bf16.mxu0 %v5497
        %5757 = vmatpush1.bf16.msra.mxu0 %v5496
        %5758 = vmatprep.subr.bf16.mxu0 %v5503
        %5759 = vmatpush1.bf16.msra.mxu0 %v5502
        %5760 = vmatprep.subr.bf16.mxu0 %v5509
        %5761 = vmatpush1.bf16.msra.mxu0 %v5508
        %5762 = vmatprep.subr.bf16.mxu0 %v5515
        %5763 = vmatpush1.bf16.msra.mxu0 %v5514
        %5764 = vmatprep.subr.bf16.mxu0 %v5521
        %5765 = vmatpush1.bf16.msra.mxu0 %v5520
        %5766 = vmatprep.subr.bf16.mxu0 %v5527
        %5767 = vmatpush1.bf16.msra.mxu0 %v5526
        %5768 = vmatprep.subr.bf16.mxu0 %v5533
        %5769 = vmatpush1.bf16.msra.mxu0 %v5532
        %5770 = vmatprep.subr.bf16.mxu0 %v5539
        %5771 = vmatpush1.bf16.msra.mxu0 %v5538
        %5772 = vmatprep.subr.bf16.mxu0 %v5545
        %5773 = vmatpush1.bf16.msra.mxu0 %v5544
        %5774 = vmatprep.mubr.bf16.mxu0 %v2767
        %5775 = vmatmul.mubr.bf16.gmra.mrb[0].mxu0 %v2766
        %v5776 = vpop.f32.mrb[0].mxu0
        %v5777 = vadd.f32 %v4770, %v5776
        %v5778 = vpop.f32.mrb[0].mxu0
        %v5779 = vadd.f32 %v4772, %v5778
        %v5780 = vpop.f32.mrb[0].mxu0
        %v5781 = vpop.f32.mrb[0].mxu0
        %5782 = vdwg.mxu0
        %5783 = vmatprep.subr.bf16.mxu0 %v5551
        %5784 = vmatpush1.bf16.msra.mxu0 %v5550
        %5785 = vmatprep.subr.bf16.mxu0 %v5557
        %5786 = vmatpush1.bf16.msra.mxu0 %v5556
        %5787 = vmatprep.subr.bf16.mxu0 %v5563
        %5788 = vmatpush1.bf16.msra.mxu0 %v5562
        %5789 = vmatprep.subr.bf16.mxu0 %v5569
        %5790 = vmatpush1.bf16.msra.mxu0 %v5568
        %5791 = vmatprep.subr.bf16.mxu0 %v5575
        %5792 = vmatpush1.bf16.msra.mxu0 %v5574
        %5793 = vmatprep.subr.bf16.mxu0 %v5581
        %5794 = vmatpush1.bf16.msra.mxu0 %v5580
        %5795 = vmatprep.subr.bf16.mxu0 %v5587
        %5796 = vmatpush1.bf16.msra.mxu0 %v5586
        %5797 = vmatprep.subr.bf16.mxu0 %v5593
        %5798 = vmatpush1.bf16.msra.mxu0 %v5592
        %5799 = vmatprep.subr.bf16.mxu0 0
        %5800 = vmatpush1.bf16.msra.mxu0 0
        %5801 = vmatprep.subr.bf16.mxu0 0
        %5802 = vmatpush1.bf16.msra.mxu0 0
        %5803 = vmatprep.subr.bf16.mxu0 0
        %5804 = vmatpush1.bf16.msra.mxu0 0
        %5805 = vmatprep.subr.bf16.mxu0 0
        %5806 = vmatpush1.bf16.msra.mxu0 0
        %5807 = vmatprep.subr.bf16.mxu0 0
        %5808 = vmatpush1.bf16.msra.mxu0 0
        %5809 = vmatprep.subr.bf16.mxu0 0
        %5810 = vmatpush1.bf16.msra.mxu0 0
        %5811 = vmatprep.subr.bf16.mxu0 0
        %5812 = vmatpush1.bf16.msra.mxu0 0
        %5813 = vmatprep.subr.bf16.mxu0 0
        %5814 = vmatpush1.bf16.msra.mxu0 0
        %5815 = vmatprep.mubr.bf16.mxu0 0
        %5816 = vmatmul.mubr.bf16.gmra.mrb[0].mxu0 %v2768
        %v5817 = vpop.f32.mrb[0].mxu0
        %v5818 = vadd.f32 %v5777, %v5817
        %v5819 = vpop.f32.mrb[0].mxu0
        %v5820 = vadd.f32 %v5779, %v5819
        %v5821 = vpop.f32.mrb[0].mxu0
        %v5822 = vpop.f32.mrb[0].mxu0
        %5823 = vdwg.mxu0
        %5824 = vmatprep.subr.bf16.mxu0 %v5457
        %5825 = vmatpush1.bf16.msra.mxu0 %v5456
        %5826 = vmatprep.subr.bf16.mxu0 %v5463
        %5827 = vmatpush1.bf16.msra.mxu0 %v5462
        %5828 = vmatprep.subr.bf16.mxu0 %v5469
        %5829 = vmatpush1.bf16.msra.mxu0 %v5468
        %5830 = vmatprep.subr.bf16.mxu0 %v5475
        %5831 = vmatpush1.bf16.msra.mxu0 %v5474
        %5832 = vmatprep.subr.bf16.mxu0 %v5481
        %5833 = vmatpush1.bf16.msra.mxu0 %v5480
        %5834 = vmatprep.subr.bf16.mxu0 %v5487
        %5835 = vmatpush1.bf16.msra.mxu0 %v5486
        %5836 = vmatprep.subr.bf16.mxu0 %v5493
        %5837 = vmatpush1.bf16.msra.mxu0 %v5492
        %5838 = vmatprep.subr.bf16.mxu0 %v5499
        %5839 = vmatpush1.bf16.msra.mxu0 %v5498
        %5840 = vmatprep.subr.bf16.mxu0 %v5505
        %5841 = vmatpush1.bf16.msra.mxu0 %v5504
        %5842 = vmatprep.subr.bf16.mxu0 %v5511
        %5843 = vmatpush1.bf16.msra.mxu0 %v5510
        %5844 = vmatprep.subr.bf16.mxu0 %v5517
        %5845 = vmatpush1.bf16.msra.mxu0 %v5516
        %5846 = vmatprep.subr.bf16.mxu0 %v5523
        %5847 = vmatpush1.bf16.msra.mxu0 %v5522
        %5848 = vmatprep.subr.bf16.mxu0 %v5529
        %5849 = vmatpush1.bf16.msra.mxu0 %v5528
        %5850 = vmatprep.subr.bf16.mxu0 %v5535
        %5851 = vmatpush1.bf16.msra.mxu0 %v5534
        %5852 = vmatprep.subr.bf16.mxu0 %v5541
        %5853 = vmatpush1.bf16.msra.mxu0 %v5540
        %5854 = vmatprep.subr.bf16.mxu0 %v5547
        %5855 = vmatpush1.bf16.msra.mxu0 %v5546
        %5856 = vmatprep.mubr.bf16.mxu0 %v2767
        %5857 = vmatmul.mubr.bf16.gmra.mrb[0].mxu0 %v2766
        %v5858 = vpop.f32.mrb[0].mxu0
        %v5859 = vadd.f32 %v4893, %v5858
        %v5860 = vpop.f32.mrb[0].mxu0
        %v5861 = vadd.f32 %v4895, %v5860
        %v5862 = vpop.f32.mrb[0].mxu0
        %v5863 = vpop.f32.mrb[0].mxu0
        %5864 = vdwg.mxu0
        %5865 = vmatprep.subr.bf16.mxu0 %v5553
        %5866 = vmatpush1.bf16.msra.mxu0 %v5552
        %5867 = vmatprep.subr.bf16.mxu0 %v5559
        %5868 = vmatpush1.bf16.msra.mxu0 %v5558
        %5869 = vmatprep.subr.bf16.mxu0 %v5565
        %5870 = vmatpush1.bf16.msra.mxu0 %v5564
        %5871 = vmatprep.subr.bf16.mxu0 %v5571
        %5872 = vmatpush1.bf16.msra.mxu0 %v5570
        %5873 = vmatprep.subr.bf16.mxu0 %v5577
        %5874 = vmatpush1.bf16.msra.mxu0 %v5576
        %5875 = vmatprep.subr.bf16.mxu0 %v5583
        %5876 = vmatpush1.bf16.msra.mxu0 %v5582
        %5877 = vmatprep.subr.bf16.mxu0 %v5589
        %5878 = vmatpush1.bf16.msra.mxu0 %v5588
        %5879 = vmatprep.subr.bf16.mxu0 %v5595
        %5880 = vmatpush1.bf16.msra.mxu0 %v5594
        %5881 = vmatprep.subr.bf16.mxu0 0
        %5882 = vmatpush1.bf16.msra.mxu0 0
        %5883 = vmatprep.subr.bf16.mxu0 0
        %5884 = vmatpush1.bf16.msra.mxu0 0
        %5885 = vmatprep.subr.bf16.mxu0 0
        %5886 = vmatpush1.bf16.msra.mxu0 0
        %5887 = vmatprep.subr.bf16.mxu0 0
        %5888 = vmatpush1.bf16.msra.mxu0 0
        %5889 = vmatprep.subr.bf16.mxu0 0
        %5890 = vmatpush1.bf16.msra.mxu0 0
        %5891 = vmatprep.subr.bf16.mxu0 0
        %5892 = vmatpush1.bf16.msra.mxu0 0
        %5893 = vmatprep.subr.bf16.mxu0 0
        %5894 = vmatpush1.bf16.msra.mxu0 0
        %5895 = vmatprep.subr.bf16.mxu0 0
        %5896 = vmatpush1.bf16.msra.mxu0 0
        %5897 = vmatprep.mubr.bf16.mxu0 0
        %5898 = vmatmul.mubr.bf16.gmra.mrb[0].mxu0 %v2768
        %v5899 = vpop.f32.mrb[0].mxu0
        %v5900 = vadd.f32 %v5859, %v5899
        %v5901 = vpop.f32.mrb[0].mxu0
        %v5902 = vadd.f32 %v5861, %v5901
        %v5903 = vpop.f32.mrb[0].mxu0
        %v5904 = vpop.f32.mrb[0].mxu0
        %5905 = vdwg.mxu0
        %5906 = vmatprep.subr.bf16.mxu0 %v5459
        %5907 = vmatpush1.bf16.msra.mxu0 %v5458
        %5908 = vmatprep.subr.bf16.mxu0 %v5465
        %5909 = vmatpush1.bf16.msra.mxu0 %v5464
        %5910 = vmatprep.subr.bf16.mxu0 %v5471
        %5911 = vmatpush1.bf16.msra.mxu0 %v5470
        %5912 = vmatprep.subr.bf16.mxu0 %v5477
        %5913 = vmatpush1.bf16.msra.mxu0 %v5476
        %5914 = vmatprep.subr.bf16.mxu0 %v5483
        %5915 = vmatpush1.bf16.msra.mxu0 %v5482
        %5916 = vmatprep.subr.bf16.mxu0 %v5489
        %5917 = vmatpush1.bf16.msra.mxu0 %v5488
        %5918 = vmatprep.subr.bf16.mxu0 %v5495
        %5919 = vmatpush1.bf16.msra.mxu0 %v5494
        %5920 = vmatprep.subr.bf16.mxu0 %v5501
        %5921 = vmatpush1.bf16.msra.mxu0 %v5500
        %5922 = vmatprep.subr.bf16.mxu0 %v5507
        %5923 = vmatpush1.bf16.msra.mxu0 %v5506
        %5924 = vmatprep.subr.bf16.mxu0 %v5513
        %5925 = vmatpush1.bf16.msra.mxu0 %v5512
        %5926 = vmatprep.subr.bf16.mxu0 %v5519
        %5927 = vmatpush1.bf16.msra.mxu0 %v5518
        %5928 = vmatprep.subr.bf16.mxu0 %v5525
        %5929 = vmatpush1.bf16.msra.mxu0 %v5524
        %5930 = vmatprep.subr.bf16.mxu0 %v5531
        %5931 = vmatpush1.bf16.msra.mxu0 %v5530
        %5932 = vmatprep.subr.bf16.mxu0 %v5537
        %5933 = vmatpush1.bf16.msra.mxu0 %v5536
        %5934 = vmatprep.subr.bf16.mxu0 %v5543
        %5935 = vmatpush1.bf16.msra.mxu0 %v5542
        %5936 = vmatprep.subr.bf16.mxu0 %v5549
        %5937 = vmatpush1.bf16.msra.mxu0 %v5548
        %5938 = vmatprep.mubr.bf16.mxu0 %v2767
        %5939 = vmatmul.mubr.bf16.gmra.mrb[0].mxu0 %v2766
        %v5940 = vpop.f32.mrb[0].mxu0
        %v5941 = vadd.f32 %v5016, %v5940
        %v5942 = vpop.f32.mrb[0].mxu0
        %v5943 = vadd.f32 %v5018, %v5942
        %v5944 = vpop.f32.mrb[0].mxu0
        %v5945 = vpop.f32.mrb[0].mxu0
        %5946 = vdwg.mxu0
        %5947 = vmatprep.subr.bf16.mxu0 %v5555
        %5948 = vmatpush1.bf16.msra.mxu0 %v5554
        %5949 = vmatprep.subr.bf16.mxu0 %v5561
        %5950 = vmatpush1.bf16.msra.mxu0 %v5560
        %5951 = vmatprep.subr.bf16.mxu0 %v5567
        %5952 = vmatpush1.bf16.msra.mxu0 %v5566
        %5953 = vmatprep.subr.bf16.mxu0 %v5573
        %5954 = vmatpush1.bf16.msra.mxu0 %v5572
        %5955 = vmatprep.subr.bf16.mxu0 %v5579
        %5956 = vmatpush1.bf16.msra.mxu0 %v5578
        %5957 = vmatprep.subr.bf16.mxu0 %v5585
        %5958 = vmatpush1.bf16.msra.mxu0 %v5584
        %5959 = vmatprep.subr.bf16.mxu0 %v5591
        %5960 = vmatpush1.bf16.msra.mxu0 %v5590
        %5961 = vmatprep.subr.bf16.mxu0 %v5597
        %5962 = vmatpush1.bf16.msra.mxu0 %v5596
        %5963 = vmatprep.subr.bf16.mxu0 0
        %5964 = vmatpush1.bf16.msra.mxu0 0
        %5965 = vmatprep.subr.bf16.mxu0 0
        %5966 = vmatpush1.bf16.msra.mxu0 0
        %5967 = vmatprep.subr.bf16.mxu0 0
        %5968 = vmatpush1.bf16.msra.mxu0 0
        %5969 = vmatprep.subr.bf16.mxu0 0
        %5970 = vmatpush1.bf16.msra.mxu0 0
        %5971 = vmatprep.subr.bf16.mxu0 0
        %5972 = vmatpush1.bf16.msra.mxu0 0
        %5973 = vmatprep.subr.bf16.mxu0 0
        %5974 = vmatpush1.bf16.msra.mxu0 0
        %5975 = vmatprep.subr.bf16.mxu0 0
        %5976 = vmatpush1.bf16.msra.mxu0 0
        %5977 = vmatprep.subr.bf16.mxu0 0
        %5978 = vmatpush1.bf16.msra.mxu0 0
        %5979 = vmatprep.mubr.bf16.mxu0 0
        %5980 = vmatmul.mubr.bf16.gmra.mrb[0].mxu0 %v2768
        %v5981 = vpop.f32.mrb[0].mxu0
        %v5982 = vadd.f32 %v5941, %v5981
        %v5983 = vpop.f32.mrb[0].mxu0
        %v5984 = vadd.f32 %v5943, %v5983
        %v5985 = vpop.f32.mrb[0].mxu0
        %v5986 = vpop.f32.mrb[0].mxu0
        %5987 = vdwg.mxu0
        %v5988 = vld [vmem:[%s539] sm:$0x3f]
        %v5990 = vlaneseq
        %v5991 = vshrl.u32 %v5990, 7
        %v5992 = vsub.s32 0, %v5991
        %v5993 = vrot.slane %v5988, %v5992
        %v5994 = vlaneseq
        %v5995 = vshrl.u32 %v5994, 7
        %v5996 = vsub.s32 1, %v5995
        %v5997 = vrot.slane %v5988, %v5996
        %v5998 = vlaneseq
        %v5999 = vshrl.u32 %v5998, 7
        %v6000 = vsub.s32 2, %v5999
        %v6001 = vrot.slane %v5988, %v6000
        %v6002 = vlaneseq
        %v6003 = vshrl.u32 %v6002, 7
        %v6004 = vsub.s32 3, %v6003
        %v6005 = vrot.slane %v5988, %v6004
        %v6006 = vlaneseq
        %v6007 = vshrl.u32 %v6006, 7
        %v6008 = vsub.s32 4, %v6007
        %v6009 = vrot.slane %v5988, %v6008
        %v6010 = vlaneseq
        %v6011 = vshrl.u32 %v6010, 7
        %v6012 = vsub.s32 5, %v6011
        %v6013 = vrot.slane %v5988, %v6012
        %v6020 = vadd.f32 %v5818, %v5993
        %v6021 = vadd.f32 %v5820, %v5997
        %v6022 = vadd.f32 %v5900, %v6001
        %v6023 = vadd.f32 %v5902, %v6005
        %v6024 = vadd.f32 %v5982, %v6009
        %v6025 = vadd.f32 %v5984, %v6013
        %6026 = vst [vmem:[%s610] sm:$0xff] %v6020
        %6027 = vst [vmem:[%s610 + $0x8] sm:$0xff] %v6021
        %6028 = vst [vmem:[%s610 + $0x10] sm:$0xff] %v6022
        %6029 = vst [vmem:[%s610 + $0x18] sm:$0xff] %v6023
        %6030 = vst [vmem:[%s610 + $0x20] sm:$0xff] %v6024
        %6031 = vst [vmem:[%s610 + $0x28] sm:$0xff] %v6025
        %s6032 = scalar_lea.vmem %s600, 48
        %v6033 = vld [vmem:[%s6032] sm:$0xff]
        %v6034 = vld [vmem:[%s6032 + $0x8] sm:$0xff]
        %v6035 = vld [vmem:[%s6032 + $0x10] sm:$0xff]
        %v6036 = vld [vmem:[%s6032 + $0x18] sm:$0xff]
        %v6037 = vld [vmem:[%s6032 + $0x20] sm:$0xff]
        %v6038 = vld [vmem:[%s6032 + $0x28] sm:$0xff]
        %v6039 = vpack.c.bf16 %v6033, %v6033
        %v6040 = vpack.c.bf16 %v6034, %v6034
        %v6041 = vpack.c.bf16 %v6035, %v6035
        %v6042 = vpack.c.bf16 %v6036, %v6036
        %v6043 = vpack.c.bf16 %v6037, %v6037
        %v6044 = vpack.c.bf16 %v6038, %v6038
        %s6045 = scalar_lea.vmem %s521, 1152 [#allocation13]
        %v6046 = vld [vmem:[%s6045] sm:$0xff]
        %v6047 = vld [vmem:[%s6045 + $0x8] sm:$0xff]
        %v6048 = vld [vmem:[%s6045 + $0x10] sm:$0xff]
        %v6049 = vld [vmem:[%s6045 + $0x18] sm:$0xff]
        %v6050 = vld [vmem:[%s6045 + $0x20] sm:$0xff]
        %v6051 = vld [vmem:[%s6045 + $0x28] sm:$0xff]
        %v6052 = vld [vmem:[%s6045 + $0x30] sm:$0xff]
        %v6053 = vld [vmem:[%s6045 + $0x38] sm:$0xff]
        %v6054 = vld [vmem:[%s6045 + $0x40] sm:$0xff]
        %v6055 = vld [vmem:[%s6045 + $0x48] sm:$0xff]
        %v6056 = vld [vmem:[%s6045 + $0x50] sm:$0xff]
        %v6057 = vld [vmem:[%s6045 + $0x58] sm:$0xff]
        %v6058 = vld [vmem:[%s6045 + $0x60] sm:$0xff]
        %v6059 = vld [vmem:[%s6045 + $0x68] sm:$0xff]
        %v6060 = vld [vmem:[%s6045 + $0x70] sm:$0xff]
        %v6061 = vld [vmem:[%s6045 + $0x78] sm:$0xff]
        %v6062 = vld [vmem:[%s6045 + $0x80] sm:$0xff]
        %v6063 = vld [vmem:[%s6045 + $0x88] sm:$0xff]
        %v6064 = vld [vmem:[%s6045 + $0x90] sm:$0xff]
        %v6065 = vld [vmem:[%s6045 + $0x98] sm:$0xff]
        %v6066 = vld [vmem:[%s6045 + $0xa0] sm:$0xff]
        %v6067 = vld [vmem:[%s6045 + $0xa8] sm:$0xff]
        %v6068 = vld [vmem:[%s6045 + $0xb0] sm:$0xff]
        %v6069 = vld [vmem:[%s6045 + $0xb8] sm:$0xff]
        %v6070 = vld [vmem:[%s6045 + $0xc0] sm:$0xff]
        %v6071 = vld [vmem:[%s6045 + $0xc8] sm:$0xff]
        %v6072 = vld [vmem:[%s6045 + $0xd0] sm:$0xff]
        %v6073 = vld [vmem:[%s6045 + $0xd8] sm:$0xff]
        %v6074 = vld [vmem:[%s6045 + $0xe0] sm:$0xff]
        %v6075 = vld [vmem:[%s6045 + $0xe8] sm:$0xff]
        %v6076 = vld [vmem:[%s6045 + $0xf0] sm:$0xff]
        %v6077 = vld [vmem:[%s6045 + $0xf8] sm:$0xff]
        %v6078 = vld [vmem:[%s6045 + $0x100] sm:$0xff]
        %v6079 = vld [vmem:[%s6045 + $0x108] sm:$0xff]
        %v6080 = vld [vmem:[%s6045 + $0x110] sm:$0xff]
        %v6081 = vld [vmem:[%s6045 + $0x118] sm:$0xff]
        %v6082 = vld [vmem:[%s6045 + $0x120] sm:$0xff]
        %v6083 = vld [vmem:[%s6045 + $0x128] sm:$0xff]
        %v6084 = vld [vmem:[%s6045 + $0x130] sm:$0xff]
        %v6085 = vld [vmem:[%s6045 + $0x138] sm:$0xff]
        %v6086 = vld [vmem:[%s6045 + $0x140] sm:$0xff]
        %v6087 = vld [vmem:[%s6045 + $0x148] sm:$0xff]
        %v6088 = vld [vmem:[%s6045 + $0x150] sm:$0xff]
        %v6089 = vld [vmem:[%s6045 + $0x158] sm:$0xff]
        %v6090 = vld [vmem:[%s6045 + $0x160] sm:$0xff]
        %v6091 = vld [vmem:[%s6045 + $0x168] sm:$0xff]
        %v6092 = vld [vmem:[%s6045 + $0x170] sm:$0xff]
        %v6093 = vld [vmem:[%s6045 + $0x178] sm:$0xff]
        %v6094 = vld [vmem:[%s6045 + $0x180] sm:$0xff]
        %v6095 = vld [vmem:[%s6045 + $0x188] sm:$0xff]
        %v6096 = vld [vmem:[%s6045 + $0x190] sm:$0xff]
        %v6097 = vld [vmem:[%s6045 + $0x198] sm:$0xff]
        %v6098 = vld [vmem:[%s6045 + $0x1a0] sm:$0xff]
        %v6099 = vld [vmem:[%s6045 + $0x1a8] sm:$0xff]
        %v6100 = vld [vmem:[%s6045 + $0x1b0] sm:$0xff]
        %v6101 = vld [vmem:[%s6045 + $0x1b8] sm:$0xff]
        %v6102 = vld [vmem:[%s6045 + $0x1c0] sm:$0xff]
        %v6103 = vld [vmem:[%s6045 + $0x1c8] sm:$0xff]
        %v6104 = vld [vmem:[%s6045 + $0x1d0] sm:$0xff]
        %v6105 = vld [vmem:[%s6045 + $0x1d8] sm:$0xff]
        %v6106 = vld [vmem:[%s6045 + $0x1e0] sm:$0xff]
        %v6107 = vld [vmem:[%s6045 + $0x1e8] sm:$0xff]
        %v6108 = vld [vmem:[%s6045 + $0x1f0] sm:$0xff]
        %v6109 = vld [vmem:[%s6045 + $0x1f8] sm:$0xff]
        %v6110 = vld [vmem:[%s6045 + $0x200] sm:$0xff]
        %v6111 = vld [vmem:[%s6045 + $0x208] sm:$0xff]
        %v6112 = vld [vmem:[%s6045 + $0x210] sm:$0xff]
        %v6113 = vld [vmem:[%s6045 + $0x218] sm:$0xff]
        %v6114 = vld [vmem:[%s6045 + $0x220] sm:$0xff]
        %v6115 = vld [vmem:[%s6045 + $0x228] sm:$0xff]
        %v6116 = vld [vmem:[%s6045 + $0x230] sm:$0xff]
        %v6117 = vld [vmem:[%s6045 + $0x238] sm:$0xff]
        %v6118 = vld [vmem:[%s6045 + $0x240] sm:$0xff]
        %v6119 = vld [vmem:[%s6045 + $0x248] sm:$0xff]
        %v6120 = vld [vmem:[%s6045 + $0x250] sm:$0xff]
        %v6121 = vld [vmem:[%s6045 + $0x258] sm:$0xff]
        %v6122 = vld [vmem:[%s6045 + $0x260] sm:$0xff]
        %v6123 = vld [vmem:[%s6045 + $0x268] sm:$0xff]
        %v6124 = vld [vmem:[%s6045 + $0x270] sm:$0xff]
        %v6125 = vld [vmem:[%s6045 + $0x278] sm:$0xff]
        %v6126 = vld [vmem:[%s6045 + $0x280] sm:$0xff]
        %v6127 = vld [vmem:[%s6045 + $0x288] sm:$0xff]
        %v6128 = vld [vmem:[%s6045 + $0x290] sm:$0xff]
        %v6129 = vld [vmem:[%s6045 + $0x298] sm:$0xff]
        %v6130 = vld [vmem:[%s6045 + $0x2a0] sm:$0xff]
        %v6131 = vld [vmem:[%s6045 + $0x2a8] sm:$0xff]
        %v6132 = vld [vmem:[%s6045 + $0x2b0] sm:$0xff]
        %v6133 = vld [vmem:[%s6045 + $0x2b8] sm:$0xff]
        %v6134 = vld [vmem:[%s6045 + $0x2c0] sm:$0xff]
        %v6135 = vld [vmem:[%s6045 + $0x2c8] sm:$0xff]
        %v6136 = vld [vmem:[%s6045 + $0x2d0] sm:$0xff]
        %v6137 = vld [vmem:[%s6045 + $0x2d8] sm:$0xff]
        %v6138 = vld [vmem:[%s6045 + $0x2e0] sm:$0xff]
        %v6139 = vld [vmem:[%s6045 + $0x2e8] sm:$0xff]
        %v6140 = vld [vmem:[%s6045 + $0x2f0] sm:$0xff]
        %v6141 = vld [vmem:[%s6045 + $0x2f8] sm:$0xff]
        %v6142 = vld [vmem:[%s6045 + $0x300] sm:$0xff]
        %v6143 = vld [vmem:[%s6045 + $0x308] sm:$0xff]
        %v6144 = vld [vmem:[%s6045 + $0x310] sm:$0xff]
        %v6145 = vld [vmem:[%s6045 + $0x318] sm:$0xff]
        %v6146 = vld [vmem:[%s6045 + $0x320] sm:$0xff]
        %v6147 = vld [vmem:[%s6045 + $0x328] sm:$0xff]
        %v6148 = vld [vmem:[%s6045 + $0x330] sm:$0xff]
        %v6149 = vld [vmem:[%s6045 + $0x338] sm:$0xff]
        %v6150 = vld [vmem:[%s6045 + $0x340] sm:$0xff]
        %v6151 = vld [vmem:[%s6045 + $0x348] sm:$0xff]
        %v6152 = vld [vmem:[%s6045 + $0x350] sm:$0xff]
        %v6153 = vld [vmem:[%s6045 + $0x358] sm:$0xff]
        %v6154 = vld [vmem:[%s6045 + $0x360] sm:$0xff]
        %v6155 = vld [vmem:[%s6045 + $0x368] sm:$0xff]
        %v6156 = vld [vmem:[%s6045 + $0x370] sm:$0xff]
        %v6157 = vld [vmem:[%s6045 + $0x378] sm:$0xff]
        %v6158 = vld [vmem:[%s6045 + $0x380] sm:$0xff]
        %v6159 = vld [vmem:[%s6045 + $0x388] sm:$0xff]
        %v6160 = vld [vmem:[%s6045 + $0x390] sm:$0xff]
        %v6161 = vld [vmem:[%s6045 + $0x398] sm:$0xff]
        %v6162 = vld [vmem:[%s6045 + $0x3a0] sm:$0xff]
        %v6163 = vld [vmem:[%s6045 + $0x3a8] sm:$0xff]
        %v6164 = vld [vmem:[%s6045 + $0x3b0] sm:$0xff]
        %v6165 = vld [vmem:[%s6045 + $0x3b8] sm:$0xff]
        %v6166 = vld [vmem:[%s6045 + $0x3c0] sm:$0xff]
        %v6167 = vld [vmem:[%s6045 + $0x3c8] sm:$0xff]
        %v6168 = vld [vmem:[%s6045 + $0x3d0] sm:$0xff]
        %v6169 = vld [vmem:[%s6045 + $0x3d8] sm:$0xff]
        %v6170 = vld [vmem:[%s6045 + $0x3e0] sm:$0xff]
        %v6171 = vld [vmem:[%s6045 + $0x3e8] sm:$0xff]
        %v6172 = vld [vmem:[%s6045 + $0x3f0] sm:$0xff]
        %v6173 = vld [vmem:[%s6045 + $0x3f8] sm:$0xff]
        %v6174 = vld [vmem:[%s6045 + $0x400] sm:$0xff]
        %v6175 = vld [vmem:[%s6045 + $0x408] sm:$0xff]
        %v6176 = vld [vmem:[%s6045 + $0x410] sm:$0xff]
        %v6177 = vld [vmem:[%s6045 + $0x418] sm:$0xff]
        %v6178 = vld [vmem:[%s6045 + $0x420] sm:$0xff]
        %v6179 = vld [vmem:[%s6045 + $0x428] sm:$0xff]
        %v6180 = vld [vmem:[%s6045 + $0x430] sm:$0xff]
        %v6181 = vld [vmem:[%s6045 + $0x438] sm:$0xff]
        %v6182 = vld [vmem:[%s6045 + $0x440] sm:$0xff]
        %v6183 = vld [vmem:[%s6045 + $0x448] sm:$0xff]
        %v6184 = vld [vmem:[%s6045 + $0x450] sm:$0xff]
        %v6185 = vld [vmem:[%s6045 + $0x458] sm:$0xff]
        %v6186 = vld [vmem:[%s6045 + $0x460] sm:$0xff]
        %v6187 = vld [vmem:[%s6045 + $0x468] sm:$0xff]
        %v6188 = vld [vmem:[%s6045 + $0x470] sm:$0xff]
        %v6189 = vld [vmem:[%s6045 + $0x478] sm:$0xff]
        %s6190 = scalar_lea.vmem %s530, 2304 [#allocation15]
        %v6191 = vld [vmem:[%s6190] sm:$0xff]
        %v6192 = vld [vmem:[%s6190 + $0x8] sm:$0xff]
        %v6193 = vld [vmem:[%s6190 + $0x10] sm:$0xff]
        %v6194 = vld [vmem:[%s6190 + $0x18] sm:$0xff]
        %v6195 = vld [vmem:[%s6190 + $0x20] sm:$0xff]
        %v6196 = vld [vmem:[%s6190 + $0x28] sm:$0xff]
        %v6197 = vld [vmem:[%s6190 + $0x30] sm:$0xff]
        %v6198 = vld [vmem:[%s6190 + $0x38] sm:$0xff]
        %v6199 = vld [vmem:[%s6190 + $0x40] sm:$0xff]
        %v6200 = vld [vmem:[%s6190 + $0x48] sm:$0xff]
        %v6201 = vld [vmem:[%s6190 + $0x50] sm:$0xff]
        %v6202 = vld [vmem:[%s6190 + $0x58] sm:$0xff]
        %v6203 = vld [vmem:[%s6190 + $0x60] sm:$0xff]
        %v6204 = vld [vmem:[%s6190 + $0x68] sm:$0xff]
        %v6205 = vld [vmem:[%s6190 + $0x70] sm:$0xff]
        %v6206 = vld [vmem:[%s6190 + $0x78] sm:$0xff]
        %v6207 = vld [vmem:[%s6190 + $0x80] sm:$0xff]
        %v6208 = vld [vmem:[%s6190 + $0x88] sm:$0xff]
        %v6209 = vld [vmem:[%s6190 + $0x90] sm:$0xff]
        %v6210 = vld [vmem:[%s6190 + $0x98] sm:$0xff]
        %v6211 = vld [vmem:[%s6190 + $0xa0] sm:$0xff]
        %v6212 = vld [vmem:[%s6190 + $0xa8] sm:$0xff]
        %v6213 = vld [vmem:[%s6190 + $0xb0] sm:$0xff]
        %v6214 = vld [vmem:[%s6190 + $0xb8] sm:$0xff]
        %v6215 = vld [vmem:[%s6190 + $0xc0] sm:$0xff]
        %v6216 = vld [vmem:[%s6190 + $0xc8] sm:$0xff]
        %v6217 = vld [vmem:[%s6190 + $0xd0] sm:$0xff]
        %v6218 = vld [vmem:[%s6190 + $0xd8] sm:$0xff]
        %v6219 = vld [vmem:[%s6190 + $0xe0] sm:$0xff]
        %v6220 = vld [vmem:[%s6190 + $0xe8] sm:$0xff]
        %v6221 = vld [vmem:[%s6190 + $0xf0] sm:$0xff]
        %v6222 = vld [vmem:[%s6190 + $0xf8] sm:$0xff]
        %v6223 = vld [vmem:[%s6190 + $0x100] sm:$0xff]
        %v6224 = vld [vmem:[%s6190 + $0x108] sm:$0xff]
        %v6225 = vld [vmem:[%s6190 + $0x110] sm:$0xff]
        %v6226 = vld [vmem:[%s6190 + $0x118] sm:$0xff]
        %v6227 = vld [vmem:[%s6190 + $0x120] sm:$0xff]
        %v6228 = vld [vmem:[%s6190 + $0x128] sm:$0xff]
        %v6229 = vld [vmem:[%s6190 + $0x130] sm:$0xff]
        %v6230 = vld [vmem:[%s6190 + $0x138] sm:$0xff]
        %v6231 = vld [vmem:[%s6190 + $0x140] sm:$0xff]
        %v6232 = vld [vmem:[%s6190 + $0x148] sm:$0xff]
        %v6233 = vld [vmem:[%s6190 + $0x150] sm:$0xff]
        %v6234 = vld [vmem:[%s6190 + $0x158] sm:$0xff]
        %v6235 = vld [vmem:[%s6190 + $0x160] sm:$0xff]
        %v6236 = vld [vmem:[%s6190 + $0x168] sm:$0xff]
        %v6237 = vld [vmem:[%s6190 + $0x170] sm:$0xff]
        %v6238 = vld [vmem:[%s6190 + $0x178] sm:$0xff]
        %v6239 = vld [vmem:[%s6190 + $0x180] sm:$0xff]
        %v6240 = vld [vmem:[%s6190 + $0x188] sm:$0xff]
        %v6241 = vld [vmem:[%s6190 + $0x190] sm:$0xff]
        %v6242 = vld [vmem:[%s6190 + $0x198] sm:$0xff]
        %v6243 = vld [vmem:[%s6190 + $0x1a0] sm:$0xff]
        %v6244 = vld [vmem:[%s6190 + $0x1a8] sm:$0xff]
        %v6245 = vld [vmem:[%s6190 + $0x1b0] sm:$0xff]
        %v6246 = vld [vmem:[%s6190 + $0x1b8] sm:$0xff]
        %v6247 = vld [vmem:[%s6190 + $0x1c0] sm:$0xff]
        %v6248 = vld [vmem:[%s6190 + $0x1c8] sm:$0xff]
        %v6249 = vld [vmem:[%s6190 + $0x1d0] sm:$0xff]
        %v6250 = vld [vmem:[%s6190 + $0x1d8] sm:$0xff]
        %v6251 = vld [vmem:[%s6190 + $0x1e0] sm:$0xff]
        %v6252 = vld [vmem:[%s6190 + $0x1e8] sm:$0xff]
        %v6253 = vld [vmem:[%s6190 + $0x1f0] sm:$0xff]
        %v6254 = vld [vmem:[%s6190 + $0x1f8] sm:$0xff]
        %v6255 = vld [vmem:[%s6190 + $0x200] sm:$0xff]
        %v6256 = vld [vmem:[%s6190 + $0x208] sm:$0xff]
        %v6257 = vld [vmem:[%s6190 + $0x210] sm:$0xff]
        %v6258 = vld [vmem:[%s6190 + $0x218] sm:$0xff]
        %v6259 = vld [vmem:[%s6190 + $0x220] sm:$0xff]
        %v6260 = vld [vmem:[%s6190 + $0x228] sm:$0xff]
        %v6261 = vld [vmem:[%s6190 + $0x230] sm:$0xff]
        %v6262 = vld [vmem:[%s6190 + $0x238] sm:$0xff]
        %v6263 = vld [vmem:[%s6190 + $0x240] sm:$0xff]
        %v6264 = vld [vmem:[%s6190 + $0x248] sm:$0xff]
        %v6265 = vld [vmem:[%s6190 + $0x250] sm:$0xff]
        %v6266 = vld [vmem:[%s6190 + $0x258] sm:$0xff]
        %v6267 = vld [vmem:[%s6190 + $0x260] sm:$0xff]
        %v6268 = vld [vmem:[%s6190 + $0x268] sm:$0xff]
        %v6269 = vld [vmem:[%s6190 + $0x270] sm:$0xff]
        %v6270 = vld [vmem:[%s6190 + $0x278] sm:$0xff]
        %v6271 = vld [vmem:[%s6190 + $0x280] sm:$0xff]
        %v6272 = vld [vmem:[%s6190 + $0x288] sm:$0xff]
        %v6273 = vld [vmem:[%s6190 + $0x290] sm:$0xff]
        %v6274 = vld [vmem:[%s6190 + $0x298] sm:$0xff]
        %v6275 = vld [vmem:[%s6190 + $0x2a0] sm:$0xff]
        %v6276 = vld [vmem:[%s6190 + $0x2a8] sm:$0xff]
        %v6277 = vld [vmem:[%s6190 + $0x2b0] sm:$0xff]
        %v6278 = vld [vmem:[%s6190 + $0x2b8] sm:$0xff]
        %v6279 = vld [vmem:[%s6190 + $0x2c0] sm:$0xff]
        %v6280 = vld [vmem:[%s6190 + $0x2c8] sm:$0xff]
        %v6281 = vld [vmem:[%s6190 + $0x2d0] sm:$0xff]
        %v6282 = vld [vmem:[%s6190 + $0x2d8] sm:$0xff]
        %v6283 = vld [vmem:[%s6190 + $0x2e0] sm:$0xff]
        %v6284 = vld [vmem:[%s6190 + $0x2e8] sm:$0xff]
        %v6285 = vld [vmem:[%s6190 + $0x2f0] sm:$0xff]
        %v6286 = vld [vmem:[%s6190 + $0x2f8] sm:$0xff]
        %v6287 = vld [vmem:[%s6190 + $0x300] sm:$0xff]
        %v6288 = vld [vmem:[%s6190 + $0x308] sm:$0xff]
        %v6289 = vld [vmem:[%s6190 + $0x310] sm:$0xff]
        %v6290 = vld [vmem:[%s6190 + $0x318] sm:$0xff]
        %v6291 = vld [vmem:[%s6190 + $0x320] sm:$0xff]
        %v6292 = vld [vmem:[%s6190 + $0x328] sm:$0xff]
        %v6293 = vld [vmem:[%s6190 + $0x330] sm:$0xff]
        %v6294 = vld [vmem:[%s6190 + $0x338] sm:$0xff]
        %v6295 = vld [vmem:[%s6190 + $0x340] sm:$0xff]
        %v6296 = vld [vmem:[%s6190 + $0x348] sm:$0xff]
        %v6297 = vld [vmem:[%s6190 + $0x350] sm:$0xff]
        %v6298 = vld [vmem:[%s6190 + $0x358] sm:$0xff]
        %v6299 = vld [vmem:[%s6190 + $0x360] sm:$0xff]
        %v6300 = vld [vmem:[%s6190 + $0x368] sm:$0xff]
        %v6301 = vld [vmem:[%s6190 + $0x370] sm:$0xff]
        %v6302 = vld [vmem:[%s6190 + $0x378] sm:$0xff]
        %v6303 = vld [vmem:[%s6190 + $0x380] sm:$0xff]
        %v6304 = vld [vmem:[%s6190 + $0x388] sm:$0xff]
        %v6305 = vld [vmem:[%s6190 + $0x390] sm:$0xff]
        %v6306 = vld [vmem:[%s6190 + $0x398] sm:$0xff]
        %v6307 = vld [vmem:[%s6190 + $0x3a0] sm:$0xff]
        %v6308 = vld [vmem:[%s6190 + $0x3a8] sm:$0xff]
        %v6309 = vld [vmem:[%s6190 + $0x3b0] sm:$0xff]
        %v6310 = vld [vmem:[%s6190 + $0x3b8] sm:$0xff]
        %v6311 = vld [vmem:[%s6190 + $0x3c0] sm:$0xff]
        %v6312 = vld [vmem:[%s6190 + $0x3c8] sm:$0xff]
        %v6313 = vld [vmem:[%s6190 + $0x3d0] sm:$0xff]
        %v6314 = vld [vmem:[%s6190 + $0x3d8] sm:$0xff]
        %v6315 = vld [vmem:[%s6190 + $0x3e0] sm:$0xff]
        %v6316 = vld [vmem:[%s6190 + $0x3e8] sm:$0xff]
        %v6317 = vld [vmem:[%s6190 + $0x3f0] sm:$0xff]
        %v6318 = vld [vmem:[%s6190 + $0x3f8] sm:$0xff]
        %v6319 = vld [vmem:[%s6190 + $0x400] sm:$0xff]
        %v6320 = vld [vmem:[%s6190 + $0x408] sm:$0xff]
        %v6321 = vld [vmem:[%s6190 + $0x410] sm:$0xff]
        %v6322 = vld [vmem:[%s6190 + $0x418] sm:$0xff]
        %v6323 = vld [vmem:[%s6190 + $0x420] sm:$0xff]
        %v6324 = vld [vmem:[%s6190 + $0x428] sm:$0xff]
        %v6325 = vld [vmem:[%s6190 + $0x430] sm:$0xff]
        %v6326 = vld [vmem:[%s6190 + $0x438] sm:$0xff]
        %v6327 = vld [vmem:[%s6190 + $0x440] sm:$0xff]
        %v6328 = vld [vmem:[%s6190 + $0x448] sm:$0xff]
        %v6329 = vld [vmem:[%s6190 + $0x450] sm:$0xff]
        %v6330 = vld [vmem:[%s6190 + $0x458] sm:$0xff]
        %v6331 = vld [vmem:[%s6190 + $0x460] sm:$0xff]
        %v6332 = vld [vmem:[%s6190 + $0x468] sm:$0xff]
        %v6333 = vld [vmem:[%s6190 + $0x470] sm:$0xff]
        %v6334 = vld [vmem:[%s6190 + $0x478] sm:$0xff]
        %v6335 = vld [vmem:[%s6190 + $0x480] sm:$0xff]
        %v6336 = vld [vmem:[%s6190 + $0x488] sm:$0xff]
        %v6337 = vld [vmem:[%s6190 + $0x490] sm:$0xff]
        %v6338 = vld [vmem:[%s6190 + $0x498] sm:$0xff]
        %v6339 = vld [vmem:[%s6190 + $0x4a0] sm:$0xff]
        %v6340 = vld [vmem:[%s6190 + $0x4a8] sm:$0xff]
        %v6341 = vld [vmem:[%s6190 + $0x4b0] sm:$0xff]
        %v6342 = vld [vmem:[%s6190 + $0x4b8] sm:$0xff]
        %v6343 = vld [vmem:[%s6190 + $0x4c0] sm:$0xff]
        %v6344 = vld [vmem:[%s6190 + $0x4c8] sm:$0xff]
        %v6345 = vld [vmem:[%s6190 + $0x4d0] sm:$0xff]
        %v6346 = vld [vmem:[%s6190 + $0x4d8] sm:$0xff]
        %v6347 = vld [vmem:[%s6190 + $0x4e0] sm:$0xff]
        %v6348 = vld [vmem:[%s6190 + $0x4e8] sm:$0xff]
        %v6349 = vld [vmem:[%s6190 + $0x4f0] sm:$0xff]
        %v6350 = vld [vmem:[%s6190 + $0x4f8] sm:$0xff]
        %v6351 = vld [vmem:[%s6190 + $0x500] sm:$0xff]
        %v6352 = vld [vmem:[%s6190 + $0x508] sm:$0xff]
        %v6353 = vld [vmem:[%s6190 + $0x510] sm:$0xff]
        %v6354 = vld [vmem:[%s6190 + $0x518] sm:$0xff]
        %v6355 = vld [vmem:[%s6190 + $0x520] sm:$0xff]
        %v6356 = vld [vmem:[%s6190 + $0x528] sm:$0xff]
        %v6357 = vld [vmem:[%s6190 + $0x530] sm:$0xff]
        %v6358 = vld [vmem:[%s6190 + $0x538] sm:$0xff]
        %v6359 = vld [vmem:[%s6190 + $0x540] sm:$0xff]
        %v6360 = vld [vmem:[%s6190 + $0x548] sm:$0xff]
        %v6361 = vld [vmem:[%s6190 + $0x550] sm:$0xff]
        %v6362 = vld [vmem:[%s6190 + $0x558] sm:$0xff]
        %v6363 = vld [vmem:[%s6190 + $0x560] sm:$0xff]
        %v6364 = vld [vmem:[%s6190 + $0x568] sm:$0xff]
        %v6365 = vld [vmem:[%s6190 + $0x570] sm:$0xff]
        %v6366 = vld [vmem:[%s6190 + $0x578] sm:$0xff]
        %v6367 = vld [vmem:[%s6190 + $0x580] sm:$0xff]
        %v6368 = vld [vmem:[%s6190 + $0x588] sm:$0xff]
        %v6369 = vld [vmem:[%s6190 + $0x590] sm:$0xff]
        %v6370 = vld [vmem:[%s6190 + $0x598] sm:$0xff]
        %v6371 = vld [vmem:[%s6190 + $0x5a0] sm:$0xff]
        %v6372 = vld [vmem:[%s6190 + $0x5a8] sm:$0xff]
        %v6373 = vld [vmem:[%s6190 + $0x5b0] sm:$0xff]
        %v6374 = vld [vmem:[%s6190 + $0x5b8] sm:$0xff]
        %v6375 = vld [vmem:[%s6190 + $0x5c0] sm:$0xff]
        %v6376 = vld [vmem:[%s6190 + $0x5c8] sm:$0xff]
        %v6377 = vld [vmem:[%s6190 + $0x5d0] sm:$0xff]
        %v6378 = vld [vmem:[%s6190 + $0x5d8] sm:$0xff]
        %v6379 = vld [vmem:[%s6190 + $0x5e0] sm:$0xff]
        %v6380 = vld [vmem:[%s6190 + $0x5e8] sm:$0xff]
        %v6381 = vld [vmem:[%s6190 + $0x5f0] sm:$0xff]
        %v6382 = vld [vmem:[%s6190 + $0x5f8] sm:$0xff]
        %v6383 = vld [vmem:[%s6190 + $0x600] sm:$0xff]
        %v6384 = vld [vmem:[%s6190 + $0x608] sm:$0xff]
        %v6385 = vld [vmem:[%s6190 + $0x610] sm:$0xff]
        %v6386 = vld [vmem:[%s6190 + $0x618] sm:$0xff]
        %v6387 = vld [vmem:[%s6190 + $0x620] sm:$0xff]
        %v6388 = vld [vmem:[%s6190 + $0x628] sm:$0xff]
        %v6389 = vld [vmem:[%s6190 + $0x630] sm:$0xff]
        %v6390 = vld [vmem:[%s6190 + $0x638] sm:$0xff]
        %v6391 = vld [vmem:[%s6190 + $0x640] sm:$0xff]
        %v6392 = vld [vmem:[%s6190 + $0x648] sm:$0xff]
        %v6393 = vld [vmem:[%s6190 + $0x650] sm:$0xff]
        %v6394 = vld [vmem:[%s6190 + $0x658] sm:$0xff]
        %v6395 = vld [vmem:[%s6190 + $0x660] sm:$0xff]
        %v6396 = vld [vmem:[%s6190 + $0x668] sm:$0xff]
        %v6397 = vld [vmem:[%s6190 + $0x670] sm:$0xff]
        %v6398 = vld [vmem:[%s6190 + $0x678] sm:$0xff]
        %v6399 = vld [vmem:[%s6190 + $0x680] sm:$0xff]
        %v6400 = vld [vmem:[%s6190 + $0x688] sm:$0xff]
        %v6401 = vld [vmem:[%s6190 + $0x690] sm:$0xff]
        %v6402 = vld [vmem:[%s6190 + $0x698] sm:$0xff]
        %v6403 = vld [vmem:[%s6190 + $0x6a0] sm:$0xff]
        %v6404 = vld [vmem:[%s6190 + $0x6a8] sm:$0xff]
        %v6405 = vld [vmem:[%s6190 + $0x6b0] sm:$0xff]
        %v6406 = vld [vmem:[%s6190 + $0x6b8] sm:$0xff]
        %v6407 = vld [vmem:[%s6190 + $0x6c0] sm:$0xff]
        %v6408 = vld [vmem:[%s6190 + $0x6c8] sm:$0xff]
        %v6409 = vld [vmem:[%s6190 + $0x6d0] sm:$0xff]
        %v6410 = vld [vmem:[%s6190 + $0x6d8] sm:$0xff]
        %v6411 = vld [vmem:[%s6190 + $0x6e0] sm:$0xff]
        %v6412 = vld [vmem:[%s6190 + $0x6e8] sm:$0xff]
        %v6413 = vld [vmem:[%s6190 + $0x6f0] sm:$0xff]
        %v6414 = vld [vmem:[%s6190 + $0x6f8] sm:$0xff]
        %v6415 = vld [vmem:[%s6190 + $0x700] sm:$0xff]
        %v6416 = vld [vmem:[%s6190 + $0x708] sm:$0xff]
        %v6417 = vld [vmem:[%s6190 + $0x710] sm:$0xff]
        %v6418 = vld [vmem:[%s6190 + $0x718] sm:$0xff]
        %v6419 = vld [vmem:[%s6190 + $0x720] sm:$0xff]
        %v6420 = vld [vmem:[%s6190 + $0x728] sm:$0xff]
        %v6421 = vld [vmem:[%s6190 + $0x730] sm:$0xff]
        %v6422 = vld [vmem:[%s6190 + $0x738] sm:$0xff]
        %v6423 = vld [vmem:[%s6190 + $0x740] sm:$0xff]
        %v6424 = vld [vmem:[%s6190 + $0x748] sm:$0xff]
        %v6425 = vld [vmem:[%s6190 + $0x750] sm:$0xff]
        %v6426 = vld [vmem:[%s6190 + $0x758] sm:$0xff]
        %v6427 = vld [vmem:[%s6190 + $0x760] sm:$0xff]
        %v6428 = vld [vmem:[%s6190 + $0x768] sm:$0xff]
        %v6429 = vld [vmem:[%s6190 + $0x770] sm:$0xff]
        %v6430 = vld [vmem:[%s6190 + $0x778] sm:$0xff]
        %v6431 = vld [vmem:[%s6190 + $0x780] sm:$0xff]
        %v6432 = vld [vmem:[%s6190 + $0x788] sm:$0xff]
        %v6433 = vld [vmem:[%s6190 + $0x790] sm:$0xff]
        %v6434 = vld [vmem:[%s6190 + $0x798] sm:$0xff]
        %v6435 = vld [vmem:[%s6190 + $0x7a0] sm:$0xff]
        %v6436 = vld [vmem:[%s6190 + $0x7a8] sm:$0xff]
        %v6437 = vld [vmem:[%s6190 + $0x7b0] sm:$0xff]
        %v6438 = vld [vmem:[%s6190 + $0x7b8] sm:$0xff]
        %v6439 = vld [vmem:[%s6190 + $0x7c0] sm:$0xff]
        %v6440 = vld [vmem:[%s6190 + $0x7c8] sm:$0xff]
        %v6441 = vld [vmem:[%s6190 + $0x7d0] sm:$0xff]
        %v6442 = vld [vmem:[%s6190 + $0x7d8] sm:$0xff]
        %v6443 = vld [vmem:[%s6190 + $0x7e0] sm:$0xff]
        %v6444 = vld [vmem:[%s6190 + $0x7e8] sm:$0xff]
        %v6445 = vld [vmem:[%s6190 + $0x7f0] sm:$0xff]
        %v6446 = vld [vmem:[%s6190 + $0x7f8] sm:$0xff]
        %v6447 = vld [vmem:[%s6190 + $0x800] sm:$0xff]
        %v6448 = vld [vmem:[%s6190 + $0x808] sm:$0xff]
        %v6449 = vld [vmem:[%s6190 + $0x810] sm:$0xff]
        %v6450 = vld [vmem:[%s6190 + $0x818] sm:$0xff]
        %v6451 = vld [vmem:[%s6190 + $0x820] sm:$0xff]
        %v6452 = vld [vmem:[%s6190 + $0x828] sm:$0xff]
        %v6453 = vld [vmem:[%s6190 + $0x830] sm:$0xff]
        %v6454 = vld [vmem:[%s6190 + $0x838] sm:$0xff]
        %v6455 = vld [vmem:[%s6190 + $0x840] sm:$0xff]
        %v6456 = vld [vmem:[%s6190 + $0x848] sm:$0xff]
        %v6457 = vld [vmem:[%s6190 + $0x850] sm:$0xff]
        %v6458 = vld [vmem:[%s6190 + $0x858] sm:$0xff]
        %v6459 = vld [vmem:[%s6190 + $0x860] sm:$0xff]
        %v6460 = vld [vmem:[%s6190 + $0x868] sm:$0xff]
        %v6461 = vld [vmem:[%s6190 + $0x870] sm:$0xff]
        %v6462 = vld [vmem:[%s6190 + $0x878] sm:$0xff]
        %v6463 = vld [vmem:[%s6190 + $0x880] sm:$0xff]
        %v6464 = vld [vmem:[%s6190 + $0x888] sm:$0xff]
        %v6465 = vld [vmem:[%s6190 + $0x890] sm:$0xff]
        %v6466 = vld [vmem:[%s6190 + $0x898] sm:$0xff]
        %v6467 = vld [vmem:[%s6190 + $0x8a0] sm:$0xff]
        %v6468 = vld [vmem:[%s6190 + $0x8a8] sm:$0xff]
        %v6469 = vld [vmem:[%s6190 + $0x8b0] sm:$0xff]
        %v6470 = vld [vmem:[%s6190 + $0x8b8] sm:$0xff]
        %v6471 = vld [vmem:[%s6190 + $0x8c0] sm:$0xff]
        %v6472 = vld [vmem:[%s6190 + $0x8c8] sm:$0xff]
        %v6473 = vld [vmem:[%s6190 + $0x8d0] sm:$0xff]
        %v6474 = vld [vmem:[%s6190 + $0x8d8] sm:$0xff]
        %v6475 = vld [vmem:[%s6190 + $0x8e0] sm:$0xff]
        %v6476 = vld [vmem:[%s6190 + $0x8e8] sm:$0xff]
        %v6477 = vld [vmem:[%s6190 + $0x8f0] sm:$0xff]
        %v6478 = vld [vmem:[%s6190 + $0x8f8] sm:$0xff]
        %v6767 = vunpack.c.l.b16 %v6191
        %v6768 = vunpack.c.h.b16 %v6191
        %v6769 = vunpack.c.l.b16 %v6192
        %v6770 = vunpack.c.h.b16 %v6192
        %v6771 = vunpack.c.l.b16 %v6193
        %v6772 = vunpack.c.h.b16 %v6193
        %v6773 = vunpack.c.l.b16 %v6194
        %v6774 = vunpack.c.h.b16 %v6194
        %v6775 = vunpack.c.l.b16 %v6195
        %v6776 = vunpack.c.h.b16 %v6195
        %v6777 = vunpack.c.l.b16 %v6196
        %v6778 = vunpack.c.h.b16 %v6196
        %v6779 = vunpack.c.l.b16 %v6197
        %v6780 = vunpack.c.h.b16 %v6197
        %v6781 = vunpack.c.l.b16 %v6198
        %v6782 = vunpack.c.h.b16 %v6198
        %v6783 = vunpack.c.l.b16 %v6199
        %v6784 = vunpack.c.h.b16 %v6199
        %v6785 = vunpack.c.l.b16 %v6200
        %v6786 = vunpack.c.h.b16 %v6200
        %v6787 = vunpack.c.l.b16 %v6201
        %v6788 = vunpack.c.h.b16 %v6201
        %v6789 = vunpack.c.l.b16 %v6202
        %v6790 = vunpack.c.h.b16 %v6202
        %v6791 = vunpack.c.l.b16 %v6203
        %v6792 = vunpack.c.h.b16 %v6203
        %v6793 = vunpack.c.l.b16 %v6204
        %v6794 = vunpack.c.h.b16 %v6204
        %v6795 = vunpack.c.l.b16 %v6205
        %v6796 = vunpack.c.h.b16 %v6205
        %v6797 = vunpack.c.l.b16 %v6206
        %v6798 = vunpack.c.h.b16 %v6206
        %v6799 = vunpack.c.l.b16 %v6207
        %v6800 = vunpack.c.h.b16 %v6207
        %v6801 = vunpack.c.l.b16 %v6208
        %v6802 = vunpack.c.h.b16 %v6208
        %v6803 = vunpack.c.l.b16 %v6209
        %v6804 = vunpack.c.h.b16 %v6209
        %v6805 = vunpack.c.l.b16 %v6210
        %v6806 = vunpack.c.h.b16 %v6210
        %v6807 = vunpack.c.l.b16 %v6211
        %v6808 = vunpack.c.h.b16 %v6211
        %v6809 = vunpack.c.l.b16 %v6212
        %v6810 = vunpack.c.h.b16 %v6212
        %v6811 = vunpack.c.l.b16 %v6213
        %v6812 = vunpack.c.h.b16 %v6213
        %v6813 = vunpack.c.l.b16 %v6214
        %v6814 = vunpack.c.h.b16 %v6214
        %v6815 = vunpack.c.l.b16 %v6215
        %v6816 = vunpack.c.h.b16 %v6215
        %v6817 = vunpack.c.l.b16 %v6216
        %v6818 = vunpack.c.h.b16 %v6216
        %v6819 = vunpack.c.l.b16 %v6217
        %v6820 = vunpack.c.h.b16 %v6217
        %v6821 = vunpack.c.l.b16 %v6218
        %v6822 = vunpack.c.h.b16 %v6218
        %v6823 = vunpack.c.l.b16 %v6219
        %v6824 = vunpack.c.h.b16 %v6219
        %v6825 = vunpack.c.l.b16 %v6220
        %v6826 = vunpack.c.h.b16 %v6220
        %v6827 = vunpack.c.l.b16 %v6221
        %v6828 = vunpack.c.h.b16 %v6221
        %v6829 = vunpack.c.l.b16 %v6222
        %v6830 = vunpack.c.h.b16 %v6222
        %v6831 = vunpack.c.l.b16 %v6223
        %v6832 = vunpack.c.h.b16 %v6223
        %v6833 = vunpack.c.l.b16 %v6224
        %v6834 = vunpack.c.h.b16 %v6224
        %v6835 = vunpack.c.l.b16 %v6225
        %v6836 = vunpack.c.h.b16 %v6225
        %v6837 = vunpack.c.l.b16 %v6226
        %v6838 = vunpack.c.h.b16 %v6226
        %v6839 = vunpack.c.l.b16 %v6227
        %v6840 = vunpack.c.h.b16 %v6227
        %v6841 = vunpack.c.l.b16 %v6228
        %v6842 = vunpack.c.h.b16 %v6228
        %v6843 = vunpack.c.l.b16 %v6229
        %v6844 = vunpack.c.h.b16 %v6229
        %v6845 = vunpack.c.l.b16 %v6230
        %v6846 = vunpack.c.h.b16 %v6230
        %v6847 = vunpack.c.l.b16 %v6231
        %v6848 = vunpack.c.h.b16 %v6231
        %v6849 = vunpack.c.l.b16 %v6232
        %v6850 = vunpack.c.h.b16 %v6232
        %v6851 = vunpack.c.l.b16 %v6233
        %v6852 = vunpack.c.h.b16 %v6233
        %v6853 = vunpack.c.l.b16 %v6234
        %v6854 = vunpack.c.h.b16 %v6234
        %v6855 = vunpack.c.l.b16 %v6235
        %v6856 = vunpack.c.h.b16 %v6235
        %v6857 = vunpack.c.l.b16 %v6236
        %v6858 = vunpack.c.h.b16 %v6236
        %v6859 = vunpack.c.l.b16 %v6237
        %v6860 = vunpack.c.h.b16 %v6237
        %v6861 = vunpack.c.l.b16 %v6238
        %v6862 = vunpack.c.h.b16 %v6238
        %v6863 = vunpack.c.l.b16 %v6239
        %v6864 = vunpack.c.h.b16 %v6239
        %v6865 = vunpack.c.l.b16 %v6240
        %v6866 = vunpack.c.h.b16 %v6240
        %v6867 = vunpack.c.l.b16 %v6241
        %v6868 = vunpack.c.h.b16 %v6241
        %v6869 = vunpack.c.l.b16 %v6242
        %v6870 = vunpack.c.h.b16 %v6242
        %v6871 = vunpack.c.l.b16 %v6243
        %v6872 = vunpack.c.h.b16 %v6243
        %v6873 = vunpack.c.l.b16 %v6244
        %v6874 = vunpack.c.h.b16 %v6244
        %v6875 = vunpack.c.l.b16 %v6245
        %v6876 = vunpack.c.h.b16 %v6245
        %v6877 = vunpack.c.l.b16 %v6246
        %v6878 = vunpack.c.h.b16 %v6246
        %v6879 = vunpack.c.l.b16 %v6247
        %v6880 = vunpack.c.h.b16 %v6247
        %v6881 = vunpack.c.l.b16 %v6248
        %v6882 = vunpack.c.h.b16 %v6248
        %v6883 = vunpack.c.l.b16 %v6249
        %v6884 = vunpack.c.h.b16 %v6249
        %v6885 = vunpack.c.l.b16 %v6250
        %v6886 = vunpack.c.h.b16 %v6250
        %v6887 = vunpack.c.l.b16 %v6251
        %v6888 = vunpack.c.h.b16 %v6251
        %v6889 = vunpack.c.l.b16 %v6252
        %v6890 = vunpack.c.h.b16 %v6252
        %v6891 = vunpack.c.l.b16 %v6253
        %v6892 = vunpack.c.h.b16 %v6253
        %v6893 = vunpack.c.l.b16 %v6254
        %v6894 = vunpack.c.h.b16 %v6254
        %v6895 = vunpack.c.l.b16 %v6255
        %v6896 = vunpack.c.h.b16 %v6255
        %v6897 = vunpack.c.l.b16 %v6256
        %v6898 = vunpack.c.h.b16 %v6256
        %v6899 = vunpack.c.l.b16 %v6257
        %v6900 = vunpack.c.h.b16 %v6257
        %v6901 = vunpack.c.l.b16 %v6258
        %v6902 = vunpack.c.h.b16 %v6258
        %v6903 = vunpack.c.l.b16 %v6259
        %v6904 = vunpack.c.h.b16 %v6259
        %v6905 = vunpack.c.l.b16 %v6260
        %v6906 = vunpack.c.h.b16 %v6260
        %v6907 = vunpack.c.l.b16 %v6261
        %v6908 = vunpack.c.h.b16 %v6261
        %v6909 = vunpack.c.l.b16 %v6262
        %v6910 = vunpack.c.h.b16 %v6262
        %v6911 = vunpack.c.l.b16 %v6263
        %v6912 = vunpack.c.h.b16 %v6263
        %v6913 = vunpack.c.l.b16 %v6264
        %v6914 = vunpack.c.h.b16 %v6264
        %v6915 = vunpack.c.l.b16 %v6265
        %v6916 = vunpack.c.h.b16 %v6265
        %v6917 = vunpack.c.l.b16 %v6266
        %v6918 = vunpack.c.h.b16 %v6266
        %v6919 = vunpack.c.l.b16 %v6267
        %v6920 = vunpack.c.h.b16 %v6267
        %v6921 = vunpack.c.l.b16 %v6268
        %v6922 = vunpack.c.h.b16 %v6268
        %v6923 = vunpack.c.l.b16 %v6269
        %v6924 = vunpack.c.h.b16 %v6269
        %v6925 = vunpack.c.l.b16 %v6270
        %v6926 = vunpack.c.h.b16 %v6270
        %v6927 = vunpack.c.l.b16 %v6271
        %v6928 = vunpack.c.h.b16 %v6271
        %v6929 = vunpack.c.l.b16 %v6272
        %v6930 = vunpack.c.h.b16 %v6272
        %v6931 = vunpack.c.l.b16 %v6273
        %v6932 = vunpack.c.h.b16 %v6273
        %v6933 = vunpack.c.l.b16 %v6274
        %v6934 = vunpack.c.h.b16 %v6274
        %v6935 = vunpack.c.l.b16 %v6275
        %v6936 = vunpack.c.h.b16 %v6275
        %v6937 = vunpack.c.l.b16 %v6276
        %v6938 = vunpack.c.h.b16 %v6276
        %v6939 = vunpack.c.l.b16 %v6277
        %v6940 = vunpack.c.h.b16 %v6277
        %v6941 = vunpack.c.l.b16 %v6278
        %v6942 = vunpack.c.h.b16 %v6278
        %v6943 = vunpack.c.l.b16 %v6279
        %v6944 = vunpack.c.h.b16 %v6279
        %v6945 = vunpack.c.l.b16 %v6280
        %v6946 = vunpack.c.h.b16 %v6280
        %v6947 = vunpack.c.l.b16 %v6281
        %v6948 = vunpack.c.h.b16 %v6281
        %v6949 = vunpack.c.l.b16 %v6282
        %v6950 = vunpack.c.h.b16 %v6282
        %v6951 = vunpack.c.l.b16 %v6283
        %v6952 = vunpack.c.h.b16 %v6283
        %v6953 = vunpack.c.l.b16 %v6284
        %v6954 = vunpack.c.h.b16 %v6284
        %v6955 = vunpack.c.l.b16 %v6285
        %v6956 = vunpack.c.h.b16 %v6285
        %v6957 = vunpack.c.l.b16 %v6286
        %v6958 = vunpack.c.h.b16 %v6286
        %v6959 = vunpack.c.l.b16 %v6287
        %v6960 = vunpack.c.h.b16 %v6287
        %v6961 = vunpack.c.l.b16 %v6288
        %v6962 = vunpack.c.h.b16 %v6288
        %v6963 = vunpack.c.l.b16 %v6289
        %v6964 = vunpack.c.h.b16 %v6289
        %v6965 = vunpack.c.l.b16 %v6290
        %v6966 = vunpack.c.h.b16 %v6290
        %v6967 = vunpack.c.l.b16 %v6291
        %v6968 = vunpack.c.h.b16 %v6291
        %v6969 = vunpack.c.l.b16 %v6292
        %v6970 = vunpack.c.h.b16 %v6292
        %v6971 = vunpack.c.l.b16 %v6293
        %v6972 = vunpack.c.h.b16 %v6293
        %v6973 = vunpack.c.l.b16 %v6294
        %v6974 = vunpack.c.h.b16 %v6294
        %v6975 = vunpack.c.l.b16 %v6295
        %v6976 = vunpack.c.h.b16 %v6295
        %v6977 = vunpack.c.l.b16 %v6296
        %v6978 = vunpack.c.h.b16 %v6296
        %v6979 = vunpack.c.l.b16 %v6297
        %v6980 = vunpack.c.h.b16 %v6297
        %v6981 = vunpack.c.l.b16 %v6298
        %v6982 = vunpack.c.h.b16 %v6298
        %v6983 = vunpack.c.l.b16 %v6299
        %v6984 = vunpack.c.h.b16 %v6299
        %v6985 = vunpack.c.l.b16 %v6300
        %v6986 = vunpack.c.h.b16 %v6300
        %v6987 = vunpack.c.l.b16 %v6301
        %v6988 = vunpack.c.h.b16 %v6301
        %v6989 = vunpack.c.l.b16 %v6302
        %v6990 = vunpack.c.h.b16 %v6302
        %v6991 = vunpack.c.l.b16 %v6303
        %v6992 = vunpack.c.h.b16 %v6303
        %v6993 = vunpack.c.l.b16 %v6304
        %v6994 = vunpack.c.h.b16 %v6304
        %v6995 = vunpack.c.l.b16 %v6305
        %v6996 = vunpack.c.h.b16 %v6305
        %v6997 = vunpack.c.l.b16 %v6306
        %v6998 = vunpack.c.h.b16 %v6306
        %v6999 = vunpack.c.l.b16 %v6307
        %v7000 = vunpack.c.h.b16 %v6307
        %v7001 = vunpack.c.l.b16 %v6308
        %v7002 = vunpack.c.h.b16 %v6308
        %v7003 = vunpack.c.l.b16 %v6309
        %v7004 = vunpack.c.h.b16 %v6309
        %v7005 = vunpack.c.l.b16 %v6310
        %v7006 = vunpack.c.h.b16 %v6310
        %v7007 = vunpack.c.l.b16 %v6311
        %v7008 = vunpack.c.h.b16 %v6311
        %v7009 = vunpack.c.l.b16 %v6312
        %v7010 = vunpack.c.h.b16 %v6312
        %v7011 = vunpack.c.l.b16 %v6313
        %v7012 = vunpack.c.h.b16 %v6313
        %v7013 = vunpack.c.l.b16 %v6314
        %v7014 = vunpack.c.h.b16 %v6314
        %v7015 = vunpack.c.l.b16 %v6315
        %v7016 = vunpack.c.h.b16 %v6315
        %v7017 = vunpack.c.l.b16 %v6316
        %v7018 = vunpack.c.h.b16 %v6316
        %v7019 = vunpack.c.l.b16 %v6317
        %v7020 = vunpack.c.h.b16 %v6317
        %v7021 = vunpack.c.l.b16 %v6318
        %v7022 = vunpack.c.h.b16 %v6318
        %v7023 = vunpack.c.l.b16 %v6319
        %v7024 = vunpack.c.h.b16 %v6319
        %v7025 = vunpack.c.l.b16 %v6320
        %v7026 = vunpack.c.h.b16 %v6320
        %v7027 = vunpack.c.l.b16 %v6321
        %v7028 = vunpack.c.h.b16 %v6321
        %v7029 = vunpack.c.l.b16 %v6322
        %v7030 = vunpack.c.h.b16 %v6322
        %v7031 = vunpack.c.l.b16 %v6323
        %v7032 = vunpack.c.h.b16 %v6323
        %v7033 = vunpack.c.l.b16 %v6324
        %v7034 = vunpack.c.h.b16 %v6324
        %v7035 = vunpack.c.l.b16 %v6325
        %v7036 = vunpack.c.h.b16 %v6325
        %v7037 = vunpack.c.l.b16 %v6326
        %v7038 = vunpack.c.h.b16 %v6326
        %v7039 = vunpack.c.l.b16 %v6327
        %v7040 = vunpack.c.h.b16 %v6327
        %v7041 = vunpack.c.l.b16 %v6328
        %v7042 = vunpack.c.h.b16 %v6328
        %v7043 = vunpack.c.l.b16 %v6329
        %v7044 = vunpack.c.h.b16 %v6329
        %v7045 = vunpack.c.l.b16 %v6330
        %v7046 = vunpack.c.h.b16 %v6330
        %v7047 = vunpack.c.l.b16 %v6331
        %v7048 = vunpack.c.h.b16 %v6331
        %v7049 = vunpack.c.l.b16 %v6332
        %v7050 = vunpack.c.h.b16 %v6332
        %v7051 = vunpack.c.l.b16 %v6333
        %v7052 = vunpack.c.h.b16 %v6333
        %v7053 = vunpack.c.l.b16 %v6334
        %v7054 = vunpack.c.h.b16 %v6334
        %v7055 = vunpack.c.l.b16 %v6335
        %v7056 = vunpack.c.h.b16 %v6335
        %v7057 = vunpack.c.l.b16 %v6336
        %v7058 = vunpack.c.h.b16 %v6336
        %v7059 = vunpack.c.l.b16 %v6337
        %v7060 = vunpack.c.h.b16 %v6337
        %v7061 = vunpack.c.l.b16 %v6338
        %v7062 = vunpack.c.h.b16 %v6338
        %v7063 = vunpack.c.l.b16 %v6339
        %v7064 = vunpack.c.h.b16 %v6339
        %v7065 = vunpack.c.l.b16 %v6340
        %v7066 = vunpack.c.h.b16 %v6340
        %v7067 = vunpack.c.l.b16 %v6341
        %v7068 = vunpack.c.h.b16 %v6341
        %v7069 = vunpack.c.l.b16 %v6342
        %v7070 = vunpack.c.h.b16 %v6342
        %v7071 = vunpack.c.l.b16 %v6343
        %v7072 = vunpack.c.h.b16 %v6343
        %v7073 = vunpack.c.l.b16 %v6344
        %v7074 = vunpack.c.h.b16 %v6344
        %v7075 = vunpack.c.l.b16 %v6345
        %v7076 = vunpack.c.h.b16 %v6345
        %v7077 = vunpack.c.l.b16 %v6346
        %v7078 = vunpack.c.h.b16 %v6346
        %v7079 = vunpack.c.l.b16 %v6347
        %v7080 = vunpack.c.h.b16 %v6347
        %v7081 = vunpack.c.l.b16 %v6348
        %v7082 = vunpack.c.h.b16 %v6348
        %v7083 = vunpack.c.l.b16 %v6349
        %v7084 = vunpack.c.h.b16 %v6349
        %v7085 = vunpack.c.l.b16 %v6350
        %v7086 = vunpack.c.h.b16 %v6350
        %v7087 = vunpack.c.l.b16 %v6351
        %v7088 = vunpack.c.h.b16 %v6351
        %v7089 = vunpack.c.l.b16 %v6352
        %v7090 = vunpack.c.h.b16 %v6352
        %v7091 = vunpack.c.l.b16 %v6353
        %v7092 = vunpack.c.h.b16 %v6353
        %v7093 = vunpack.c.l.b16 %v6354
        %v7094 = vunpack.c.h.b16 %v6354
        %v7095 = vunpack.c.l.b16 %v6355
        %v7096 = vunpack.c.h.b16 %v6355
        %v7097 = vunpack.c.l.b16 %v6356
        %v7098 = vunpack.c.h.b16 %v6356
        %v7099 = vunpack.c.l.b16 %v6357
        %v7100 = vunpack.c.h.b16 %v6357
        %v7101 = vunpack.c.l.b16 %v6358
        %v7102 = vunpack.c.h.b16 %v6358
        %v7103 = vunpack.c.l.b16 %v6359
        %v7104 = vunpack.c.h.b16 %v6359
        %v7105 = vunpack.c.l.b16 %v6360
        %v7106 = vunpack.c.h.b16 %v6360
        %v7107 = vunpack.c.l.b16 %v6361
        %v7108 = vunpack.c.h.b16 %v6361
        %v7109 = vunpack.c.l.b16 %v6362
        %v7110 = vunpack.c.h.b16 %v6362
        %v7111 = vunpack.c.l.b16 %v6363
        %v7112 = vunpack.c.h.b16 %v6363
        %v7113 = vunpack.c.l.b16 %v6364
        %v7114 = vunpack.c.h.b16 %v6364
        %v7115 = vunpack.c.l.b16 %v6365
        %v7116 = vunpack.c.h.b16 %v6365
        %v7117 = vunpack.c.l.b16 %v6366
        %v7118 = vunpack.c.h.b16 %v6366
        %v7119 = vunpack.c.l.b16 %v6367
        %v7120 = vunpack.c.h.b16 %v6367
        %v7121 = vunpack.c.l.b16 %v6368
        %v7122 = vunpack.c.h.b16 %v6368
        %v7123 = vunpack.c.l.b16 %v6369
        %v7124 = vunpack.c.h.b16 %v6369
        %v7125 = vunpack.c.l.b16 %v6370
        %v7126 = vunpack.c.h.b16 %v6370
        %v7127 = vunpack.c.l.b16 %v6371
        %v7128 = vunpack.c.h.b16 %v6371
        %v7129 = vunpack.c.l.b16 %v6372
        %v7130 = vunpack.c.h.b16 %v6372
        %v7131 = vunpack.c.l.b16 %v6373
        %v7132 = vunpack.c.h.b16 %v6373
        %v7133 = vunpack.c.l.b16 %v6374
        %v7134 = vunpack.c.h.b16 %v6374
        %v7135 = vunpack.c.l.b16 %v6375
        %v7136 = vunpack.c.h.b16 %v6375
        %v7137 = vunpack.c.l.b16 %v6376
        %v7138 = vunpack.c.h.b16 %v6376
        %v7139 = vunpack.c.l.b16 %v6377
        %v7140 = vunpack.c.h.b16 %v6377
        %v7141 = vunpack.c.l.b16 %v6378
        %v7142 = vunpack.c.h.b16 %v6378
        %v7143 = vunpack.c.l.b16 %v6379
        %v7144 = vunpack.c.h.b16 %v6379
        %v7145 = vunpack.c.l.b16 %v6380
        %v7146 = vunpack.c.h.b16 %v6380
        %v7147 = vunpack.c.l.b16 %v6381
        %v7148 = vunpack.c.h.b16 %v6381
        %v7149 = vunpack.c.l.b16 %v6382
        %v7150 = vunpack.c.h.b16 %v6382
        %v7151 = vunpack.c.l.b16 %v6383
        %v7152 = vunpack.c.h.b16 %v6383
        %v7153 = vunpack.c.l.b16 %v6384
        %v7154 = vunpack.c.h.b16 %v6384
        %v7155 = vunpack.c.l.b16 %v6385
        %v7156 = vunpack.c.h.b16 %v6385
        %v7157 = vunpack.c.l.b16 %v6386
        %v7158 = vunpack.c.h.b16 %v6386
        %v7159 = vunpack.c.l.b16 %v6387
        %v7160 = vunpack.c.h.b16 %v6387
        %v7161 = vunpack.c.l.b16 %v6388
        %v7162 = vunpack.c.h.b16 %v6388
        %v7163 = vunpack.c.l.b16 %v6389
        %v7164 = vunpack.c.h.b16 %v6389
        %v7165 = vunpack.c.l.b16 %v6390
        %v7166 = vunpack.c.h.b16 %v6390
        %v7167 = vunpack.c.l.b16 %v6391
        %v7168 = vunpack.c.h.b16 %v6391
        %v7169 = vunpack.c.l.b16 %v6392
        %v7170 = vunpack.c.h.b16 %v6392
        %v7171 = vunpack.c.l.b16 %v6393
        %v7172 = vunpack.c.h.b16 %v6393
        %v7173 = vunpack.c.l.b16 %v6394
        %v7174 = vunpack.c.h.b16 %v6394
        %v7175 = vunpack.c.l.b16 %v6395
        %v7176 = vunpack.c.h.b16 %v6395
        %v7177 = vunpack.c.l.b16 %v6396
        %v7178 = vunpack.c.h.b16 %v6396
        %v7179 = vunpack.c.l.b16 %v6397
        %v7180 = vunpack.c.h.b16 %v6397
        %v7181 = vunpack.c.l.b16 %v6398
        %v7182 = vunpack.c.h.b16 %v6398
        %v7183 = vunpack.c.l.b16 %v6399
        %v7184 = vunpack.c.h.b16 %v6399
        %v7185 = vunpack.c.l.b16 %v6400
        %v7186 = vunpack.c.h.b16 %v6400
        %v7187 = vunpack.c.l.b16 %v6401
        %v7188 = vunpack.c.h.b16 %v6401
        %v7189 = vunpack.c.l.b16 %v6402
        %v7190 = vunpack.c.h.b16 %v6402
        %v7191 = vunpack.c.l.b16 %v6403
        %v7192 = vunpack.c.h.b16 %v6403
        %v7193 = vunpack.c.l.b16 %v6404
        %v7194 = vunpack.c.h.b16 %v6404
        %v7195 = vunpack.c.l.b16 %v6405
        %v7196 = vunpack.c.h.b16 %v6405
        %v7197 = vunpack.c.l.b16 %v6406
        %v7198 = vunpack.c.h.b16 %v6406
        %v7199 = vunpack.c.l.b16 %v6407
        %v7200 = vunpack.c.h.b16 %v6407
        %v7201 = vunpack.c.l.b16 %v6408
        %v7202 = vunpack.c.h.b16 %v6408
        %v7203 = vunpack.c.l.b16 %v6409
        %v7204 = vunpack.c.h.b16 %v6409
        %v7205 = vunpack.c.l.b16 %v6410
        %v7206 = vunpack.c.h.b16 %v6410
        %v7207 = vunpack.c.l.b16 %v6411
        %v7208 = vunpack.c.h.b16 %v6411
        %v7209 = vunpack.c.l.b16 %v6412
        %v7210 = vunpack.c.h.b16 %v6412
        %v7211 = vunpack.c.l.b16 %v6413
        %v7212 = vunpack.c.h.b16 %v6413
        %v7213 = vunpack.c.l.b16 %v6414
        %v7214 = vunpack.c.h.b16 %v6414
        %v7215 = vunpack.c.l.b16 %v6415
        %v7216 = vunpack.c.h.b16 %v6415
        %v7217 = vunpack.c.l.b16 %v6416
        %v7218 = vunpack.c.h.b16 %v6416
        %v7219 = vunpack.c.l.b16 %v6417
        %v7220 = vunpack.c.h.b16 %v6417
        %v7221 = vunpack.c.l.b16 %v6418
        %v7222 = vunpack.c.h.b16 %v6418
        %v7223 = vunpack.c.l.b16 %v6419
        %v7224 = vunpack.c.h.b16 %v6419
        %v7225 = vunpack.c.l.b16 %v6420
        %v7226 = vunpack.c.h.b16 %v6420
        %v7227 = vunpack.c.l.b16 %v6421
        %v7228 = vunpack.c.h.b16 %v6421
        %v7229 = vunpack.c.l.b16 %v6422
        %v7230 = vunpack.c.h.b16 %v6422
        %v7231 = vunpack.c.l.b16 %v6423
        %v7232 = vunpack.c.h.b16 %v6423
        %v7233 = vunpack.c.l.b16 %v6424
        %v7234 = vunpack.c.h.b16 %v6424
        %v7235 = vunpack.c.l.b16 %v6425
        %v7236 = vunpack.c.h.b16 %v6425
        %v7237 = vunpack.c.l.b16 %v6426
        %v7238 = vunpack.c.h.b16 %v6426
        %v7239 = vunpack.c.l.b16 %v6427
        %v7240 = vunpack.c.h.b16 %v6427
        %v7241 = vunpack.c.l.b16 %v6428
        %v7242 = vunpack.c.h.b16 %v6428
        %v7243 = vunpack.c.l.b16 %v6429
        %v7244 = vunpack.c.h.b16 %v6429
        %v7245 = vunpack.c.l.b16 %v6430
        %v7246 = vunpack.c.h.b16 %v6430
        %v7247 = vunpack.c.l.b16 %v6431
        %v7248 = vunpack.c.h.b16 %v6431
        %v7249 = vunpack.c.l.b16 %v6432
        %v7250 = vunpack.c.h.b16 %v6432
        %v7251 = vunpack.c.l.b16 %v6433
        %v7252 = vunpack.c.h.b16 %v6433
        %v7253 = vunpack.c.l.b16 %v6434
        %v7254 = vunpack.c.h.b16 %v6434
        %v7255 = vunpack.c.l.b16 %v6435
        %v7256 = vunpack.c.h.b16 %v6435
        %v7257 = vunpack.c.l.b16 %v6436
        %v7258 = vunpack.c.h.b16 %v6436
        %v7259 = vunpack.c.l.b16 %v6437
        %v7260 = vunpack.c.h.b16 %v6437
        %v7261 = vunpack.c.l.b16 %v6438
        %v7262 = vunpack.c.h.b16 %v6438
        %v7263 = vunpack.c.l.b16 %v6439
        %v7264 = vunpack.c.h.b16 %v6439
        %v7265 = vunpack.c.l.b16 %v6440
        %v7266 = vunpack.c.h.b16 %v6440
        %v7267 = vunpack.c.l.b16 %v6441
        %v7268 = vunpack.c.h.b16 %v6441
        %v7269 = vunpack.c.l.b16 %v6442
        %v7270 = vunpack.c.h.b16 %v6442
        %v7271 = vunpack.c.l.b16 %v6443
        %v7272 = vunpack.c.h.b16 %v6443
        %v7273 = vunpack.c.l.b16 %v6444
        %v7274 = vunpack.c.h.b16 %v6444
        %v7275 = vunpack.c.l.b16 %v6445
        %v7276 = vunpack.c.h.b16 %v6445
        %v7277 = vunpack.c.l.b16 %v6446
        %v7278 = vunpack.c.h.b16 %v6446
        %v7279 = vunpack.c.l.b16 %v6447
        %v7280 = vunpack.c.h.b16 %v6447
        %v7281 = vunpack.c.l.b16 %v6448
        %v7282 = vunpack.c.h.b16 %v6448
        %v7283 = vunpack.c.l.b16 %v6449
        %v7284 = vunpack.c.h.b16 %v6449
        %v7285 = vunpack.c.l.b16 %v6450
        %v7286 = vunpack.c.h.b16 %v6450
        %v7287 = vunpack.c.l.b16 %v6451
        %v7288 = vunpack.c.h.b16 %v6451
        %v7289 = vunpack.c.l.b16 %v6452
        %v7290 = vunpack.c.h.b16 %v6452
        %v7291 = vunpack.c.l.b16 %v6453
        %v7292 = vunpack.c.h.b16 %v6453
        %v7293 = vunpack.c.l.b16 %v6454
        %v7294 = vunpack.c.h.b16 %v6454
        %v7295 = vunpack.c.l.b16 %v6455
        %v7296 = vunpack.c.h.b16 %v6455
        %v7297 = vunpack.c.l.b16 %v6456
        %v7298 = vunpack.c.h.b16 %v6456
        %v7299 = vunpack.c.l.b16 %v6457
        %v7300 = vunpack.c.h.b16 %v6457
        %v7301 = vunpack.c.l.b16 %v6458
        %v7302 = vunpack.c.h.b16 %v6458
        %v7303 = vunpack.c.l.b16 %v6459
        %v7304 = vunpack.c.h.b16 %v6459
        %v7305 = vunpack.c.l.b16 %v6460
        %v7306 = vunpack.c.h.b16 %v6460
        %v7307 = vunpack.c.l.b16 %v6461
        %v7308 = vunpack.c.h.b16 %v6461
        %v7309 = vunpack.c.l.b16 %v6462
        %v7310 = vunpack.c.h.b16 %v6462
        %v7311 = vunpack.c.l.b16 %v6463
        %v7312 = vunpack.c.h.b16 %v6463
        %v7313 = vunpack.c.l.b16 %v6464
        %v7314 = vunpack.c.h.b16 %v6464
        %v7315 = vunpack.c.l.b16 %v6465
        %v7316 = vunpack.c.h.b16 %v6465
        %v7317 = vunpack.c.l.b16 %v6466
        %v7318 = vunpack.c.h.b16 %v6466
        %v7319 = vunpack.c.l.b16 %v6467
        %v7320 = vunpack.c.h.b16 %v6467
        %v7321 = vunpack.c.l.b16 %v6468
        %v7322 = vunpack.c.h.b16 %v6468
        %v7323 = vunpack.c.l.b16 %v6469
        %v7324 = vunpack.c.h.b16 %v6469
        %v7325 = vunpack.c.l.b16 %v6470
        %v7326 = vunpack.c.h.b16 %v6470
        %v7327 = vunpack.c.l.b16 %v6471
        %v7328 = vunpack.c.h.b16 %v6471
        %v7329 = vunpack.c.l.b16 %v6472
        %v7330 = vunpack.c.h.b16 %v6472
        %v7331 = vunpack.c.l.b16 %v6473
        %v7332 = vunpack.c.h.b16 %v6473
        %v7333 = vunpack.c.l.b16 %v6474
        %v7334 = vunpack.c.h.b16 %v6474
        %v7335 = vunpack.c.l.b16 %v6475
        %v7336 = vunpack.c.h.b16 %v6475
        %v7337 = vunpack.c.l.b16 %v6476
        %v7338 = vunpack.c.h.b16 %v6476
        %v7339 = vunpack.c.l.b16 %v6477
        %v7340 = vunpack.c.h.b16 %v6477
        %v7341 = vunpack.c.l.b16 %v6478
        %v7342 = vunpack.c.h.b16 %v6478
        %v7343 = vpack.c.b16 %v6773, %v6767
        %v7344 = vpack.c.b16 %v6774, %v6768
        %v7345 = vpack.c.b16 %v6775, %v6769
        %v7346 = vpack.c.b16 %v6776, %v6770
        %v7347 = vpack.c.b16 %v6777, %v6771
        %v7348 = vpack.c.b16 %v6778, %v6772
        %v7349 = vpack.c.b16 %v6785, %v6779
        %v7350 = vpack.c.b16 %v6786, %v6780
        %v7351 = vpack.c.b16 %v6787, %v6781
        %v7352 = vpack.c.b16 %v6788, %v6782
        %v7353 = vpack.c.b16 %v6789, %v6783
        %v7354 = vpack.c.b16 %v6790, %v6784
        %v7355 = vpack.c.b16 %v6797, %v6791
        %v7356 = vpack.c.b16 %v6798, %v6792
        %v7357 = vpack.c.b16 %v6799, %v6793
        %v7358 = vpack.c.b16 %v6800, %v6794
        %v7359 = vpack.c.b16 %v6801, %v6795
        %v7360 = vpack.c.b16 %v6802, %v6796
        %v7361 = vpack.c.b16 %v6809, %v6803
        %v7362 = vpack.c.b16 %v6810, %v6804
        %v7363 = vpack.c.b16 %v6811, %v6805
        %v7364 = vpack.c.b16 %v6812, %v6806
        %v7365 = vpack.c.b16 %v6813, %v6807
        %v7366 = vpack.c.b16 %v6814, %v6808
        %v7367 = vpack.c.b16 %v6821, %v6815
        %v7368 = vpack.c.b16 %v6822, %v6816
        %v7369 = vpack.c.b16 %v6823, %v6817
        %v7370 = vpack.c.b16 %v6824, %v6818
        %v7371 = vpack.c.b16 %v6825, %v6819
        %v7372 = vpack.c.b16 %v6826, %v6820
        %v7373 = vpack.c.b16 %v6833, %v6827
        %v7374 = vpack.c.b16 %v6834, %v6828
        %v7375 = vpack.c.b16 %v6835, %v6829
        %v7376 = vpack.c.b16 %v6836, %v6830
        %v7377 = vpack.c.b16 %v6837, %v6831
        %v7378 = vpack.c.b16 %v6838, %v6832
        %v7379 = vpack.c.b16 %v6845, %v6839
        %v7380 = vpack.c.b16 %v6846, %v6840
        %v7381 = vpack.c.b16 %v6847, %v6841
        %v7382 = vpack.c.b16 %v6848, %v6842
        %v7383 = vpack.c.b16 %v6849, %v6843
        %v7384 = vpack.c.b16 %v6850, %v6844
        %v7385 = vpack.c.b16 %v6857, %v6851
        %v7386 = vpack.c.b16 %v6858, %v6852
        %v7387 = vpack.c.b16 %v6859, %v6853
        %v7388 = vpack.c.b16 %v6860, %v6854
        %v7389 = vpack.c.b16 %v6861, %v6855
        %v7390 = vpack.c.b16 %v6862, %v6856
        %v7391 = vpack.c.b16 %v6869, %v6863
        %v7392 = vpack.c.b16 %v6870, %v6864
        %v7393 = vpack.c.b16 %v6871, %v6865
        %v7394 = vpack.c.b16 %v6872, %v6866
        %v7395 = vpack.c.b16 %v6873, %v6867
        %v7396 = vpack.c.b16 %v6874, %v6868
        %v7397 = vpack.c.b16 %v6881, %v6875
        %v7398 = vpack.c.b16 %v6882, %v6876
        %v7399 = vpack.c.b16 %v6883, %v6877
        %v7400 = vpack.c.b16 %v6884, %v6878
        %v7401 = vpack.c.b16 %v6885, %v6879
        %v7402 = vpack.c.b16 %v6886, %v6880
        %v7403 = vpack.c.b16 %v6893, %v6887
        %v7404 = vpack.c.b16 %v6894, %v6888
        %v7405 = vpack.c.b16 %v6895, %v6889
        %v7406 = vpack.c.b16 %v6896, %v6890
        %v7407 = vpack.c.b16 %v6897, %v6891
        %v7408 = vpack.c.b16 %v6898, %v6892
        %v7409 = vpack.c.b16 %v6905, %v6899
        %v7410 = vpack.c.b16 %v6906, %v6900
        %v7411 = vpack.c.b16 %v6907, %v6901
        %v7412 = vpack.c.b16 %v6908, %v6902
        %v7413 = vpack.c.b16 %v6909, %v6903
        %v7414 = vpack.c.b16 %v6910, %v6904
        %v7415 = vpack.c.b16 %v6917, %v6911
        %v7416 = vpack.c.b16 %v6918, %v6912
        %v7417 = vpack.c.b16 %v6919, %v6913
        %v7418 = vpack.c.b16 %v6920, %v6914
        %v7419 = vpack.c.b16 %v6921, %v6915
        %v7420 = vpack.c.b16 %v6922, %v6916
        %v7421 = vpack.c.b16 %v6929, %v6923
        %v7422 = vpack.c.b16 %v6930, %v6924
        %v7423 = vpack.c.b16 %v6931, %v6925
        %v7424 = vpack.c.b16 %v6932, %v6926
        %v7425 = vpack.c.b16 %v6933, %v6927
        %v7426 = vpack.c.b16 %v6934, %v6928
        %v7427 = vpack.c.b16 %v6941, %v6935
        %v7428 = vpack.c.b16 %v6942, %v6936
        %v7429 = vpack.c.b16 %v6943, %v6937
        %v7430 = vpack.c.b16 %v6944, %v6938
        %v7431 = vpack.c.b16 %v6945, %v6939
        %v7432 = vpack.c.b16 %v6946, %v6940
        %v7433 = vpack.c.b16 %v6953, %v6947
        %v7434 = vpack.c.b16 %v6954, %v6948
        %v7435 = vpack.c.b16 %v6955, %v6949
        %v7436 = vpack.c.b16 %v6956, %v6950
        %v7437 = vpack.c.b16 %v6957, %v6951
        %v7438 = vpack.c.b16 %v6958, %v6952
        %v7439 = vpack.c.b16 %v6965, %v6959
        %v7440 = vpack.c.b16 %v6966, %v6960
        %v7441 = vpack.c.b16 %v6967, %v6961
        %v7442 = vpack.c.b16 %v6968, %v6962
        %v7443 = vpack.c.b16 %v6969, %v6963
        %v7444 = vpack.c.b16 %v6970, %v6964
        %v7445 = vpack.c.b16 %v6977, %v6971
        %v7446 = vpack.c.b16 %v6978, %v6972
        %v7447 = vpack.c.b16 %v6979, %v6973
        %v7448 = vpack.c.b16 %v6980, %v6974
        %v7449 = vpack.c.b16 %v6981, %v6975
        %v7450 = vpack.c.b16 %v6982, %v6976
        %v7451 = vpack.c.b16 %v6989, %v6983
        %v7452 = vpack.c.b16 %v6990, %v6984
        %v7453 = vpack.c.b16 %v6991, %v6985
        %v7454 = vpack.c.b16 %v6992, %v6986
        %v7455 = vpack.c.b16 %v6993, %v6987
        %v7456 = vpack.c.b16 %v6994, %v6988
        %v7457 = vpack.c.b16 %v7001, %v6995
        %v7458 = vpack.c.b16 %v7002, %v6996
        %v7459 = vpack.c.b16 %v7003, %v6997
        %v7460 = vpack.c.b16 %v7004, %v6998
        %v7461 = vpack.c.b16 %v7005, %v6999
        %v7462 = vpack.c.b16 %v7006, %v7000
        %v7463 = vpack.c.b16 %v7013, %v7007
        %v7464 = vpack.c.b16 %v7014, %v7008
        %v7465 = vpack.c.b16 %v7015, %v7009
        %v7466 = vpack.c.b16 %v7016, %v7010
        %v7467 = vpack.c.b16 %v7017, %v7011
        %v7468 = vpack.c.b16 %v7018, %v7012
        %v7469 = vpack.c.b16 %v7025, %v7019
        %v7470 = vpack.c.b16 %v7026, %v7020
        %v7471 = vpack.c.b16 %v7027, %v7021
        %v7472 = vpack.c.b16 %v7028, %v7022
        %v7473 = vpack.c.b16 %v7029, %v7023
        %v7474 = vpack.c.b16 %v7030, %v7024
        %v7475 = vpack.c.b16 %v7037, %v7031
        %v7476 = vpack.c.b16 %v7038, %v7032
        %v7477 = vpack.c.b16 %v7039, %v7033
        %v7478 = vpack.c.b16 %v7040, %v7034
        %v7479 = vpack.c.b16 %v7041, %v7035
        %v7480 = vpack.c.b16 %v7042, %v7036
        %v7481 = vpack.c.b16 %v7049, %v7043
        %v7482 = vpack.c.b16 %v7050, %v7044
        %v7483 = vpack.c.b16 %v7051, %v7045
        %v7484 = vpack.c.b16 %v7052, %v7046
        %v7485 = vpack.c.b16 %v7053, %v7047
        %v7486 = vpack.c.b16 %v7054, %v7048
        %v7487 = vpack.c.b16 %v7061, %v7055
        %v7488 = vpack.c.b16 %v7062, %v7056
        %v7489 = vpack.c.b16 %v7063, %v7057
        %v7490 = vpack.c.b16 %v7064, %v7058
        %v7491 = vpack.c.b16 %v7065, %v7059
        %v7492 = vpack.c.b16 %v7066, %v7060
        %v7493 = vpack.c.b16 %v7073, %v7067
        %v7494 = vpack.c.b16 %v7074, %v7068
        %v7495 = vpack.c.b16 %v7075, %v7069
        %v7496 = vpack.c.b16 %v7076, %v7070
        %v7497 = vpack.c.b16 %v7077, %v7071
        %v7498 = vpack.c.b16 %v7078, %v7072
        %v7499 = vpack.c.b16 %v7085, %v7079
        %v7500 = vpack.c.b16 %v7086, %v7080
        %v7501 = vpack.c.b16 %v7087, %v7081
        %v7502 = vpack.c.b16 %v7088, %v7082
        %v7503 = vpack.c.b16 %v7089, %v7083
        %v7504 = vpack.c.b16 %v7090, %v7084
        %v7505 = vpack.c.b16 %v7097, %v7091
        %v7506 = vpack.c.b16 %v7098, %v7092
        %v7507 = vpack.c.b16 %v7099, %v7093
        %v7508 = vpack.c.b16 %v7100, %v7094
        %v7509 = vpack.c.b16 %v7101, %v7095
        %v7510 = vpack.c.b16 %v7102, %v7096
        %v7511 = vpack.c.b16 %v7109, %v7103
        %v7512 = vpack.c.b16 %v7110, %v7104
        %v7513 = vpack.c.b16 %v7111, %v7105
        %v7514 = vpack.c.b16 %v7112, %v7106
        %v7515 = vpack.c.b16 %v7113, %v7107
        %v7516 = vpack.c.b16 %v7114, %v7108
        %v7517 = vpack.c.b16 %v7121, %v7115
        %v7518 = vpack.c.b16 %v7122, %v7116
        %v7519 = vpack.c.b16 %v7123, %v7117
        %v7520 = vpack.c.b16 %v7124, %v7118
        %v7521 = vpack.c.b16 %v7125, %v7119
        %v7522 = vpack.c.b16 %v7126, %v7120
        %v7523 = vpack.c.b16 %v7133, %v7127
        %v7524 = vpack.c.b16 %v7134, %v7128
        %v7525 = vpack.c.b16 %v7135, %v7129
        %v7526 = vpack.c.b16 %v7136, %v7130
        %v7527 = vpack.c.b16 %v7137, %v7131
        %v7528 = vpack.c.b16 %v7138, %v7132
        %v7529 = vpack.c.b16 %v7145, %v7139
        %v7530 = vpack.c.b16 %v7146, %v7140
        %v7531 = vpack.c.b16 %v7147, %v7141
        %v7532 = vpack.c.b16 %v7148, %v7142
        %v7533 = vpack.c.b16 %v7149, %v7143
        %v7534 = vpack.c.b16 %v7150, %v7144
        %v7535 = vpack.c.b16 %v7157, %v7151
        %v7536 = vpack.c.b16 %v7158, %v7152
        %v7537 = vpack.c.b16 %v7159, %v7153
        %v7538 = vpack.c.b16 %v7160, %v7154
        %v7539 = vpack.c.b16 %v7161, %v7155
        %v7540 = vpack.c.b16 %v7162, %v7156
        %v7541 = vpack.c.b16 %v7169, %v7163
        %v7542 = vpack.c.b16 %v7170, %v7164
        %v7543 = vpack.c.b16 %v7171, %v7165
        %v7544 = vpack.c.b16 %v7172, %v7166
        %v7545 = vpack.c.b16 %v7173, %v7167
        %v7546 = vpack.c.b16 %v7174, %v7168
        %v7547 = vpack.c.b16 %v7181, %v7175
        %v7548 = vpack.c.b16 %v7182, %v7176
        %v7549 = vpack.c.b16 %v7183, %v7177
        %v7550 = vpack.c.b16 %v7184, %v7178
        %v7551 = vpack.c.b16 %v7185, %v7179
        %v7552 = vpack.c.b16 %v7186, %v7180
        %v7553 = vpack.c.b16 %v7193, %v7187
        %v7554 = vpack.c.b16 %v7194, %v7188
        %v7555 = vpack.c.b16 %v7195, %v7189
        %v7556 = vpack.c.b16 %v7196, %v7190
        %v7557 = vpack.c.b16 %v7197, %v7191
        %v7558 = vpack.c.b16 %v7198, %v7192
        %v7559 = vpack.c.b16 %v7205, %v7199
        %v7560 = vpack.c.b16 %v7206, %v7200
        %v7561 = vpack.c.b16 %v7207, %v7201
        %v7562 = vpack.c.b16 %v7208, %v7202
        %v7563 = vpack.c.b16 %v7209, %v7203
        %v7564 = vpack.c.b16 %v7210, %v7204
        %v7565 = vpack.c.b16 %v7217, %v7211
        %v7566 = vpack.c.b16 %v7218, %v7212
        %v7567 = vpack.c.b16 %v7219, %v7213
        %v7568 = vpack.c.b16 %v7220, %v7214
        %v7569 = vpack.c.b16 %v7221, %v7215
        %v7570 = vpack.c.b16 %v7222, %v7216
        %v7571 = vpack.c.b16 %v7229, %v7223
        %v7572 = vpack.c.b16 %v7230, %v7224
        %v7573 = vpack.c.b16 %v7231, %v7225
        %v7574 = vpack.c.b16 %v7232, %v7226
        %v7575 = vpack.c.b16 %v7233, %v7227
        %v7576 = vpack.c.b16 %v7234, %v7228
        %v7577 = vpack.c.b16 %v7241, %v7235
        %v7578 = vpack.c.b16 %v7242, %v7236
        %v7579 = vpack.c.b16 %v7243, %v7237
        %v7580 = vpack.c.b16 %v7244, %v7238
        %v7581 = vpack.c.b16 %v7245, %v7239
        %v7582 = vpack.c.b16 %v7246, %v7240
        %v7583 = vpack.c.b16 %v7253, %v7247
        %v7584 = vpack.c.b16 %v7254, %v7248
        %v7585 = vpack.c.b16 %v7255, %v7249
        %v7586 = vpack.c.b16 %v7256, %v7250
        %v7587 = vpack.c.b16 %v7257, %v7251
        %v7588 = vpack.c.b16 %v7258, %v7252
        %v7589 = vpack.c.b16 %v7265, %v7259
        %v7590 = vpack.c.b16 %v7266, %v7260
        %v7591 = vpack.c.b16 %v7267, %v7261
        %v7592 = vpack.c.b16 %v7268, %v7262
        %v7593 = vpack.c.b16 %v7269, %v7263
        %v7594 = vpack.c.b16 %v7270, %v7264
        %v7595 = vpack.c.b16 %v7277, %v7271
        %v7596 = vpack.c.b16 %v7278, %v7272
        %v7597 = vpack.c.b16 %v7279, %v7273
        %v7598 = vpack.c.b16 %v7280, %v7274
        %v7599 = vpack.c.b16 %v7281, %v7275
        %v7600 = vpack.c.b16 %v7282, %v7276
        %v7601 = vpack.c.b16 %v7289, %v7283
        %v7602 = vpack.c.b16 %v7290, %v7284
        %v7603 = vpack.c.b16 %v7291, %v7285
        %v7604 = vpack.c.b16 %v7292, %v7286
        %v7605 = vpack.c.b16 %v7293, %v7287
        %v7606 = vpack.c.b16 %v7294, %v7288
        %v7607 = vpack.c.b16 %v7301, %v7295
        %v7608 = vpack.c.b16 %v7302, %v7296
        %v7609 = vpack.c.b16 %v7303, %v7297
        %v7610 = vpack.c.b16 %v7304, %v7298
        %v7611 = vpack.c.b16 %v7305, %v7299
        %v7612 = vpack.c.b16 %v7306, %v7300
        %v7613 = vpack.c.b16 %v7313, %v7307
        %v7614 = vpack.c.b16 %v7314, %v7308
        %v7615 = vpack.c.b16 %v7315, %v7309
        %v7616 = vpack.c.b16 %v7316, %v7310
        %v7617 = vpack.c.b16 %v7317, %v7311
        %v7618 = vpack.c.b16 %v7318, %v7312
        %v7619 = vpack.c.b16 %v7325, %v7319
        %v7620 = vpack.c.b16 %v7326, %v7320
        %v7621 = vpack.c.b16 %v7327, %v7321
        %v7622 = vpack.c.b16 %v7328, %v7322
        %v7623 = vpack.c.b16 %v7329, %v7323
        %v7624 = vpack.c.b16 %v7330, %v7324
        %v7625 = vpack.c.b16 %v7337, %v7331
        %v7626 = vpack.c.b16 %v7338, %v7332
        %v7627 = vpack.c.b16 %v7339, %v7333
        %v7628 = vpack.c.b16 %v7340, %v7334
        %v7629 = vpack.c.b16 %v7341, %v7335
        %v7630 = vpack.c.b16 %v7342, %v7336
        %7919 = vmatprep.subr.bf16.mxu0 %v7344
        %7920 = vmatpush1.bf16.msra.mxu0 %v7343
        %7921 = vmatprep.subr.bf16.mxu0 %v7350
        %7922 = vmatpush1.bf16.msra.mxu0 %v7349
        %7923 = vmatprep.subr.bf16.mxu0 %v7356
        %7924 = vmatpush1.bf16.msra.mxu0 %v7355
        %7925 = vmatprep.subr.bf16.mxu0 %v7362
        %7926 = vmatpush1.bf16.msra.mxu0 %v7361
        %7927 = vmatprep.subr.bf16.mxu0 %v7368
        %7928 = vmatpush1.bf16.msra.mxu0 %v7367
        %7929 = vmatprep.subr.bf16.mxu0 %v7374
        %7930 = vmatpush1.bf16.msra.mxu0 %v7373
        %7931 = vmatprep.subr.bf16.mxu0 %v7380
        %7932 = vmatpush1.bf16.msra.mxu0 %v7379
        %7933 = vmatprep.subr.bf16.mxu0 %v7386
        %7934 = vmatpush1.bf16.msra.mxu0 %v7385
        %7935 = vmatprep.subr.bf16.mxu0 %v7392
        %7936 = vmatpush1.bf16.msra.mxu0 %v7391
        %7937 = vmatprep.subr.bf16.mxu0 %v7398
        %7938 = vmatpush1.bf16.msra.mxu0 %v7397
        %7939 = vmatprep.subr.bf16.mxu0 %v7404
        %7940 = vmatpush1.bf16.msra.mxu0 %v7403
        %7941 = vmatprep.subr.bf16.mxu0 %v7410
        %7942 = vmatpush1.bf16.msra.mxu0 %v7409
        %7943 = vmatprep.subr.bf16.mxu0 %v7416
        %7944 = vmatpush1.bf16.msra.mxu0 %v7415
        %7945 = vmatprep.subr.bf16.mxu0 %v7422
        %7946 = vmatpush1.bf16.msra.mxu0 %v7421
        %7947 = vmatprep.subr.bf16.mxu0 %v7428
        %7948 = vmatpush1.bf16.msra.mxu0 %v7427
        %7949 = vmatprep.subr.bf16.mxu0 %v7434
        %7950 = vmatpush1.bf16.msra.mxu0 %v7433
        %7951 = vmatprep.mubr.bf16.mxu0 %v6040
        %7952 = vmatmul.mubr.bf16.gmra.mrb[0].mxu0 %v6039
        %v7953 = vpop.f32.mrb[0].mxu0
        %v7954 = vadd.f32 0.0, %v7953
        %v7955 = vpop.f32.mrb[0].mxu0
        %v7956 = vadd.f32 0.0, %v7955
        %v7957 = vpop.f32.mrb[0].mxu0
        %v7958 = vpop.f32.mrb[0].mxu0
        %7959 = vdwg.mxu0
        %7960 = vmatprep.subr.bf16.mxu0 %v7440
        %7961 = vmatpush1.bf16.msra.mxu0 %v7439
        %7962 = vmatprep.subr.bf16.mxu0 %v7446
        %7963 = vmatpush1.bf16.msra.mxu0 %v7445
        %7964 = vmatprep.subr.bf16.mxu0 %v7452
        %7965 = vmatpush1.bf16.msra.mxu0 %v7451
        %7966 = vmatprep.subr.bf16.mxu0 %v7458
        %7967 = vmatpush1.bf16.msra.mxu0 %v7457
        %7968 = vmatprep.subr.bf16.mxu0 %v7464
        %7969 = vmatpush1.bf16.msra.mxu0 %v7463
        %7970 = vmatprep.subr.bf16.mxu0 %v7470
        %7971 = vmatpush1.bf16.msra.mxu0 %v7469
        %7972 = vmatprep.subr.bf16.mxu0 %v7476
        %7973 = vmatpush1.bf16.msra.mxu0 %v7475
        %7974 = vmatprep.subr.bf16.mxu0 %v7482
        %7975 = vmatpush1.bf16.msra.mxu0 %v7481
        %7976 = vmatprep.subr.bf16.mxu0 %v7488
        %7977 = vmatpush1.bf16.msra.mxu0 %v7487
        %7978 = vmatprep.subr.bf16.mxu0 %v7494
        %7979 = vmatpush1.bf16.msra.mxu0 %v7493
        %7980 = vmatprep.subr.bf16.mxu0 %v7500
        %7981 = vmatpush1.bf16.msra.mxu0 %v7499
        %7982 = vmatprep.subr.bf16.mxu0 %v7506
        %7983 = vmatpush1.bf16.msra.mxu0 %v7505
        %7984 = vmatprep.subr.bf16.mxu0 %v7512
        %7985 = vmatpush1.bf16.msra.mxu0 %v7511
        %7986 = vmatprep.subr.bf16.mxu0 %v7518
        %7987 = vmatpush1.bf16.msra.mxu0 %v7517
        %7988 = vmatprep.subr.bf16.mxu0 %v7524
        %7989 = vmatpush1.bf16.msra.mxu0 %v7523
        %7990 = vmatprep.subr.bf16.mxu0 %v7530
        %7991 = vmatpush1.bf16.msra.mxu0 %v7529
        %7992 = vmatprep.mubr.bf16.mxu0 %v6042
        %7993 = vmatmul.mubr.bf16.gmra.mrb[0].mxu0 %v6041
        %v7994 = vpop.f32.mrb[0].mxu0
        %v7995 = vadd.f32 %v7954, %v7994
        %v7996 = vpop.f32.mrb[0].mxu0
        %v7997 = vadd.f32 %v7956, %v7996
        %v7998 = vpop.f32.mrb[0].mxu0
        %v7999 = vpop.f32.mrb[0].mxu0
        %8000 = vdwg.mxu0
        %8001 = vmatprep.subr.bf16.mxu0 %v7536
        %8002 = vmatpush1.bf16.msra.mxu0 %v7535
        %8003 = vmatprep.subr.bf16.mxu0 %v7542
        %8004 = vmatpush1.bf16.msra.mxu0 %v7541
        %8005 = vmatprep.subr.bf16.mxu0 %v7548
        %8006 = vmatpush1.bf16.msra.mxu0 %v7547
        %8007 = vmatprep.subr.bf16.mxu0 %v7554
        %8008 = vmatpush1.bf16.msra.mxu0 %v7553
        %8009 = vmatprep.subr.bf16.mxu0 %v7560
        %8010 = vmatpush1.bf16.msra.mxu0 %v7559
        %8011 = vmatprep.subr.bf16.mxu0 %v7566
        %8012 = vmatpush1.bf16.msra.mxu0 %v7565
        %8013 = vmatprep.subr.bf16.mxu0 %v7572
        %8014 = vmatpush1.bf16.msra.mxu0 %v7571
        %8015 = vmatprep.subr.bf16.mxu0 %v7578
        %8016 = vmatpush1.bf16.msra.mxu0 %v7577
        %8017 = vmatprep.subr.bf16.mxu0 %v7584
        %8018 = vmatpush1.bf16.msra.mxu0 %v7583
        %8019 = vmatprep.subr.bf16.mxu0 %v7590
        %8020 = vmatpush1.bf16.msra.mxu0 %v7589
        %8021 = vmatprep.subr.bf16.mxu0 %v7596
        %8022 = vmatpush1.bf16.msra.mxu0 %v7595
        %8023 = vmatprep.subr.bf16.mxu0 %v7602
        %8024 = vmatpush1.bf16.msra.mxu0 %v7601
        %8025 = vmatprep.subr.bf16.mxu0 %v7608
        %8026 = vmatpush1.bf16.msra.mxu0 %v7607
        %8027 = vmatprep.subr.bf16.mxu0 %v7614
        %8028 = vmatpush1.bf16.msra.mxu0 %v7613
        %8029 = vmatprep.subr.bf16.mxu0 %v7620
        %8030 = vmatpush1.bf16.msra.mxu0 %v7619
        %8031 = vmatprep.subr.bf16.mxu0 %v7626
        %8032 = vmatpush1.bf16.msra.mxu0 %v7625
        %8033 = vmatprep.mubr.bf16.mxu0 %v6044
        %8034 = vmatmul.mubr.bf16.gmra.mrb[0].mxu0 %v6043
        %v8035 = vpop.f32.mrb[0].mxu0
        %v8036 = vadd.f32 %v7995, %v8035
        %v8037 = vpop.f32.mrb[0].mxu0
        %v8038 = vadd.f32 %v7997, %v8037
        %v8039 = vpop.f32.mrb[0].mxu0
        %v8040 = vpop.f32.mrb[0].mxu0
        %8041 = vdwg.mxu0
        %8042 = vmatprep.subr.bf16.mxu0 %v7346
        %8043 = vmatpush1.bf16.msra.mxu0 %v7345
        %8044 = vmatprep.subr.bf16.mxu0 %v7352
        %8045 = vmatpush1.bf16.msra.mxu0 %v7351
        %8046 = vmatprep.subr.bf16.mxu0 %v7358
        %8047 = vmatpush1.bf16.msra.mxu0 %v7357
        %8048 = vmatprep.subr.bf16.mxu0 %v7364
        %8049 = vmatpush1.bf16.msra.mxu0 %v7363
        %8050 = vmatprep.subr.bf16.mxu0 %v7370
        %8051 = vmatpush1.bf16.msra.mxu0 %v7369
        %8052 = vmatprep.subr.bf16.mxu0 %v7376
        %8053 = vmatpush1.bf16.msra.mxu0 %v7375
        %8054 = vmatprep.subr.bf16.mxu0 %v7382
        %8055 = vmatpush1.bf16.msra.mxu0 %v7381
        %8056 = vmatprep.subr.bf16.mxu0 %v7388
        %8057 = vmatpush1.bf16.msra.mxu0 %v7387
        %8058 = vmatprep.subr.bf16.mxu0 %v7394
        %8059 = vmatpush1.bf16.msra.mxu0 %v7393
        %8060 = vmatprep.subr.bf16.mxu0 %v7400
        %8061 = vmatpush1.bf16.msra.mxu0 %v7399
        %8062 = vmatprep.subr.bf16.mxu0 %v7406
        %8063 = vmatpush1.bf16.msra.mxu0 %v7405
        %8064 = vmatprep.subr.bf16.mxu0 %v7412
        %8065 = vmatpush1.bf16.msra.mxu0 %v7411
        %8066 = vmatprep.subr.bf16.mxu0 %v7418
        %8067 = vmatpush1.bf16.msra.mxu0 %v7417
        %8068 = vmatprep.subr.bf16.mxu0 %v7424
        %8069 = vmatpush1.bf16.msra.mxu0 %v7423
        %8070 = vmatprep.subr.bf16.mxu0 %v7430
        %8071 = vmatpush1.bf16.msra.mxu0 %v7429
        %8072 = vmatprep.subr.bf16.mxu0 %v7436
        %8073 = vmatpush1.bf16.msra.mxu0 %v7435
        %8074 = vmatprep.mubr.bf16.mxu0 %v6040
        %8075 = vmatmul.mubr.bf16.gmra.mrb[0].mxu0 %v6039
        %v8076 = vpop.f32.mrb[0].mxu0
        %v8077 = vadd.f32 0.0, %v8076
        %v8078 = vpop.f32.mrb[0].mxu0
        %v8079 = vadd.f32 0.0, %v8078
        %v8080 = vpop.f32.mrb[0].mxu0
        %v8081 = vpop.f32.mrb[0].mxu0
        %8082 = vdwg.mxu0
        %8083 = vmatprep.subr.bf16.mxu0 %v7442
        %8084 = vmatpush1.bf16.msra.mxu0 %v7441
        %8085 = vmatprep.subr.bf16.mxu0 %v7448
        %8086 = vmatpush1.bf16.msra.mxu0 %v7447
        %8087 = vmatprep.subr.bf16.mxu0 %v7454
        %8088 = vmatpush1.bf16.msra.mxu0 %v7453
        %8089 = vmatprep.subr.bf16.mxu0 %v7460
        %8090 = vmatpush1.bf16.msra.mxu0 %v7459
        %8091 = vmatprep.subr.bf16.mxu0 %v7466
        %8092 = vmatpush1.bf16.msra.mxu0 %v7465
        %8093 = vmatprep.subr.bf16.mxu0 %v7472
        %8094 = vmatpush1.bf16.msra.mxu0 %v7471
        %8095 = vmatprep.subr.bf16.mxu0 %v7478
        %8096 = vmatpush1.bf16.msra.mxu0 %v7477
        %8097 = vmatprep.subr.bf16.mxu0 %v7484
        %8098 = vmatpush1.bf16.msra.mxu0 %v7483
        %8099 = vmatprep.subr.bf16.mxu0 %v7490
        %8100 = vmatpush1.bf16.msra.mxu0 %v7489
        %8101 = vmatprep.subr.bf16.mxu0 %v7496
        %8102 = vmatpush1.bf16.msra.mxu0 %v7495
        %8103 = vmatprep.subr.bf16.mxu0 %v7502
        %8104 = vmatpush1.bf16.msra.mxu0 %v7501
        %8105 = vmatprep.subr.bf16.mxu0 %v7508
        %8106 = vmatpush1.bf16.msra.mxu0 %v7507
        %8107 = vmatprep.subr.bf16.mxu0 %v7514
        %8108 = vmatpush1.bf16.msra.mxu0 %v7513
        %8109 = vmatprep.subr.bf16.mxu0 %v7520
        %8110 = vmatpush1.bf16.msra.mxu0 %v7519
        %8111 = vmatprep.subr.bf16.mxu0 %v7526
        %8112 = vmatpush1.bf16.msra.mxu0 %v7525
        %8113 = vmatprep.subr.bf16.mxu0 %v7532
        %8114 = vmatpush1.bf16.msra.mxu0 %v7531
        %8115 = vmatprep.mubr.bf16.mxu0 %v6042
        %8116 = vmatmul.mubr.bf16.gmra.mrb[0].mxu0 %v6041
        %v8117 = vpop.f32.mrb[0].mxu0
        %v8118 = vadd.f32 %v8077, %v8117
        %v8119 = vpop.f32.mrb[0].mxu0
        %v8120 = vadd.f32 %v8079, %v8119
        %v8121 = vpop.f32.mrb[0].mxu0
        %v8122 = vpop.f32.mrb[0].mxu0
        %8123 = vdwg.mxu0
        %8124 = vmatprep.subr.bf16.mxu0 %v7538
        %8125 = vmatpush1.bf16.msra.mxu0 %v7537
        %8126 = vmatprep.subr.bf16.mxu0 %v7544
        %8127 = vmatpush1.bf16.msra.mxu0 %v7543
        %8128 = vmatprep.subr.bf16.mxu0 %v7550
        %8129 = vmatpush1.bf16.msra.mxu0 %v7549
        %8130 = vmatprep.subr.bf16.mxu0 %v7556
        %8131 = vmatpush1.bf16.msra.mxu0 %v7555
        %8132 = vmatprep.subr.bf16.mxu0 %v7562
        %8133 = vmatpush1.bf16.msra.mxu0 %v7561
        %8134 = vmatprep.subr.bf16.mxu0 %v7568
        %8135 = vmatpush1.bf16.msra.mxu0 %v7567
        %8136 = vmatprep.subr.bf16.mxu0 %v7574
        %8137 = vmatpush1.bf16.msra.mxu0 %v7573
        %8138 = vmatprep.subr.bf16.mxu0 %v7580
        %8139 = vmatpush1.bf16.msra.mxu0 %v7579
        %8140 = vmatprep.subr.bf16.mxu0 %v7586
        %8141 = vmatpush1.bf16.msra.mxu0 %v7585
        %8142 = vmatprep.subr.bf16.mxu0 %v7592
        %8143 = vmatpush1.bf16.msra.mxu0 %v7591
        %8144 = vmatprep.subr.bf16.mxu0 %v7598
        %8145 = vmatpush1.bf16.msra.mxu0 %v7597
        %8146 = vmatprep.subr.bf16.mxu0 %v7604
        %8147 = vmatpush1.bf16.msra.mxu0 %v7603
        %8148 = vmatprep.subr.bf16.mxu0 %v7610
        %8149 = vmatpush1.bf16.msra.mxu0 %v7609
        %8150 = vmatprep.subr.bf16.mxu0 %v7616
        %8151 = vmatpush1.bf16.msra.mxu0 %v7615
        %8152 = vmatprep.subr.bf16.mxu0 %v7622
        %8153 = vmatpush1.bf16.msra.mxu0 %v7621
        %8154 = vmatprep.subr.bf16.mxu0 %v7628
        %8155 = vmatpush1.bf16.msra.mxu0 %v7627
        %8156 = vmatprep.mubr.bf16.mxu0 %v6044
        %8157 = vmatmul.mubr.bf16.gmra.mrb[0].mxu0 %v6043
        %v8158 = vpop.f32.mrb[0].mxu0
        %v8159 = vadd.f32 %v8118, %v8158
        %v8160 = vpop.f32.mrb[0].mxu0
        %v8161 = vadd.f32 %v8120, %v8160
        %v8162 = vpop.f32.mrb[0].mxu0
        %v8163 = vpop.f32.mrb[0].mxu0
        %8164 = vdwg.mxu0
        %8165 = vmatprep.subr.bf16.mxu0 %v7348
        %8166 = vmatpush1.bf16.msra.mxu0 %v7347
        %8167 = vmatprep.subr.bf16.mxu0 %v7354
        %8168 = vmatpush1.bf16.msra.mxu0 %v7353
        %8169 = vmatprep.subr.bf16.mxu0 %v7360
        %8170 = vmatpush1.bf16.msra.mxu0 %v7359
        %8171 = vmatprep.subr.bf16.mxu0 %v7366
        %8172 = vmatpush1.bf16.msra.mxu0 %v7365
        %8173 = vmatprep.subr.bf16.mxu0 %v7372
        %8174 = vmatpush1.bf16.msra.mxu0 %v7371
        %8175 = vmatprep.subr.bf16.mxu0 %v7378
        %8176 = vmatpush1.bf16.msra.mxu0 %v7377
        %8177 = vmatprep.subr.bf16.mxu0 %v7384
        %8178 = vmatpush1.bf16.msra.mxu0 %v7383
        %8179 = vmatprep.subr.bf16.mxu0 %v7390
        %8180 = vmatpush1.bf16.msra.mxu0 %v7389
        %8181 = vmatprep.subr.bf16.mxu0 %v7396
        %8182 = vmatpush1.bf16.msra.mxu0 %v7395
        %8183 = vmatprep.subr.bf16.mxu0 %v7402
        %8184 = vmatpush1.bf16.msra.mxu0 %v7401
        %8185 = vmatprep.subr.bf16.mxu0 %v7408
        %8186 = vmatpush1.bf16.msra.mxu0 %v7407
        %8187 = vmatprep.subr.bf16.mxu0 %v7414
        %8188 = vmatpush1.bf16.msra.mxu0 %v7413
        %8189 = vmatprep.subr.bf16.mxu0 %v7420
        %8190 = vmatpush1.bf16.msra.mxu0 %v7419
        %8191 = vmatprep.subr.bf16.mxu0 %v7426
        %8192 = vmatpush1.bf16.msra.mxu0 %v7425
        %8193 = vmatprep.subr.bf16.mxu0 %v7432
        %8194 = vmatpush1.bf16.msra.mxu0 %v7431
        %8195 = vmatprep.subr.bf16.mxu0 %v7438
        %8196 = vmatpush1.bf16.msra.mxu0 %v7437
        %8197 = vmatprep.mubr.bf16.mxu0 %v6040
        %8198 = vmatmul.mubr.bf16.gmra.mrb[0].mxu0 %v6039
        %v8199 = vpop.f32.mrb[0].mxu0
        %v8200 = vadd.f32 0.0, %v8199
        %v8201 = vpop.f32.mrb[0].mxu0
        %v8202 = vadd.f32 0.0, %v8201
        %v8203 = vpop.f32.mrb[0].mxu0
        %v8204 = vpop.f32.mrb[0].mxu0
        %8205 = vdwg.mxu0
        %8206 = vmatprep.subr.bf16.mxu0 %v7444
        %8207 = vmatpush1.bf16.msra.mxu0 %v7443
        %8208 = vmatprep.subr.bf16.mxu0 %v7450
        %8209 = vmatpush1.bf16.msra.mxu0 %v7449
        %8210 = vmatprep.subr.bf16.mxu0 %v7456
        %8211 = vmatpush1.bf16.msra.mxu0 %v7455
        %8212 = vmatprep.subr.bf16.mxu0 %v7462
        %8213 = vmatpush1.bf16.msra.mxu0 %v7461
        %8214 = vmatprep.subr.bf16.mxu0 %v7468
        %8215 = vmatpush1.bf16.msra.mxu0 %v7467
        %8216 = vmatprep.subr.bf16.mxu0 %v7474
        %8217 = vmatpush1.bf16.msra.mxu0 %v7473
        %8218 = vmatprep.subr.bf16.mxu0 %v7480
        %8219 = vmatpush1.bf16.msra.mxu0 %v7479
        %8220 = vmatprep.subr.bf16.mxu0 %v7486
        %8221 = vmatpush1.bf16.msra.mxu0 %v7485
        %8222 = vmatprep.subr.bf16.mxu0 %v7492
        %8223 = vmatpush1.bf16.msra.mxu0 %v7491
        %8224 = vmatprep.subr.bf16.mxu0 %v7498
        %8225 = vmatpush1.bf16.msra.mxu0 %v7497
        %8226 = vmatprep.subr.bf16.mxu0 %v7504
        %8227 = vmatpush1.bf16.msra.mxu0 %v7503
        %8228 = vmatprep.subr.bf16.mxu0 %v7510
        %8229 = vmatpush1.bf16.msra.mxu0 %v7509
        %8230 = vmatprep.subr.bf16.mxu0 %v7516
        %8231 = vmatpush1.bf16.msra.mxu0 %v7515
        %8232 = vmatprep.subr.bf16.mxu0 %v7522
        %8233 = vmatpush1.bf16.msra.mxu0 %v7521
        %8234 = vmatprep.subr.bf16.mxu0 %v7528
        %8235 = vmatpush1.bf16.msra.mxu0 %v7527
        %8236 = vmatprep.subr.bf16.mxu0 %v7534
        %8237 = vmatpush1.bf16.msra.mxu0 %v7533
        %8238 = vmatprep.mubr.bf16.mxu0 %v6042
        %8239 = vmatmul.mubr.bf16.gmra.mrb[0].mxu0 %v6041
        %v8240 = vpop.f32.mrb[0].mxu0
        %v8241 = vadd.f32 %v8200, %v8240
        %v8242 = vpop.f32.mrb[0].mxu0
        %v8243 = vadd.f32 %v8202, %v8242
        %v8244 = vpop.f32.mrb[0].mxu0
        %v8245 = vpop.f32.mrb[0].mxu0
        %8246 = vdwg.mxu0
        %8247 = vmatprep.subr.bf16.mxu0 %v7540
        %8248 = vmatpush1.bf16.msra.mxu0 %v7539
        %8249 = vmatprep.subr.bf16.mxu0 %v7546
        %8250 = vmatpush1.bf16.msra.mxu0 %v7545
        %8251 = vmatprep.subr.bf16.mxu0 %v7552
        %8252 = vmatpush1.bf16.msra.mxu0 %v7551
        %8253 = vmatprep.subr.bf16.mxu0 %v7558
        %8254 = vmatpush1.bf16.msra.mxu0 %v7557
        %8255 = vmatprep.subr.bf16.mxu0 %v7564
        %8256 = vmatpush1.bf16.msra.mxu0 %v7563
        %8257 = vmatprep.subr.bf16.mxu0 %v7570
        %8258 = vmatpush1.bf16.msra.mxu0 %v7569
        %8259 = vmatprep.subr.bf16.mxu0 %v7576
        %8260 = vmatpush1.bf16.msra.mxu0 %v7575
        %8261 = vmatprep.subr.bf16.mxu0 %v7582
        %8262 = vmatpush1.bf16.msra.mxu0 %v7581
        %8263 = vmatprep.subr.bf16.mxu0 %v7588
        %8264 = vmatpush1.bf16.msra.mxu0 %v7587
        %8265 = vmatprep.subr.bf16.mxu0 %v7594
        %8266 = vmatpush1.bf16.msra.mxu0 %v7593
        %8267 = vmatprep.subr.bf16.mxu0 %v7600
        %8268 = vmatpush1.bf16.msra.mxu0 %v7599
        %8269 = vmatprep.subr.bf16.mxu0 %v7606
        %8270 = vmatpush1.bf16.msra.mxu0 %v7605
        %8271 = vmatprep.subr.bf16.mxu0 %v7612
        %8272 = vmatpush1.bf16.msra.mxu0 %v7611
        %8273 = vmatprep.subr.bf16.mxu0 %v7618
        %8274 = vmatpush1.bf16.msra.mxu0 %v7617
        %8275 = vmatprep.subr.bf16.mxu0 %v7624
        %8276 = vmatpush1.bf16.msra.mxu0 %v7623
        %8277 = vmatprep.subr.bf16.mxu0 %v7630
        %8278 = vmatpush1.bf16.msra.mxu0 %v7629
        %8279 = vmatprep.mubr.bf16.mxu0 %v6044
        %8280 = vmatmul.mubr.bf16.gmra.mrb[0].mxu0 %v6043
        %v8281 = vpop.f32.mrb[0].mxu0
        %v8282 = vadd.f32 %v8241, %v8281
        %v8283 = vpop.f32.mrb[0].mxu0
        %v8284 = vadd.f32 %v8243, %v8283
        %v8285 = vpop.f32.mrb[0].mxu0
        %v8286 = vpop.f32.mrb[0].mxu0
        %8287 = vdwg.mxu0
        %v8432 = vunpack.c.l.b16 %v6046
        %v8433 = vunpack.c.h.b16 %v6046
        %v8434 = vunpack.c.l.b16 %v6047
        %v8435 = vunpack.c.h.b16 %v6047
        %v8436 = vunpack.c.l.b16 %v6048
        %v8437 = vunpack.c.h.b16 %v6048
        %v8438 = vunpack.c.l.b16 %v6049
        %v8439 = vunpack.c.h.b16 %v6049
        %v8440 = vunpack.c.l.b16 %v6050
        %v8441 = vunpack.c.h.b16 %v6050
        %v8442 = vunpack.c.l.b16 %v6051
        %v8443 = vunpack.c.h.b16 %v6051
        %v8444 = vunpack.c.l.b16 %v6052
        %v8445 = vunpack.c.h.b16 %v6052
        %v8446 = vunpack.c.l.b16 %v6053
        %v8447 = vunpack.c.h.b16 %v6053
        %v8448 = vunpack.c.l.b16 %v6054
        %v8449 = vunpack.c.h.b16 %v6054
        %v8450 = vunpack.c.l.b16 %v6055
        %v8451 = vunpack.c.h.b16 %v6055
        %v8452 = vunpack.c.l.b16 %v6056
        %v8453 = vunpack.c.h.b16 %v6056
        %v8454 = vunpack.c.l.b16 %v6057
        %v8455 = vunpack.c.h.b16 %v6057
        %v8456 = vunpack.c.l.b16 %v6058
        %v8457 = vunpack.c.h.b16 %v6058
        %v8458 = vunpack.c.l.b16 %v6059
        %v8459 = vunpack.c.h.b16 %v6059
        %v8460 = vunpack.c.l.b16 %v6060
        %v8461 = vunpack.c.h.b16 %v6060
        %v8462 = vunpack.c.l.b16 %v6061
        %v8463 = vunpack.c.h.b16 %v6061
        %v8464 = vunpack.c.l.b16 %v6062
        %v8465 = vunpack.c.h.b16 %v6062
        %v8466 = vunpack.c.l.b16 %v6063
        %v8467 = vunpack.c.h.b16 %v6063
        %v8468 = vunpack.c.l.b16 %v6064
        %v8469 = vunpack.c.h.b16 %v6064
        %v8470 = vunpack.c.l.b16 %v6065
        %v8471 = vunpack.c.h.b16 %v6065
        %v8472 = vunpack.c.l.b16 %v6066
        %v8473 = vunpack.c.h.b16 %v6066
        %v8474 = vunpack.c.l.b16 %v6067
        %v8475 = vunpack.c.h.b16 %v6067
        %v8476 = vunpack.c.l.b16 %v6068
        %v8477 = vunpack.c.h.b16 %v6068
        %v8478 = vunpack.c.l.b16 %v6069
        %v8479 = vunpack.c.h.b16 %v6069
        %v8480 = vunpack.c.l.b16 %v6070
        %v8481 = vunpack.c.h.b16 %v6070
        %v8482 = vunpack.c.l.b16 %v6071
        %v8483 = vunpack.c.h.b16 %v6071
        %v8484 = vunpack.c.l.b16 %v6072
        %v8485 = vunpack.c.h.b16 %v6072
        %v8486 = vunpack.c.l.b16 %v6073
        %v8487 = vunpack.c.h.b16 %v6073
        %v8488 = vunpack.c.l.b16 %v6074
        %v8489 = vunpack.c.h.b16 %v6074
        %v8490 = vunpack.c.l.b16 %v6075
        %v8491 = vunpack.c.h.b16 %v6075
        %v8492 = vunpack.c.l.b16 %v6076
        %v8493 = vunpack.c.h.b16 %v6076
        %v8494 = vunpack.c.l.b16 %v6077
        %v8495 = vunpack.c.h.b16 %v6077
        %v8496 = vunpack.c.l.b16 %v6078
        %v8497 = vunpack.c.h.b16 %v6078
        %v8498 = vunpack.c.l.b16 %v6079
        %v8499 = vunpack.c.h.b16 %v6079
        %v8500 = vunpack.c.l.b16 %v6080
        %v8501 = vunpack.c.h.b16 %v6080
        %v8502 = vunpack.c.l.b16 %v6081
        %v8503 = vunpack.c.h.b16 %v6081
        %v8504 = vunpack.c.l.b16 %v6082
        %v8505 = vunpack.c.h.b16 %v6082
        %v8506 = vunpack.c.l.b16 %v6083
        %v8507 = vunpack.c.h.b16 %v6083
        %v8508 = vunpack.c.l.b16 %v6084
        %v8509 = vunpack.c.h.b16 %v6084
        %v8510 = vunpack.c.l.b16 %v6085
        %v8511 = vunpack.c.h.b16 %v6085
        %v8512 = vunpack.c.l.b16 %v6086
        %v8513 = vunpack.c.h.b16 %v6086
        %v8514 = vunpack.c.l.b16 %v6087
        %v8515 = vunpack.c.h.b16 %v6087
        %v8516 = vunpack.c.l.b16 %v6088
        %v8517 = vunpack.c.h.b16 %v6088
        %v8518 = vunpack.c.l.b16 %v6089
        %v8519 = vunpack.c.h.b16 %v6089
        %v8520 = vunpack.c.l.b16 %v6090
        %v8521 = vunpack.c.h.b16 %v6090
        %v8522 = vunpack.c.l.b16 %v6091
        %v8523 = vunpack.c.h.b16 %v6091
        %v8524 = vunpack.c.l.b16 %v6092
        %v8525 = vunpack.c.h.b16 %v6092
        %v8526 = vunpack.c.l.b16 %v6093
        %v8527 = vunpack.c.h.b16 %v6093
        %v8528 = vunpack.c.l.b16 %v6094
        %v8529 = vunpack.c.h.b16 %v6094
        %v8530 = vunpack.c.l.b16 %v6095
        %v8531 = vunpack.c.h.b16 %v6095
        %v8532 = vunpack.c.l.b16 %v6096
        %v8533 = vunpack.c.h.b16 %v6096
        %v8534 = vunpack.c.l.b16 %v6097
        %v8535 = vunpack.c.h.b16 %v6097
        %v8536 = vunpack.c.l.b16 %v6098
        %v8537 = vunpack.c.h.b16 %v6098
        %v8538 = vunpack.c.l.b16 %v6099
        %v8539 = vunpack.c.h.b16 %v6099
        %v8540 = vunpack.c.l.b16 %v6100
        %v8541 = vunpack.c.h.b16 %v6100
        %v8542 = vunpack.c.l.b16 %v6101
        %v8543 = vunpack.c.h.b16 %v6101
        %v8544 = vunpack.c.l.b16 %v6102
        %v8545 = vunpack.c.h.b16 %v6102
        %v8546 = vunpack.c.l.b16 %v6103
        %v8547 = vunpack.c.h.b16 %v6103
        %v8548 = vunpack.c.l.b16 %v6104
        %v8549 = vunpack.c.h.b16 %v6104
        %v8550 = vunpack.c.l.b16 %v6105
        %v8551 = vunpack.c.h.b16 %v6105
        %v8552 = vunpack.c.l.b16 %v6106
        %v8553 = vunpack.c.h.b16 %v6106
        %v8554 = vunpack.c.l.b16 %v6107
        %v8555 = vunpack.c.h.b16 %v6107
        %v8556 = vunpack.c.l.b16 %v6108
        %v8557 = vunpack.c.h.b16 %v6108
        %v8558 = vunpack.c.l.b16 %v6109
        %v8559 = vunpack.c.h.b16 %v6109
        %v8560 = vunpack.c.l.b16 %v6110
        %v8561 = vunpack.c.h.b16 %v6110
        %v8562 = vunpack.c.l.b16 %v6111
        %v8563 = vunpack.c.h.b16 %v6111
        %v8564 = vunpack.c.l.b16 %v6112
        %v8565 = vunpack.c.h.b16 %v6112
        %v8566 = vunpack.c.l.b16 %v6113
        %v8567 = vunpack.c.h.b16 %v6113
        %v8568 = vunpack.c.l.b16 %v6114
        %v8569 = vunpack.c.h.b16 %v6114
        %v8570 = vunpack.c.l.b16 %v6115
        %v8571 = vunpack.c.h.b16 %v6115
        %v8572 = vunpack.c.l.b16 %v6116
        %v8573 = vunpack.c.h.b16 %v6116
        %v8574 = vunpack.c.l.b16 %v6117
        %v8575 = vunpack.c.h.b16 %v6117
        %v8576 = vunpack.c.l.b16 %v6118
        %v8577 = vunpack.c.h.b16 %v6118
        %v8578 = vunpack.c.l.b16 %v6119
        %v8579 = vunpack.c.h.b16 %v6119
        %v8580 = vunpack.c.l.b16 %v6120
        %v8581 = vunpack.c.h.b16 %v6120
        %v8582 = vunpack.c.l.b16 %v6121
        %v8583 = vunpack.c.h.b16 %v6121
        %v8584 = vunpack.c.l.b16 %v6122
        %v8585 = vunpack.c.h.b16 %v6122
        %v8586 = vunpack.c.l.b16 %v6123
        %v8587 = vunpack.c.h.b16 %v6123
        %v8588 = vunpack.c.l.b16 %v6124
        %v8589 = vunpack.c.h.b16 %v6124
        %v8590 = vunpack.c.l.b16 %v6125
        %v8591 = vunpack.c.h.b16 %v6125
        %v8592 = vunpack.c.l.b16 %v6126
        %v8593 = vunpack.c.h.b16 %v6126
        %v8594 = vunpack.c.l.b16 %v6127
        %v8595 = vunpack.c.h.b16 %v6127
        %v8596 = vunpack.c.l.b16 %v6128
        %v8597 = vunpack.c.h.b16 %v6128
        %v8598 = vunpack.c.l.b16 %v6129
        %v8599 = vunpack.c.h.b16 %v6129
        %v8600 = vunpack.c.l.b16 %v6130
        %v8601 = vunpack.c.h.b16 %v6130
        %v8602 = vunpack.c.l.b16 %v6131
        %v8603 = vunpack.c.h.b16 %v6131
        %v8604 = vunpack.c.l.b16 %v6132
        %v8605 = vunpack.c.h.b16 %v6132
        %v8606 = vunpack.c.l.b16 %v6133
        %v8607 = vunpack.c.h.b16 %v6133
        %v8608 = vunpack.c.l.b16 %v6134
        %v8609 = vunpack.c.h.b16 %v6134
        %v8610 = vunpack.c.l.b16 %v6135
        %v8611 = vunpack.c.h.b16 %v6135
        %v8612 = vunpack.c.l.b16 %v6136
        %v8613 = vunpack.c.h.b16 %v6136
        %v8614 = vunpack.c.l.b16 %v6137
        %v8615 = vunpack.c.h.b16 %v6137
        %v8616 = vunpack.c.l.b16 %v6138
        %v8617 = vunpack.c.h.b16 %v6138
        %v8618 = vunpack.c.l.b16 %v6139
        %v8619 = vunpack.c.h.b16 %v6139
        %v8620 = vunpack.c.l.b16 %v6140
        %v8621 = vunpack.c.h.b16 %v6140
        %v8622 = vunpack.c.l.b16 %v6141
        %v8623 = vunpack.c.h.b16 %v6141
        %v8624 = vunpack.c.l.b16 %v6142
        %v8625 = vunpack.c.h.b16 %v6142
        %v8626 = vunpack.c.l.b16 %v6143
        %v8627 = vunpack.c.h.b16 %v6143
        %v8628 = vunpack.c.l.b16 %v6144
        %v8629 = vunpack.c.h.b16 %v6144
        %v8630 = vunpack.c.l.b16 %v6145
        %v8631 = vunpack.c.h.b16 %v6145
        %v8632 = vunpack.c.l.b16 %v6146
        %v8633 = vunpack.c.h.b16 %v6146
        %v8634 = vunpack.c.l.b16 %v6147
        %v8635 = vunpack.c.h.b16 %v6147
        %v8636 = vunpack.c.l.b16 %v6148
        %v8637 = vunpack.c.h.b16 %v6148
        %v8638 = vunpack.c.l.b16 %v6149
        %v8639 = vunpack.c.h.b16 %v6149
        %v8640 = vunpack.c.l.b16 %v6150
        %v8641 = vunpack.c.h.b16 %v6150
        %v8642 = vunpack.c.l.b16 %v6151
        %v8643 = vunpack.c.h.b16 %v6151
        %v8644 = vunpack.c.l.b16 %v6152
        %v8645 = vunpack.c.h.b16 %v6152
        %v8646 = vunpack.c.l.b16 %v6153
        %v8647 = vunpack.c.h.b16 %v6153
        %v8648 = vunpack.c.l.b16 %v6154
        %v8649 = vunpack.c.h.b16 %v6154
        %v8650 = vunpack.c.l.b16 %v6155
        %v8651 = vunpack.c.h.b16 %v6155
        %v8652 = vunpack.c.l.b16 %v6156
        %v8653 = vunpack.c.h.b16 %v6156
        %v8654 = vunpack.c.l.b16 %v6157
        %v8655 = vunpack.c.h.b16 %v6157
        %v8656 = vunpack.c.l.b16 %v6158
        %v8657 = vunpack.c.h.b16 %v6158
        %v8658 = vunpack.c.l.b16 %v6159
        %v8659 = vunpack.c.h.b16 %v6159
        %v8660 = vunpack.c.l.b16 %v6160
        %v8661 = vunpack.c.h.b16 %v6160
        %v8662 = vunpack.c.l.b16 %v6161
        %v8663 = vunpack.c.h.b16 %v6161
        %v8664 = vunpack.c.l.b16 %v6162
        %v8665 = vunpack.c.h.b16 %v6162
        %v8666 = vunpack.c.l.b16 %v6163
        %v8667 = vunpack.c.h.b16 %v6163
        %v8668 = vunpack.c.l.b16 %v6164
        %v8669 = vunpack.c.h.b16 %v6164
        %v8670 = vunpack.c.l.b16 %v6165
        %v8671 = vunpack.c.h.b16 %v6165
        %v8672 = vunpack.c.l.b16 %v6166
        %v8673 = vunpack.c.h.b16 %v6166
        %v8674 = vunpack.c.l.b16 %v6167
        %v8675 = vunpack.c.h.b16 %v6167
        %v8676 = vunpack.c.l.b16 %v6168
        %v8677 = vunpack.c.h.b16 %v6168
        %v8678 = vunpack.c.l.b16 %v6169
        %v8679 = vunpack.c.h.b16 %v6169
        %v8680 = vunpack.c.l.b16 %v6170
        %v8681 = vunpack.c.h.b16 %v6170
        %v8682 = vunpack.c.l.b16 %v6171
        %v8683 = vunpack.c.h.b16 %v6171
        %v8684 = vunpack.c.l.b16 %v6172
        %v8685 = vunpack.c.h.b16 %v6172
        %v8686 = vunpack.c.l.b16 %v6173
        %v8687 = vunpack.c.h.b16 %v6173
        %v8688 = vunpack.c.l.b16 %v6174
        %v8689 = vunpack.c.h.b16 %v6174
        %v8690 = vunpack.c.l.b16 %v6175
        %v8691 = vunpack.c.h.b16 %v6175
        %v8692 = vunpack.c.l.b16 %v6176
        %v8693 = vunpack.c.h.b16 %v6176
        %v8694 = vunpack.c.l.b16 %v6177
        %v8695 = vunpack.c.h.b16 %v6177
        %v8696 = vunpack.c.l.b16 %v6178
        %v8697 = vunpack.c.h.b16 %v6178
        %v8698 = vunpack.c.l.b16 %v6179
        %v8699 = vunpack.c.h.b16 %v6179
        %v8700 = vunpack.c.l.b16 %v6180
        %v8701 = vunpack.c.h.b16 %v6180
        %v8702 = vunpack.c.l.b16 %v6181
        %v8703 = vunpack.c.h.b16 %v6181
        %v8704 = vunpack.c.l.b16 %v6182
        %v8705 = vunpack.c.h.b16 %v6182
        %v8706 = vunpack.c.l.b16 %v6183
        %v8707 = vunpack.c.h.b16 %v6183
        %v8708 = vunpack.c.l.b16 %v6184
        %v8709 = vunpack.c.h.b16 %v6184
        %v8710 = vunpack.c.l.b16 %v6185
        %v8711 = vunpack.c.h.b16 %v6185
        %v8712 = vunpack.c.l.b16 %v6186
        %v8713 = vunpack.c.h.b16 %v6186
        %v8714 = vunpack.c.l.b16 %v6187
        %v8715 = vunpack.c.h.b16 %v6187
        %v8716 = vunpack.c.l.b16 %v6188
        %v8717 = vunpack.c.h.b16 %v6188
        %v8718 = vunpack.c.l.b16 %v6189
        %v8719 = vunpack.c.h.b16 %v6189
        %v8720 = vpack.c.b16 %v8438, %v8432
        %v8721 = vpack.c.b16 %v8439, %v8433
        %v8722 = vpack.c.b16 %v8440, %v8434
        %v8723 = vpack.c.b16 %v8441, %v8435
        %v8724 = vpack.c.b16 %v8442, %v8436
        %v8725 = vpack.c.b16 %v8443, %v8437
        %v8726 = vpack.c.b16 %v8450, %v8444
        %v8727 = vpack.c.b16 %v8451, %v8445
        %v8728 = vpack.c.b16 %v8452, %v8446
        %v8729 = vpack.c.b16 %v8453, %v8447
        %v8730 = vpack.c.b16 %v8454, %v8448
        %v8731 = vpack.c.b16 %v8455, %v8449
        %v8732 = vpack.c.b16 %v8462, %v8456
        %v8733 = vpack.c.b16 %v8463, %v8457
        %v8734 = vpack.c.b16 %v8464, %v8458
        %v8735 = vpack.c.b16 %v8465, %v8459
        %v8736 = vpack.c.b16 %v8466, %v8460
        %v8737 = vpack.c.b16 %v8467, %v8461
        %v8738 = vpack.c.b16 %v8474, %v8468
        %v8739 = vpack.c.b16 %v8475, %v8469
        %v8740 = vpack.c.b16 %v8476, %v8470
        %v8741 = vpack.c.b16 %v8477, %v8471
        %v8742 = vpack.c.b16 %v8478, %v8472
        %v8743 = vpack.c.b16 %v8479, %v8473
        %v8744 = vpack.c.b16 %v8486, %v8480
        %v8745 = vpack.c.b16 %v8487, %v8481
        %v8746 = vpack.c.b16 %v8488, %v8482
        %v8747 = vpack.c.b16 %v8489, %v8483
        %v8748 = vpack.c.b16 %v8490, %v8484
        %v8749 = vpack.c.b16 %v8491, %v8485
        %v8750 = vpack.c.b16 %v8498, %v8492
        %v8751 = vpack.c.b16 %v8499, %v8493
        %v8752 = vpack.c.b16 %v8500, %v8494
        %v8753 = vpack.c.b16 %v8501, %v8495
        %v8754 = vpack.c.b16 %v8502, %v8496
        %v8755 = vpack.c.b16 %v8503, %v8497
        %v8756 = vpack.c.b16 %v8510, %v8504
        %v8757 = vpack.c.b16 %v8511, %v8505
        %v8758 = vpack.c.b16 %v8512, %v8506
        %v8759 = vpack.c.b16 %v8513, %v8507
        %v8760 = vpack.c.b16 %v8514, %v8508
        %v8761 = vpack.c.b16 %v8515, %v8509
        %v8762 = vpack.c.b16 %v8522, %v8516
        %v8763 = vpack.c.b16 %v8523, %v8517
        %v8764 = vpack.c.b16 %v8524, %v8518
        %v8765 = vpack.c.b16 %v8525, %v8519
        %v8766 = vpack.c.b16 %v8526, %v8520
        %v8767 = vpack.c.b16 %v8527, %v8521
        %v8768 = vpack.c.b16 %v8534, %v8528
        %v8769 = vpack.c.b16 %v8535, %v8529
        %v8770 = vpack.c.b16 %v8536, %v8530
        %v8771 = vpack.c.b16 %v8537, %v8531
        %v8772 = vpack.c.b16 %v8538, %v8532
        %v8773 = vpack.c.b16 %v8539, %v8533
        %v8774 = vpack.c.b16 %v8546, %v8540
        %v8775 = vpack.c.b16 %v8547, %v8541
        %v8776 = vpack.c.b16 %v8548, %v8542
        %v8777 = vpack.c.b16 %v8549, %v8543
        %v8778 = vpack.c.b16 %v8550, %v8544
        %v8779 = vpack.c.b16 %v8551, %v8545
        %v8780 = vpack.c.b16 %v8558, %v8552
        %v8781 = vpack.c.b16 %v8559, %v8553
        %v8782 = vpack.c.b16 %v8560, %v8554
        %v8783 = vpack.c.b16 %v8561, %v8555
        %v8784 = vpack.c.b16 %v8562, %v8556
        %v8785 = vpack.c.b16 %v8563, %v8557
        %v8786 = vpack.c.b16 %v8570, %v8564
        %v8787 = vpack.c.b16 %v8571, %v8565
        %v8788 = vpack.c.b16 %v8572, %v8566
        %v8789 = vpack.c.b16 %v8573, %v8567
        %v8790 = vpack.c.b16 %v8574, %v8568
        %v8791 = vpack.c.b16 %v8575, %v8569
        %v8792 = vpack.c.b16 %v8582, %v8576
        %v8793 = vpack.c.b16 %v8583, %v8577
        %v8794 = vpack.c.b16 %v8584, %v8578
        %v8795 = vpack.c.b16 %v8585, %v8579
        %v8796 = vpack.c.b16 %v8586, %v8580
        %v8797 = vpack.c.b16 %v8587, %v8581
        %v8798 = vpack.c.b16 %v8594, %v8588
        %v8799 = vpack.c.b16 %v8595, %v8589
        %v8800 = vpack.c.b16 %v8596, %v8590
        %v8801 = vpack.c.b16 %v8597, %v8591
        %v8802 = vpack.c.b16 %v8598, %v8592
        %v8803 = vpack.c.b16 %v8599, %v8593
        %v8804 = vpack.c.b16 %v8606, %v8600
        %v8805 = vpack.c.b16 %v8607, %v8601
        %v8806 = vpack.c.b16 %v8608, %v8602
        %v8807 = vpack.c.b16 %v8609, %v8603
        %v8808 = vpack.c.b16 %v8610, %v8604
        %v8809 = vpack.c.b16 %v8611, %v8605
        %v8810 = vpack.c.b16 %v8618, %v8612
        %v8811 = vpack.c.b16 %v8619, %v8613
        %v8812 = vpack.c.b16 %v8620, %v8614
        %v8813 = vpack.c.b16 %v8621, %v8615
        %v8814 = vpack.c.b16 %v8622, %v8616
        %v8815 = vpack.c.b16 %v8623, %v8617
        %v8816 = vpack.c.b16 %v8630, %v8624
        %v8817 = vpack.c.b16 %v8631, %v8625
        %v8818 = vpack.c.b16 %v8632, %v8626
        %v8819 = vpack.c.b16 %v8633, %v8627
        %v8820 = vpack.c.b16 %v8634, %v8628
        %v8821 = vpack.c.b16 %v8635, %v8629
        %v8822 = vpack.c.b16 %v8642, %v8636
        %v8823 = vpack.c.b16 %v8643, %v8637
        %v8824 = vpack.c.b16 %v8644, %v8638
        %v8825 = vpack.c.b16 %v8645, %v8639
        %v8826 = vpack.c.b16 %v8646, %v8640
        %v8827 = vpack.c.b16 %v8647, %v8641
        %v8828 = vpack.c.b16 %v8654, %v8648
        %v8829 = vpack.c.b16 %v8655, %v8649
        %v8830 = vpack.c.b16 %v8656, %v8650
        %v8831 = vpack.c.b16 %v8657, %v8651
        %v8832 = vpack.c.b16 %v8658, %v8652
        %v8833 = vpack.c.b16 %v8659, %v8653
        %v8834 = vpack.c.b16 %v8666, %v8660
        %v8835 = vpack.c.b16 %v8667, %v8661
        %v8836 = vpack.c.b16 %v8668, %v8662
        %v8837 = vpack.c.b16 %v8669, %v8663
        %v8838 = vpack.c.b16 %v8670, %v8664
        %v8839 = vpack.c.b16 %v8671, %v8665
        %v8840 = vpack.c.b16 %v8678, %v8672
        %v8841 = vpack.c.b16 %v8679, %v8673
        %v8842 = vpack.c.b16 %v8680, %v8674
        %v8843 = vpack.c.b16 %v8681, %v8675
        %v8844 = vpack.c.b16 %v8682, %v8676
        %v8845 = vpack.c.b16 %v8683, %v8677
        %v8846 = vpack.c.b16 %v8690, %v8684
        %v8847 = vpack.c.b16 %v8691, %v8685
        %v8848 = vpack.c.b16 %v8692, %v8686
        %v8849 = vpack.c.b16 %v8693, %v8687
        %v8850 = vpack.c.b16 %v8694, %v8688
        %v8851 = vpack.c.b16 %v8695, %v8689
        %v8852 = vpack.c.b16 %v8702, %v8696
        %v8853 = vpack.c.b16 %v8703, %v8697
        %v8854 = vpack.c.b16 %v8704, %v8698
        %v8855 = vpack.c.b16 %v8705, %v8699
        %v8856 = vpack.c.b16 %v8706, %v8700
        %v8857 = vpack.c.b16 %v8707, %v8701
        %v8858 = vpack.c.b16 %v8714, %v8708
        %v8859 = vpack.c.b16 %v8715, %v8709
        %v8860 = vpack.c.b16 %v8716, %v8710
        %v8861 = vpack.c.b16 %v8717, %v8711
        %v8862 = vpack.c.b16 %v8718, %v8712
        %v8863 = vpack.c.b16 %v8719, %v8713
        %9008 = vmatprep.subr.bf16.mxu0 %v8721
        %9009 = vmatpush1.bf16.msra.mxu0 %v8720
        %9010 = vmatprep.subr.bf16.mxu0 %v8727
        %9011 = vmatpush1.bf16.msra.mxu0 %v8726
        %9012 = vmatprep.subr.bf16.mxu0 %v8733
        %9013 = vmatpush1.bf16.msra.mxu0 %v8732
        %9014 = vmatprep.subr.bf16.mxu0 %v8739
        %9015 = vmatpush1.bf16.msra.mxu0 %v8738
        %9016 = vmatprep.subr.bf16.mxu0 %v8745
        %9017 = vmatpush1.bf16.msra.mxu0 %v8744
        %9018 = vmatprep.subr.bf16.mxu0 %v8751
        %9019 = vmatpush1.bf16.msra.mxu0 %v8750
        %9020 = vmatprep.subr.bf16.mxu0 %v8757
        %9021 = vmatpush1.bf16.msra.mxu0 %v8756
        %9022 = vmatprep.subr.bf16.mxu0 %v8763
        %9023 = vmatpush1.bf16.msra.mxu0 %v8762
        %9024 = vmatprep.subr.bf16.mxu0 %v8769
        %9025 = vmatpush1.bf16.msra.mxu0 %v8768
        %9026 = vmatprep.subr.bf16.mxu0 %v8775
        %9027 = vmatpush1.bf16.msra.mxu0 %v8774
        %9028 = vmatprep.subr.bf16.mxu0 %v8781
        %9029 = vmatpush1.bf16.msra.mxu0 %v8780
        %9030 = vmatprep.subr.bf16.mxu0 %v8787
        %9031 = vmatpush1.bf16.msra.mxu0 %v8786
        %9032 = vmatprep.subr.bf16.mxu0 %v8793
        %9033 = vmatpush1.bf16.msra.mxu0 %v8792
        %9034 = vmatprep.subr.bf16.mxu0 %v8799
        %9035 = vmatpush1.bf16.msra.mxu0 %v8798
        %9036 = vmatprep.subr.bf16.mxu0 %v8805
        %9037 = vmatpush1.bf16.msra.mxu0 %v8804
        %9038 = vmatprep.subr.bf16.mxu0 %v8811
        %9039 = vmatpush1.bf16.msra.mxu0 %v8810
        %9040 = vmatprep.mubr.bf16.mxu0 %v2767
        %9041 = vmatmul.mubr.bf16.gmra.mrb[0].mxu0 %v2766
        %v9042 = vpop.f32.mrb[0].mxu0
        %v9043 = vadd.f32 %v8036, %v9042
        %v9044 = vpop.f32.mrb[0].mxu0
        %v9045 = vadd.f32 %v8038, %v9044
        %v9046 = vpop.f32.mrb[0].mxu0
        %v9047 = vpop.f32.mrb[0].mxu0
        %9048 = vdwg.mxu0
        %9049 = vmatprep.subr.bf16.mxu0 %v8817
        %9050 = vmatpush1.bf16.msra.mxu0 %v8816
        %9051 = vmatprep.subr.bf16.mxu0 %v8823
        %9052 = vmatpush1.bf16.msra.mxu0 %v8822
        %9053 = vmatprep.subr.bf16.mxu0 %v8829
        %9054 = vmatpush1.bf16.msra.mxu0 %v8828
        %9055 = vmatprep.subr.bf16.mxu0 %v8835
        %9056 = vmatpush1.bf16.msra.mxu0 %v8834
        %9057 = vmatprep.subr.bf16.mxu0 %v8841
        %9058 = vmatpush1.bf16.msra.mxu0 %v8840
        %9059 = vmatprep.subr.bf16.mxu0 %v8847
        %9060 = vmatpush1.bf16.msra.mxu0 %v8846
        %9061 = vmatprep.subr.bf16.mxu0 %v8853
        %9062 = vmatpush1.bf16.msra.mxu0 %v8852
        %9063 = vmatprep.subr.bf16.mxu0 %v8859
        %9064 = vmatpush1.bf16.msra.mxu0 %v8858
        %9065 = vmatprep.subr.bf16.mxu0 0
        %9066 = vmatpush1.bf16.msra.mxu0 0
        %9067 = vmatprep.subr.bf16.mxu0 0
        %9068 = vmatpush1.bf16.msra.mxu0 0
        %9069 = vmatprep.subr.bf16.mxu0 0
        %9070 = vmatpush1.bf16.msra.mxu0 0
        %9071 = vmatprep.subr.bf16.mxu0 0
        %9072 = vmatpush1.bf16.msra.mxu0 0
        %9073 = vmatprep.subr.bf16.mxu0 0
        %9074 = vmatpush1.bf16.msra.mxu0 0
        %9075 = vmatprep.subr.bf16.mxu0 0
        %9076 = vmatpush1.bf16.msra.mxu0 0
        %9077 = vmatprep.subr.bf16.mxu0 0
        %9078 = vmatpush1.bf16.msra.mxu0 0
        %9079 = vmatprep.subr.bf16.mxu0 0
        %9080 = vmatpush1.bf16.msra.mxu0 0
        %9081 = vmatprep.mubr.bf16.mxu0 0
        %9082 = vmatmul.mubr.bf16.gmra.mrb[0].mxu0 %v2768
        %v9083 = vpop.f32.mrb[0].mxu0
        %v9084 = vadd.f32 %v9043, %v9083
        %v9085 = vpop.f32.mrb[0].mxu0
        %v9086 = vadd.f32 %v9045, %v9085
        %v9087 = vpop.f32.mrb[0].mxu0
        %v9088 = vpop.f32.mrb[0].mxu0
        %9089 = vdwg.mxu0
        %9090 = vmatprep.subr.bf16.mxu0 %v8723
        %9091 = vmatpush1.bf16.msra.mxu0 %v8722
        %9092 = vmatprep.subr.bf16.mxu0 %v8729
        %9093 = vmatpush1.bf16.msra.mxu0 %v8728
        %9094 = vmatprep.subr.bf16.mxu0 %v8735
        %9095 = vmatpush1.bf16.msra.mxu0 %v8734
        %9096 = vmatprep.subr.bf16.mxu0 %v8741
        %9097 = vmatpush1.bf16.msra.mxu0 %v8740
        %9098 = vmatprep.subr.bf16.mxu0 %v8747
        %9099 = vmatpush1.bf16.msra.mxu0 %v8746
        %9100 = vmatprep.subr.bf16.mxu0 %v8753
        %9101 = vmatpush1.bf16.msra.mxu0 %v8752
        %9102 = vmatprep.subr.bf16.mxu0 %v8759
        %9103 = vmatpush1.bf16.msra.mxu0 %v8758
        %9104 = vmatprep.subr.bf16.mxu0 %v8765
        %9105 = vmatpush1.bf16.msra.mxu0 %v8764
        %9106 = vmatprep.subr.bf16.mxu0 %v8771
        %9107 = vmatpush1.bf16.msra.mxu0 %v8770
        %9108 = vmatprep.subr.bf16.mxu0 %v8777
        %9109 = vmatpush1.bf16.msra.mxu0 %v8776
        %9110 = vmatprep.subr.bf16.mxu0 %v8783
        %9111 = vmatpush1.bf16.msra.mxu0 %v8782
        %9112 = vmatprep.subr.bf16.mxu0 %v8789
        %9113 = vmatpush1.bf16.msra.mxu0 %v8788
        %9114 = vmatprep.subr.bf16.mxu0 %v8795
        %9115 = vmatpush1.bf16.msra.mxu0 %v8794
        %9116 = vmatprep.subr.bf16.mxu0 %v8801
        %9117 = vmatpush1.bf16.msra.mxu0 %v8800
        %9118 = vmatprep.subr.bf16.mxu0 %v8807
        %9119 = vmatpush1.bf16.msra.mxu0 %v8806
        %9120 = vmatprep.subr.bf16.mxu0 %v8813
        %9121 = vmatpush1.bf16.msra.mxu0 %v8812
        %9122 = vmatprep.mubr.bf16.mxu0 %v2767
        %9123 = vmatmul.mubr.bf16.gmra.mrb[0].mxu0 %v2766
        %v9124 = vpop.f32.mrb[0].mxu0
        %v9125 = vadd.f32 %v8159, %v9124
        %v9126 = vpop.f32.mrb[0].mxu0
        %v9127 = vadd.f32 %v8161, %v9126
        %v9128 = vpop.f32.mrb[0].mxu0
        %v9129 = vpop.f32.mrb[0].mxu0
        %9130 = vdwg.mxu0
        %9131 = vmatprep.subr.bf16.mxu0 %v8819
        %9132 = vmatpush1.bf16.msra.mxu0 %v8818
        %9133 = vmatprep.subr.bf16.mxu0 %v8825
        %9134 = vmatpush1.bf16.msra.mxu0 %v8824
        %9135 = vmatprep.subr.bf16.mxu0 %v8831
        %9136 = vmatpush1.bf16.msra.mxu0 %v8830
        %9137 = vmatprep.subr.bf16.mxu0 %v8837
        %9138 = vmatpush1.bf16.msra.mxu0 %v8836
        %9139 = vmatprep.subr.bf16.mxu0 %v8843
        %9140 = vmatpush1.bf16.msra.mxu0 %v8842
        %9141 = vmatprep.subr.bf16.mxu0 %v8849
        %9142 = vmatpush1.bf16.msra.mxu0 %v8848
        %9143 = vmatprep.subr.bf16.mxu0 %v8855
        %9144 = vmatpush1.bf16.msra.mxu0 %v8854
        %9145 = vmatprep.subr.bf16.mxu0 %v8861
        %9146 = vmatpush1.bf16.msra.mxu0 %v8860
        %9147 = vmatprep.subr.bf16.mxu0 0
        %9148 = vmatpush1.bf16.msra.mxu0 0
        %9149 = vmatprep.subr.bf16.mxu0 0
        %9150 = vmatpush1.bf16.msra.mxu0 0
        %9151 = vmatprep.subr.bf16.mxu0 0
        %9152 = vmatpush1.bf16.msra.mxu0 0
        %9153 = vmatprep.subr.bf16.mxu0 0
        %9154 = vmatpush1.bf16.msra.mxu0 0
        %9155 = vmatprep.subr.bf16.mxu0 0
        %9156 = vmatpush1.bf16.msra.mxu0 0
        %9157 = vmatprep.subr.bf16.mxu0 0
        %9158 = vmatpush1.bf16.msra.mxu0 0
        %9159 = vmatprep.subr.bf16.mxu0 0
        %9160 = vmatpush1.bf16.msra.mxu0 0
        %9161 = vmatprep.subr.bf16.mxu0 0
        %9162 = vmatpush1.bf16.msra.mxu0 0
        %9163 = vmatprep.mubr.bf16.mxu0 0
        %9164 = vmatmul.mubr.bf16.gmra.mrb[0].mxu0 %v2768
        %v9165 = vpop.f32.mrb[0].mxu0
        %v9166 = vadd.f32 %v9125, %v9165
        %v9167 = vpop.f32.mrb[0].mxu0
        %v9168 = vadd.f32 %v9127, %v9167
        %v9169 = vpop.f32.mrb[0].mxu0
        %v9170 = vpop.f32.mrb[0].mxu0
        %9171 = vdwg.mxu0
        %9172 = vmatprep.subr.bf16.mxu0 %v8725
        %9173 = vmatpush1.bf16.msra.mxu0 %v8724
        %9174 = vmatprep.subr.bf16.mxu0 %v8731
        %9175 = vmatpush1.bf16.msra.mxu0 %v8730
        %9176 = vmatprep.subr.bf16.mxu0 %v8737
        %9177 = vmatpush1.bf16.msra.mxu0 %v8736
        %9178 = vmatprep.subr.bf16.mxu0 %v8743
        %9179 = vmatpush1.bf16.msra.mxu0 %v8742
        %9180 = vmatprep.subr.bf16.mxu0 %v8749
        %9181 = vmatpush1.bf16.msra.mxu0 %v8748
        %9182 = vmatprep.subr.bf16.mxu0 %v8755
        %9183 = vmatpush1.bf16.msra.mxu0 %v8754
        %9184 = vmatprep.subr.bf16.mxu0 %v8761
        %9185 = vmatpush1.bf16.msra.mxu0 %v8760
        %9186 = vmatprep.subr.bf16.mxu0 %v8767
        %9187 = vmatpush1.bf16.msra.mxu0 %v8766
        %9188 = vmatprep.subr.bf16.mxu0 %v8773
        %9189 = vmatpush1.bf16.msra.mxu0 %v8772
        %9190 = vmatprep.subr.bf16.mxu0 %v8779
        %9191 = vmatpush1.bf16.msra.mxu0 %v8778
        %9192 = vmatprep.subr.bf16.mxu0 %v8785
        %9193 = vmatpush1.bf16.msra.mxu0 %v8784
        %9194 = vmatprep.subr.bf16.mxu0 %v8791
        %9195 = vmatpush1.bf16.msra.mxu0 %v8790
        %9196 = vmatprep.subr.bf16.mxu0 %v8797
        %9197 = vmatpush1.bf16.msra.mxu0 %v8796
        %9198 = vmatprep.subr.bf16.mxu0 %v8803
        %9199 = vmatpush1.bf16.msra.mxu0 %v8802
        %9200 = vmatprep.subr.bf16.mxu0 %v8809
        %9201 = vmatpush1.bf16.msra.mxu0 %v8808
        %9202 = vmatprep.subr.bf16.mxu0 %v8815
        %9203 = vmatpush1.bf16.msra.mxu0 %v8814
        %9204 = vmatprep.mubr.bf16.mxu0 %v2767
        %9205 = vmatmul.mubr.bf16.gmra.mrb[0].mxu0 %v2766
        %v9206 = vpop.f32.mrb[0].mxu0
        %v9207 = vadd.f32 %v8282, %v9206
        %v9208 = vpop.f32.mrb[0].mxu0
        %v9209 = vadd.f32 %v8284, %v9208
        %v9210 = vpop.f32.mrb[0].mxu0
        %v9211 = vpop.f32.mrb[0].mxu0
        %9212 = vdwg.mxu0
        %9213 = vmatprep.subr.bf16.mxu0 %v8821
        %9214 = vmatpush1.bf16.msra.mxu0 %v8820
        %9215 = vmatprep.subr.bf16.mxu0 %v8827
        %9216 = vmatpush1.bf16.msra.mxu0 %v8826
        %9217 = vmatprep.subr.bf16.mxu0 %v8833
        %9218 = vmatpush1.bf16.msra.mxu0 %v8832
        %9219 = vmatprep.subr.bf16.mxu0 %v8839
        %9220 = vmatpush1.bf16.msra.mxu0 %v8838
        %9221 = vmatprep.subr.bf16.mxu0 %v8845
        %9222 = vmatpush1.bf16.msra.mxu0 %v8844
        %9223 = vmatprep.subr.bf16.mxu0 %v8851
        %9224 = vmatpush1.bf16.msra.mxu0 %v8850
        %9225 = vmatprep.subr.bf16.mxu0 %v8857
        %9226 = vmatpush1.bf16.msra.mxu0 %v8856
        %9227 = vmatprep.subr.bf16.mxu0 %v8863
        %9228 = vmatpush1.bf16.msra.mxu0 %v8862
        %9229 = vmatprep.subr.bf16.mxu0 0
        %9230 = vmatpush1.bf16.msra.mxu0 0
        %9231 = vmatprep.subr.bf16.mxu0 0
        %9232 = vmatpush1.bf16.msra.mxu0 0
        %9233 = vmatprep.subr.bf16.mxu0 0
        %9234 = vmatpush1.bf16.msra.mxu0 0
        %9235 = vmatprep.subr.bf16.mxu0 0
        %9236 = vmatpush1.bf16.msra.mxu0 0
        %9237 = vmatprep.subr.bf16.mxu0 0
        %9238 = vmatpush1.bf16.msra.mxu0 0
        %9239 = vmatprep.subr.bf16.mxu0 0
        %9240 = vmatpush1.bf16.msra.mxu0 0
        %9241 = vmatprep.subr.bf16.mxu0 0
        %9242 = vmatpush1.bf16.msra.mxu0 0
        %9243 = vmatprep.subr.bf16.mxu0 0
        %9244 = vmatpush1.bf16.msra.mxu0 0
        %9245 = vmatprep.mubr.bf16.mxu0 0
        %9246 = vmatmul.mubr.bf16.gmra.mrb[0].mxu0 %v2768
        %v9247 = vpop.f32.mrb[0].mxu0
        %v9248 = vadd.f32 %v9207, %v9247
        %v9249 = vpop.f32.mrb[0].mxu0
        %v9250 = vadd.f32 %v9209, %v9249
        %v9251 = vpop.f32.mrb[0].mxu0
        %v9252 = vpop.f32.mrb[0].mxu0
        %9253 = vdwg.mxu0
        %s9254 = scalar_lea.vmem %s539, 6 [#allocation16]
        %v9255 = vld [vmem:[%s9254] sm:$0x3f]
        %v9257 = vlaneseq
        %v9258 = vshrl.u32 %v9257, 7
        %v9259 = vsub.s32 0, %v9258
        %v9260 = vrot.slane %v9255, %v9259
        %v9261 = vlaneseq
        %v9262 = vshrl.u32 %v9261, 7
        %v9263 = vsub.s32 1, %v9262
        %v9264 = vrot.slane %v9255, %v9263
        %v9265 = vlaneseq
        %v9266 = vshrl.u32 %v9265, 7
        %v9267 = vsub.s32 2, %v9266
        %v9268 = vrot.slane %v9255, %v9267
        %v9269 = vlaneseq
        %v9270 = vshrl.u32 %v9269, 7
        %v9271 = vsub.s32 3, %v9270
        %v9272 = vrot.slane %v9255, %v9271
        %v9273 = vlaneseq
        %v9274 = vshrl.u32 %v9273, 7
        %v9275 = vsub.s32 4, %v9274
        %v9276 = vrot.slane %v9255, %v9275
        %v9277 = vlaneseq
        %v9278 = vshrl.u32 %v9277, 7
        %v9279 = vsub.s32 5, %v9278
        %v9280 = vrot.slane %v9255, %v9279
        %v9287 = vadd.f32 %v9084, %v9260
        %v9288 = vadd.f32 %v9086, %v9264
        %v9289 = vadd.f32 %v9166, %v9268
        %v9290 = vadd.f32 %v9168, %v9272
        %v9291 = vadd.f32 %v9248, %v9276
        %v9292 = vadd.f32 %v9250, %v9280
        %s9293 = scalar_lea.vmem %s610, 48
        %9294 = vst [vmem:[%s9293] sm:$0xff] %v9287
        %9295 = vst [vmem:[%s9293 + $0x8] sm:$0xff] %v9288
        %9296 = vst [vmem:[%s9293 + $0x10] sm:$0xff] %v9289
        %9297 = vst [vmem:[%s9293 + $0x18] sm:$0xff] %v9290
        %9298 = vst [vmem:[%s9293 + $0x20] sm:$0xff] %v9291
        %9299 = vst [vmem:[%s9293 + $0x28] sm:$0xff] %v9292
        %s9300 = smul.u32 2, %s32
        %p9301 = scmp.lt.s32.totalorder %s9300, 19
        %s9302 = scalar_select %p9301, %s9300, 19
        %s9303 = smul.addr %s9302, 6
        %s9304 = smul.addr %s9303, 8
        %s9305 = scalar_lea.vmem %s11, %s9304
        // Predicated region
        $region105: #{forward.2} parent=63 // pred_check
          %p9306 = pneg %p301
        $region106: #{forward.2} parent=63 // pred_check_branch
          %9308 = sbr.rel (%p9306) target = $region108
        $region107: #{forward.2} parent=63 // pred_region
          %s9309 = smul.u32 2, %s32
        $region108: #{forward.2} parent=63 // pred_fallthru
          _
      $region64: #{forward.2} parent=5 // pred_fallthru
        _
      %p9310 = scmp.le.s32.totalorder 2, %s27
      // Predicated region
      $region109: #{forward.2} parent=5 // pred_check
        %p9311 = pneg %p9310
      $region110: #{forward.2} parent=5 // pred_check_branch
        %9313 = sbr.rel (%p9311) target = $region112
      $region111: #{forward.2} parent=5 // pred_region
        %s9314 = ssub.s32 %s27, 2
        // Predicated region
        $region113: #{forward.2} parent=111 // pred_check
          %p9315 = pneg %p307
        $region114: #{forward.2} parent=111 // pred_check_branch
          %9317 = sbr.rel (%p9315) target = $region116
        $region115: #{forward.2} parent=111 // pred_region
          %s9318 = smul.u32 2, %s33
          %p9319 = scmp.lt.s32.totalorder %s9318, 19
          %s9320 = scalar_select %p9319, %s9318, 19
          %s9321 = smul.addr %s9320, 6
          %s9322 = smul.addr %s9321, 8
          %s9323 = scalar_lea.vmem %s11, %s9322
        $region116: #{forward.2} parent=111 // pred_fallthru
          _
      $region112: #{forward.2} parent=5 // pred_fallthru
        _
    $region6: #{forward.2} parent=1 // loop_footer
      %s31 = sadd.s32 1, %s27
    $region7: #{forward.2} parent=1 // loop_footer_branch
      %26 = sbr.rel target = $region3
    $region8: #{forward.2} parent=1 // loop_exit
      _
    %9324 = vsyncpa [#allocation3], 1
    %s9325 = scalar_lea.sflag [#allocation3], 1
    %9326 = vsyncpa %s9325, 1
    %9327 = vsyncpa [#allocation5], 1
    %9328 = vsyncpa [#allocation8], 1
    %9329 = vsyncpa [#allocation11], 1
    %9330 = vsyncpa [#allocation14], 1
    %s9331 = scalar_lea.sflag [#allocation14], 1
    %9332 = vsyncpa %s9331, 1
    %9333 = vsyncpa [#allocation17], 1
    %s9334 = scalar_lea.sflag [#allocation17], 1
    %9335 = vsyncpa %s9334, 1

</llo_original>
